<compile_context>
chip_gen: v5e
topology: v5e:2x2
jax: 0.10.0
libtpu: 0.0.40
codegen_flags: <defaults>
</compile_context>

<pallas_src>
import numpy as np

import jax
import jax.numpy as jnp
from jax import lax
from jax.experimental import pallas as pl
from jax.experimental.pallas import tpu as pltpu

LANE = 128
SUBLANE = 8


def _cdiv(a, b):
    return -(-a // b)


# ---------------------------------------------------------------------------
# Pallas kernel: Gram-decomposed pairwise sorted-feature MSE (one K tile per step)
# ---------------------------------------------------------------------------
def _efdm_kernel(t_ref, s_ref, w_ref, cross_ref, t2_ref, s2_ref, pos_ref):
    """Accumulate the Gram terms of D over K tiles.

    t_ref, s_ref : (Br, TK)  rank-sorted translate / style features (f32)
    w_ref        : (1, TK)   sqrt(1/(C*H*W)) of the owning feature (0 in padding)
    cross_ref    : (Br, Br)  += sum_k w_k * T[i,k] * S[j,k]        (resident output block)
    t2_ref       : (Br, 1)   += sum_k w_k * T[i,k]^2
    s2_ref       : (Br, 1)   += sum_k w_k * S[j,k]^2
    pos_ref      : (Br, 1)   += sum_k w_k * (T[i,k] - S[i,k])^2    (direct diagonal path;
                               avoids cancellation of t2 + s2 - 2*cross when T ~= S)
    """
    k = pl.program_id(1)

    @pl.when(k == 0)
    def _init():
        cross_ref[...] = jnp.zeros_like(cross_ref)
        t2_ref[...] = jnp.zeros_like(t2_ref)
        s2_ref[...] = jnp.zeros_like(s2_ref)
        pos_ref[...] = jnp.zeros_like(pos_ref)

    w = w_ref[...]                         # (1, TK), broadcast over sublanes
    tq = t_ref[...] * w                    # weight hoisted: 1 multiply per element
    sq = s_ref[...] * w

    # O(Br*K) VPU work (row norms + direct diagonal) ...
    t2_ref[...] += jnp.sum(tq * tq, axis=1, keepdims=True)
    s2_ref[...] += jnp.sum(sq * sq, axis=1, keepdims=True)
    d = tq - sq
    pos_ref[...] += jnp.sum(d * d, axis=1, keepdims=True)

    # ... and the O(Br^2*K) cross term on the otherwise-idle MXU (f32 multi-pass).
    cross_ref[...] += lax.dot_general(
        tq, sq, (((1,), (1,)), ((), ())),
        precision=lax.Precision.HIGHEST,
        preferred_element_type=jnp.float32)


# ---------------------------------------------------------------------------
# Wrapper
# ---------------------------------------------------------------------------
def _sorted_flat(x):
    """Sort an NCHW feature over its spatial axis per (b, c) row; flatten to (B, C*H*W)."""
    x = jnp.asarray(x, jnp.float32)
    B, C, H, W = x.shape
    # TODO(synk): torch.sort/argsort has no TPU Pallas primitive; rank-matching sort stays in XLA.
    return jnp.sort(x.reshape(B, C, H * W), axis=-1).reshape(B, C * H * W)


def _choose_tiles(K, Br, tk_max):
    """Pick the K tile width (TK), the 2-way core split (NC) and tiles-per-core (NPC)."""
    if tk_max is None:
        # ~20 MiB budget for the double-buffered T/S/w input streams: keeps depth-2
        # pipelining under v7x's 32 MiB default scoped VMEM (64 MiB physical);
        # v5e/v6e (128 MiB) trivially fit.
        budget = 20 * 1024 * 1024
        tk_max = budget // (2 * (2 * Br + 1) * 4)
        tk_max = min(tk_max, 1 << 16)
    tk_max = max(LANE, (int(tk_max) // LANE) * LANE)

    kp128 = _cdiv(K, LANE) * LANE
    n_tiles = _cdiv(kp128, tk_max)
    nc = 2 if n_tiles >= 2 else 1           # split K across both v7x TensorCores when possible
    npc = _cdiv(n_tiles, nc)
    n_total = nc * npc
    tk = _cdiv(_cdiv(kp128, n_total), LANE) * LANE
    return tk, nc, npc, tk * n_total


def efdm_loss(style_E, style_S, translate_E, translate_S, neg_idx, *, tk_max=None):
    """Forward of EFDM_loss.

    style_E / translate_E and style_S / translate_S: lists of (hf, lf) pairs of NCHW arrays
    (same batch dim B).  neg_idx: length-B list of iterables of negative batch indices
    (must be non-empty for every b, as the PyTorch module assumes).
    """
    pairs = []
    for s_list, t_list in ((style_E, translate_E), (style_S, translate_S)):
        for s_lvl, t_lvl in zip(s_list, t_list):
            for s, t in zip(s_lvl, t_lvl):                 # (hf, lf)
                pairs.append((s, t))

    B = int(pairs[0][0].shape[0])
    neg_lists = [list(v) for v in neg_idx]
    assert len(neg_lists) == B
    for b in range(B):
        assert len(neg_lists[b]) > 0, "neg_idx[b] must be non-empty (module divides by neg loss)"

    s_chunks, t_chunks, w_chunks = [], [], []
    for s, t in pairs:
        _, C, H, W = s.shape
        n = C * H * W
        s_chunks.append(_sorted_flat(s))
        t_chunks.append(_sorted_flat(t))
        w_chunks.append(np.full((n,), 1.0 / np.sqrt(n), np.float32))  # sqrt of per-element MSE weight

    S = jnp.concatenate(s_chunks, axis=-1)                 # (B, K) sorted style features
    T = jnp.concatenate(t_chunks, axis=-1)                 # (B, K) sorted translate features
    w = np.concatenate(w_chunks)
    K = int(S.shape[-1])

    Br = _cdiv(B, SUBLANE) * SUBLANE                       # sublane-aligned batch (MXU-friendly)
    TK, NC, NPC, Kp = _choose_tiles(K, Br, tk_max)

    # Zero padding (rows and K columns) contributes nothing: padded values are 0 and w=0 there.
    S = jnp.pad(S, ((0, Br - B), (0, Kp - K)))
    T = jnp.pad(T, ((0, Br - B), (0, Kp - K)))
    w_pad = np.zeros((1, Kp), np.float32)
    w_pad[0, :K] = w
    W2 = jnp.asarray(w_pad)

    cross, t2, s2, pos = pl.pallas_call(
        _efdm_kernel,
        out_shape=(jax.ShapeDtypeStruct((NC, Br, Br), jnp.float32),
                   jax.ShapeDtypeStruct((NC, Br, 1), jnp.float32),
                   jax.ShapeDtypeStruct((NC, Br, 1), jnp.float32),
                   jax.ShapeDtypeStruct((NC, Br, 1), jnp.float32)),
        grid=(NC, NPC),
        in_specs=[
            pl.BlockSpec((Br, TK), lambda c, k: (0, c * NPC + k)),   # sorted translate
            pl.BlockSpec((Br, TK), lambda c, k: (0, c * NPC + k)),   # sorted style
            pl.BlockSpec((1, TK), lambda c, k: (0, c * NPC + k)),    # sqrt weights
        ],
        out_specs=[
            pl.BlockSpec((None, Br, Br), lambda c, k: (c, 0, 0)),    # per-core partial cross
            pl.BlockSpec((None, Br, 1), lambda c, k: (c, 0, 0)),     # per-core partial t2
            pl.BlockSpec((None, Br, 1), lambda c, k: (c, 0, 0)),     # per-core partial s2
            pl.BlockSpec((None, Br, 1), lambda c, k: (c, 0, 0)),     # per-core partial pos
        ],
        compiler_params=pltpu.CompilerParams(
            dimension_semantics=("parallel", "arbitrary"),
            vmem_limit_bytes=32 * 1024 * 1024),
    )(T, S, W2)

    # Tiny O(B^2) epilogue in XLA: combine the (<=2) per-core partials, rebuild the pairwise
    # distance matrix from the Gram terms and fold in the negative-pair mask.
    cross = jnp.sum(cross, axis=0)[:B, :B]
    t2 = jnp.sum(t2, axis=0)[:B, 0]
    s2 = jnp.sum(s2, axis=0)[:B, 0]
    pos = jnp.sum(pos, axis=0)[:B, 0]

    mask_np = np.zeros((B, B), np.float32)
    for b in range(B):
        for nb in neg_lists[b]:
            mask_np[b, int(nb)] += 1.0
    mask = jnp.asarray(mask_np)

    D = t2[:, None] + s2[None, :] - 2.0 * cross            # D[b_trans, b_style]
    neg = jnp.sum(D * mask, axis=1)                        # (B,)
    return jnp.sum(pos / neg)


# ---------------------------------------------------------------------------
# Pure-numpy reference (follows the PyTorch code literally, in float64)
# ---------------------------------------------------------------------------
def _efdm_single_ref(style, trans):
    B, C, H, W = style.shape
    s = style.reshape(B, C, -1).astype(np.float64)
    t = trans.reshape(B, C, -1).astype(np.float64)
    value_style = np.sort(s, axis=-1)
    index_trans = np.argsort(t, axis=-1, kind="stable")
    inverse_index = np.argsort(index_trans, axis=-1, kind="stable")
    gathered = np.take_along_axis(value_style, inverse_index, axis=-1)
    return float(np.mean((t - gathered) ** 2))


def efdm_loss_ref(style_E, style_S, translate_E, translate_S, neg_idx):
    loss = 0.0
    B = style_E[0][0].shape[0]
    for b in range(B):
        pos, neg = 0.0, 0.0
        for i in range(len(style_E)):
            for j in range(2):
                pos += _efdm_single_ref(style_E[i][j][b:b + 1], translate_E[i][j][b:b + 1])
        for i in range(len(style_S)):
            for j in range(2):
                pos += _efdm_single_ref(style_S[i][j][b:b + 1], translate_S[i][j][b:b + 1])
        for nb in neg_idx[b]:
            for i in range(len(style_E)):
                for j in range(2):
                    neg += _efdm_single_ref(style_E[i][j][nb:nb + 1], translate_E[i][j][b:b + 1])
            for i in range(len(style_S)):
                for j in range(2):
                    neg += _efdm_single_ref(style_S[i][j][nb:nb + 1], translate_S[i][j][b:b + 1])
        loss += pos / neg
    return loss


# ---------------------------------------------------------------------------
if __name__ == "__main__":
    key = jax.random.PRNGKey(0)
    B = 2
    # Encoder (E) features: two levels of (high-freq, low-freq) octave pairs, NCHW.
    shapes_E = [((B, 16, 16, 16), (B, 16, 8, 8)),
                ((B, 32, 8, 8), (B, 32, 4, 4))]
    # Style-code (S) features: one level.
    shapes_S = [((B, 32, 4, 4), (B, 32, 2, 2))]

    def make(k, shapes):
        out = []
        for hf_shape, lf_shape in shapes:
            k, k1, k2 = jax.random.split(k, 3)
            out.append((jax.random.normal(k1, hf_shape, jnp.float32),
                        jax.random.normal(k2, lf_shape, jnp.float32)))
        return k, out

    key, style_E = make(key, shapes_E)
    key, style_S = make(key, shapes_S)
    key, translate_E = make(key, shapes_E)
    key, translate_S = make(key, shapes_S)

    neg_idx = [[1], [0]]                   # each sample's negative set = the other sample

    ref = efdm_loss_ref(
        [tuple(np.asarray(x) for x in p) for p in style_E],
        [tuple(np.asarray(x) for x in p) for p in style_S],
        [tuple(np.asarray(x) for x in p) for p in translate_E],
        [tuple(np.asarray(x) for x in p) for p in translate_S],
        neg_idx)

    # 1) Default config: one large lane-dense K tile (HBM-roofline-oriented tiling).
    loss = float(jax.block_until_ready(
        efdm_loss(style_E, style_S, translate_E, translate_S, neg_idx)))
    assert np.isfinite(loss), loss
    assert abs(loss - ref) <= 1e-3 * max(1.0, abs(ref)), (loss, ref)

    # 2) Small-tile config: exercises multi-step K accumulation and the 2-way core split.
    loss_small = float(jax.block_until_ready(
        efdm_loss(style_E, style_S, translate_E, translate_S, neg_idx, tk_max=1024)))
    assert np.isfinite(loss_small), loss_small
    assert abs(loss_small - ref) <= 1e-3 * max(1.0, abs(ref)), (loss_small, ref)

    print("KERNEL_OK")
</pallas_src>

<mosaic_0001>
module attributes {stable_mosaic.version = 11 : i64} {
  func.func @_efdm_kernel(%arg0: i32, %arg1: i32, %arg2: memref<8x8320xf32, #tpu.memory_space<vmem>>, %arg3: memref<8x8320xf32, #tpu.memory_space<vmem>>, %arg4: memref<1x8320xf32, #tpu.memory_space<vmem>>, %arg5: memref<1x8x8xf32, #tpu.memory_space<vmem>>, %arg6: memref<1x8x1xf32, #tpu.memory_space<vmem>>, %arg7: memref<1x8x1xf32, #tpu.memory_space<vmem>>, %arg8: memref<1x8x1xf32, #tpu.memory_space<vmem>>) attributes {dimension_semantics = [#tpu.dimension_semantics<parallel>, #tpu.dimension_semantics<arbitrary>], iteration_bounds = array<i64: 1, 1>, scalar_prefetch = 0 : i64, scratch_operands = 0 : i64, tpu.core_type = #tpu.core_type<tc>, window_params = [{transform_indices = @transform_0, window_bounds = array<i64: 8, 8320>}, {transform_indices = @transform_1, window_bounds = array<i64: 8, 8320>}, {transform_indices = @transform_2, window_bounds = array<i64: 1, 8320>}, {transform_indices = @transform_3, window_bounds = array<i64: 1, 8, 8>}, {transform_indices = @transform_4, window_bounds = array<i64: 1, 8, 1>}, {transform_indices = @transform_5, window_bounds = array<i64: 1, 8, 1>}, {transform_indices = @transform_6, window_bounds = array<i64: 1, 8, 1>}]} {
    %c0_i32 = arith.constant 0 : i32
    %0 = arith.cmpi eq, %arg1, %c0_i32 : i32
    %1 = arith.extui %0 : i1 to i32
    %c0_i32_0 = arith.constant 0 : i32
    %2 = arith.cmpi ne, %1, %c0_i32_0 : i32
    scf.if %2 {
      %cst_33 = arith.constant 0.000000e+00 : f32
      %45 = vector.broadcast %cst_33 : f32 to vector<8x8xf32>
      %c0_34 = arith.constant 0 : index
      %c0_35 = arith.constant 0 : index
      %c0_36 = arith.constant 0 : index
      %46 = vector.load %arg5[%c0_34, %c0_35, %c0_36] : memref<1x8x8xf32, #tpu.memory_space<vmem>>, vector<1x8x8xf32>
      %47 = vector.shape_cast %46 : vector<1x8x8xf32> to vector<8x8xf32>
      %48 = vector.shape_cast %45 : vector<8x8xf32> to vector<1x8x8xf32>
      tpu.vector_store %arg5[%c0_34, %c0_35, %c0_36], %48 {strides = array<i32>} : memref<1x8x8xf32, #tpu.memory_space<vmem>>, vector<1x8x8xf32>,
      %cst_37 = arith.constant 0.000000e+00 : f32
      %49 = vector.broadcast %cst_37 : f32 to vector<8x1xf32>
      %c0_38 = arith.constant 0 : index
      %c0_39 = arith.constant 0 : index
      %c0_40 = arith.constant 0 : index
      %50 = vector.load %arg6[%c0_38, %c0_39, %c0_40] : memref<1x8x1xf32, #tpu.memory_space<vmem>>, vector<1x8x1xf32>
      %51 = vector.shape_cast %50 : vector<1x8x1xf32> to vector<8x1xf32>
      %52 = vector.shape_cast %49 : vector<8x1xf32> to vector<1x8x1xf32>
      tpu.vector_store %arg6[%c0_38, %c0_39, %c0_40], %52 {strides = array<i32>} : memref<1x8x1xf32, #tpu.memory_space<vmem>>, vector<1x8x1xf32>,
      %cst_41 = arith.constant 0.000000e+00 : f32
      %53 = vector.broadcast %cst_41 : f32 to vector<8x1xf32>
      %c0_42 = arith.constant 0 : index
      %c0_43 = arith.constant 0 : index
      %c0_44 = arith.constant 0 : index
      %54 = vector.load %arg7[%c0_42, %c0_43, %c0_44] : memref<1x8x1xf32, #tpu.memory_space<vmem>>, vector<1x8x1xf32>
      %55 = vector.shape_cast %54 : vector<1x8x1xf32> to vector<8x1xf32>
      %56 = vector.shape_cast %53 : vector<8x1xf32> to vector<1x8x1xf32>
      tpu.vector_store %arg7[%c0_42, %c0_43, %c0_44], %56 {strides = array<i32>} : memref<1x8x1xf32, #tpu.memory_space<vmem>>, vector<1x8x1xf32>,
      %cst_45 = arith.constant 0.000000e+00 : f32
      %57 = vector.broadcast %cst_45 : f32 to vector<8x1xf32>
      %c0_46 = arith.constant 0 : index
      %c0_47 = arith.constant 0 : index
      %c0_48 = arith.constant 0 : index
      %58 = vector.load %arg8[%c0_46, %c0_47, %c0_48] : memref<1x8x1xf32, #tpu.memory_space<vmem>>, vector<1x8x1xf32>
      %59 = vector.shape_cast %58 : vector<1x8x1xf32> to vector<8x1xf32>
      %60 = vector.shape_cast %57 : vector<8x1xf32> to vector<1x8x1xf32>
      tpu.vector_store %arg8[%c0_46, %c0_47, %c0_48], %60 {strides = array<i32>} : memref<1x8x1xf32, #tpu.memory_space<vmem>>, vector<1x8x1xf32>,
    } else {
    }
    %c0 = arith.constant 0 : index
    %c0_1 = arith.constant 0 : index
    %3 = vector.load %arg4[%c0, %c0_1] : memref<1x8320xf32, #tpu.memory_space<vmem>>, vector<1x8320xf32>
    %c0_2 = arith.constant 0 : index
    %c0_3 = arith.constant 0 : index
    %4 = vector.load %arg2[%c0_2, %c0_3] : memref<8x8320xf32, #tpu.memory_space<vmem>>, vector<8x8320xf32>
    %5 = vector.broadcast %3 : vector<1x8320xf32> to vector<8x8320xf32>
    %6 = arith.mulf %4, %5 : vector<8x8320xf32>
    %c0_4 = arith.constant 0 : index
    %c0_5 = arith.constant 0 : index
    %7 = vector.load %arg3[%c0_4, %c0_5] : memref<8x8320xf32, #tpu.memory_space<vmem>>, vector<8x8320xf32>
    %8 = vector.broadcast %3 : vector<1x8320xf32> to vector<8x8320xf32>
    %9 = arith.mulf %7, %8 : vector<8x8320xf32>
    %c0_6 = arith.constant 0 : index
    %c0_7 = arith.constant 0 : index
    %c0_8 = arith.constant 0 : index
    %10 = vector.load %arg6[%c0_6, %c0_7, %c0_8] : memref<1x8x1xf32, #tpu.memory_space<vmem>>, vector<1x8x1xf32>
    %11 = vector.shape_cast %10 : vector<1x8x1xf32> to vector<8x1xf32>
    %12 = arith.mulf %6, %6 : vector<8x8320xf32>
    %cst = arith.constant dense<0.000000e+00> : vector<8xf32>
    %13 = vector.multi_reduction <add>, %12, %cst [1] : vector<8x8320xf32> to vector<8xf32>
    %14 = vector.shape_cast %13 : vector<8xf32> to vector<8x1xf32>
    %15 = arith.addf %11, %14 : vector<8x1xf32>
    %c0_9 = arith.constant 0 : index
    %c0_10 = arith.constant 0 : index
    %c0_11 = arith.constant 0 : index
    %16 = vector.load %arg6[%c0_9, %c0_10, %c0_11] : memref<1x8x1xf32, #tpu.memory_space<vmem>>, vector<1x8x1xf32>
    %17 = vector.shape_cast %16 : vector<1x8x1xf32> to vector<8x1xf32>
    %18 = vector.shape_cast %15 : vector<8x1xf32> to vector<1x8x1xf32>
    tpu.vector_store %arg6[%c0_9, %c0_10, %c0_11], %18 {strides = array<i32>} : memref<1x8x1xf32, #tpu.memory_space<vmem>>, vector<1x8x1xf32>,
    %c0_12 = arith.constant 0 : index
    %c0_13 = arith.constant 0 : index
    %c0_14 = arith.constant 0 : index
    %19 = vector.load %arg7[%c0_12, %c0_13, %c0_14] : memref<1x8x1xf32, #tpu.memory_space<vmem>>, vector<1x8x1xf32>
    %20 = vector.shape_cast %19 : vector<1x8x1xf32> to vector<8x1xf32>
    %21 = arith.mulf %9, %9 : vector<8x8320xf32>
    %cst_15 = arith.constant dense<0.000000e+00> : vector<8xf32>
    %22 = vector.multi_reduction <add>, %21, %cst_15 [1] : vector<8x8320xf32> to vector<8xf32>
    %23 = vector.shape_cast %22 : vector<8xf32> to vector<8x1xf32>
    %24 = arith.addf %20, %23 : vector<8x1xf32>
    %c0_16 = arith.constant 0 : index
    %c0_17 = arith.constant 0 : index
    %c0_18 = arith.constant 0 : index
    %25 = vector.load %arg7[%c0_16, %c0_17, %c0_18] : memref<1x8x1xf32, #tpu.memory_space<vmem>>, vector<1x8x1xf32>
    %26 = vector.shape_cast %25 : vector<1x8x1xf32> to vector<8x1xf32>
    %27 = vector.shape_cast %24 : vector<8x1xf32> to vector<1x8x1xf32>
    tpu.vector_store %arg7[%c0_16, %c0_17, %c0_18], %27 {strides = array<i32>} : memref<1x8x1xf32, #tpu.memory_space<vmem>>, vector<1x8x1xf32>,
    %28 = arith.subf %6, %9 : vector<8x8320xf32>
    %c0_19 = arith.constant 0 : index
    %c0_20 = arith.constant 0 : index
    %c0_21 = arith.constant 0 : index
    %29 = vector.load %arg8[%c0_19, %c0_20, %c0_21] : memref<1x8x1xf32, #tpu.memory_space<vmem>>, vector<1x8x1xf32>
    %30 = vector.shape_cast %29 : vector<1x8x1xf32> to vector<8x1xf32>
    %31 = arith.mulf %28, %28 : vector<8x8320xf32>
    %cst_22 = arith.constant dense<0.000000e+00> : vector<8xf32>
    %32 = vector.multi_reduction <add>, %31, %cst_22 [1] : vector<8x8320xf32> to vector<8xf32>
    %33 = vector.shape_cast %32 : vector<8xf32> to vector<8x1xf32>
    %34 = arith.addf %30, %33 : vector<8x1xf32>
    %c0_23 = arith.constant 0 : index
    %c0_24 = arith.constant 0 : index
    %c0_25 = arith.constant 0 : index
    %35 = vector.load %arg8[%c0_23, %c0_24, %c0_25] : memref<1x8x1xf32, #tpu.memory_space<vmem>>, vector<1x8x1xf32>
    %36 = vector.shape_cast %35 : vector<1x8x1xf32> to vector<8x1xf32>
    %37 = vector.shape_cast %34 : vector<8x1xf32> to vector<1x8x1xf32>
    tpu.vector_store %arg8[%c0_23, %c0_24, %c0_25], %37 {strides = array<i32>} : memref<1x8x1xf32, #tpu.memory_space<vmem>>, vector<1x8x1xf32>,
    %c0_26 = arith.constant 0 : index
    %c0_27 = arith.constant 0 : index
    %c0_28 = arith.constant 0 : index
    %38 = vector.load %arg5[%c0_26, %c0_27, %c0_28] : memref<1x8x8xf32, #tpu.memory_space<vmem>>, vector<1x8x8xf32>
    %39 = vector.shape_cast %38 : vector<1x8x8xf32> to vector<8x8xf32>
    %cst_29 = arith.constant dense<0.000000e+00> : vector<8x8xf32>
    %40 = tpu.matmul %6, %9, %cst_29 {dimension_numbers = #tpu.dot_dimension_numbers<[1], [1], [0], [0], [0, 0, 1, 0], [], []>, precision = #tpu.contract_precision<fp32>} : vector<8x8320xf32>, vector<8x8320xf32>, vector<8x8xf32> -> vector<8x8xf32>
    %41 = arith.addf %39, %40 : vector<8x8xf32>
    %c0_30 = arith.constant 0 : index
    %c0_31 = arith.constant 0 : index
    %c0_32 = arith.constant 0 : index
    %42 = vector.load %arg5[%c0_30, %c0_31, %c0_32] : memref<1x8x8xf32, #tpu.memory_space<vmem>>, vector<1x8x8xf32>
    %43 = vector.shape_cast %42 : vector<1x8x8xf32> to vector<8x8xf32>
    %44 = vector.shape_cast %41 : vector<8x8xf32> to vector<1x8x8xf32>
    tpu.vector_store %arg5[%c0_30, %c0_31, %c0_32], %44 {strides = array<i32>} : memref<1x8x8xf32, #tpu.memory_space<vmem>>, vector<1x8x8xf32>,
    return
  }
  func.func @transform_0(%arg0: i32, %arg1: i32) -> (i32, i32) {
    %c1_i32 = arith.constant 1 : i32
    %0 = arith.muli %arg0, %c1_i32 : i32
    %1 = arith.addi %0, %arg1 : i32
    %c0_i32 = arith.constant 0 : i32
    %c0_i32_0 = arith.constant 0 : i32
    return %c0_i32, %1 : i32, i32
  }
  func.func @transform_1(%arg0: i32, %arg1: i32) -> (i32, i32) {
    %c1_i32 = arith.constant 1 : i32
    %0 = arith.muli %arg0, %c1_i32 : i32
    %1 = arith.addi %0, %arg1 : i32
    %c0_i32 = arith.constant 0 : i32
    %c0_i32_0 = arith.constant 0 : i32
    return %c0_i32, %1 : i32, i32
  }
  func.func @transform_2(%arg0: i32, %arg1: i32) -> (i32, i32) {
    %c1_i32 = arith.constant 1 : i32
    %0 = arith.muli %arg0, %c1_i32 : i32
    %1 = arith.addi %0, %arg1 : i32
    %c0_i32 = arith.constant 0 : i32
    %c0_i32_0 = arith.constant 0 : i32
    return %c0_i32, %1 : i32, i32
  }
  func.func @transform_3(%arg0: i32, %arg1: i32) -> (i32, i32, i32) {
    %c0_i32 = arith.constant 0 : i32
    %c0_i32_0 = arith.constant 0 : i32
    %c0_i32_1 = arith.constant 0 : i32
    return %arg0, %c0_i32, %c0_i32_0 : i32, i32, i32
  }
  func.func @transform_4(%arg0: i32, %arg1: i32) -> (i32, i32, i32) {
    %c0_i32 = arith.constant 0 : i32
    %c0_i32_0 = arith.constant 0 : i32
    %c0_i32_1 = arith.constant 0 : i32
    return %arg0, %c0_i32, %c0_i32_0 : i32, i32, i32
  }
  func.func @transform_5(%arg0: i32, %arg1: i32) -> (i32, i32, i32) {
    %c0_i32 = arith.constant 0 : i32
    %c0_i32_0 = arith.constant 0 : i32
    %c0_i32_1 = arith.constant 0 : i32
    return %arg0, %c0_i32, %c0_i32_0 : i32, i32, i32
  }
  func.func @transform_6(%arg0: i32, %arg1: i32) -> (i32, i32, i32) {
    %c0_i32 = arith.constant 0 : i32
    %c0_i32_0 = arith.constant 0 : i32
    %c0_i32_1 = arith.constant 0 : i32
    return %arg0, %c0_i32, %c0_i32_0 : i32, i32, i32
  }
}

</mosaic_0001>

<llo_original>
// kernel: tpu_custom_call.1
$region0: #{tpu_custom_call.1}
  #allocation0 [shape = 'u32[]', space=smem, size = 0x4, offset = 0x4, fixed_abs, tag = 'smem constant byte address 0x4 - core index']
  #allocation1 [shape = 'u32[72,128]{1,0:T(1,128)}', space=vmem, size = 0x9000, scoped, tag = 'internal scratch']
  %s0 = inlined_call_operand.hbm [shape: f32[8,8320], index: 0, kind: input, shape index: {}]
  %s1 = inlined_call_operand.hbm [shape: f32[8,8320], index: 1, kind: input, shape index: {}]
  %s2 = inlined_call_operand.hbm [shape: f32[1,8320], index: 2, kind: input, shape index: {}]
  %s3 = inlined_call_operand.hbm [shape: f32[1,8,8], index: 3, kind: output, shape index: {0}]
  %s4 = inlined_call_operand.vmem [shape: f32[1,8,1], index: 4, kind: output, shape index: {1}]
  %s5 = inlined_call_operand.vmem [shape: f32[1,8,1], index: 5, kind: output, shape index: {2}]
  %s6 = inlined_call_operand.vmem [shape: f32[1,8,1], index: 6, kind: output, shape index: {3}]
  %7 = xla_tuple %s3, %s4, %s5, %s6
  %s8 = sld [smem:[#allocation0]]
  $region62: #{tpu_custom_call.1} parent=0
    _
  %s10 = ssub.s32 1, %s8
  %s11 = scalar_select 0, %s10, %s8
  $region1: #{tpu_custom_call.1} parent=0
    #allocation2 [shape = 'u8[266240]{0}', space=vmem, size = 0x41000, scoped, tag = 'input window, operand 0, single buffered']
    #allocation3 [shape = 's32[1]{0}', space=sflag, size = 0x4, scoped, tag = 'scoped memory for tpu_custom_call.1']
    #allocation4 [shape = 's32[1]{0}', space=sflag, size = 0x4, scoped, tag = 'scoped memory for tpu_custom_call.1']
    #allocation5 [shape = 'u8[266240]{0}', space=vmem, size = 0x41000, scoped, tag = 'input window, operand 1, single buffered']
    #allocation6 [shape = 's32[1]{0}', space=sflag, size = 0x4, scoped, tag = 'scoped memory for tpu_custom_call.1']
    #allocation7 [shape = 'u8[33280]{0}', space=vmem, size = 0x8400, scoped, tag = 'input window, operand 2, single buffered']
    #allocation8 [shape = 'u8[4096]{0}', space=vmem, size = 0x1000, scoped, tag = 'output window, operand 0, single buffered']
    %12 = vsyncpa [#allocation3], 0
    %13 = vsyncpa [#allocation6], 0
    %14 = vsyncpa [#allocation4], 0
    // Predicated region
    $region2: #{tpu_custom_call.1} parent=1 // pred_check
      _
    $region3: #{tpu_custom_call.1} parent=1 // pred_check_branch
      %16 = sbr.rel (0) target = $region5
    $region4: #{tpu_custom_call.1} parent=1 // pred_region
      %s17 = sadd.s32 0, 0
      %s18 = smul.u32 65, %s17
      %20 = vsyncadd [#allocation3], 0
      %s21 = smul.addr %s18, 8
      %s22 = scalar_lea.hbm %s0, %s21
      %s24 = sshll.u32 %s22, 4
      %s25 = int_to_ptr.hbm [resolvable:$true] %s24
      %s26 = sshll.u32 [#allocation2], 4
      %s27 = int_to_ptr.vmem [resolvable:$true] %s26
      %29 = dma.hbm_to_vmem [thread:$0]  %s25, 8320, %s27, [#allocation3]
    $region5: #{tpu_custom_call.1} parent=1 // pred_fallthru
      _
    // Predicated region
    $region6: #{tpu_custom_call.1} parent=1 // pred_check
      _
    $region7: #{tpu_custom_call.1} parent=1 // pred_check_branch
      %31 = sbr.rel (0) target = $region9
    $region8: #{tpu_custom_call.1} parent=1 // pred_region
      %s32 = sadd.s32 0, 0
      %s33 = smul.u32 65, %s32
      %35 = vsyncadd [#allocation6], 0
      %s36 = smul.addr %s33, 8
      %s37 = scalar_lea.hbm %s1, %s36
      %s39 = sshll.u32 %s37, 4
      %s40 = int_to_ptr.hbm [resolvable:$true] %s39
      %s41 = sshll.u32 [#allocation5], 4
      %s42 = int_to_ptr.vmem [resolvable:$true] %s41
      %44 = dma.hbm_to_vmem [thread:$0]  %s40, 8320, %s42, [#allocation6]
    $region9: #{tpu_custom_call.1} parent=1 // pred_fallthru
      _
    // Predicated region
    $region10: #{tpu_custom_call.1} parent=1 // pred_check
      _
    $region11: #{tpu_custom_call.1} parent=1 // pred_check_branch
      %46 = sbr.rel (0) target = $region13
    $region12: #{tpu_custom_call.1} parent=1 // pred_region
      %s47 = sadd.s32 0, 0
      %s48 = smul.u32 65, %s47
      %50 = vsyncadd [#allocation6], 0
      %s51 = scalar_lea.hbm %s2, %s48
      %s53 = sshll.u32 %s51, 4
      %s54 = int_to_ptr.hbm [resolvable:$true] %s53
      %s55 = sshll.u32 [#allocation7], 4
      %s56 = int_to_ptr.vmem [resolvable:$true] %s55
      %58 = dma.hbm_to_vmem [thread:$0]  %s54, 1040, %s56, [#allocation6]
    $region13: #{tpu_custom_call.1} parent=1 // pred_fallthru
      _
    // Predicated region
    $region14: #{tpu_custom_call.1} parent=1 // pred_check
      _
    $region15: #{tpu_custom_call.1} parent=1 // pred_check_branch
      %60 = sbr.rel (0) target = $region17
    $region16: #{tpu_custom_call.1} parent=1 // pred_region
      %62 = dma.done [#allocation3], 8320
    $region17: #{tpu_custom_call.1} parent=1 // pred_fallthru
      _
    // Predicated region
    $region18: #{tpu_custom_call.1} parent=1 // pred_check
      _
    $region19: #{tpu_custom_call.1} parent=1 // pred_check_branch
      %64 = sbr.rel (0) target = $region21
    $region20: #{tpu_custom_call.1} parent=1 // pred_region
      %66 = dma.done [#allocation6], 8320
    $region21: #{tpu_custom_call.1} parent=1 // pred_fallthru
      _
    // Predicated region
    $region22: #{tpu_custom_call.1} parent=1 // pred_check
      _
    $region23: #{tpu_custom_call.1} parent=1 // pred_check_branch
      %68 = sbr.rel (0) target = $region25
    $region24: #{tpu_custom_call.1} parent=1 // pred_region
      %70 = dma.done [#allocation6], 1040
    $region25: #{tpu_custom_call.1} parent=1 // pred_fallthru
      _
    %s71 = sadd.s32 0, 0
    %s72 = smul.u32 65, %s71
    %s73 = sadd.s32 0, 0
    %s74 = smul.u32 65, %s73
    %s75 = sadd.s32 0, 0
    %s76 = smul.u32 65, %s75
    %p77 = scmp.eq.s32.totalorder 0, 0
    // Predicated region
    $region26: #{tpu_custom_call.1} parent=1 // pred_check
      %p78 = pneg %p77
    $region27: #{tpu_custom_call.1} parent=1 // pred_check_branch
      %80 = sbr.rel (%p78) target = $region29
    $region28: #{tpu_custom_call.1} parent=1 // pred_region
      %vm81 = vcmask 64512
      %82 = vst.msk [vmem:[#allocation8] sm:$0xff] %vm81, 0.0
      %vm83 = vcmask 7168
      %84 = vst.msk [vmem:[%s4] sm:$0xff] %vm83, 0.0
      %85 = vst.msk [vmem:[%s5] sm:$0xff] %vm83, 0.0
      %86 = vst.msk [vmem:[%s6] sm:$0xff] %vm83, 0.0
    $region29: #{tpu_custom_call.1} parent=1 // pred_fallthru
      _
    %v87 = vld [vmem:[#allocation7] sm:$0xff]
    %v88 = vld [vmem:[#allocation7 + $0x8] sm:$0xff]
    %v89 = vld [vmem:[#allocation7 + $0x10] sm:$0xff]
    %v90 = vld [vmem:[#allocation7 + $0x18] sm:$0xff]
    %v91 = vld [vmem:[#allocation7 + $0x20] sm:$0xff]
    %v92 = vld [vmem:[#allocation7 + $0x28] sm:$0xff]
    %v93 = vld [vmem:[#allocation7 + $0x30] sm:$0xff]
    %v94 = vld [vmem:[#allocation7 + $0x38] sm:$0xff]
    %v95 = vld [vmem:[#allocation7 + $0x40] sm:$0x1]
    %v96 = vld [vmem:[#allocation2] sm:$0xff]
    %v97 = vld [vmem:[#allocation2 + $0x8] sm:$0xff]
    %v98 = vld [vmem:[#allocation2 + $0x10] sm:$0xff]
    %v99 = vld [vmem:[#allocation2 + $0x18] sm:$0xff]
    %v100 = vld [vmem:[#allocation2 + $0x20] sm:$0xff]
    %v101 = vld [vmem:[#allocation2 + $0x28] sm:$0xff]
    %v102 = vld [vmem:[#allocation2 + $0x30] sm:$0xff]
    %v103 = vld [vmem:[#allocation2 + $0x38] sm:$0xff]
    %v104 = vld [vmem:[#allocation2 + $0x40] sm:$0xff]
    %v105 = vld [vmem:[#allocation2 + $0x48] sm:$0xff]
    %v106 = vld [vmem:[#allocation2 + $0x50] sm:$0xff]
    %v107 = vld [vmem:[#allocation2 + $0x58] sm:$0xff]
    %v108 = vld [vmem:[#allocation2 + $0x60] sm:$0xff]
    %v109 = vld [vmem:[#allocation2 + $0x68] sm:$0xff]
    %v110 = vld [vmem:[#allocation2 + $0x70] sm:$0xff]
    %v111 = vld [vmem:[#allocation2 + $0x78] sm:$0xff]
    %v112 = vld [vmem:[#allocation2 + $0x80] sm:$0xff]
    %v113 = vld [vmem:[#allocation2 + $0x88] sm:$0xff]
    %v114 = vld [vmem:[#allocation2 + $0x90] sm:$0xff]
    %v115 = vld [vmem:[#allocation2 + $0x98] sm:$0xff]
    %v116 = vld [vmem:[#allocation2 + $0xa0] sm:$0xff]
    %v117 = vld [vmem:[#allocation2 + $0xa8] sm:$0xff]
    %v118 = vld [vmem:[#allocation2 + $0xb0] sm:$0xff]
    %v119 = vld [vmem:[#allocation2 + $0xb8] sm:$0xff]
    %v120 = vld [vmem:[#allocation2 + $0xc0] sm:$0xff]
    %v121 = vld [vmem:[#allocation2 + $0xc8] sm:$0xff]
    %v122 = vld [vmem:[#allocation2 + $0xd0] sm:$0xff]
    %v123 = vld [vmem:[#allocation2 + $0xd8] sm:$0xff]
    %v124 = vld [vmem:[#allocation2 + $0xe0] sm:$0xff]
    %v125 = vld [vmem:[#allocation2 + $0xe8] sm:$0xff]
    %v126 = vld [vmem:[#allocation2 + $0xf0] sm:$0xff]
    %v127 = vld [vmem:[#allocation2 + $0xf8] sm:$0xff]
    %v128 = vld [vmem:[#allocation2 + $0x100] sm:$0xff]
    %v129 = vld [vmem:[#allocation2 + $0x108] sm:$0xff]
    %v130 = vld [vmem:[#allocation2 + $0x110] sm:$0xff]
    %v131 = vld [vmem:[#allocation2 + $0x118] sm:$0xff]
    %v132 = vld [vmem:[#allocation2 + $0x120] sm:$0xff]
    %v133 = vld [vmem:[#allocation2 + $0x128] sm:$0xff]
    %v134 = vld [vmem:[#allocation2 + $0x130] sm:$0xff]
    %v135 = vld [vmem:[#allocation2 + $0x138] sm:$0xff]
    %v136 = vld [vmem:[#allocation2 + $0x140] sm:$0xff]
    %v137 = vld [vmem:[#allocation2 + $0x148] sm:$0xff]
    %v138 = vld [vmem:[#allocation2 + $0x150] sm:$0xff]
    %v139 = vld [vmem:[#allocation2 + $0x158] sm:$0xff]
    %v140 = vld [vmem:[#allocation2 + $0x160] sm:$0xff]
    %v141 = vld [vmem:[#allocation2 + $0x168] sm:$0xff]
    %v142 = vld [vmem:[#allocation2 + $0x170] sm:$0xff]
    %v143 = vld [vmem:[#allocation2 + $0x178] sm:$0xff]
    %v144 = vld [vmem:[#allocation2 + $0x180] sm:$0xff]
    %v145 = vld [vmem:[#allocation2 + $0x188] sm:$0xff]
    %v146 = vld [vmem:[#allocation2 + $0x190] sm:$0xff]
    %v147 = vld [vmem:[#allocation2 + $0x198] sm:$0xff]
    %v148 = vld [vmem:[#allocation2 + $0x1a0] sm:$0xff]
    %v149 = vld [vmem:[#allocation2 + $0x1a8] sm:$0xff]
    %v150 = vld [vmem:[#allocation2 + $0x1b0] sm:$0xff]
    %v151 = vld [vmem:[#allocation2 + $0x1b8] sm:$0xff]
    %v152 = vld [vmem:[#allocation2 + $0x1c0] sm:$0xff]
    %v153 = vld [vmem:[#allocation2 + $0x1c8] sm:$0xff]
    %v154 = vld [vmem:[#allocation2 + $0x1d0] sm:$0xff]
    %v155 = vld [vmem:[#allocation2 + $0x1d8] sm:$0xff]
    %v156 = vld [vmem:[#allocation2 + $0x1e0] sm:$0xff]
    %v157 = vld [vmem:[#allocation2 + $0x1e8] sm:$0xff]
    %v158 = vld [vmem:[#allocation2 + $0x1f0] sm:$0xff]
    %v159 = vld [vmem:[#allocation2 + $0x1f8] sm:$0xff]
    %v160 = vld [vmem:[#allocation2 + $0x200] sm:$0xff]
    %v170 = vperm.slane %v87, 0
    %v171 = vperm.slane %v87, 1
    %v172 = vperm.slane %v87, 2
    %v173 = vperm.slane %v87, 3
    %v174 = vperm.slane %v87, 4
    %v175 = vperm.slane %v87, 5
    %v176 = vperm.slane %v87, 6
    %v177 = vperm.slane %v87, 7
    %v178 = vperm.slane %v88, 0
    %v179 = vperm.slane %v88, 1
    %v180 = vperm.slane %v88, 2
    %v181 = vperm.slane %v88, 3
    %v182 = vperm.slane %v88, 4
    %v183 = vperm.slane %v88, 5
    %v184 = vperm.slane %v88, 6
    %v185 = vperm.slane %v88, 7
    %v186 = vperm.slane %v89, 0
    %v187 = vperm.slane %v89, 1
    %v188 = vperm.slane %v89, 2
    %v189 = vperm.slane %v89, 3
    %v190 = vperm.slane %v89, 4
    %v191 = vperm.slane %v89, 5
    %v192 = vperm.slane %v89, 6
    %v193 = vperm.slane %v89, 7
    %v194 = vperm.slane %v90, 0
    %v195 = vperm.slane %v90, 1
    %v196 = vperm.slane %v90, 2
    %v197 = vperm.slane %v90, 3
    %v198 = vperm.slane %v90, 4
    %v199 = vperm.slane %v90, 5
    %v200 = vperm.slane %v90, 6
    %v201 = vperm.slane %v90, 7
    %v202 = vperm.slane %v91, 0
    %v203 = vperm.slane %v91, 1
    %v204 = vperm.slane %v91, 2
    %v205 = vperm.slane %v91, 3
    %v206 = vperm.slane %v91, 4
    %v207 = vperm.slane %v91, 5
    %v208 = vperm.slane %v91, 6
    %v209 = vperm.slane %v91, 7
    %v210 = vperm.slane %v92, 0
    %v211 = vperm.slane %v92, 1
    %v212 = vperm.slane %v92, 2
    %v213 = vperm.slane %v92, 3
    %v214 = vperm.slane %v92, 4
    %v215 = vperm.slane %v92, 5
    %v216 = vperm.slane %v92, 6
    %v217 = vperm.slane %v92, 7
    %v218 = vperm.slane %v93, 0
    %v219 = vperm.slane %v93, 1
    %v220 = vperm.slane %v93, 2
    %v221 = vperm.slane %v93, 3
    %v222 = vperm.slane %v93, 4
    %v223 = vperm.slane %v93, 5
    %v224 = vperm.slane %v93, 6
    %v225 = vperm.slane %v93, 7
    %v226 = vperm.slane %v94, 0
    %v227 = vperm.slane %v94, 1
    %v228 = vperm.slane %v94, 2
    %v229 = vperm.slane %v94, 3
    %v230 = vperm.slane %v94, 4
    %v231 = vperm.slane %v94, 5
    %v232 = vperm.slane %v94, 6
    %v233 = vperm.slane %v94, 7
    %v234 = vperm.slane %v95, 0
    %v300 = vmul.f32 %v96, %v170
    %v301 = vmul.f32 %v97, %v171
    %v302 = vmul.f32 %v98, %v172
    %v303 = vmul.f32 %v99, %v173
    %v304 = vmul.f32 %v100, %v174
    %v305 = vmul.f32 %v101, %v175
    %v306 = vmul.f32 %v102, %v176
    %v307 = vmul.f32 %v103, %v177
    %v308 = vmul.f32 %v104, %v178
    %v309 = vmul.f32 %v105, %v179
    %v310 = vmul.f32 %v106, %v180
    %v311 = vmul.f32 %v107, %v181
    %v312 = vmul.f32 %v108, %v182
    %v313 = vmul.f32 %v109, %v183
    %v314 = vmul.f32 %v110, %v184
    %v315 = vmul.f32 %v111, %v185
    %v316 = vmul.f32 %v112, %v186
    %v317 = vmul.f32 %v113, %v187
    %v318 = vmul.f32 %v114, %v188
    %v319 = vmul.f32 %v115, %v189
    %v320 = vmul.f32 %v116, %v190
    %v321 = vmul.f32 %v117, %v191
    %v322 = vmul.f32 %v118, %v192
    %v323 = vmul.f32 %v119, %v193
    %v324 = vmul.f32 %v120, %v194
    %v325 = vmul.f32 %v121, %v195
    %v326 = vmul.f32 %v122, %v196
    %v327 = vmul.f32 %v123, %v197
    %v328 = vmul.f32 %v124, %v198
    %v329 = vmul.f32 %v125, %v199
    %v330 = vmul.f32 %v126, %v200
    %v331 = vmul.f32 %v127, %v201
    %v332 = vmul.f32 %v128, %v202
    %v333 = vmul.f32 %v129, %v203
    %v334 = vmul.f32 %v130, %v204
    %v335 = vmul.f32 %v131, %v205
    %v336 = vmul.f32 %v132, %v206
    %v337 = vmul.f32 %v133, %v207
    %v338 = vmul.f32 %v134, %v208
    %v339 = vmul.f32 %v135, %v209
    %v340 = vmul.f32 %v136, %v210
    %v341 = vmul.f32 %v137, %v211
    %v342 = vmul.f32 %v138, %v212
    %v343 = vmul.f32 %v139, %v213
    %v344 = vmul.f32 %v140, %v214
    %v345 = vmul.f32 %v141, %v215
    %v346 = vmul.f32 %v142, %v216
    %v347 = vmul.f32 %v143, %v217
    %v348 = vmul.f32 %v144, %v218
    %v349 = vmul.f32 %v145, %v219
    %v350 = vmul.f32 %v146, %v220
    %v351 = vmul.f32 %v147, %v221
    %v352 = vmul.f32 %v148, %v222
    %v353 = vmul.f32 %v149, %v223
    %v354 = vmul.f32 %v150, %v224
    %v355 = vmul.f32 %v151, %v225
    %v356 = vmul.f32 %v152, %v226
    %v357 = vmul.f32 %v153, %v227
    %v358 = vmul.f32 %v154, %v228
    %v359 = vmul.f32 %v155, %v229
    %v360 = vmul.f32 %v156, %v230
    %v361 = vmul.f32 %v157, %v231
    %v362 = vmul.f32 %v158, %v232
    %v363 = vmul.f32 %v159, %v233
    %v364 = vmul.f32 %v160, %v234
    %v365 = vld [vmem:[#allocation5] sm:$0xff]
    %v366 = vld [vmem:[#allocation5 + $0x8] sm:$0xff]
    %v367 = vld [vmem:[#allocation5 + $0x10] sm:$0xff]
    %v368 = vld [vmem:[#allocation5 + $0x18] sm:$0xff]
    %v369 = vld [vmem:[#allocation5 + $0x20] sm:$0xff]
    %v370 = vld [vmem:[#allocation5 + $0x28] sm:$0xff]
    %v371 = vld [vmem:[#allocation5 + $0x30] sm:$0xff]
    %v372 = vld [vmem:[#allocation5 + $0x38] sm:$0xff]
    %v373 = vld [vmem:[#allocation5 + $0x40] sm:$0xff]
    %v374 = vld [vmem:[#allocation5 + $0x48] sm:$0xff]
    %v375 = vld [vmem:[#allocation5 + $0x50] sm:$0xff]
    %v376 = vld [vmem:[#allocation5 + $0x58] sm:$0xff]
    %v377 = vld [vmem:[#allocation5 + $0x60] sm:$0xff]
    %v378 = vld [vmem:[#allocation5 + $0x68] sm:$0xff]
    %v379 = vld [vmem:[#allocation5 + $0x70] sm:$0xff]
    %v380 = vld [vmem:[#allocation5 + $0x78] sm:$0xff]
    %v381 = vld [vmem:[#allocation5 + $0x80] sm:$0xff]
    %v382 = vld [vmem:[#allocation5 + $0x88] sm:$0xff]
    %v383 = vld [vmem:[#allocation5 + $0x90] sm:$0xff]
    %v384 = vld [vmem:[#allocation5 + $0x98] sm:$0xff]
    %v385 = vld [vmem:[#allocation5 + $0xa0] sm:$0xff]
    %v386 = vld [vmem:[#allocation5 + $0xa8] sm:$0xff]
    %v387 = vld [vmem:[#allocation5 + $0xb0] sm:$0xff]
    %v388 = vld [vmem:[#allocation5 + $0xb8] sm:$0xff]
    %v389 = vld [vmem:[#allocation5 + $0xc0] sm:$0xff]
    %v390 = vld [vmem:[#allocation5 + $0xc8] sm:$0xff]
    %v391 = vld [vmem:[#allocation5 + $0xd0] sm:$0xff]
    %v392 = vld [vmem:[#allocation5 + $0xd8] sm:$0xff]
    %v393 = vld [vmem:[#allocation5 + $0xe0] sm:$0xff]
    %v394 = vld [vmem:[#allocation5 + $0xe8] sm:$0xff]
    %v395 = vld [vmem:[#allocation5 + $0xf0] sm:$0xff]
    %v396 = vld [vmem:[#allocation5 + $0xf8] sm:$0xff]
    %v397 = vld [vmem:[#allocation5 + $0x100] sm:$0xff]
    %v398 = vld [vmem:[#allocation5 + $0x108] sm:$0xff]
    %v399 = vld [vmem:[#allocation5 + $0x110] sm:$0xff]
    %v400 = vld [vmem:[#allocation5 + $0x118] sm:$0xff]
    %v401 = vld [vmem:[#allocation5 + $0x120] sm:$0xff]
    %v402 = vld [vmem:[#allocation5 + $0x128] sm:$0xff]
    %v403 = vld [vmem:[#allocation5 + $0x130] sm:$0xff]
    %v404 = vld [vmem:[#allocation5 + $0x138] sm:$0xff]
    %v405 = vld [vmem:[#allocation5 + $0x140] sm:$0xff]
    %v406 = vld [vmem:[#allocation5 + $0x148] sm:$0xff]
    %v407 = vld [vmem:[#allocation5 + $0x150] sm:$0xff]
    %v408 = vld [vmem:[#allocation5 + $0x158] sm:$0xff]
    %v409 = vld [vmem:[#allocation5 + $0x160] sm:$0xff]
    %v410 = vld [vmem:[#allocation5 + $0x168] sm:$0xff]
    %v411 = vld [vmem:[#allocation5 + $0x170] sm:$0xff]
    %v412 = vld [vmem:[#allocation5 + $0x178] sm:$0xff]
    %v413 = vld [vmem:[#allocation5 + $0x180] sm:$0xff]
    %v414 = vld [vmem:[#allocation5 + $0x188] sm:$0xff]
    %v415 = vld [vmem:[#allocation5 + $0x190] sm:$0xff]
    %v416 = vld [vmem:[#allocation5 + $0x198] sm:$0xff]
    %v417 = vld [vmem:[#allocation5 + $0x1a0] sm:$0xff]
    %v418 = vld [vmem:[#allocation5 + $0x1a8] sm:$0xff]
    %v419 = vld [vmem:[#allocation5 + $0x1b0] sm:$0xff]
    %v420 = vld [vmem:[#allocation5 + $0x1b8] sm:$0xff]
    %v421 = vld [vmem:[#allocation5 + $0x1c0] sm:$0xff]
    %v422 = vld [vmem:[#allocation5 + $0x1c8] sm:$0xff]
    %v423 = vld [vmem:[#allocation5 + $0x1d0] sm:$0xff]
    %v424 = vld [vmem:[#allocation5 + $0x1d8] sm:$0xff]
    %v425 = vld [vmem:[#allocation5 + $0x1e0] sm:$0xff]
    %v426 = vld [vmem:[#allocation5 + $0x1e8] sm:$0xff]
    %v427 = vld [vmem:[#allocation5 + $0x1f0] sm:$0xff]
    %v428 = vld [vmem:[#allocation5 + $0x1f8] sm:$0xff]
    %v429 = vld [vmem:[#allocation5 + $0x200] sm:$0xff]
    %v430 = vmul.f32 %v365, %v170
    %v431 = vmul.f32 %v366, %v171
    %v432 = vmul.f32 %v367, %v172
    %v433 = vmul.f32 %v368, %v173
    %v434 = vmul.f32 %v369, %v174
    %v435 = vmul.f32 %v370, %v175
    %v436 = vmul.f32 %v371, %v176
    %v437 = vmul.f32 %v372, %v177
    %v438 = vmul.f32 %v373, %v178
    %v439 = vmul.f32 %v374, %v179
    %v440 = vmul.f32 %v375, %v180
    %v441 = vmul.f32 %v376, %v181
    %v442 = vmul.f32 %v377, %v182
    %v443 = vmul.f32 %v378, %v183
    %v444 = vmul.f32 %v379, %v184
    %v445 = vmul.f32 %v380, %v185
    %v446 = vmul.f32 %v381, %v186
    %v447 = vmul.f32 %v382, %v187
    %v448 = vmul.f32 %v383, %v188
    %v449 = vmul.f32 %v384, %v189
    %v450 = vmul.f32 %v385, %v190
    %v451 = vmul.f32 %v386, %v191
    %v452 = vmul.f32 %v387, %v192
    %v453 = vmul.f32 %v388, %v193
    %v454 = vmul.f32 %v389, %v194
    %v455 = vmul.f32 %v390, %v195
    %v456 = vmul.f32 %v391, %v196
    %v457 = vmul.f32 %v392, %v197
    %v458 = vmul.f32 %v393, %v198
    %v459 = vmul.f32 %v394, %v199
    %v460 = vmul.f32 %v395, %v200
    %v461 = vmul.f32 %v396, %v201
    %v462 = vmul.f32 %v397, %v202
    %v463 = vmul.f32 %v398, %v203
    %v464 = vmul.f32 %v399, %v204
    %v465 = vmul.f32 %v400, %v205
    %v466 = vmul.f32 %v401, %v206
    %v467 = vmul.f32 %v402, %v207
    %v468 = vmul.f32 %v403, %v208
    %v469 = vmul.f32 %v404, %v209
    %v470 = vmul.f32 %v405, %v210
    %v471 = vmul.f32 %v406, %v211
    %v472 = vmul.f32 %v407, %v212
    %v473 = vmul.f32 %v408, %v213
    %v474 = vmul.f32 %v409, %v214
    %v475 = vmul.f32 %v410, %v215
    %v476 = vmul.f32 %v411, %v216
    %v477 = vmul.f32 %v412, %v217
    %v478 = vmul.f32 %v413, %v218
    %v479 = vmul.f32 %v414, %v219
    %v480 = vmul.f32 %v415, %v220
    %v481 = vmul.f32 %v416, %v221
    %v482 = vmul.f32 %v417, %v222
    %v483 = vmul.f32 %v418, %v223
    %v484 = vmul.f32 %v419, %v224
    %v485 = vmul.f32 %v420, %v225
    %v486 = vmul.f32 %v421, %v226
    %v487 = vmul.f32 %v422, %v227
    %v488 = vmul.f32 %v423, %v228
    %v489 = vmul.f32 %v424, %v229
    %v490 = vmul.f32 %v425, %v230
    %v491 = vmul.f32 %v426, %v231
    %v492 = vmul.f32 %v427, %v232
    %v493 = vmul.f32 %v428, %v233
    %v494 = vmul.f32 %v429, %v234
    %v495 = vld [vmem:[%s4] sm:$0xff]
    %v496 = vmul.f32 %v300, %v300
    %v497 = vmul.f32 %v301, %v301
    %v498 = vmul.f32 %v302, %v302
    %v499 = vmul.f32 %v303, %v303
    %v500 = vmul.f32 %v304, %v304
    %v501 = vmul.f32 %v305, %v305
    %v502 = vmul.f32 %v306, %v306
    %v503 = vmul.f32 %v307, %v307
    %v504 = vmul.f32 %v308, %v308
    %v505 = vmul.f32 %v309, %v309
    %v506 = vmul.f32 %v310, %v310
    %v507 = vmul.f32 %v311, %v311
    %v508 = vmul.f32 %v312, %v312
    %v509 = vmul.f32 %v313, %v313
    %v510 = vmul.f32 %v314, %v314
    %v511 = vmul.f32 %v315, %v315
    %v512 = vmul.f32 %v316, %v316
    %v513 = vmul.f32 %v317, %v317
    %v514 = vmul.f32 %v318, %v318
    %v515 = vmul.f32 %v319, %v319
    %v516 = vmul.f32 %v320, %v320
    %v517 = vmul.f32 %v321, %v321
    %v518 = vmul.f32 %v322, %v322
    %v519 = vmul.f32 %v323, %v323
    %v520 = vmul.f32 %v324, %v324
    %v521 = vmul.f32 %v325, %v325
    %v522 = vmul.f32 %v326, %v326
    %v523 = vmul.f32 %v327, %v327
    %v524 = vmul.f32 %v328, %v328
    %v525 = vmul.f32 %v329, %v329
    %v526 = vmul.f32 %v330, %v330
    %v527 = vmul.f32 %v331, %v331
    %v528 = vmul.f32 %v332, %v332
    %v529 = vmul.f32 %v333, %v333
    %v530 = vmul.f32 %v334, %v334
    %v531 = vmul.f32 %v335, %v335
    %v532 = vmul.f32 %v336, %v336
    %v533 = vmul.f32 %v337, %v337
    %v534 = vmul.f32 %v338, %v338
    %v535 = vmul.f32 %v339, %v339
    %v536 = vmul.f32 %v340, %v340
    %v537 = vmul.f32 %v341, %v341
    %v538 = vmul.f32 %v342, %v342
    %v539 = vmul.f32 %v343, %v343
    %v540 = vmul.f32 %v344, %v344
    %v541 = vmul.f32 %v345, %v345
    %v542 = vmul.f32 %v346, %v346
    %v543 = vmul.f32 %v347, %v347
    %v544 = vmul.f32 %v348, %v348
    %v545 = vmul.f32 %v349, %v349
    %v546 = vmul.f32 %v350, %v350
    %v547 = vmul.f32 %v351, %v351
    %v548 = vmul.f32 %v352, %v352
    %v549 = vmul.f32 %v353, %v353
    %v550 = vmul.f32 %v354, %v354
    %v551 = vmul.f32 %v355, %v355
    %v552 = vmul.f32 %v356, %v356
    %v553 = vmul.f32 %v357, %v357
    %v554 = vmul.f32 %v358, %v358
    %v555 = vmul.f32 %v359, %v359
    %v556 = vmul.f32 %v360, %v360
    %v557 = vmul.f32 %v361, %v361
    %v558 = vmul.f32 %v362, %v362
    %v559 = vmul.f32 %v363, %v363
    %v560 = vmul.f32 %v364, %v364
    %v561 = vadd.f32 %v496, %v497
    %v562 = vadd.f32 %v561, %v498
    %v563 = vadd.f32 %v562, %v499
    %v564 = vadd.f32 %v563, %v500
    %v565 = vadd.f32 %v564, %v501
    %v566 = vadd.f32 %v565, %v502
    %v567 = vadd.f32 %v566, %v503
    %v568 = vadd.f32 %v567, %v504
    %v569 = vadd.f32 %v568, %v505
    %v570 = vadd.f32 %v569, %v506
    %v571 = vadd.f32 %v570, %v507
    %v572 = vadd.f32 %v571, %v508
    %v573 = vadd.f32 %v572, %v509
    %v574 = vadd.f32 %v573, %v510
    %v575 = vadd.f32 %v574, %v511
    %v576 = vadd.f32 %v575, %v512
    %v577 = vadd.f32 %v576, %v513
    %v578 = vadd.f32 %v577, %v514
    %v579 = vadd.f32 %v578, %v515
    %v580 = vadd.f32 %v579, %v516
    %v581 = vadd.f32 %v580, %v517
    %v582 = vadd.f32 %v581, %v518
    %v583 = vadd.f32 %v582, %v519
    %v584 = vadd.f32 %v583, %v520
    %v585 = vadd.f32 %v584, %v521
    %v586 = vadd.f32 %v585, %v522
    %v587 = vadd.f32 %v586, %v523
    %v588 = vadd.f32 %v587, %v524
    %v589 = vadd.f32 %v588, %v525
    %v590 = vadd.f32 %v589, %v526
    %v591 = vadd.f32 %v590, %v527
    %v592 = vadd.f32 %v591, %v528
    %v593 = vadd.f32 %v592, %v529
    %v594 = vadd.f32 %v593, %v530
    %v595 = vadd.f32 %v594, %v531
    %v596 = vadd.f32 %v595, %v532
    %v597 = vadd.f32 %v596, %v533
    %v598 = vadd.f32 %v597, %v534
    %v599 = vadd.f32 %v598, %v535
    %v600 = vadd.f32 %v599, %v536
    %v601 = vadd.f32 %v600, %v537
    %v602 = vadd.f32 %v601, %v538
    %v603 = vadd.f32 %v602, %v539
    %v604 = vadd.f32 %v603, %v540
    %v605 = vadd.f32 %v604, %v541
    %v606 = vadd.f32 %v605, %v542
    %v607 = vadd.f32 %v606, %v543
    %v608 = vadd.f32 %v607, %v544
    %v609 = vadd.f32 %v608, %v545
    %v610 = vadd.f32 %v609, %v546
    %v611 = vadd.f32 %v610, %v547
    %v612 = vadd.f32 %v611, %v548
    %v613 = vadd.f32 %v612, %v549
    %v614 = vadd.f32 %v613, %v550
    %v615 = vadd.f32 %v614, %v551
    %v616 = vadd.f32 %v615, %v552
    %v617 = vadd.f32 %v616, %v553
    %v618 = vadd.f32 %v617, %v554
    %v619 = vadd.f32 %v618, %v555
    %v620 = vadd.f32 %v619, %v556
    %v621 = vadd.f32 %v620, %v557
    %v622 = vadd.f32 %v621, %v558
    %v623 = vadd.f32 %v622, %v559
    %v624 = vadd.f32 %v623, %v560
    %625 = vadd.xlane.f32.xlu0 %v624
    %v626 = vpop.xlane.xlu0 %625
    %v627 = vadd.f32 %v495, %v626
    %vm628 = vcmask 7168
    %629 = vst.msk [vmem:[%s4] sm:$0xff] %vm628, %v627
    %v630 = vld [vmem:[%s5] sm:$0xff]
    %v631 = vmul.f32 %v430, %v430
    %v632 = vmul.f32 %v431, %v431
    %v633 = vmul.f32 %v432, %v432
    %v634 = vmul.f32 %v433, %v433
    %v635 = vmul.f32 %v434, %v434
    %v636 = vmul.f32 %v435, %v435
    %v637 = vmul.f32 %v436, %v436
    %v638 = vmul.f32 %v437, %v437
    %v639 = vmul.f32 %v438, %v438
    %v640 = vmul.f32 %v439, %v439
    %v641 = vmul.f32 %v440, %v440
    %v642 = vmul.f32 %v441, %v441
    %v643 = vmul.f32 %v442, %v442
    %v644 = vmul.f32 %v443, %v443
    %v645 = vmul.f32 %v444, %v444
    %v646 = vmul.f32 %v445, %v445
    %v647 = vmul.f32 %v446, %v446
    %v648 = vmul.f32 %v447, %v447
    %v649 = vmul.f32 %v448, %v448
    %v650 = vmul.f32 %v449, %v449
    %v651 = vmul.f32 %v450, %v450
    %v652 = vmul.f32 %v451, %v451
    %v653 = vmul.f32 %v452, %v452
    %v654 = vmul.f32 %v453, %v453
    %v655 = vmul.f32 %v454, %v454
    %v656 = vmul.f32 %v455, %v455
    %v657 = vmul.f32 %v456, %v456
    %v658 = vmul.f32 %v457, %v457
    %v659 = vmul.f32 %v458, %v458
    %v660 = vmul.f32 %v459, %v459
    %v661 = vmul.f32 %v460, %v460
    %v662 = vmul.f32 %v461, %v461
    %v663 = vmul.f32 %v462, %v462
    %v664 = vmul.f32 %v463, %v463
    %v665 = vmul.f32 %v464, %v464
    %v666 = vmul.f32 %v465, %v465
    %v667 = vmul.f32 %v466, %v466
    %v668 = vmul.f32 %v467, %v467
    %v669 = vmul.f32 %v468, %v468
    %v670 = vmul.f32 %v469, %v469
    %v671 = vmul.f32 %v470, %v470
    %v672 = vmul.f32 %v471, %v471
    %v673 = vmul.f32 %v472, %v472
    %v674 = vmul.f32 %v473, %v473
    %v675 = vmul.f32 %v474, %v474
    %v676 = vmul.f32 %v475, %v475
    %v677 = vmul.f32 %v476, %v476
    %v678 = vmul.f32 %v477, %v477
    %v679 = vmul.f32 %v478, %v478
    %v680 = vmul.f32 %v479, %v479
    %v681 = vmul.f32 %v480, %v480
    %v682 = vmul.f32 %v481, %v481
    %v683 = vmul.f32 %v482, %v482
    %v684 = vmul.f32 %v483, %v483
    %v685 = vmul.f32 %v484, %v484
    %v686 = vmul.f32 %v485, %v485
    %v687 = vmul.f32 %v486, %v486
    %v688 = vmul.f32 %v487, %v487
    %v689 = vmul.f32 %v488, %v488
    %v690 = vmul.f32 %v489, %v489
    %v691 = vmul.f32 %v490, %v490
    %v692 = vmul.f32 %v491, %v491
    %v693 = vmul.f32 %v492, %v492
    %v694 = vmul.f32 %v493, %v493
    %v695 = vmul.f32 %v494, %v494
    %v696 = vadd.f32 %v631, %v632
    %v697 = vadd.f32 %v696, %v633
    %v698 = vadd.f32 %v697, %v634
    %v699 = vadd.f32 %v698, %v635
    %v700 = vadd.f32 %v699, %v636
    %v701 = vadd.f32 %v700, %v637
    %v702 = vadd.f32 %v701, %v638
    %v703 = vadd.f32 %v702, %v639
    %v704 = vadd.f32 %v703, %v640
    %v705 = vadd.f32 %v704, %v641
    %v706 = vadd.f32 %v705, %v642
    %v707 = vadd.f32 %v706, %v643
    %v708 = vadd.f32 %v707, %v644
    %v709 = vadd.f32 %v708, %v645
    %v710 = vadd.f32 %v709, %v646
    %v711 = vadd.f32 %v710, %v647
    %v712 = vadd.f32 %v711, %v648
    %v713 = vadd.f32 %v712, %v649
    %v714 = vadd.f32 %v713, %v650
    %v715 = vadd.f32 %v714, %v651
    %v716 = vadd.f32 %v715, %v652
    %v717 = vadd.f32 %v716, %v653
    %v718 = vadd.f32 %v717, %v654
    %v719 = vadd.f32 %v718, %v655
    %v720 = vadd.f32 %v719, %v656
    %v721 = vadd.f32 %v720, %v657
    %v722 = vadd.f32 %v721, %v658
    %v723 = vadd.f32 %v722, %v659
    %v724 = vadd.f32 %v723, %v660
    %v725 = vadd.f32 %v724, %v661
    %v726 = vadd.f32 %v725, %v662
    %v727 = vadd.f32 %v726, %v663
    %v728 = vadd.f32 %v727, %v664
    %v729 = vadd.f32 %v728, %v665
    %v730 = vadd.f32 %v729, %v666
    %v731 = vadd.f32 %v730, %v667
    %v732 = vadd.f32 %v731, %v668
    %v733 = vadd.f32 %v732, %v669
    %v734 = vadd.f32 %v733, %v670
    %v735 = vadd.f32 %v734, %v671
    %v736 = vadd.f32 %v735, %v672
    %v737 = vadd.f32 %v736, %v673
    %v738 = vadd.f32 %v737, %v674
    %v739 = vadd.f32 %v738, %v675
    %v740 = vadd.f32 %v739, %v676
    %v741 = vadd.f32 %v740, %v677
    %v742 = vadd.f32 %v741, %v678
    %v743 = vadd.f32 %v742, %v679
    %v744 = vadd.f32 %v743, %v680
    %v745 = vadd.f32 %v744, %v681
    %v746 = vadd.f32 %v745, %v682
    %v747 = vadd.f32 %v746, %v683
    %v748 = vadd.f32 %v747, %v684
    %v749 = vadd.f32 %v748, %v685
    %v750 = vadd.f32 %v749, %v686
    %v751 = vadd.f32 %v750, %v687
    %v752 = vadd.f32 %v751, %v688
    %v753 = vadd.f32 %v752, %v689
    %v754 = vadd.f32 %v753, %v690
    %v755 = vadd.f32 %v754, %v691
    %v756 = vadd.f32 %v755, %v692
    %v757 = vadd.f32 %v756, %v693
    %v758 = vadd.f32 %v757, %v694
    %v759 = vadd.f32 %v758, %v695
    %760 = vadd.xlane.f32.xlu0 %v759
    %v761 = vpop.xlane.xlu0 %760
    %v762 = vadd.f32 %v630, %v761
    %763 = vst.msk [vmem:[%s5] sm:$0xff] %vm628, %v762
    %v764 = vsub.f32 %v300, %v430
    %v765 = vsub.f32 %v301, %v431
    %v766 = vsub.f32 %v302, %v432
    %v767 = vsub.f32 %v303, %v433
    %v768 = vsub.f32 %v304, %v434
    %v769 = vsub.f32 %v305, %v435
    %v770 = vsub.f32 %v306, %v436
    %v771 = vsub.f32 %v307, %v437
    %v772 = vsub.f32 %v308, %v438
    %v773 = vsub.f32 %v309, %v439
    %v774 = vsub.f32 %v310, %v440
    %v775 = vsub.f32 %v311, %v441
    %v776 = vsub.f32 %v312, %v442
    %v777 = vsub.f32 %v313, %v443
    %v778 = vsub.f32 %v314, %v444
    %v779 = vsub.f32 %v315, %v445
    %v780 = vsub.f32 %v316, %v446
    %v781 = vsub.f32 %v317, %v447
    %v782 = vsub.f32 %v318, %v448
    %v783 = vsub.f32 %v319, %v449
    %v784 = vsub.f32 %v320, %v450
    %v785 = vsub.f32 %v321, %v451
    %v786 = vsub.f32 %v322, %v452
    %v787 = vsub.f32 %v323, %v453
    %v788 = vsub.f32 %v324, %v454
    %v789 = vsub.f32 %v325, %v455
    %v790 = vsub.f32 %v326, %v456
    %v791 = vsub.f32 %v327, %v457
    %v792 = vsub.f32 %v328, %v458
    %v793 = vsub.f32 %v329, %v459
    %v794 = vsub.f32 %v330, %v460
    %v795 = vsub.f32 %v331, %v461
    %v796 = vsub.f32 %v332, %v462
    %v797 = vsub.f32 %v333, %v463
    %v798 = vsub.f32 %v334, %v464
    %v799 = vsub.f32 %v335, %v465
    %v800 = vsub.f32 %v336, %v466
    %v801 = vsub.f32 %v337, %v467
    %v802 = vsub.f32 %v338, %v468
    %v803 = vsub.f32 %v339, %v469
    %v804 = vsub.f32 %v340, %v470
    %v805 = vsub.f32 %v341, %v471
    %v806 = vsub.f32 %v342, %v472
    %v807 = vsub.f32 %v343, %v473
    %v808 = vsub.f32 %v344, %v474
    %v809 = vsub.f32 %v345, %v475
    %v810 = vsub.f32 %v346, %v476
    %v811 = vsub.f32 %v347, %v477
    %v812 = vsub.f32 %v348, %v478
    %v813 = vsub.f32 %v349, %v479
    %v814 = vsub.f32 %v350, %v480
    %v815 = vsub.f32 %v351, %v481
    %v816 = vsub.f32 %v352, %v482
    %v817 = vsub.f32 %v353, %v483
    %v818 = vsub.f32 %v354, %v484
    %v819 = vsub.f32 %v355, %v485
    %v820 = vsub.f32 %v356, %v486
    %v821 = vsub.f32 %v357, %v487
    %v822 = vsub.f32 %v358, %v488
    %v823 = vsub.f32 %v359, %v489
    %v824 = vsub.f32 %v360, %v490
    %v825 = vsub.f32 %v361, %v491
    %v826 = vsub.f32 %v362, %v492
    %v827 = vsub.f32 %v363, %v493
    %v828 = vsub.f32 %v364, %v494
    %v829 = vld [vmem:[%s6] sm:$0xff]
    %v830 = vmul.f32 %v764, %v764
    %v831 = vmul.f32 %v765, %v765
    %v832 = vmul.f32 %v766, %v766
    %v833 = vmul.f32 %v767, %v767
    %v834 = vmul.f32 %v768, %v768
    %v835 = vmul.f32 %v769, %v769
    %v836 = vmul.f32 %v770, %v770
    %v837 = vmul.f32 %v771, %v771
    %v838 = vmul.f32 %v772, %v772
    %v839 = vmul.f32 %v773, %v773
    %v840 = vmul.f32 %v774, %v774
    %v841 = vmul.f32 %v775, %v775
    %v842 = vmul.f32 %v776, %v776
    %v843 = vmul.f32 %v777, %v777
    %v844 = vmul.f32 %v778, %v778
    %v845 = vmul.f32 %v779, %v779
    %v846 = vmul.f32 %v780, %v780
    %v847 = vmul.f32 %v781, %v781
    %v848 = vmul.f32 %v782, %v782
    %v849 = vmul.f32 %v783, %v783
    %v850 = vmul.f32 %v784, %v784
    %v851 = vmul.f32 %v785, %v785
    %v852 = vmul.f32 %v786, %v786
    %v853 = vmul.f32 %v787, %v787
    %v854 = vmul.f32 %v788, %v788
    %v855 = vmul.f32 %v789, %v789
    %v856 = vmul.f32 %v790, %v790
    %v857 = vmul.f32 %v791, %v791
    %v858 = vmul.f32 %v792, %v792
    %v859 = vmul.f32 %v793, %v793
    %v860 = vmul.f32 %v794, %v794
    %v861 = vmul.f32 %v795, %v795
    %v862 = vmul.f32 %v796, %v796
    %v863 = vmul.f32 %v797, %v797
    %v864 = vmul.f32 %v798, %v798
    %v865 = vmul.f32 %v799, %v799
    %v866 = vmul.f32 %v800, %v800
    %v867 = vmul.f32 %v801, %v801
    %v868 = vmul.f32 %v802, %v802
    %v869 = vmul.f32 %v803, %v803
    %v870 = vmul.f32 %v804, %v804
    %v871 = vmul.f32 %v805, %v805
    %v872 = vmul.f32 %v806, %v806
    %v873 = vmul.f32 %v807, %v807
    %v874 = vmul.f32 %v808, %v808
    %v875 = vmul.f32 %v809, %v809
    %v876 = vmul.f32 %v810, %v810
    %v877 = vmul.f32 %v811, %v811
    %v878 = vmul.f32 %v812, %v812
    %v879 = vmul.f32 %v813, %v813
    %v880 = vmul.f32 %v814, %v814
    %v881 = vmul.f32 %v815, %v815
    %v882 = vmul.f32 %v816, %v816
    %v883 = vmul.f32 %v817, %v817
    %v884 = vmul.f32 %v818, %v818
    %v885 = vmul.f32 %v819, %v819
    %v886 = vmul.f32 %v820, %v820
    %v887 = vmul.f32 %v821, %v821
    %v888 = vmul.f32 %v822, %v822
    %v889 = vmul.f32 %v823, %v823
    %v890 = vmul.f32 %v824, %v824
    %v891 = vmul.f32 %v825, %v825
    %v892 = vmul.f32 %v826, %v826
    %v893 = vmul.f32 %v827, %v827
    %v894 = vmul.f32 %v828, %v828
    %v895 = vadd.f32 %v830, %v831
    %v896 = vadd.f32 %v895, %v832
    %v897 = vadd.f32 %v896, %v833
    %v898 = vadd.f32 %v897, %v834
    %v899 = vadd.f32 %v898, %v835
    %v900 = vadd.f32 %v899, %v836
    %v901 = vadd.f32 %v900, %v837
    %v902 = vadd.f32 %v901, %v838
    %v903 = vadd.f32 %v902, %v839
    %v904 = vadd.f32 %v903, %v840
    %v905 = vadd.f32 %v904, %v841
    %v906 = vadd.f32 %v905, %v842
    %v907 = vadd.f32 %v906, %v843
    %v908 = vadd.f32 %v907, %v844
    %v909 = vadd.f32 %v908, %v845
    %v910 = vadd.f32 %v909, %v846
    %v911 = vadd.f32 %v910, %v847
    %v912 = vadd.f32 %v911, %v848
    %v913 = vadd.f32 %v912, %v849
    %v914 = vadd.f32 %v913, %v850
    %v915 = vadd.f32 %v914, %v851
    %v916 = vadd.f32 %v915, %v852
    %v917 = vadd.f32 %v916, %v853
    %v918 = vadd.f32 %v917, %v854
    %v919 = vadd.f32 %v918, %v855
    %v920 = vadd.f32 %v919, %v856
    %v921 = vadd.f32 %v920, %v857
    %v922 = vadd.f32 %v921, %v858
    %v923 = vadd.f32 %v922, %v859
    %v924 = vadd.f32 %v923, %v860
    %v925 = vadd.f32 %v924, %v861
    %v926 = vadd.f32 %v925, %v862
    %v927 = vadd.f32 %v926, %v863
    %v928 = vadd.f32 %v927, %v864
    %v929 = vadd.f32 %v928, %v865
    %v930 = vadd.f32 %v929, %v866
    %v931 = vadd.f32 %v930, %v867
    %v932 = vadd.f32 %v931, %v868
    %v933 = vadd.f32 %v932, %v869
    %v934 = vadd.f32 %v933, %v870
    %v935 = vadd.f32 %v934, %v871
    %v936 = vadd.f32 %v935, %v872
    %v937 = vadd.f32 %v936, %v873
    %v938 = vadd.f32 %v937, %v874
    %v939 = vadd.f32 %v938, %v875
    %v940 = vadd.f32 %v939, %v876
    %v941 = vadd.f32 %v940, %v877
    %v942 = vadd.f32 %v941, %v878
    %v943 = vadd.f32 %v942, %v879
    %v944 = vadd.f32 %v943, %v880
    %v945 = vadd.f32 %v944, %v881
    %v946 = vadd.f32 %v945, %v882
    %v947 = vadd.f32 %v946, %v883
    %v948 = vadd.f32 %v947, %v884
    %v949 = vadd.f32 %v948, %v885
    %v950 = vadd.f32 %v949, %v886
    %v951 = vadd.f32 %v950, %v887
    %v952 = vadd.f32 %v951, %v888
    %v953 = vadd.f32 %v952, %v889
    %v954 = vadd.f32 %v953, %v890
    %v955 = vadd.f32 %v954, %v891
    %v956 = vadd.f32 %v955, %v892
    %v957 = vadd.f32 %v956, %v893
    %v958 = vadd.f32 %v957, %v894
    %959 = vadd.xlane.f32.xlu0 %v958
    %v960 = vpop.xlane.xlu0 %959
    %v961 = vadd.f32 %v829, %v960
    %962 = vst.msk [vmem:[%s6] sm:$0xff] %vm628, %v961
    %v963 = vld [vmem:[#allocation8] sm:$0xff]
    %964 = vmatpush.xpose.msra.mxu0 0.0
    %965 = vmatpush.xpose.msra.mxu0 0.0
    %966 = vmatpush.xpose.msra.mxu0 0.0
    %967 = vmatpush.xpose.msra.mxu0 0.0
    %968 = vmatpush.xpose.msra.mxu0 0.0
    %969 = vmatpush.xpose.msra.mxu0 0.0
    %970 = vmatpush.xpose.msra.mxu0 0.0
    %971 = vmatpush.xpose.msra.mxu0 0.0
    %972 = vmatpush.xpose.msra.mxu0 0.0
    %973 = vmatpush.xpose.msra.mxu0 0.0
    %974 = vmatpush.xpose.msra.mxu0 0.0
    %975 = vmatpush.xpose.msra.mxu0 0.0
    %976 = vmatpush.xpose.msra.mxu0 0.0
    %977 = vmatpush.xpose.msra.mxu0 0.0
    %978 = vmatpush.xpose.msra.mxu0 0.0
    %v979 = vand.u32 %v430, 4294901760
    %980 = vmatpush.xpose.msra.mxu0 %v979
    %v981 = vand.u32 %v300, 4294901760
    %v982 = vsub.f32 %v300, %v981
    %v983 = vand.u32 %v982, 4294901760
    %v984 = vsub.f32 %v982, %v983
    %v985 = vand.u32 %v984, 4294901760
    %986 = vmatmul.f32.gmra.mxu0 %v985
    %v987 = vpop.f32.mrf.mxu0
    %v988 = vadd.f32 0.0, %v987
    %989 = vdwg.mxu0
    %990 = vmatpush.xpose.msra.mxu0 0.0
    %991 = vmatpush.xpose.msra.mxu0 0.0
    %992 = vmatpush.xpose.msra.mxu0 0.0
    %993 = vmatpush.xpose.msra.mxu0 0.0
    %994 = vmatpush.xpose.msra.mxu0 0.0
    %995 = vmatpush.xpose.msra.mxu0 0.0
    %996 = vmatpush.xpose.msra.mxu0 0.0
    %997 = vmatpush.xpose.msra.mxu0 0.0
    %998 = vmatpush.xpose.msra.mxu0 0.0
    %999 = vmatpush.xpose.msra.mxu0 0.0
    %1000 = vmatpush.xpose.msra.mxu0 0.0
    %1001 = vmatpush.xpose.msra.mxu0 0.0
    %1002 = vmatpush.xpose.msra.mxu0 0.0
    %1003 = vmatpush.xpose.msra.mxu0 0.0
    %1004 = vmatpush.xpose.msra.mxu0 0.0
    %v1005 = vand.u32 %v430, 4294901760
    %v1006 = vsub.f32 %v430, %v1005
    %v1007 = vand.u32 %v1006, 4294901760
    %v1008 = vsub.f32 %v1006, %v1007
    %v1009 = vand.u32 %v1008, 4294901760
    %1010 = vmatpush.xpose.msra.mxu0 %v1009
    %v1011 = vand.u32 %v300, 4294901760
    %1012 = vmatmul.f32.gmra.mxu0 %v1011
    %v1013 = vpop.f32.mrf.mxu0
    %v1014 = vadd.f32 %v988, %v1013
    %1015 = vdwg.mxu0
    %1016 = vmatpush.xpose.msra.mxu0 0.0
    %1017 = vmatpush.xpose.msra.mxu0 0.0
    %1018 = vmatpush.xpose.msra.mxu0 0.0
    %1019 = vmatpush.xpose.msra.mxu0 0.0
    %1020 = vmatpush.xpose.msra.mxu0 0.0
    %1021 = vmatpush.xpose.msra.mxu0 0.0
    %1022 = vmatpush.xpose.msra.mxu0 0.0
    %1023 = vmatpush.xpose.msra.mxu0 0.0
    %1024 = vmatpush.xpose.msra.mxu0 0.0
    %1025 = vmatpush.xpose.msra.mxu0 0.0
    %1026 = vmatpush.xpose.msra.mxu0 0.0
    %1027 = vmatpush.xpose.msra.mxu0 0.0
    %1028 = vmatpush.xpose.msra.mxu0 0.0
    %1029 = vmatpush.xpose.msra.mxu0 0.0
    %1030 = vmatpush.xpose.msra.mxu0 0.0
    %v1031 = vand.u32 %v430, 4294901760
    %v1032 = vsub.f32 %v430, %v1031
    %1033 = vmatpush.xpose.msra.mxu0 %v1032
    %v1034 = vand.u32 %v300, 4294901760
    %v1035 = vsub.f32 %v300, %v1034
    %1036 = vmatmul.f32.gmra.mxu0 %v1035
    %v1037 = vpop.f32.mrf.mxu0
    %v1038 = vadd.f32 %v1014, %v1037
    %1039 = vdwg.mxu0
    %1040 = vmatpush.xpose.msra.mxu0 0.0
    %1041 = vmatpush.xpose.msra.mxu0 0.0
    %1042 = vmatpush.xpose.msra.mxu0 0.0
    %1043 = vmatpush.xpose.msra.mxu0 0.0
    %1044 = vmatpush.xpose.msra.mxu0 0.0
    %1045 = vmatpush.xpose.msra.mxu0 0.0
    %1046 = vmatpush.xpose.msra.mxu0 0.0
    %1047 = vmatpush.xpose.msra.mxu0 0.0
    %1048 = vmatpush.xpose.msra.mxu0 0.0
    %1049 = vmatpush.xpose.msra.mxu0 0.0
    %1050 = vmatpush.xpose.msra.mxu0 0.0
    %1051 = vmatpush.xpose.msra.mxu0 0.0
    %1052 = vmatpush.xpose.msra.mxu0 0.0
    %1053 = vmatpush.xpose.msra.mxu0 0.0
    %1054 = vmatpush.xpose.msra.mxu0 0.0
    %v1055 = vand.u32 %v430, 4294901760
    %1056 = vmatpush.xpose.msra.mxu0 %v1055
    %v1057 = vand.u32 %v300, 4294901760
    %v1058 = vsub.f32 %v300, %v1057
    %v1059 = vand.u32 %v1058, 4294901760
    %1060 = vmatmul.f32.gmra.mxu0 %v1059
    %v1061 = vpop.f32.mrf.mxu0
    %v1062 = vadd.f32 %v1038, %v1061
    %1063 = vdwg.mxu0
    %1064 = vmatpush.xpose.msra.mxu0 0.0
    %1065 = vmatpush.xpose.msra.mxu0 0.0
    %1066 = vmatpush.xpose.msra.mxu0 0.0
    %1067 = vmatpush.xpose.msra.mxu0 0.0
    %1068 = vmatpush.xpose.msra.mxu0 0.0
    %1069 = vmatpush.xpose.msra.mxu0 0.0
    %1070 = vmatpush.xpose.msra.mxu0 0.0
    %1071 = vmatpush.xpose.msra.mxu0 0.0
    %1072 = vmatpush.xpose.msra.mxu0 0.0
    %1073 = vmatpush.xpose.msra.mxu0 0.0
    %1074 = vmatpush.xpose.msra.mxu0 0.0
    %1075 = vmatpush.xpose.msra.mxu0 0.0
    %1076 = vmatpush.xpose.msra.mxu0 0.0
    %1077 = vmatpush.xpose.msra.mxu0 0.0
    %1078 = vmatpush.xpose.msra.mxu0 0.0
    %v1079 = vand.u32 %v430, 4294901760
    %v1080 = vsub.f32 %v430, %v1079
    %v1081 = vand.u32 %v1080, 4294901760
    %1082 = vmatpush.xpose.msra.mxu0 %v1081
    %v1083 = vand.u32 %v300, 4294901760
    %1084 = vmatmul.f32.gmra.mxu0 %v1083
    %v1085 = vpop.f32.mrf.mxu0
    %v1086 = vadd.f32 %v1062, %v1085
    %1087 = vdwg.mxu0
    %1088 = vmatpush.xpose.msra.mxu0 0.0
    %1089 = vmatpush.xpose.msra.mxu0 0.0
    %1090 = vmatpush.xpose.msra.mxu0 0.0
    %1091 = vmatpush.xpose.msra.mxu0 0.0
    %1092 = vmatpush.xpose.msra.mxu0 0.0
    %1093 = vmatpush.xpose.msra.mxu0 0.0
    %1094 = vmatpush.xpose.msra.mxu0 0.0
    %1095 = vmatpush.xpose.msra.mxu0 0.0
    %1096 = vmatpush.xpose.msra.mxu0 0.0
    %1097 = vmatpush.xpose.msra.mxu0 0.0
    %1098 = vmatpush.xpose.msra.mxu0 0.0
    %1099 = vmatpush.xpose.msra.mxu0 0.0
    %1100 = vmatpush.xpose.msra.mxu0 0.0
    %1101 = vmatpush.xpose.msra.mxu0 0.0
    %1102 = vmatpush.xpose.msra.mxu0 0.0
    %v1103 = vand.u32 %v430, 4294901760
    %1104 = vmatpush.xpose.msra.mxu0 %v1103
    %v1105 = vand.u32 %v300, 4294901760
    %1106 = vmatmul.f32.gmra.mxu0 %v1105
    %v1107 = vpop.f32.mrf.mxu0
    %v1108 = vadd.f32 %v1086, %v1107
    %1109 = vdwg.mxu0
    %1110 = vmatpush.xpose.msra.mxu0 0.0
    %1111 = vmatpush.xpose.msra.mxu0 0.0
    %1112 = vmatpush.xpose.msra.mxu0 0.0
    %1113 = vmatpush.xpose.msra.mxu0 0.0
    %1114 = vmatpush.xpose.msra.mxu0 0.0
    %1115 = vmatpush.xpose.msra.mxu0 0.0
    %1116 = vmatpush.xpose.msra.mxu0 0.0
    %1117 = vmatpush.xpose.msra.mxu0 0.0
    %1118 = vmatpush.xpose.msra.mxu0 0.0
    %1119 = vmatpush.xpose.msra.mxu0 0.0
    %1120 = vmatpush.xpose.msra.mxu0 0.0
    %1121 = vmatpush.xpose.msra.mxu0 0.0
    %1122 = vmatpush.xpose.msra.mxu0 0.0
    %1123 = vmatpush.xpose.msra.mxu0 0.0
    %1124 = vmatpush.xpose.msra.mxu0 0.0
    %v1125 = vand.u32 %v431, 4294901760
    %1126 = vmatpush.xpose.msra.mxu0 %v1125
    %v1127 = vand.u32 %v301, 4294901760
    %v1128 = vsub.f32 %v301, %v1127
    %v1129 = vand.u32 %v1128, 4294901760
    %v1130 = vsub.f32 %v1128, %v1129
    %v1131 = vand.u32 %v1130, 4294901760
    %1132 = vmatmul.f32.gmra.mxu0 %v1131
    %v1133 = vpop.f32.mrf.mxu0
    %v1134 = vadd.f32 %v1108, %v1133
    %1135 = vdwg.mxu0
    %1136 = vmatpush.xpose.msra.mxu0 0.0
    %1137 = vmatpush.xpose.msra.mxu0 0.0
    %1138 = vmatpush.xpose.msra.mxu0 0.0
    %1139 = vmatpush.xpose.msra.mxu0 0.0
    %1140 = vmatpush.xpose.msra.mxu0 0.0
    %1141 = vmatpush.xpose.msra.mxu0 0.0
    %1142 = vmatpush.xpose.msra.mxu0 0.0
    %1143 = vmatpush.xpose.msra.mxu0 0.0
    %1144 = vmatpush.xpose.msra.mxu0 0.0
    %1145 = vmatpush.xpose.msra.mxu0 0.0
    %1146 = vmatpush.xpose.msra.mxu0 0.0
    %1147 = vmatpush.xpose.msra.mxu0 0.0
    %1148 = vmatpush.xpose.msra.mxu0 0.0
    %1149 = vmatpush.xpose.msra.mxu0 0.0
    %1150 = vmatpush.xpose.msra.mxu0 0.0
    %v1151 = vand.u32 %v431, 4294901760
    %v1152 = vsub.f32 %v431, %v1151
    %v1153 = vand.u32 %v1152, 4294901760
    %v1154 = vsub.f32 %v1152, %v1153
    %v1155 = vand.u32 %v1154, 4294901760
    %1156 = vmatpush.xpose.msra.mxu0 %v1155
    %v1157 = vand.u32 %v301, 4294901760
    %1158 = vmatmul.f32.gmra.mxu0 %v1157
    %v1159 = vpop.f32.mrf.mxu0
    %v1160 = vadd.f32 %v1134, %v1159
    %1161 = vdwg.mxu0
    %1162 = vmatpush.xpose.msra.mxu0 0.0
    %1163 = vmatpush.xpose.msra.mxu0 0.0
    %1164 = vmatpush.xpose.msra.mxu0 0.0
    %1165 = vmatpush.xpose.msra.mxu0 0.0
    %1166 = vmatpush.xpose.msra.mxu0 0.0
    %1167 = vmatpush.xpose.msra.mxu0 0.0
    %1168 = vmatpush.xpose.msra.mxu0 0.0
    %1169 = vmatpush.xpose.msra.mxu0 0.0
    %1170 = vmatpush.xpose.msra.mxu0 0.0
    %1171 = vmatpush.xpose.msra.mxu0 0.0
    %1172 = vmatpush.xpose.msra.mxu0 0.0
    %1173 = vmatpush.xpose.msra.mxu0 0.0
    %1174 = vmatpush.xpose.msra.mxu0 0.0
    %1175 = vmatpush.xpose.msra.mxu0 0.0
    %1176 = vmatpush.xpose.msra.mxu0 0.0
    %v1177 = vand.u32 %v431, 4294901760
    %v1178 = vsub.f32 %v431, %v1177
    %1179 = vmatpush.xpose.msra.mxu0 %v1178
    %v1180 = vand.u32 %v301, 4294901760
    %v1181 = vsub.f32 %v301, %v1180
    %1182 = vmatmul.f32.gmra.mxu0 %v1181
    %v1183 = vpop.f32.mrf.mxu0
    %v1184 = vadd.f32 %v1160, %v1183
    %1185 = vdwg.mxu0
    %1186 = vmatpush.xpose.msra.mxu0 0.0
    %1187 = vmatpush.xpose.msra.mxu0 0.0
    %1188 = vmatpush.xpose.msra.mxu0 0.0
    %1189 = vmatpush.xpose.msra.mxu0 0.0
    %1190 = vmatpush.xpose.msra.mxu0 0.0
    %1191 = vmatpush.xpose.msra.mxu0 0.0
    %1192 = vmatpush.xpose.msra.mxu0 0.0
    %1193 = vmatpush.xpose.msra.mxu0 0.0
    %1194 = vmatpush.xpose.msra.mxu0 0.0
    %1195 = vmatpush.xpose.msra.mxu0 0.0
    %1196 = vmatpush.xpose.msra.mxu0 0.0
    %1197 = vmatpush.xpose.msra.mxu0 0.0
    %1198 = vmatpush.xpose.msra.mxu0 0.0
    %1199 = vmatpush.xpose.msra.mxu0 0.0
    %1200 = vmatpush.xpose.msra.mxu0 0.0
    %v1201 = vand.u32 %v431, 4294901760
    %1202 = vmatpush.xpose.msra.mxu0 %v1201
    %v1203 = vand.u32 %v301, 4294901760
    %v1204 = vsub.f32 %v301, %v1203
    %v1205 = vand.u32 %v1204, 4294901760
    %1206 = vmatmul.f32.gmra.mxu0 %v1205
    %v1207 = vpop.f32.mrf.mxu0
    %v1208 = vadd.f32 %v1184, %v1207
    %1209 = vdwg.mxu0
    %1210 = vmatpush.xpose.msra.mxu0 0.0
    %1211 = vmatpush.xpose.msra.mxu0 0.0
    %1212 = vmatpush.xpose.msra.mxu0 0.0
    %1213 = vmatpush.xpose.msra.mxu0 0.0
    %1214 = vmatpush.xpose.msra.mxu0 0.0
    %1215 = vmatpush.xpose.msra.mxu0 0.0
    %1216 = vmatpush.xpose.msra.mxu0 0.0
    %1217 = vmatpush.xpose.msra.mxu0 0.0
    %1218 = vmatpush.xpose.msra.mxu0 0.0
    %1219 = vmatpush.xpose.msra.mxu0 0.0
    %1220 = vmatpush.xpose.msra.mxu0 0.0
    %1221 = vmatpush.xpose.msra.mxu0 0.0
    %1222 = vmatpush.xpose.msra.mxu0 0.0
    %1223 = vmatpush.xpose.msra.mxu0 0.0
    %1224 = vmatpush.xpose.msra.mxu0 0.0
    %v1225 = vand.u32 %v431, 4294901760
    %v1226 = vsub.f32 %v431, %v1225
    %v1227 = vand.u32 %v1226, 4294901760
    %1228 = vmatpush.xpose.msra.mxu0 %v1227
    %v1229 = vand.u32 %v301, 4294901760
    %1230 = vmatmul.f32.gmra.mxu0 %v1229
    %v1231 = vpop.f32.mrf.mxu0
    %v1232 = vadd.f32 %v1208, %v1231
    %1233 = vdwg.mxu0
    %1234 = vmatpush.xpose.msra.mxu0 0.0
    %1235 = vmatpush.xpose.msra.mxu0 0.0
    %1236 = vmatpush.xpose.msra.mxu0 0.0
    %1237 = vmatpush.xpose.msra.mxu0 0.0
    %1238 = vmatpush.xpose.msra.mxu0 0.0
    %1239 = vmatpush.xpose.msra.mxu0 0.0
    %1240 = vmatpush.xpose.msra.mxu0 0.0
    %1241 = vmatpush.xpose.msra.mxu0 0.0
    %1242 = vmatpush.xpose.msra.mxu0 0.0
    %1243 = vmatpush.xpose.msra.mxu0 0.0
    %1244 = vmatpush.xpose.msra.mxu0 0.0
    %1245 = vmatpush.xpose.msra.mxu0 0.0
    %1246 = vmatpush.xpose.msra.mxu0 0.0
    %1247 = vmatpush.xpose.msra.mxu0 0.0
    %1248 = vmatpush.xpose.msra.mxu0 0.0
    %v1249 = vand.u32 %v431, 4294901760
    %1250 = vmatpush.xpose.msra.mxu0 %v1249
    %v1251 = vand.u32 %v301, 4294901760
    %1252 = vmatmul.f32.gmra.mxu0 %v1251
    %v1253 = vpop.f32.mrf.mxu0
    %v1254 = vadd.f32 %v1232, %v1253
    %1255 = vdwg.mxu0
    %1256 = vmatpush.xpose.msra.mxu0 0.0
    %1257 = vmatpush.xpose.msra.mxu0 0.0
    %1258 = vmatpush.xpose.msra.mxu0 0.0
    %1259 = vmatpush.xpose.msra.mxu0 0.0
    %1260 = vmatpush.xpose.msra.mxu0 0.0
    %1261 = vmatpush.xpose.msra.mxu0 0.0
    %1262 = vmatpush.xpose.msra.mxu0 0.0
    %1263 = vmatpush.xpose.msra.mxu0 0.0
    %1264 = vmatpush.xpose.msra.mxu0 0.0
    %1265 = vmatpush.xpose.msra.mxu0 0.0
    %1266 = vmatpush.xpose.msra.mxu0 0.0
    %1267 = vmatpush.xpose.msra.mxu0 0.0
    %1268 = vmatpush.xpose.msra.mxu0 0.0
    %1269 = vmatpush.xpose.msra.mxu0 0.0
    %1270 = vmatpush.xpose.msra.mxu0 0.0
    %v1271 = vand.u32 %v432, 4294901760
    %1272 = vmatpush.xpose.msra.mxu0 %v1271
    %v1273 = vand.u32 %v302, 4294901760
    %v1274 = vsub.f32 %v302, %v1273
    %v1275 = vand.u32 %v1274, 4294901760
    %v1276 = vsub.f32 %v1274, %v1275
    %v1277 = vand.u32 %v1276, 4294901760
    %1278 = vmatmul.f32.gmra.mxu0 %v1277
    %v1279 = vpop.f32.mrf.mxu0
    %v1280 = vadd.f32 %v1254, %v1279
    %1281 = vdwg.mxu0
    %1282 = vmatpush.xpose.msra.mxu0 0.0
    %1283 = vmatpush.xpose.msra.mxu0 0.0
    %1284 = vmatpush.xpose.msra.mxu0 0.0
    %1285 = vmatpush.xpose.msra.mxu0 0.0
    %1286 = vmatpush.xpose.msra.mxu0 0.0
    %1287 = vmatpush.xpose.msra.mxu0 0.0
    %1288 = vmatpush.xpose.msra.mxu0 0.0
    %1289 = vmatpush.xpose.msra.mxu0 0.0
    %1290 = vmatpush.xpose.msra.mxu0 0.0
    %1291 = vmatpush.xpose.msra.mxu0 0.0
    %1292 = vmatpush.xpose.msra.mxu0 0.0
    %1293 = vmatpush.xpose.msra.mxu0 0.0
    %1294 = vmatpush.xpose.msra.mxu0 0.0
    %1295 = vmatpush.xpose.msra.mxu0 0.0
    %1296 = vmatpush.xpose.msra.mxu0 0.0
    %v1297 = vand.u32 %v432, 4294901760
    %v1298 = vsub.f32 %v432, %v1297
    %v1299 = vand.u32 %v1298, 4294901760
    %v1300 = vsub.f32 %v1298, %v1299
    %v1301 = vand.u32 %v1300, 4294901760
    %1302 = vmatpush.xpose.msra.mxu0 %v1301
    %v1303 = vand.u32 %v302, 4294901760
    %1304 = vmatmul.f32.gmra.mxu0 %v1303
    %v1305 = vpop.f32.mrf.mxu0
    %v1306 = vadd.f32 %v1280, %v1305
    %1307 = vdwg.mxu0
    %1308 = vmatpush.xpose.msra.mxu0 0.0
    %1309 = vmatpush.xpose.msra.mxu0 0.0
    %1310 = vmatpush.xpose.msra.mxu0 0.0
    %1311 = vmatpush.xpose.msra.mxu0 0.0
    %1312 = vmatpush.xpose.msra.mxu0 0.0
    %1313 = vmatpush.xpose.msra.mxu0 0.0
    %1314 = vmatpush.xpose.msra.mxu0 0.0
    %1315 = vmatpush.xpose.msra.mxu0 0.0
    %1316 = vmatpush.xpose.msra.mxu0 0.0
    %1317 = vmatpush.xpose.msra.mxu0 0.0
    %1318 = vmatpush.xpose.msra.mxu0 0.0
    %1319 = vmatpush.xpose.msra.mxu0 0.0
    %1320 = vmatpush.xpose.msra.mxu0 0.0
    %1321 = vmatpush.xpose.msra.mxu0 0.0
    %1322 = vmatpush.xpose.msra.mxu0 0.0
    %v1323 = vand.u32 %v432, 4294901760
    %v1324 = vsub.f32 %v432, %v1323
    %1325 = vmatpush.xpose.msra.mxu0 %v1324
    %v1326 = vand.u32 %v302, 4294901760
    %v1327 = vsub.f32 %v302, %v1326
    %1328 = vmatmul.f32.gmra.mxu0 %v1327
    %v1329 = vpop.f32.mrf.mxu0
    %v1330 = vadd.f32 %v1306, %v1329
    %1331 = vdwg.mxu0
    %1332 = vmatpush.xpose.msra.mxu0 0.0
    %1333 = vmatpush.xpose.msra.mxu0 0.0
    %1334 = vmatpush.xpose.msra.mxu0 0.0
    %1335 = vmatpush.xpose.msra.mxu0 0.0
    %1336 = vmatpush.xpose.msra.mxu0 0.0
    %1337 = vmatpush.xpose.msra.mxu0 0.0
    %1338 = vmatpush.xpose.msra.mxu0 0.0
    %1339 = vmatpush.xpose.msra.mxu0 0.0
    %1340 = vmatpush.xpose.msra.mxu0 0.0
    %1341 = vmatpush.xpose.msra.mxu0 0.0
    %1342 = vmatpush.xpose.msra.mxu0 0.0
    %1343 = vmatpush.xpose.msra.mxu0 0.0
    %1344 = vmatpush.xpose.msra.mxu0 0.0
    %1345 = vmatpush.xpose.msra.mxu0 0.0
    %1346 = vmatpush.xpose.msra.mxu0 0.0
    %v1347 = vand.u32 %v432, 4294901760
    %1348 = vmatpush.xpose.msra.mxu0 %v1347
    %v1349 = vand.u32 %v302, 4294901760
    %v1350 = vsub.f32 %v302, %v1349
    %v1351 = vand.u32 %v1350, 4294901760
    %1352 = vmatmul.f32.gmra.mxu0 %v1351
    %v1353 = vpop.f32.mrf.mxu0
    %v1354 = vadd.f32 %v1330, %v1353
    %1355 = vdwg.mxu0
    %1356 = vmatpush.xpose.msra.mxu0 0.0
    %1357 = vmatpush.xpose.msra.mxu0 0.0
    %1358 = vmatpush.xpose.msra.mxu0 0.0
    %1359 = vmatpush.xpose.msra.mxu0 0.0
    %1360 = vmatpush.xpose.msra.mxu0 0.0
    %1361 = vmatpush.xpose.msra.mxu0 0.0
    %1362 = vmatpush.xpose.msra.mxu0 0.0
    %1363 = vmatpush.xpose.msra.mxu0 0.0
    %1364 = vmatpush.xpose.msra.mxu0 0.0
    %1365 = vmatpush.xpose.msra.mxu0 0.0
    %1366 = vmatpush.xpose.msra.mxu0 0.0
    %1367 = vmatpush.xpose.msra.mxu0 0.0
    %1368 = vmatpush.xpose.msra.mxu0 0.0
    %1369 = vmatpush.xpose.msra.mxu0 0.0
    %1370 = vmatpush.xpose.msra.mxu0 0.0
    %v1371 = vand.u32 %v432, 4294901760
    %v1372 = vsub.f32 %v432, %v1371
    %v1373 = vand.u32 %v1372, 4294901760
    %1374 = vmatpush.xpose.msra.mxu0 %v1373
    %v1375 = vand.u32 %v302, 4294901760
    %1376 = vmatmul.f32.gmra.mxu0 %v1375
    %v1377 = vpop.f32.mrf.mxu0
    %v1378 = vadd.f32 %v1354, %v1377
    %1379 = vdwg.mxu0
    %1380 = vmatpush.xpose.msra.mxu0 0.0
    %1381 = vmatpush.xpose.msra.mxu0 0.0
    %1382 = vmatpush.xpose.msra.mxu0 0.0
    %1383 = vmatpush.xpose.msra.mxu0 0.0
    %1384 = vmatpush.xpose.msra.mxu0 0.0
    %1385 = vmatpush.xpose.msra.mxu0 0.0
    %1386 = vmatpush.xpose.msra.mxu0 0.0
    %1387 = vmatpush.xpose.msra.mxu0 0.0
    %1388 = vmatpush.xpose.msra.mxu0 0.0
    %1389 = vmatpush.xpose.msra.mxu0 0.0
    %1390 = vmatpush.xpose.msra.mxu0 0.0
    %1391 = vmatpush.xpose.msra.mxu0 0.0
    %1392 = vmatpush.xpose.msra.mxu0 0.0
    %1393 = vmatpush.xpose.msra.mxu0 0.0
    %1394 = vmatpush.xpose.msra.mxu0 0.0
    %v1395 = vand.u32 %v432, 4294901760
    %1396 = vmatpush.xpose.msra.mxu0 %v1395
    %v1397 = vand.u32 %v302, 4294901760
    %1398 = vmatmul.f32.gmra.mxu0 %v1397
    %v1399 = vpop.f32.mrf.mxu0
    %v1400 = vadd.f32 %v1378, %v1399
    %1401 = vdwg.mxu0
    %1402 = vmatpush.xpose.msra.mxu0 0.0
    %1403 = vmatpush.xpose.msra.mxu0 0.0
    %1404 = vmatpush.xpose.msra.mxu0 0.0
    %1405 = vmatpush.xpose.msra.mxu0 0.0
    %1406 = vmatpush.xpose.msra.mxu0 0.0
    %1407 = vmatpush.xpose.msra.mxu0 0.0
    %1408 = vmatpush.xpose.msra.mxu0 0.0
    %1409 = vmatpush.xpose.msra.mxu0 0.0
    %1410 = vmatpush.xpose.msra.mxu0 0.0
    %1411 = vmatpush.xpose.msra.mxu0 0.0
    %1412 = vmatpush.xpose.msra.mxu0 0.0
    %1413 = vmatpush.xpose.msra.mxu0 0.0
    %1414 = vmatpush.xpose.msra.mxu0 0.0
    %1415 = vmatpush.xpose.msra.mxu0 0.0
    %1416 = vmatpush.xpose.msra.mxu0 0.0
    %v1417 = vand.u32 %v433, 4294901760
    %1418 = vmatpush.xpose.msra.mxu0 %v1417
    %v1419 = vand.u32 %v303, 4294901760
    %v1420 = vsub.f32 %v303, %v1419
    %v1421 = vand.u32 %v1420, 4294901760
    %v1422 = vsub.f32 %v1420, %v1421
    %v1423 = vand.u32 %v1422, 4294901760
    %1424 = vmatmul.f32.gmra.mxu0 %v1423
    %v1425 = vpop.f32.mrf.mxu0
    %v1426 = vadd.f32 %v1400, %v1425
    %1427 = vdwg.mxu0
    %1428 = vmatpush.xpose.msra.mxu0 0.0
    %1429 = vmatpush.xpose.msra.mxu0 0.0
    %1430 = vmatpush.xpose.msra.mxu0 0.0
    %1431 = vmatpush.xpose.msra.mxu0 0.0
    %1432 = vmatpush.xpose.msra.mxu0 0.0
    %1433 = vmatpush.xpose.msra.mxu0 0.0
    %1434 = vmatpush.xpose.msra.mxu0 0.0
    %1435 = vmatpush.xpose.msra.mxu0 0.0
    %1436 = vmatpush.xpose.msra.mxu0 0.0
    %1437 = vmatpush.xpose.msra.mxu0 0.0
    %1438 = vmatpush.xpose.msra.mxu0 0.0
    %1439 = vmatpush.xpose.msra.mxu0 0.0
    %1440 = vmatpush.xpose.msra.mxu0 0.0
    %1441 = vmatpush.xpose.msra.mxu0 0.0
    %1442 = vmatpush.xpose.msra.mxu0 0.0
    %v1443 = vand.u32 %v433, 4294901760
    %v1444 = vsub.f32 %v433, %v1443
    %v1445 = vand.u32 %v1444, 4294901760
    %v1446 = vsub.f32 %v1444, %v1445
    %v1447 = vand.u32 %v1446, 4294901760
    %1448 = vmatpush.xpose.msra.mxu0 %v1447
    %v1449 = vand.u32 %v303, 4294901760
    %1450 = vmatmul.f32.gmra.mxu0 %v1449
    %v1451 = vpop.f32.mrf.mxu0
    %v1452 = vadd.f32 %v1426, %v1451
    %1453 = vdwg.mxu0
    %1454 = vmatpush.xpose.msra.mxu0 0.0
    %1455 = vmatpush.xpose.msra.mxu0 0.0
    %1456 = vmatpush.xpose.msra.mxu0 0.0
    %1457 = vmatpush.xpose.msra.mxu0 0.0
    %1458 = vmatpush.xpose.msra.mxu0 0.0
    %1459 = vmatpush.xpose.msra.mxu0 0.0
    %1460 = vmatpush.xpose.msra.mxu0 0.0
    %1461 = vmatpush.xpose.msra.mxu0 0.0
    %1462 = vmatpush.xpose.msra.mxu0 0.0
    %1463 = vmatpush.xpose.msra.mxu0 0.0
    %1464 = vmatpush.xpose.msra.mxu0 0.0
    %1465 = vmatpush.xpose.msra.mxu0 0.0
    %1466 = vmatpush.xpose.msra.mxu0 0.0
    %1467 = vmatpush.xpose.msra.mxu0 0.0
    %1468 = vmatpush.xpose.msra.mxu0 0.0
    %v1469 = vand.u32 %v433, 4294901760
    %v1470 = vsub.f32 %v433, %v1469
    %1471 = vmatpush.xpose.msra.mxu0 %v1470
    %v1472 = vand.u32 %v303, 4294901760
    %v1473 = vsub.f32 %v303, %v1472
    %1474 = vmatmul.f32.gmra.mxu0 %v1473
    %v1475 = vpop.f32.mrf.mxu0
    %v1476 = vadd.f32 %v1452, %v1475
    %1477 = vdwg.mxu0
    %1478 = vmatpush.xpose.msra.mxu0 0.0
    %1479 = vmatpush.xpose.msra.mxu0 0.0
    %1480 = vmatpush.xpose.msra.mxu0 0.0
    %1481 = vmatpush.xpose.msra.mxu0 0.0
    %1482 = vmatpush.xpose.msra.mxu0 0.0
    %1483 = vmatpush.xpose.msra.mxu0 0.0
    %1484 = vmatpush.xpose.msra.mxu0 0.0
    %1485 = vmatpush.xpose.msra.mxu0 0.0
    %1486 = vmatpush.xpose.msra.mxu0 0.0
    %1487 = vmatpush.xpose.msra.mxu0 0.0
    %1488 = vmatpush.xpose.msra.mxu0 0.0
    %1489 = vmatpush.xpose.msra.mxu0 0.0
    %1490 = vmatpush.xpose.msra.mxu0 0.0
    %1491 = vmatpush.xpose.msra.mxu0 0.0
    %1492 = vmatpush.xpose.msra.mxu0 0.0
    %v1493 = vand.u32 %v433, 4294901760
    %1494 = vmatpush.xpose.msra.mxu0 %v1493
    %v1495 = vand.u32 %v303, 4294901760
    %v1496 = vsub.f32 %v303, %v1495
    %v1497 = vand.u32 %v1496, 4294901760
    %1498 = vmatmul.f32.gmra.mxu0 %v1497
    %v1499 = vpop.f32.mrf.mxu0
    %v1500 = vadd.f32 %v1476, %v1499
    %1501 = vdwg.mxu0
    %1502 = vmatpush.xpose.msra.mxu0 0.0
    %1503 = vmatpush.xpose.msra.mxu0 0.0
    %1504 = vmatpush.xpose.msra.mxu0 0.0
    %1505 = vmatpush.xpose.msra.mxu0 0.0
    %1506 = vmatpush.xpose.msra.mxu0 0.0
    %1507 = vmatpush.xpose.msra.mxu0 0.0
    %1508 = vmatpush.xpose.msra.mxu0 0.0
    %1509 = vmatpush.xpose.msra.mxu0 0.0
    %1510 = vmatpush.xpose.msra.mxu0 0.0
    %1511 = vmatpush.xpose.msra.mxu0 0.0
    %1512 = vmatpush.xpose.msra.mxu0 0.0
    %1513 = vmatpush.xpose.msra.mxu0 0.0
    %1514 = vmatpush.xpose.msra.mxu0 0.0
    %1515 = vmatpush.xpose.msra.mxu0 0.0
    %1516 = vmatpush.xpose.msra.mxu0 0.0
    %v1517 = vand.u32 %v433, 4294901760
    %v1518 = vsub.f32 %v433, %v1517
    %v1519 = vand.u32 %v1518, 4294901760
    %1520 = vmatpush.xpose.msra.mxu0 %v1519
    %v1521 = vand.u32 %v303, 4294901760
    %1522 = vmatmul.f32.gmra.mxu0 %v1521
    %v1523 = vpop.f32.mrf.mxu0
    %v1524 = vadd.f32 %v1500, %v1523
    %1525 = vdwg.mxu0
    %1526 = vmatpush.xpose.msra.mxu0 0.0
    %1527 = vmatpush.xpose.msra.mxu0 0.0
    %1528 = vmatpush.xpose.msra.mxu0 0.0
    %1529 = vmatpush.xpose.msra.mxu0 0.0
    %1530 = vmatpush.xpose.msra.mxu0 0.0
    %1531 = vmatpush.xpose.msra.mxu0 0.0
    %1532 = vmatpush.xpose.msra.mxu0 0.0
    %1533 = vmatpush.xpose.msra.mxu0 0.0
    %1534 = vmatpush.xpose.msra.mxu0 0.0
    %1535 = vmatpush.xpose.msra.mxu0 0.0
    %1536 = vmatpush.xpose.msra.mxu0 0.0
    %1537 = vmatpush.xpose.msra.mxu0 0.0
    %1538 = vmatpush.xpose.msra.mxu0 0.0
    %1539 = vmatpush.xpose.msra.mxu0 0.0
    %1540 = vmatpush.xpose.msra.mxu0 0.0
    %v1541 = vand.u32 %v433, 4294901760
    %1542 = vmatpush.xpose.msra.mxu0 %v1541
    %v1543 = vand.u32 %v303, 4294901760
    %1544 = vmatmul.f32.gmra.mxu0 %v1543
    %v1545 = vpop.f32.mrf.mxu0
    %v1546 = vadd.f32 %v1524, %v1545
    %1547 = vdwg.mxu0
    %1548 = vmatpush.xpose.msra.mxu0 0.0
    %1549 = vmatpush.xpose.msra.mxu0 0.0
    %1550 = vmatpush.xpose.msra.mxu0 0.0
    %1551 = vmatpush.xpose.msra.mxu0 0.0
    %1552 = vmatpush.xpose.msra.mxu0 0.0
    %1553 = vmatpush.xpose.msra.mxu0 0.0
    %1554 = vmatpush.xpose.msra.mxu0 0.0
    %1555 = vmatpush.xpose.msra.mxu0 0.0
    %1556 = vmatpush.xpose.msra.mxu0 0.0
    %1557 = vmatpush.xpose.msra.mxu0 0.0
    %1558 = vmatpush.xpose.msra.mxu0 0.0
    %1559 = vmatpush.xpose.msra.mxu0 0.0
    %1560 = vmatpush.xpose.msra.mxu0 0.0
    %1561 = vmatpush.xpose.msra.mxu0 0.0
    %1562 = vmatpush.xpose.msra.mxu0 0.0
    %v1563 = vand.u32 %v434, 4294901760
    %1564 = vmatpush.xpose.msra.mxu0 %v1563
    %v1565 = vand.u32 %v304, 4294901760
    %v1566 = vsub.f32 %v304, %v1565
    %v1567 = vand.u32 %v1566, 4294901760
    %v1568 = vsub.f32 %v1566, %v1567
    %v1569 = vand.u32 %v1568, 4294901760
    %1570 = vmatmul.f32.gmra.mxu0 %v1569
    %v1571 = vpop.f32.mrf.mxu0
    %v1572 = vadd.f32 %v1546, %v1571
    %1573 = vdwg.mxu0
    %1574 = vmatpush.xpose.msra.mxu0 0.0
    %1575 = vmatpush.xpose.msra.mxu0 0.0
    %1576 = vmatpush.xpose.msra.mxu0 0.0
    %1577 = vmatpush.xpose.msra.mxu0 0.0
    %1578 = vmatpush.xpose.msra.mxu0 0.0
    %1579 = vmatpush.xpose.msra.mxu0 0.0
    %1580 = vmatpush.xpose.msra.mxu0 0.0
    %1581 = vmatpush.xpose.msra.mxu0 0.0
    %1582 = vmatpush.xpose.msra.mxu0 0.0
    %1583 = vmatpush.xpose.msra.mxu0 0.0
    %1584 = vmatpush.xpose.msra.mxu0 0.0
    %1585 = vmatpush.xpose.msra.mxu0 0.0
    %1586 = vmatpush.xpose.msra.mxu0 0.0
    %1587 = vmatpush.xpose.msra.mxu0 0.0
    %1588 = vmatpush.xpose.msra.mxu0 0.0
    %v1589 = vand.u32 %v434, 4294901760
    %v1590 = vsub.f32 %v434, %v1589
    %v1591 = vand.u32 %v1590, 4294901760
    %v1592 = vsub.f32 %v1590, %v1591
    %v1593 = vand.u32 %v1592, 4294901760
    %1594 = vmatpush.xpose.msra.mxu0 %v1593
    %v1595 = vand.u32 %v304, 4294901760
    %1596 = vmatmul.f32.gmra.mxu0 %v1595
    %v1597 = vpop.f32.mrf.mxu0
    %v1598 = vadd.f32 %v1572, %v1597
    %1599 = vdwg.mxu0
    %1600 = vmatpush.xpose.msra.mxu0 0.0
    %1601 = vmatpush.xpose.msra.mxu0 0.0
    %1602 = vmatpush.xpose.msra.mxu0 0.0
    %1603 = vmatpush.xpose.msra.mxu0 0.0
    %1604 = vmatpush.xpose.msra.mxu0 0.0
    %1605 = vmatpush.xpose.msra.mxu0 0.0
    %1606 = vmatpush.xpose.msra.mxu0 0.0
    %1607 = vmatpush.xpose.msra.mxu0 0.0
    %1608 = vmatpush.xpose.msra.mxu0 0.0
    %1609 = vmatpush.xpose.msra.mxu0 0.0
    %1610 = vmatpush.xpose.msra.mxu0 0.0
    %1611 = vmatpush.xpose.msra.mxu0 0.0
    %1612 = vmatpush.xpose.msra.mxu0 0.0
    %1613 = vmatpush.xpose.msra.mxu0 0.0
    %1614 = vmatpush.xpose.msra.mxu0 0.0
    %v1615 = vand.u32 %v434, 4294901760
    %v1616 = vsub.f32 %v434, %v1615
    %1617 = vmatpush.xpose.msra.mxu0 %v1616
    %v1618 = vand.u32 %v304, 4294901760
    %v1619 = vsub.f32 %v304, %v1618
    %1620 = vmatmul.f32.gmra.mxu0 %v1619
    %v1621 = vpop.f32.mrf.mxu0
    %v1622 = vadd.f32 %v1598, %v1621
    %1623 = vdwg.mxu0
    %1624 = vmatpush.xpose.msra.mxu0 0.0
    %1625 = vmatpush.xpose.msra.mxu0 0.0
    %1626 = vmatpush.xpose.msra.mxu0 0.0
    %1627 = vmatpush.xpose.msra.mxu0 0.0
    %1628 = vmatpush.xpose.msra.mxu0 0.0
    %1629 = vmatpush.xpose.msra.mxu0 0.0
    %1630 = vmatpush.xpose.msra.mxu0 0.0
    %1631 = vmatpush.xpose.msra.mxu0 0.0
    %1632 = vmatpush.xpose.msra.mxu0 0.0
    %1633 = vmatpush.xpose.msra.mxu0 0.0
    %1634 = vmatpush.xpose.msra.mxu0 0.0
    %1635 = vmatpush.xpose.msra.mxu0 0.0
    %1636 = vmatpush.xpose.msra.mxu0 0.0
    %1637 = vmatpush.xpose.msra.mxu0 0.0
    %1638 = vmatpush.xpose.msra.mxu0 0.0
    %v1639 = vand.u32 %v434, 4294901760
    %1640 = vmatpush.xpose.msra.mxu0 %v1639
    %v1641 = vand.u32 %v304, 4294901760
    %v1642 = vsub.f32 %v304, %v1641
    %v1643 = vand.u32 %v1642, 4294901760
    %1644 = vmatmul.f32.gmra.mxu0 %v1643
    %v1645 = vpop.f32.mrf.mxu0
    %v1646 = vadd.f32 %v1622, %v1645
    %1647 = vdwg.mxu0
    %1648 = vmatpush.xpose.msra.mxu0 0.0
    %1649 = vmatpush.xpose.msra.mxu0 0.0
    %1650 = vmatpush.xpose.msra.mxu0 0.0
    %1651 = vmatpush.xpose.msra.mxu0 0.0
    %1652 = vmatpush.xpose.msra.mxu0 0.0
    %1653 = vmatpush.xpose.msra.mxu0 0.0
    %1654 = vmatpush.xpose.msra.mxu0 0.0
    %1655 = vmatpush.xpose.msra.mxu0 0.0
    %1656 = vmatpush.xpose.msra.mxu0 0.0
    %1657 = vmatpush.xpose.msra.mxu0 0.0
    %1658 = vmatpush.xpose.msra.mxu0 0.0
    %1659 = vmatpush.xpose.msra.mxu0 0.0
    %1660 = vmatpush.xpose.msra.mxu0 0.0
    %1661 = vmatpush.xpose.msra.mxu0 0.0
    %1662 = vmatpush.xpose.msra.mxu0 0.0
    %v1663 = vand.u32 %v434, 4294901760
    %v1664 = vsub.f32 %v434, %v1663
    %v1665 = vand.u32 %v1664, 4294901760
    %1666 = vmatpush.xpose.msra.mxu0 %v1665
    %v1667 = vand.u32 %v304, 4294901760
    %1668 = vmatmul.f32.gmra.mxu0 %v1667
    %v1669 = vpop.f32.mrf.mxu0
    %v1670 = vadd.f32 %v1646, %v1669
    %1671 = vdwg.mxu0
    %1672 = vmatpush.xpose.msra.mxu0 0.0
    %1673 = vmatpush.xpose.msra.mxu0 0.0
    %1674 = vmatpush.xpose.msra.mxu0 0.0
    %1675 = vmatpush.xpose.msra.mxu0 0.0
    %1676 = vmatpush.xpose.msra.mxu0 0.0
    %1677 = vmatpush.xpose.msra.mxu0 0.0
    %1678 = vmatpush.xpose.msra.mxu0 0.0
    %1679 = vmatpush.xpose.msra.mxu0 0.0
    %1680 = vmatpush.xpose.msra.mxu0 0.0
    %1681 = vmatpush.xpose.msra.mxu0 0.0
    %1682 = vmatpush.xpose.msra.mxu0 0.0
    %1683 = vmatpush.xpose.msra.mxu0 0.0
    %1684 = vmatpush.xpose.msra.mxu0 0.0
    %1685 = vmatpush.xpose.msra.mxu0 0.0
    %1686 = vmatpush.xpose.msra.mxu0 0.0
    %v1687 = vand.u32 %v434, 4294901760
    %1688 = vmatpush.xpose.msra.mxu0 %v1687
    %v1689 = vand.u32 %v304, 4294901760
    %1690 = vmatmul.f32.gmra.mxu0 %v1689
    %v1691 = vpop.f32.mrf.mxu0
    %v1692 = vadd.f32 %v1670, %v1691
    %1693 = vdwg.mxu0
    %1694 = vmatpush.xpose.msra.mxu0 0.0
    %1695 = vmatpush.xpose.msra.mxu0 0.0
    %1696 = vmatpush.xpose.msra.mxu0 0.0
    %1697 = vmatpush.xpose.msra.mxu0 0.0
    %1698 = vmatpush.xpose.msra.mxu0 0.0
    %1699 = vmatpush.xpose.msra.mxu0 0.0
    %1700 = vmatpush.xpose.msra.mxu0 0.0
    %1701 = vmatpush.xpose.msra.mxu0 0.0
    %1702 = vmatpush.xpose.msra.mxu0 0.0
    %1703 = vmatpush.xpose.msra.mxu0 0.0
    %1704 = vmatpush.xpose.msra.mxu0 0.0
    %1705 = vmatpush.xpose.msra.mxu0 0.0
    %1706 = vmatpush.xpose.msra.mxu0 0.0
    %1707 = vmatpush.xpose.msra.mxu0 0.0
    %1708 = vmatpush.xpose.msra.mxu0 0.0
    %v1709 = vand.u32 %v435, 4294901760
    %1710 = vmatpush.xpose.msra.mxu0 %v1709
    %v1711 = vand.u32 %v305, 4294901760
    %v1712 = vsub.f32 %v305, %v1711
    %v1713 = vand.u32 %v1712, 4294901760
    %v1714 = vsub.f32 %v1712, %v1713
    %v1715 = vand.u32 %v1714, 4294901760
    %1716 = vmatmul.f32.gmra.mxu0 %v1715
    %v1717 = vpop.f32.mrf.mxu0
    %v1718 = vadd.f32 %v1692, %v1717
    %1719 = vdwg.mxu0
    %1720 = vmatpush.xpose.msra.mxu0 0.0
    %1721 = vmatpush.xpose.msra.mxu0 0.0
    %1722 = vmatpush.xpose.msra.mxu0 0.0
    %1723 = vmatpush.xpose.msra.mxu0 0.0
    %1724 = vmatpush.xpose.msra.mxu0 0.0
    %1725 = vmatpush.xpose.msra.mxu0 0.0
    %1726 = vmatpush.xpose.msra.mxu0 0.0
    %1727 = vmatpush.xpose.msra.mxu0 0.0
    %1728 = vmatpush.xpose.msra.mxu0 0.0
    %1729 = vmatpush.xpose.msra.mxu0 0.0
    %1730 = vmatpush.xpose.msra.mxu0 0.0
    %1731 = vmatpush.xpose.msra.mxu0 0.0
    %1732 = vmatpush.xpose.msra.mxu0 0.0
    %1733 = vmatpush.xpose.msra.mxu0 0.0
    %1734 = vmatpush.xpose.msra.mxu0 0.0
    %v1735 = vand.u32 %v435, 4294901760
    %v1736 = vsub.f32 %v435, %v1735
    %v1737 = vand.u32 %v1736, 4294901760
    %v1738 = vsub.f32 %v1736, %v1737
    %v1739 = vand.u32 %v1738, 4294901760
    %1740 = vmatpush.xpose.msra.mxu0 %v1739
    %v1741 = vand.u32 %v305, 4294901760
    %1742 = vmatmul.f32.gmra.mxu0 %v1741
    %v1743 = vpop.f32.mrf.mxu0
    %v1744 = vadd.f32 %v1718, %v1743
    %1745 = vdwg.mxu0
    %1746 = vmatpush.xpose.msra.mxu0 0.0
    %1747 = vmatpush.xpose.msra.mxu0 0.0
    %1748 = vmatpush.xpose.msra.mxu0 0.0
    %1749 = vmatpush.xpose.msra.mxu0 0.0
    %1750 = vmatpush.xpose.msra.mxu0 0.0
    %1751 = vmatpush.xpose.msra.mxu0 0.0
    %1752 = vmatpush.xpose.msra.mxu0 0.0
    %1753 = vmatpush.xpose.msra.mxu0 0.0
    %1754 = vmatpush.xpose.msra.mxu0 0.0
    %1755 = vmatpush.xpose.msra.mxu0 0.0
    %1756 = vmatpush.xpose.msra.mxu0 0.0
    %1757 = vmatpush.xpose.msra.mxu0 0.0
    %1758 = vmatpush.xpose.msra.mxu0 0.0
    %1759 = vmatpush.xpose.msra.mxu0 0.0
    %1760 = vmatpush.xpose.msra.mxu0 0.0
    %v1761 = vand.u32 %v435, 4294901760
    %v1762 = vsub.f32 %v435, %v1761
    %1763 = vmatpush.xpose.msra.mxu0 %v1762
    %v1764 = vand.u32 %v305, 4294901760
    %v1765 = vsub.f32 %v305, %v1764
    %1766 = vmatmul.f32.gmra.mxu0 %v1765
    %v1767 = vpop.f32.mrf.mxu0
    %v1768 = vadd.f32 %v1744, %v1767
    %1769 = vdwg.mxu0
    %1770 = vmatpush.xpose.msra.mxu0 0.0
    %1771 = vmatpush.xpose.msra.mxu0 0.0
    %1772 = vmatpush.xpose.msra.mxu0 0.0
    %1773 = vmatpush.xpose.msra.mxu0 0.0
    %1774 = vmatpush.xpose.msra.mxu0 0.0
    %1775 = vmatpush.xpose.msra.mxu0 0.0
    %1776 = vmatpush.xpose.msra.mxu0 0.0
    %1777 = vmatpush.xpose.msra.mxu0 0.0
    %1778 = vmatpush.xpose.msra.mxu0 0.0
    %1779 = vmatpush.xpose.msra.mxu0 0.0
    %1780 = vmatpush.xpose.msra.mxu0 0.0
    %1781 = vmatpush.xpose.msra.mxu0 0.0
    %1782 = vmatpush.xpose.msra.mxu0 0.0
    %1783 = vmatpush.xpose.msra.mxu0 0.0
    %1784 = vmatpush.xpose.msra.mxu0 0.0
    %v1785 = vand.u32 %v435, 4294901760
    %1786 = vmatpush.xpose.msra.mxu0 %v1785
    %v1787 = vand.u32 %v305, 4294901760
    %v1788 = vsub.f32 %v305, %v1787
    %v1789 = vand.u32 %v1788, 4294901760
    %1790 = vmatmul.f32.gmra.mxu0 %v1789
    %v1791 = vpop.f32.mrf.mxu0
    %v1792 = vadd.f32 %v1768, %v1791
    %1793 = vdwg.mxu0
    %1794 = vmatpush.xpose.msra.mxu0 0.0
    %1795 = vmatpush.xpose.msra.mxu0 0.0
    %1796 = vmatpush.xpose.msra.mxu0 0.0
    %1797 = vmatpush.xpose.msra.mxu0 0.0
    %1798 = vmatpush.xpose.msra.mxu0 0.0
    %1799 = vmatpush.xpose.msra.mxu0 0.0
    %1800 = vmatpush.xpose.msra.mxu0 0.0
    %1801 = vmatpush.xpose.msra.mxu0 0.0
    %1802 = vmatpush.xpose.msra.mxu0 0.0
    %1803 = vmatpush.xpose.msra.mxu0 0.0
    %1804 = vmatpush.xpose.msra.mxu0 0.0
    %1805 = vmatpush.xpose.msra.mxu0 0.0
    %1806 = vmatpush.xpose.msra.mxu0 0.0
    %1807 = vmatpush.xpose.msra.mxu0 0.0
    %1808 = vmatpush.xpose.msra.mxu0 0.0
    %v1809 = vand.u32 %v435, 4294901760
    %v1810 = vsub.f32 %v435, %v1809
    %v1811 = vand.u32 %v1810, 4294901760
    %1812 = vmatpush.xpose.msra.mxu0 %v1811
    %v1813 = vand.u32 %v305, 4294901760
    %1814 = vmatmul.f32.gmra.mxu0 %v1813
    %v1815 = vpop.f32.mrf.mxu0
    %v1816 = vadd.f32 %v1792, %v1815
    %1817 = vdwg.mxu0
    %1818 = vmatpush.xpose.msra.mxu0 0.0
    %1819 = vmatpush.xpose.msra.mxu0 0.0
    %1820 = vmatpush.xpose.msra.mxu0 0.0
    %1821 = vmatpush.xpose.msra.mxu0 0.0
    %1822 = vmatpush.xpose.msra.mxu0 0.0
    %1823 = vmatpush.xpose.msra.mxu0 0.0
    %1824 = vmatpush.xpose.msra.mxu0 0.0
    %1825 = vmatpush.xpose.msra.mxu0 0.0
    %1826 = vmatpush.xpose.msra.mxu0 0.0
    %1827 = vmatpush.xpose.msra.mxu0 0.0
    %1828 = vmatpush.xpose.msra.mxu0 0.0
    %1829 = vmatpush.xpose.msra.mxu0 0.0
    %1830 = vmatpush.xpose.msra.mxu0 0.0
    %1831 = vmatpush.xpose.msra.mxu0 0.0
    %1832 = vmatpush.xpose.msra.mxu0 0.0
    %v1833 = vand.u32 %v435, 4294901760
    %1834 = vmatpush.xpose.msra.mxu0 %v1833
    %v1835 = vand.u32 %v305, 4294901760
    %1836 = vmatmul.f32.gmra.mxu0 %v1835
    %v1837 = vpop.f32.mrf.mxu0
    %v1838 = vadd.f32 %v1816, %v1837
    %1839 = vdwg.mxu0
    %1840 = vmatpush.xpose.msra.mxu0 0.0
    %1841 = vmatpush.xpose.msra.mxu0 0.0
    %1842 = vmatpush.xpose.msra.mxu0 0.0
    %1843 = vmatpush.xpose.msra.mxu0 0.0
    %1844 = vmatpush.xpose.msra.mxu0 0.0
    %1845 = vmatpush.xpose.msra.mxu0 0.0
    %1846 = vmatpush.xpose.msra.mxu0 0.0
    %1847 = vmatpush.xpose.msra.mxu0 0.0
    %1848 = vmatpush.xpose.msra.mxu0 0.0
    %1849 = vmatpush.xpose.msra.mxu0 0.0
    %1850 = vmatpush.xpose.msra.mxu0 0.0
    %1851 = vmatpush.xpose.msra.mxu0 0.0
    %1852 = vmatpush.xpose.msra.mxu0 0.0
    %1853 = vmatpush.xpose.msra.mxu0 0.0
    %1854 = vmatpush.xpose.msra.mxu0 0.0
    %v1855 = vand.u32 %v436, 4294901760
    %1856 = vmatpush.xpose.msra.mxu0 %v1855
    %v1857 = vand.u32 %v306, 4294901760
    %v1858 = vsub.f32 %v306, %v1857
    %v1859 = vand.u32 %v1858, 4294901760
    %v1860 = vsub.f32 %v1858, %v1859
    %v1861 = vand.u32 %v1860, 4294901760
    %1862 = vmatmul.f32.gmra.mxu0 %v1861
    %v1863 = vpop.f32.mrf.mxu0
    %v1864 = vadd.f32 %v1838, %v1863
    %1865 = vdwg.mxu0
    %1866 = vmatpush.xpose.msra.mxu0 0.0
    %1867 = vmatpush.xpose.msra.mxu0 0.0
    %1868 = vmatpush.xpose.msra.mxu0 0.0
    %1869 = vmatpush.xpose.msra.mxu0 0.0
    %1870 = vmatpush.xpose.msra.mxu0 0.0
    %1871 = vmatpush.xpose.msra.mxu0 0.0
    %1872 = vmatpush.xpose.msra.mxu0 0.0
    %1873 = vmatpush.xpose.msra.mxu0 0.0
    %1874 = vmatpush.xpose.msra.mxu0 0.0
    %1875 = vmatpush.xpose.msra.mxu0 0.0
    %1876 = vmatpush.xpose.msra.mxu0 0.0
    %1877 = vmatpush.xpose.msra.mxu0 0.0
    %1878 = vmatpush.xpose.msra.mxu0 0.0
    %1879 = vmatpush.xpose.msra.mxu0 0.0
    %1880 = vmatpush.xpose.msra.mxu0 0.0
    %v1881 = vand.u32 %v436, 4294901760
    %v1882 = vsub.f32 %v436, %v1881
    %v1883 = vand.u32 %v1882, 4294901760
    %v1884 = vsub.f32 %v1882, %v1883
    %v1885 = vand.u32 %v1884, 4294901760
    %1886 = vmatpush.xpose.msra.mxu0 %v1885
    %v1887 = vand.u32 %v306, 4294901760
    %1888 = vmatmul.f32.gmra.mxu0 %v1887
    %v1889 = vpop.f32.mrf.mxu0
    %v1890 = vadd.f32 %v1864, %v1889
    %1891 = vdwg.mxu0
    %1892 = vmatpush.xpose.msra.mxu0 0.0
    %1893 = vmatpush.xpose.msra.mxu0 0.0
    %1894 = vmatpush.xpose.msra.mxu0 0.0
    %1895 = vmatpush.xpose.msra.mxu0 0.0
    %1896 = vmatpush.xpose.msra.mxu0 0.0
    %1897 = vmatpush.xpose.msra.mxu0 0.0
    %1898 = vmatpush.xpose.msra.mxu0 0.0
    %1899 = vmatpush.xpose.msra.mxu0 0.0
    %1900 = vmatpush.xpose.msra.mxu0 0.0
    %1901 = vmatpush.xpose.msra.mxu0 0.0
    %1902 = vmatpush.xpose.msra.mxu0 0.0
    %1903 = vmatpush.xpose.msra.mxu0 0.0
    %1904 = vmatpush.xpose.msra.mxu0 0.0
    %1905 = vmatpush.xpose.msra.mxu0 0.0
    %1906 = vmatpush.xpose.msra.mxu0 0.0
    %v1907 = vand.u32 %v436, 4294901760
    %v1908 = vsub.f32 %v436, %v1907
    %1909 = vmatpush.xpose.msra.mxu0 %v1908
    %v1910 = vand.u32 %v306, 4294901760
    %v1911 = vsub.f32 %v306, %v1910
    %1912 = vmatmul.f32.gmra.mxu0 %v1911
    %v1913 = vpop.f32.mrf.mxu0
    %v1914 = vadd.f32 %v1890, %v1913
    %1915 = vdwg.mxu0
    %1916 = vmatpush.xpose.msra.mxu0 0.0
    %1917 = vmatpush.xpose.msra.mxu0 0.0
    %1918 = vmatpush.xpose.msra.mxu0 0.0
    %1919 = vmatpush.xpose.msra.mxu0 0.0
    %1920 = vmatpush.xpose.msra.mxu0 0.0
    %1921 = vmatpush.xpose.msra.mxu0 0.0
    %1922 = vmatpush.xpose.msra.mxu0 0.0
    %1923 = vmatpush.xpose.msra.mxu0 0.0
    %1924 = vmatpush.xpose.msra.mxu0 0.0
    %1925 = vmatpush.xpose.msra.mxu0 0.0
    %1926 = vmatpush.xpose.msra.mxu0 0.0
    %1927 = vmatpush.xpose.msra.mxu0 0.0
    %1928 = vmatpush.xpose.msra.mxu0 0.0
    %1929 = vmatpush.xpose.msra.mxu0 0.0
    %1930 = vmatpush.xpose.msra.mxu0 0.0
    %v1931 = vand.u32 %v436, 4294901760
    %1932 = vmatpush.xpose.msra.mxu0 %v1931
    %v1933 = vand.u32 %v306, 4294901760
    %v1934 = vsub.f32 %v306, %v1933
    %v1935 = vand.u32 %v1934, 4294901760
    %1936 = vmatmul.f32.gmra.mxu0 %v1935
    %v1937 = vpop.f32.mrf.mxu0
    %v1938 = vadd.f32 %v1914, %v1937
    %1939 = vdwg.mxu0
    %1940 = vmatpush.xpose.msra.mxu0 0.0
    %1941 = vmatpush.xpose.msra.mxu0 0.0
    %1942 = vmatpush.xpose.msra.mxu0 0.0
    %1943 = vmatpush.xpose.msra.mxu0 0.0
    %1944 = vmatpush.xpose.msra.mxu0 0.0
    %1945 = vmatpush.xpose.msra.mxu0 0.0
    %1946 = vmatpush.xpose.msra.mxu0 0.0
    %1947 = vmatpush.xpose.msra.mxu0 0.0
    %1948 = vmatpush.xpose.msra.mxu0 0.0
    %1949 = vmatpush.xpose.msra.mxu0 0.0
    %1950 = vmatpush.xpose.msra.mxu0 0.0
    %1951 = vmatpush.xpose.msra.mxu0 0.0
    %1952 = vmatpush.xpose.msra.mxu0 0.0
    %1953 = vmatpush.xpose.msra.mxu0 0.0
    %1954 = vmatpush.xpose.msra.mxu0 0.0
    %v1955 = vand.u32 %v436, 4294901760
    %v1956 = vsub.f32 %v436, %v1955
    %v1957 = vand.u32 %v1956, 4294901760
    %1958 = vmatpush.xpose.msra.mxu0 %v1957
    %v1959 = vand.u32 %v306, 4294901760
    %1960 = vmatmul.f32.gmra.mxu0 %v1959
    %v1961 = vpop.f32.mrf.mxu0
    %v1962 = vadd.f32 %v1938, %v1961
    %1963 = vdwg.mxu0
    %1964 = vmatpush.xpose.msra.mxu0 0.0
    %1965 = vmatpush.xpose.msra.mxu0 0.0
    %1966 = vmatpush.xpose.msra.mxu0 0.0
    %1967 = vmatpush.xpose.msra.mxu0 0.0
    %1968 = vmatpush.xpose.msra.mxu0 0.0
    %1969 = vmatpush.xpose.msra.mxu0 0.0
    %1970 = vmatpush.xpose.msra.mxu0 0.0
    %1971 = vmatpush.xpose.msra.mxu0 0.0
    %1972 = vmatpush.xpose.msra.mxu0 0.0
    %1973 = vmatpush.xpose.msra.mxu0 0.0
    %1974 = vmatpush.xpose.msra.mxu0 0.0
    %1975 = vmatpush.xpose.msra.mxu0 0.0
    %1976 = vmatpush.xpose.msra.mxu0 0.0
    %1977 = vmatpush.xpose.msra.mxu0 0.0
    %1978 = vmatpush.xpose.msra.mxu0 0.0
    %v1979 = vand.u32 %v436, 4294901760
    %1980 = vmatpush.xpose.msra.mxu0 %v1979
    %v1981 = vand.u32 %v306, 4294901760
    %1982 = vmatmul.f32.gmra.mxu0 %v1981
    %v1983 = vpop.f32.mrf.mxu0
    %v1984 = vadd.f32 %v1962, %v1983
    %1985 = vdwg.mxu0
    %1986 = vmatpush.xpose.msra.mxu0 0.0
    %1987 = vmatpush.xpose.msra.mxu0 0.0
    %1988 = vmatpush.xpose.msra.mxu0 0.0
    %1989 = vmatpush.xpose.msra.mxu0 0.0
    %1990 = vmatpush.xpose.msra.mxu0 0.0
    %1991 = vmatpush.xpose.msra.mxu0 0.0
    %1992 = vmatpush.xpose.msra.mxu0 0.0
    %1993 = vmatpush.xpose.msra.mxu0 0.0
    %1994 = vmatpush.xpose.msra.mxu0 0.0
    %1995 = vmatpush.xpose.msra.mxu0 0.0
    %1996 = vmatpush.xpose.msra.mxu0 0.0
    %1997 = vmatpush.xpose.msra.mxu0 0.0
    %1998 = vmatpush.xpose.msra.mxu0 0.0
    %1999 = vmatpush.xpose.msra.mxu0 0.0
    %2000 = vmatpush.xpose.msra.mxu0 0.0
    %v2001 = vand.u32 %v437, 4294901760
    %2002 = vmatpush.xpose.msra.mxu0 %v2001
    %v2003 = vand.u32 %v307, 4294901760
    %v2004 = vsub.f32 %v307, %v2003
    %v2005 = vand.u32 %v2004, 4294901760
    %v2006 = vsub.f32 %v2004, %v2005
    %v2007 = vand.u32 %v2006, 4294901760
    %2008 = vmatmul.f32.gmra.mxu0 %v2007
    %v2009 = vpop.f32.mrf.mxu0
    %v2010 = vadd.f32 %v1984, %v2009
    %2011 = vdwg.mxu0
    %2012 = vmatpush.xpose.msra.mxu0 0.0
    %2013 = vmatpush.xpose.msra.mxu0 0.0
    %2014 = vmatpush.xpose.msra.mxu0 0.0
    %2015 = vmatpush.xpose.msra.mxu0 0.0
    %2016 = vmatpush.xpose.msra.mxu0 0.0
    %2017 = vmatpush.xpose.msra.mxu0 0.0
    %2018 = vmatpush.xpose.msra.mxu0 0.0
    %2019 = vmatpush.xpose.msra.mxu0 0.0
    %2020 = vmatpush.xpose.msra.mxu0 0.0
    %2021 = vmatpush.xpose.msra.mxu0 0.0
    %2022 = vmatpush.xpose.msra.mxu0 0.0
    %2023 = vmatpush.xpose.msra.mxu0 0.0
    %2024 = vmatpush.xpose.msra.mxu0 0.0
    %2025 = vmatpush.xpose.msra.mxu0 0.0
    %2026 = vmatpush.xpose.msra.mxu0 0.0
    %v2027 = vand.u32 %v437, 4294901760
    %v2028 = vsub.f32 %v437, %v2027
    %v2029 = vand.u32 %v2028, 4294901760
    %v2030 = vsub.f32 %v2028, %v2029
    %v2031 = vand.u32 %v2030, 4294901760
    %2032 = vmatpush.xpose.msra.mxu0 %v2031
    %v2033 = vand.u32 %v307, 4294901760
    %2034 = vmatmul.f32.gmra.mxu0 %v2033
    %v2035 = vpop.f32.mrf.mxu0
    %v2036 = vadd.f32 %v2010, %v2035
    %2037 = vdwg.mxu0
    %2038 = vmatpush.xpose.msra.mxu0 0.0
    %2039 = vmatpush.xpose.msra.mxu0 0.0
    %2040 = vmatpush.xpose.msra.mxu0 0.0
    %2041 = vmatpush.xpose.msra.mxu0 0.0
    %2042 = vmatpush.xpose.msra.mxu0 0.0
    %2043 = vmatpush.xpose.msra.mxu0 0.0
    %2044 = vmatpush.xpose.msra.mxu0 0.0
    %2045 = vmatpush.xpose.msra.mxu0 0.0
    %2046 = vmatpush.xpose.msra.mxu0 0.0
    %2047 = vmatpush.xpose.msra.mxu0 0.0
    %2048 = vmatpush.xpose.msra.mxu0 0.0
    %2049 = vmatpush.xpose.msra.mxu0 0.0
    %2050 = vmatpush.xpose.msra.mxu0 0.0
    %2051 = vmatpush.xpose.msra.mxu0 0.0
    %2052 = vmatpush.xpose.msra.mxu0 0.0
    %v2053 = vand.u32 %v437, 4294901760
    %v2054 = vsub.f32 %v437, %v2053
    %2055 = vmatpush.xpose.msra.mxu0 %v2054
    %v2056 = vand.u32 %v307, 4294901760
    %v2057 = vsub.f32 %v307, %v2056
    %2058 = vmatmul.f32.gmra.mxu0 %v2057
    %v2059 = vpop.f32.mrf.mxu0
    %v2060 = vadd.f32 %v2036, %v2059
    %2061 = vdwg.mxu0
    %2062 = vmatpush.xpose.msra.mxu0 0.0
    %2063 = vmatpush.xpose.msra.mxu0 0.0
    %2064 = vmatpush.xpose.msra.mxu0 0.0
    %2065 = vmatpush.xpose.msra.mxu0 0.0
    %2066 = vmatpush.xpose.msra.mxu0 0.0
    %2067 = vmatpush.xpose.msra.mxu0 0.0
    %2068 = vmatpush.xpose.msra.mxu0 0.0
    %2069 = vmatpush.xpose.msra.mxu0 0.0
    %2070 = vmatpush.xpose.msra.mxu0 0.0
    %2071 = vmatpush.xpose.msra.mxu0 0.0
    %2072 = vmatpush.xpose.msra.mxu0 0.0
    %2073 = vmatpush.xpose.msra.mxu0 0.0
    %2074 = vmatpush.xpose.msra.mxu0 0.0
    %2075 = vmatpush.xpose.msra.mxu0 0.0
    %2076 = vmatpush.xpose.msra.mxu0 0.0
    %v2077 = vand.u32 %v437, 4294901760
    %2078 = vmatpush.xpose.msra.mxu0 %v2077
    %v2079 = vand.u32 %v307, 4294901760
    %v2080 = vsub.f32 %v307, %v2079
    %v2081 = vand.u32 %v2080, 4294901760
    %2082 = vmatmul.f32.gmra.mxu0 %v2081
    %v2083 = vpop.f32.mrf.mxu0
    %v2084 = vadd.f32 %v2060, %v2083
    %2085 = vdwg.mxu0
    %2086 = vmatpush.xpose.msra.mxu0 0.0
    %2087 = vmatpush.xpose.msra.mxu0 0.0
    %2088 = vmatpush.xpose.msra.mxu0 0.0
    %2089 = vmatpush.xpose.msra.mxu0 0.0
    %2090 = vmatpush.xpose.msra.mxu0 0.0
    %2091 = vmatpush.xpose.msra.mxu0 0.0
    %2092 = vmatpush.xpose.msra.mxu0 0.0
    %2093 = vmatpush.xpose.msra.mxu0 0.0
    %2094 = vmatpush.xpose.msra.mxu0 0.0
    %2095 = vmatpush.xpose.msra.mxu0 0.0
    %2096 = vmatpush.xpose.msra.mxu0 0.0
    %2097 = vmatpush.xpose.msra.mxu0 0.0
    %2098 = vmatpush.xpose.msra.mxu0 0.0
    %2099 = vmatpush.xpose.msra.mxu0 0.0
    %2100 = vmatpush.xpose.msra.mxu0 0.0
    %v2101 = vand.u32 %v437, 4294901760
    %v2102 = vsub.f32 %v437, %v2101
    %v2103 = vand.u32 %v2102, 4294901760
    %2104 = vmatpush.xpose.msra.mxu0 %v2103
    %v2105 = vand.u32 %v307, 4294901760
    %2106 = vmatmul.f32.gmra.mxu0 %v2105
    %v2107 = vpop.f32.mrf.mxu0
    %v2108 = vadd.f32 %v2084, %v2107
    %2109 = vdwg.mxu0
    %2110 = vmatpush.xpose.msra.mxu0 0.0
    %2111 = vmatpush.xpose.msra.mxu0 0.0
    %2112 = vmatpush.xpose.msra.mxu0 0.0
    %2113 = vmatpush.xpose.msra.mxu0 0.0
    %2114 = vmatpush.xpose.msra.mxu0 0.0
    %2115 = vmatpush.xpose.msra.mxu0 0.0
    %2116 = vmatpush.xpose.msra.mxu0 0.0
    %2117 = vmatpush.xpose.msra.mxu0 0.0
    %2118 = vmatpush.xpose.msra.mxu0 0.0
    %2119 = vmatpush.xpose.msra.mxu0 0.0
    %2120 = vmatpush.xpose.msra.mxu0 0.0
    %2121 = vmatpush.xpose.msra.mxu0 0.0
    %2122 = vmatpush.xpose.msra.mxu0 0.0
    %2123 = vmatpush.xpose.msra.mxu0 0.0
    %2124 = vmatpush.xpose.msra.mxu0 0.0
    %v2125 = vand.u32 %v437, 4294901760
    %2126 = vmatpush.xpose.msra.mxu0 %v2125
    %v2127 = vand.u32 %v307, 4294901760
    %2128 = vmatmul.f32.gmra.mxu0 %v2127
    %v2129 = vpop.f32.mrf.mxu0
    %v2130 = vadd.f32 %v2108, %v2129
    %2131 = vdwg.mxu0
    %2132 = vmatpush.xpose.msra.mxu0 0.0
    %2133 = vmatpush.xpose.msra.mxu0 0.0
    %2134 = vmatpush.xpose.msra.mxu0 0.0
    %2135 = vmatpush.xpose.msra.mxu0 0.0
    %2136 = vmatpush.xpose.msra.mxu0 0.0
    %2137 = vmatpush.xpose.msra.mxu0 0.0
    %2138 = vmatpush.xpose.msra.mxu0 0.0
    %2139 = vmatpush.xpose.msra.mxu0 0.0
    %2140 = vmatpush.xpose.msra.mxu0 0.0
    %2141 = vmatpush.xpose.msra.mxu0 0.0
    %2142 = vmatpush.xpose.msra.mxu0 0.0
    %2143 = vmatpush.xpose.msra.mxu0 0.0
    %2144 = vmatpush.xpose.msra.mxu0 0.0
    %2145 = vmatpush.xpose.msra.mxu0 0.0
    %2146 = vmatpush.xpose.msra.mxu0 0.0
    %v2147 = vand.u32 %v438, 4294901760
    %2148 = vmatpush.xpose.msra.mxu0 %v2147
    %v2149 = vand.u32 %v308, 4294901760
    %v2150 = vsub.f32 %v308, %v2149
    %v2151 = vand.u32 %v2150, 4294901760
    %v2152 = vsub.f32 %v2150, %v2151
    %v2153 = vand.u32 %v2152, 4294901760
    %2154 = vmatmul.f32.gmra.mxu0 %v2153
    %v2155 = vpop.f32.mrf.mxu0
    %v2156 = vadd.f32 %v2130, %v2155
    %2157 = vdwg.mxu0
    %2158 = vmatpush.xpose.msra.mxu0 0.0
    %2159 = vmatpush.xpose.msra.mxu0 0.0
    %2160 = vmatpush.xpose.msra.mxu0 0.0
    %2161 = vmatpush.xpose.msra.mxu0 0.0
    %2162 = vmatpush.xpose.msra.mxu0 0.0
    %2163 = vmatpush.xpose.msra.mxu0 0.0
    %2164 = vmatpush.xpose.msra.mxu0 0.0
    %2165 = vmatpush.xpose.msra.mxu0 0.0
    %2166 = vmatpush.xpose.msra.mxu0 0.0
    %2167 = vmatpush.xpose.msra.mxu0 0.0
    %2168 = vmatpush.xpose.msra.mxu0 0.0
    %2169 = vmatpush.xpose.msra.mxu0 0.0
    %2170 = vmatpush.xpose.msra.mxu0 0.0
    %2171 = vmatpush.xpose.msra.mxu0 0.0
    %2172 = vmatpush.xpose.msra.mxu0 0.0
    %v2173 = vand.u32 %v438, 4294901760
    %v2174 = vsub.f32 %v438, %v2173
    %v2175 = vand.u32 %v2174, 4294901760
    %v2176 = vsub.f32 %v2174, %v2175
    %v2177 = vand.u32 %v2176, 4294901760
    %2178 = vmatpush.xpose.msra.mxu0 %v2177
    %v2179 = vand.u32 %v308, 4294901760
    %2180 = vmatmul.f32.gmra.mxu0 %v2179
    %v2181 = vpop.f32.mrf.mxu0
    %v2182 = vadd.f32 %v2156, %v2181
    %2183 = vdwg.mxu0
    %2184 = vmatpush.xpose.msra.mxu0 0.0
    %2185 = vmatpush.xpose.msra.mxu0 0.0
    %2186 = vmatpush.xpose.msra.mxu0 0.0
    %2187 = vmatpush.xpose.msra.mxu0 0.0
    %2188 = vmatpush.xpose.msra.mxu0 0.0
    %2189 = vmatpush.xpose.msra.mxu0 0.0
    %2190 = vmatpush.xpose.msra.mxu0 0.0
    %2191 = vmatpush.xpose.msra.mxu0 0.0
    %2192 = vmatpush.xpose.msra.mxu0 0.0
    %2193 = vmatpush.xpose.msra.mxu0 0.0
    %2194 = vmatpush.xpose.msra.mxu0 0.0
    %2195 = vmatpush.xpose.msra.mxu0 0.0
    %2196 = vmatpush.xpose.msra.mxu0 0.0
    %2197 = vmatpush.xpose.msra.mxu0 0.0
    %2198 = vmatpush.xpose.msra.mxu0 0.0
    %v2199 = vand.u32 %v438, 4294901760
    %v2200 = vsub.f32 %v438, %v2199
    %2201 = vmatpush.xpose.msra.mxu0 %v2200
    %v2202 = vand.u32 %v308, 4294901760
    %v2203 = vsub.f32 %v308, %v2202
    %2204 = vmatmul.f32.gmra.mxu0 %v2203
    %v2205 = vpop.f32.mrf.mxu0
    %v2206 = vadd.f32 %v2182, %v2205
    %2207 = vdwg.mxu0
    %2208 = vmatpush.xpose.msra.mxu0 0.0
    %2209 = vmatpush.xpose.msra.mxu0 0.0
    %2210 = vmatpush.xpose.msra.mxu0 0.0
    %2211 = vmatpush.xpose.msra.mxu0 0.0
    %2212 = vmatpush.xpose.msra.mxu0 0.0
    %2213 = vmatpush.xpose.msra.mxu0 0.0
    %2214 = vmatpush.xpose.msra.mxu0 0.0
    %2215 = vmatpush.xpose.msra.mxu0 0.0
    %2216 = vmatpush.xpose.msra.mxu0 0.0
    %2217 = vmatpush.xpose.msra.mxu0 0.0
    %2218 = vmatpush.xpose.msra.mxu0 0.0
    %2219 = vmatpush.xpose.msra.mxu0 0.0
    %2220 = vmatpush.xpose.msra.mxu0 0.0
    %2221 = vmatpush.xpose.msra.mxu0 0.0
    %2222 = vmatpush.xpose.msra.mxu0 0.0
    %v2223 = vand.u32 %v438, 4294901760
    %2224 = vmatpush.xpose.msra.mxu0 %v2223
    %v2225 = vand.u32 %v308, 4294901760
    %v2226 = vsub.f32 %v308, %v2225
    %v2227 = vand.u32 %v2226, 4294901760
    %2228 = vmatmul.f32.gmra.mxu0 %v2227
    %v2229 = vpop.f32.mrf.mxu0
    %v2230 = vadd.f32 %v2206, %v2229
    %2231 = vdwg.mxu0
    %2232 = vmatpush.xpose.msra.mxu0 0.0
    %2233 = vmatpush.xpose.msra.mxu0 0.0
    %2234 = vmatpush.xpose.msra.mxu0 0.0
    %2235 = vmatpush.xpose.msra.mxu0 0.0
    %2236 = vmatpush.xpose.msra.mxu0 0.0
    %2237 = vmatpush.xpose.msra.mxu0 0.0
    %2238 = vmatpush.xpose.msra.mxu0 0.0
    %2239 = vmatpush.xpose.msra.mxu0 0.0
    %2240 = vmatpush.xpose.msra.mxu0 0.0
    %2241 = vmatpush.xpose.msra.mxu0 0.0
    %2242 = vmatpush.xpose.msra.mxu0 0.0
    %2243 = vmatpush.xpose.msra.mxu0 0.0
    %2244 = vmatpush.xpose.msra.mxu0 0.0
    %2245 = vmatpush.xpose.msra.mxu0 0.0
    %2246 = vmatpush.xpose.msra.mxu0 0.0
    %v2247 = vand.u32 %v438, 4294901760
    %v2248 = vsub.f32 %v438, %v2247
    %v2249 = vand.u32 %v2248, 4294901760
    %2250 = vmatpush.xpose.msra.mxu0 %v2249
    %v2251 = vand.u32 %v308, 4294901760
    %2252 = vmatmul.f32.gmra.mxu0 %v2251
    %v2253 = vpop.f32.mrf.mxu0
    %v2254 = vadd.f32 %v2230, %v2253
    %2255 = vdwg.mxu0
    %2256 = vmatpush.xpose.msra.mxu0 0.0
    %2257 = vmatpush.xpose.msra.mxu0 0.0
    %2258 = vmatpush.xpose.msra.mxu0 0.0
    %2259 = vmatpush.xpose.msra.mxu0 0.0
    %2260 = vmatpush.xpose.msra.mxu0 0.0
    %2261 = vmatpush.xpose.msra.mxu0 0.0
    %2262 = vmatpush.xpose.msra.mxu0 0.0
    %2263 = vmatpush.xpose.msra.mxu0 0.0
    %2264 = vmatpush.xpose.msra.mxu0 0.0
    %2265 = vmatpush.xpose.msra.mxu0 0.0
    %2266 = vmatpush.xpose.msra.mxu0 0.0
    %2267 = vmatpush.xpose.msra.mxu0 0.0
    %2268 = vmatpush.xpose.msra.mxu0 0.0
    %2269 = vmatpush.xpose.msra.mxu0 0.0
    %2270 = vmatpush.xpose.msra.mxu0 0.0
    %v2271 = vand.u32 %v438, 4294901760
    %2272 = vmatpush.xpose.msra.mxu0 %v2271
    %v2273 = vand.u32 %v308, 4294901760
    %2274 = vmatmul.f32.gmra.mxu0 %v2273
    %v2275 = vpop.f32.mrf.mxu0
    %v2276 = vadd.f32 %v2254, %v2275
    %2277 = vdwg.mxu0
    %2278 = vmatpush.xpose.msra.mxu0 0.0
    %2279 = vmatpush.xpose.msra.mxu0 0.0
    %2280 = vmatpush.xpose.msra.mxu0 0.0
    %2281 = vmatpush.xpose.msra.mxu0 0.0
    %2282 = vmatpush.xpose.msra.mxu0 0.0
    %2283 = vmatpush.xpose.msra.mxu0 0.0
    %2284 = vmatpush.xpose.msra.mxu0 0.0
    %2285 = vmatpush.xpose.msra.mxu0 0.0
    %2286 = vmatpush.xpose.msra.mxu0 0.0
    %2287 = vmatpush.xpose.msra.mxu0 0.0
    %2288 = vmatpush.xpose.msra.mxu0 0.0
    %2289 = vmatpush.xpose.msra.mxu0 0.0
    %2290 = vmatpush.xpose.msra.mxu0 0.0
    %2291 = vmatpush.xpose.msra.mxu0 0.0
    %2292 = vmatpush.xpose.msra.mxu0 0.0
    %v2293 = vand.u32 %v439, 4294901760
    %2294 = vmatpush.xpose.msra.mxu0 %v2293
    %v2295 = vand.u32 %v309, 4294901760
    %v2296 = vsub.f32 %v309, %v2295
    %v2297 = vand.u32 %v2296, 4294901760
    %v2298 = vsub.f32 %v2296, %v2297
    %v2299 = vand.u32 %v2298, 4294901760
    %2300 = vmatmul.f32.gmra.mxu0 %v2299
    %v2301 = vpop.f32.mrf.mxu0
    %v2302 = vadd.f32 %v2276, %v2301
    %2303 = vdwg.mxu0
    %2304 = vmatpush.xpose.msra.mxu0 0.0
    %2305 = vmatpush.xpose.msra.mxu0 0.0
    %2306 = vmatpush.xpose.msra.mxu0 0.0
    %2307 = vmatpush.xpose.msra.mxu0 0.0
    %2308 = vmatpush.xpose.msra.mxu0 0.0
    %2309 = vmatpush.xpose.msra.mxu0 0.0
    %2310 = vmatpush.xpose.msra.mxu0 0.0
    %2311 = vmatpush.xpose.msra.mxu0 0.0
    %2312 = vmatpush.xpose.msra.mxu0 0.0
    %2313 = vmatpush.xpose.msra.mxu0 0.0
    %2314 = vmatpush.xpose.msra.mxu0 0.0
    %2315 = vmatpush.xpose.msra.mxu0 0.0
    %2316 = vmatpush.xpose.msra.mxu0 0.0
    %2317 = vmatpush.xpose.msra.mxu0 0.0
    %2318 = vmatpush.xpose.msra.mxu0 0.0
    %v2319 = vand.u32 %v439, 4294901760
    %v2320 = vsub.f32 %v439, %v2319
    %v2321 = vand.u32 %v2320, 4294901760
    %v2322 = vsub.f32 %v2320, %v2321
    %v2323 = vand.u32 %v2322, 4294901760
    %2324 = vmatpush.xpose.msra.mxu0 %v2323
    %v2325 = vand.u32 %v309, 4294901760
    %2326 = vmatmul.f32.gmra.mxu0 %v2325
    %v2327 = vpop.f32.mrf.mxu0
    %v2328 = vadd.f32 %v2302, %v2327
    %2329 = vdwg.mxu0
    %2330 = vmatpush.xpose.msra.mxu0 0.0
    %2331 = vmatpush.xpose.msra.mxu0 0.0
    %2332 = vmatpush.xpose.msra.mxu0 0.0
    %2333 = vmatpush.xpose.msra.mxu0 0.0
    %2334 = vmatpush.xpose.msra.mxu0 0.0
    %2335 = vmatpush.xpose.msra.mxu0 0.0
    %2336 = vmatpush.xpose.msra.mxu0 0.0
    %2337 = vmatpush.xpose.msra.mxu0 0.0
    %2338 = vmatpush.xpose.msra.mxu0 0.0
    %2339 = vmatpush.xpose.msra.mxu0 0.0
    %2340 = vmatpush.xpose.msra.mxu0 0.0
    %2341 = vmatpush.xpose.msra.mxu0 0.0
    %2342 = vmatpush.xpose.msra.mxu0 0.0
    %2343 = vmatpush.xpose.msra.mxu0 0.0
    %2344 = vmatpush.xpose.msra.mxu0 0.0
    %v2345 = vand.u32 %v439, 4294901760
    %v2346 = vsub.f32 %v439, %v2345
    %2347 = vmatpush.xpose.msra.mxu0 %v2346
    %v2348 = vand.u32 %v309, 4294901760
    %v2349 = vsub.f32 %v309, %v2348
    %2350 = vmatmul.f32.gmra.mxu0 %v2349
    %v2351 = vpop.f32.mrf.mxu0
    %v2352 = vadd.f32 %v2328, %v2351
    %2353 = vdwg.mxu0
    %2354 = vmatpush.xpose.msra.mxu0 0.0
    %2355 = vmatpush.xpose.msra.mxu0 0.0
    %2356 = vmatpush.xpose.msra.mxu0 0.0
    %2357 = vmatpush.xpose.msra.mxu0 0.0
    %2358 = vmatpush.xpose.msra.mxu0 0.0
    %2359 = vmatpush.xpose.msra.mxu0 0.0
    %2360 = vmatpush.xpose.msra.mxu0 0.0
    %2361 = vmatpush.xpose.msra.mxu0 0.0
    %2362 = vmatpush.xpose.msra.mxu0 0.0
    %2363 = vmatpush.xpose.msra.mxu0 0.0
    %2364 = vmatpush.xpose.msra.mxu0 0.0
    %2365 = vmatpush.xpose.msra.mxu0 0.0
    %2366 = vmatpush.xpose.msra.mxu0 0.0
    %2367 = vmatpush.xpose.msra.mxu0 0.0
    %2368 = vmatpush.xpose.msra.mxu0 0.0
    %v2369 = vand.u32 %v439, 4294901760
    %2370 = vmatpush.xpose.msra.mxu0 %v2369
    %v2371 = vand.u32 %v309, 4294901760
    %v2372 = vsub.f32 %v309, %v2371
    %v2373 = vand.u32 %v2372, 4294901760
    %2374 = vmatmul.f32.gmra.mxu0 %v2373
    %v2375 = vpop.f32.mrf.mxu0
    %v2376 = vadd.f32 %v2352, %v2375
    %2377 = vdwg.mxu0
    %2378 = vmatpush.xpose.msra.mxu0 0.0
    %2379 = vmatpush.xpose.msra.mxu0 0.0
    %2380 = vmatpush.xpose.msra.mxu0 0.0
    %2381 = vmatpush.xpose.msra.mxu0 0.0
    %2382 = vmatpush.xpose.msra.mxu0 0.0
    %2383 = vmatpush.xpose.msra.mxu0 0.0
    %2384 = vmatpush.xpose.msra.mxu0 0.0
    %2385 = vmatpush.xpose.msra.mxu0 0.0
    %2386 = vmatpush.xpose.msra.mxu0 0.0
    %2387 = vmatpush.xpose.msra.mxu0 0.0
    %2388 = vmatpush.xpose.msra.mxu0 0.0
    %2389 = vmatpush.xpose.msra.mxu0 0.0
    %2390 = vmatpush.xpose.msra.mxu0 0.0
    %2391 = vmatpush.xpose.msra.mxu0 0.0
    %2392 = vmatpush.xpose.msra.mxu0 0.0
    %v2393 = vand.u32 %v439, 4294901760
    %v2394 = vsub.f32 %v439, %v2393
    %v2395 = vand.u32 %v2394, 4294901760
    %2396 = vmatpush.xpose.msra.mxu0 %v2395
    %v2397 = vand.u32 %v309, 4294901760
    %2398 = vmatmul.f32.gmra.mxu0 %v2397
    %v2399 = vpop.f32.mrf.mxu0
    %v2400 = vadd.f32 %v2376, %v2399
    %2401 = vdwg.mxu0
    %2402 = vmatpush.xpose.msra.mxu0 0.0
    %2403 = vmatpush.xpose.msra.mxu0 0.0
    %2404 = vmatpush.xpose.msra.mxu0 0.0
    %2405 = vmatpush.xpose.msra.mxu0 0.0
    %2406 = vmatpush.xpose.msra.mxu0 0.0
    %2407 = vmatpush.xpose.msra.mxu0 0.0
    %2408 = vmatpush.xpose.msra.mxu0 0.0
    %2409 = vmatpush.xpose.msra.mxu0 0.0
    %2410 = vmatpush.xpose.msra.mxu0 0.0
    %2411 = vmatpush.xpose.msra.mxu0 0.0
    %2412 = vmatpush.xpose.msra.mxu0 0.0
    %2413 = vmatpush.xpose.msra.mxu0 0.0
    %2414 = vmatpush.xpose.msra.mxu0 0.0
    %2415 = vmatpush.xpose.msra.mxu0 0.0
    %2416 = vmatpush.xpose.msra.mxu0 0.0
    %v2417 = vand.u32 %v439, 4294901760
    %2418 = vmatpush.xpose.msra.mxu0 %v2417
    %v2419 = vand.u32 %v309, 4294901760
    %2420 = vmatmul.f32.gmra.mxu0 %v2419
    %v2421 = vpop.f32.mrf.mxu0
    %v2422 = vadd.f32 %v2400, %v2421
    %2423 = vdwg.mxu0
    %2424 = vmatpush.xpose.msra.mxu0 0.0
    %2425 = vmatpush.xpose.msra.mxu0 0.0
    %2426 = vmatpush.xpose.msra.mxu0 0.0
    %2427 = vmatpush.xpose.msra.mxu0 0.0
    %2428 = vmatpush.xpose.msra.mxu0 0.0
    %2429 = vmatpush.xpose.msra.mxu0 0.0
    %2430 = vmatpush.xpose.msra.mxu0 0.0
    %2431 = vmatpush.xpose.msra.mxu0 0.0
    %2432 = vmatpush.xpose.msra.mxu0 0.0
    %2433 = vmatpush.xpose.msra.mxu0 0.0
    %2434 = vmatpush.xpose.msra.mxu0 0.0
    %2435 = vmatpush.xpose.msra.mxu0 0.0
    %2436 = vmatpush.xpose.msra.mxu0 0.0
    %2437 = vmatpush.xpose.msra.mxu0 0.0
    %2438 = vmatpush.xpose.msra.mxu0 0.0
    %v2439 = vand.u32 %v440, 4294901760
    %2440 = vmatpush.xpose.msra.mxu0 %v2439
    %v2441 = vand.u32 %v310, 4294901760
    %v2442 = vsub.f32 %v310, %v2441
    %v2443 = vand.u32 %v2442, 4294901760
    %v2444 = vsub.f32 %v2442, %v2443
    %v2445 = vand.u32 %v2444, 4294901760
    %2446 = vmatmul.f32.gmra.mxu0 %v2445
    %v2447 = vpop.f32.mrf.mxu0
    %v2448 = vadd.f32 %v2422, %v2447
    %2449 = vdwg.mxu0
    %2450 = vmatpush.xpose.msra.mxu0 0.0
    %2451 = vmatpush.xpose.msra.mxu0 0.0
    %2452 = vmatpush.xpose.msra.mxu0 0.0
    %2453 = vmatpush.xpose.msra.mxu0 0.0
    %2454 = vmatpush.xpose.msra.mxu0 0.0
    %2455 = vmatpush.xpose.msra.mxu0 0.0
    %2456 = vmatpush.xpose.msra.mxu0 0.0
    %2457 = vmatpush.xpose.msra.mxu0 0.0
    %2458 = vmatpush.xpose.msra.mxu0 0.0
    %2459 = vmatpush.xpose.msra.mxu0 0.0
    %2460 = vmatpush.xpose.msra.mxu0 0.0
    %2461 = vmatpush.xpose.msra.mxu0 0.0
    %2462 = vmatpush.xpose.msra.mxu0 0.0
    %2463 = vmatpush.xpose.msra.mxu0 0.0
    %2464 = vmatpush.xpose.msra.mxu0 0.0
    %v2465 = vand.u32 %v440, 4294901760
    %v2466 = vsub.f32 %v440, %v2465
    %v2467 = vand.u32 %v2466, 4294901760
    %v2468 = vsub.f32 %v2466, %v2467
    %v2469 = vand.u32 %v2468, 4294901760
    %2470 = vmatpush.xpose.msra.mxu0 %v2469
    %v2471 = vand.u32 %v310, 4294901760
    %2472 = vmatmul.f32.gmra.mxu0 %v2471
    %v2473 = vpop.f32.mrf.mxu0
    %v2474 = vadd.f32 %v2448, %v2473
    %2475 = vdwg.mxu0
    %2476 = vmatpush.xpose.msra.mxu0 0.0
    %2477 = vmatpush.xpose.msra.mxu0 0.0
    %2478 = vmatpush.xpose.msra.mxu0 0.0
    %2479 = vmatpush.xpose.msra.mxu0 0.0
    %2480 = vmatpush.xpose.msra.mxu0 0.0
    %2481 = vmatpush.xpose.msra.mxu0 0.0
    %2482 = vmatpush.xpose.msra.mxu0 0.0
    %2483 = vmatpush.xpose.msra.mxu0 0.0
    %2484 = vmatpush.xpose.msra.mxu0 0.0
    %2485 = vmatpush.xpose.msra.mxu0 0.0
    %2486 = vmatpush.xpose.msra.mxu0 0.0
    %2487 = vmatpush.xpose.msra.mxu0 0.0
    %2488 = vmatpush.xpose.msra.mxu0 0.0
    %2489 = vmatpush.xpose.msra.mxu0 0.0
    %2490 = vmatpush.xpose.msra.mxu0 0.0
    %v2491 = vand.u32 %v440, 4294901760
    %v2492 = vsub.f32 %v440, %v2491
    %2493 = vmatpush.xpose.msra.mxu0 %v2492
    %v2494 = vand.u32 %v310, 4294901760
    %v2495 = vsub.f32 %v310, %v2494
    %2496 = vmatmul.f32.gmra.mxu0 %v2495
    %v2497 = vpop.f32.mrf.mxu0
    %v2498 = vadd.f32 %v2474, %v2497
    %2499 = vdwg.mxu0
    %2500 = vmatpush.xpose.msra.mxu0 0.0
    %2501 = vmatpush.xpose.msra.mxu0 0.0
    %2502 = vmatpush.xpose.msra.mxu0 0.0
    %2503 = vmatpush.xpose.msra.mxu0 0.0
    %2504 = vmatpush.xpose.msra.mxu0 0.0
    %2505 = vmatpush.xpose.msra.mxu0 0.0
    %2506 = vmatpush.xpose.msra.mxu0 0.0
    %2507 = vmatpush.xpose.msra.mxu0 0.0
    %2508 = vmatpush.xpose.msra.mxu0 0.0
    %2509 = vmatpush.xpose.msra.mxu0 0.0
    %2510 = vmatpush.xpose.msra.mxu0 0.0
    %2511 = vmatpush.xpose.msra.mxu0 0.0
    %2512 = vmatpush.xpose.msra.mxu0 0.0
    %2513 = vmatpush.xpose.msra.mxu0 0.0
    %2514 = vmatpush.xpose.msra.mxu0 0.0
    %v2515 = vand.u32 %v440, 4294901760
    %2516 = vmatpush.xpose.msra.mxu0 %v2515
    %v2517 = vand.u32 %v310, 4294901760
    %v2518 = vsub.f32 %v310, %v2517
    %v2519 = vand.u32 %v2518, 4294901760
    %2520 = vmatmul.f32.gmra.mxu0 %v2519
    %v2521 = vpop.f32.mrf.mxu0
    %v2522 = vadd.f32 %v2498, %v2521
    %2523 = vdwg.mxu0
    %2524 = vmatpush.xpose.msra.mxu0 0.0
    %2525 = vmatpush.xpose.msra.mxu0 0.0
    %2526 = vmatpush.xpose.msra.mxu0 0.0
    %2527 = vmatpush.xpose.msra.mxu0 0.0
    %2528 = vmatpush.xpose.msra.mxu0 0.0
    %2529 = vmatpush.xpose.msra.mxu0 0.0
    %2530 = vmatpush.xpose.msra.mxu0 0.0
    %2531 = vmatpush.xpose.msra.mxu0 0.0
    %2532 = vmatpush.xpose.msra.mxu0 0.0
    %2533 = vmatpush.xpose.msra.mxu0 0.0
    %2534 = vmatpush.xpose.msra.mxu0 0.0
    %2535 = vmatpush.xpose.msra.mxu0 0.0
    %2536 = vmatpush.xpose.msra.mxu0 0.0
    %2537 = vmatpush.xpose.msra.mxu0 0.0
    %2538 = vmatpush.xpose.msra.mxu0 0.0
    %v2539 = vand.u32 %v440, 4294901760
    %v2540 = vsub.f32 %v440, %v2539
    %v2541 = vand.u32 %v2540, 4294901760
    %2542 = vmatpush.xpose.msra.mxu0 %v2541
    %v2543 = vand.u32 %v310, 4294901760
    %2544 = vmatmul.f32.gmra.mxu0 %v2543
    %v2545 = vpop.f32.mrf.mxu0
    %v2546 = vadd.f32 %v2522, %v2545
    %2547 = vdwg.mxu0
    %2548 = vmatpush.xpose.msra.mxu0 0.0
    %2549 = vmatpush.xpose.msra.mxu0 0.0
    %2550 = vmatpush.xpose.msra.mxu0 0.0
    %2551 = vmatpush.xpose.msra.mxu0 0.0
    %2552 = vmatpush.xpose.msra.mxu0 0.0
    %2553 = vmatpush.xpose.msra.mxu0 0.0
    %2554 = vmatpush.xpose.msra.mxu0 0.0
    %2555 = vmatpush.xpose.msra.mxu0 0.0
    %2556 = vmatpush.xpose.msra.mxu0 0.0
    %2557 = vmatpush.xpose.msra.mxu0 0.0
    %2558 = vmatpush.xpose.msra.mxu0 0.0
    %2559 = vmatpush.xpose.msra.mxu0 0.0
    %2560 = vmatpush.xpose.msra.mxu0 0.0
    %2561 = vmatpush.xpose.msra.mxu0 0.0
    %2562 = vmatpush.xpose.msra.mxu0 0.0
    %v2563 = vand.u32 %v440, 4294901760
    %2564 = vmatpush.xpose.msra.mxu0 %v2563
    %v2565 = vand.u32 %v310, 4294901760
    %2566 = vmatmul.f32.gmra.mxu0 %v2565
    %v2567 = vpop.f32.mrf.mxu0
    %v2568 = vadd.f32 %v2546, %v2567
    %2569 = vdwg.mxu0
    %2570 = vmatpush.xpose.msra.mxu0 0.0
    %2571 = vmatpush.xpose.msra.mxu0 0.0
    %2572 = vmatpush.xpose.msra.mxu0 0.0
    %2573 = vmatpush.xpose.msra.mxu0 0.0
    %2574 = vmatpush.xpose.msra.mxu0 0.0
    %2575 = vmatpush.xpose.msra.mxu0 0.0
    %2576 = vmatpush.xpose.msra.mxu0 0.0
    %2577 = vmatpush.xpose.msra.mxu0 0.0
    %2578 = vmatpush.xpose.msra.mxu0 0.0
    %2579 = vmatpush.xpose.msra.mxu0 0.0
    %2580 = vmatpush.xpose.msra.mxu0 0.0
    %2581 = vmatpush.xpose.msra.mxu0 0.0
    %2582 = vmatpush.xpose.msra.mxu0 0.0
    %2583 = vmatpush.xpose.msra.mxu0 0.0
    %2584 = vmatpush.xpose.msra.mxu0 0.0
    %v2585 = vand.u32 %v441, 4294901760
    %2586 = vmatpush.xpose.msra.mxu0 %v2585
    %v2587 = vand.u32 %v311, 4294901760
    %v2588 = vsub.f32 %v311, %v2587
    %v2589 = vand.u32 %v2588, 4294901760
    %v2590 = vsub.f32 %v2588, %v2589
    %v2591 = vand.u32 %v2590, 4294901760
    %2592 = vmatmul.f32.gmra.mxu0 %v2591
    %v2593 = vpop.f32.mrf.mxu0
    %v2594 = vadd.f32 %v2568, %v2593
    %2595 = vdwg.mxu0
    %2596 = vmatpush.xpose.msra.mxu0 0.0
    %2597 = vmatpush.xpose.msra.mxu0 0.0
    %2598 = vmatpush.xpose.msra.mxu0 0.0
    %2599 = vmatpush.xpose.msra.mxu0 0.0
    %2600 = vmatpush.xpose.msra.mxu0 0.0
    %2601 = vmatpush.xpose.msra.mxu0 0.0
    %2602 = vmatpush.xpose.msra.mxu0 0.0
    %2603 = vmatpush.xpose.msra.mxu0 0.0
    %2604 = vmatpush.xpose.msra.mxu0 0.0
    %2605 = vmatpush.xpose.msra.mxu0 0.0
    %2606 = vmatpush.xpose.msra.mxu0 0.0
    %2607 = vmatpush.xpose.msra.mxu0 0.0
    %2608 = vmatpush.xpose.msra.mxu0 0.0
    %2609 = vmatpush.xpose.msra.mxu0 0.0
    %2610 = vmatpush.xpose.msra.mxu0 0.0
    %v2611 = vand.u32 %v441, 4294901760
    %v2612 = vsub.f32 %v441, %v2611
    %v2613 = vand.u32 %v2612, 4294901760
    %v2614 = vsub.f32 %v2612, %v2613
    %v2615 = vand.u32 %v2614, 4294901760
    %2616 = vmatpush.xpose.msra.mxu0 %v2615
    %v2617 = vand.u32 %v311, 4294901760
    %2618 = vmatmul.f32.gmra.mxu0 %v2617
    %v2619 = vpop.f32.mrf.mxu0
    %v2620 = vadd.f32 %v2594, %v2619
    %2621 = vdwg.mxu0
    %2622 = vmatpush.xpose.msra.mxu0 0.0
    %2623 = vmatpush.xpose.msra.mxu0 0.0
    %2624 = vmatpush.xpose.msra.mxu0 0.0
    %2625 = vmatpush.xpose.msra.mxu0 0.0
    %2626 = vmatpush.xpose.msra.mxu0 0.0
    %2627 = vmatpush.xpose.msra.mxu0 0.0
    %2628 = vmatpush.xpose.msra.mxu0 0.0
    %2629 = vmatpush.xpose.msra.mxu0 0.0
    %2630 = vmatpush.xpose.msra.mxu0 0.0
    %2631 = vmatpush.xpose.msra.mxu0 0.0
    %2632 = vmatpush.xpose.msra.mxu0 0.0
    %2633 = vmatpush.xpose.msra.mxu0 0.0
    %2634 = vmatpush.xpose.msra.mxu0 0.0
    %2635 = vmatpush.xpose.msra.mxu0 0.0
    %2636 = vmatpush.xpose.msra.mxu0 0.0
    %v2637 = vand.u32 %v441, 4294901760
    %v2638 = vsub.f32 %v441, %v2637
    %2639 = vmatpush.xpose.msra.mxu0 %v2638
    %v2640 = vand.u32 %v311, 4294901760
    %v2641 = vsub.f32 %v311, %v2640
    %2642 = vmatmul.f32.gmra.mxu0 %v2641
    %v2643 = vpop.f32.mrf.mxu0
    %v2644 = vadd.f32 %v2620, %v2643
    %2645 = vdwg.mxu0
    %2646 = vmatpush.xpose.msra.mxu0 0.0
    %2647 = vmatpush.xpose.msra.mxu0 0.0
    %2648 = vmatpush.xpose.msra.mxu0 0.0
    %2649 = vmatpush.xpose.msra.mxu0 0.0
    %2650 = vmatpush.xpose.msra.mxu0 0.0
    %2651 = vmatpush.xpose.msra.mxu0 0.0
    %2652 = vmatpush.xpose.msra.mxu0 0.0
    %2653 = vmatpush.xpose.msra.mxu0 0.0
    %2654 = vmatpush.xpose.msra.mxu0 0.0
    %2655 = vmatpush.xpose.msra.mxu0 0.0
    %2656 = vmatpush.xpose.msra.mxu0 0.0
    %2657 = vmatpush.xpose.msra.mxu0 0.0
    %2658 = vmatpush.xpose.msra.mxu0 0.0
    %2659 = vmatpush.xpose.msra.mxu0 0.0
    %2660 = vmatpush.xpose.msra.mxu0 0.0
    %v2661 = vand.u32 %v441, 4294901760
    %2662 = vmatpush.xpose.msra.mxu0 %v2661
    %v2663 = vand.u32 %v311, 4294901760
    %v2664 = vsub.f32 %v311, %v2663
    %v2665 = vand.u32 %v2664, 4294901760
    %2666 = vmatmul.f32.gmra.mxu0 %v2665
    %v2667 = vpop.f32.mrf.mxu0
    %v2668 = vadd.f32 %v2644, %v2667
    %2669 = vdwg.mxu0
    %2670 = vmatpush.xpose.msra.mxu0 0.0
    %2671 = vmatpush.xpose.msra.mxu0 0.0
    %2672 = vmatpush.xpose.msra.mxu0 0.0
    %2673 = vmatpush.xpose.msra.mxu0 0.0
    %2674 = vmatpush.xpose.msra.mxu0 0.0
    %2675 = vmatpush.xpose.msra.mxu0 0.0
    %2676 = vmatpush.xpose.msra.mxu0 0.0
    %2677 = vmatpush.xpose.msra.mxu0 0.0
    %2678 = vmatpush.xpose.msra.mxu0 0.0
    %2679 = vmatpush.xpose.msra.mxu0 0.0
    %2680 = vmatpush.xpose.msra.mxu0 0.0
    %2681 = vmatpush.xpose.msra.mxu0 0.0
    %2682 = vmatpush.xpose.msra.mxu0 0.0
    %2683 = vmatpush.xpose.msra.mxu0 0.0
    %2684 = vmatpush.xpose.msra.mxu0 0.0
    %v2685 = vand.u32 %v441, 4294901760
    %v2686 = vsub.f32 %v441, %v2685
    %v2687 = vand.u32 %v2686, 4294901760
    %2688 = vmatpush.xpose.msra.mxu0 %v2687
    %v2689 = vand.u32 %v311, 4294901760
    %2690 = vmatmul.f32.gmra.mxu0 %v2689
    %v2691 = vpop.f32.mrf.mxu0
    %v2692 = vadd.f32 %v2668, %v2691
    %2693 = vdwg.mxu0
    %2694 = vmatpush.xpose.msra.mxu0 0.0
    %2695 = vmatpush.xpose.msra.mxu0 0.0
    %2696 = vmatpush.xpose.msra.mxu0 0.0
    %2697 = vmatpush.xpose.msra.mxu0 0.0
    %2698 = vmatpush.xpose.msra.mxu0 0.0
    %2699 = vmatpush.xpose.msra.mxu0 0.0
    %2700 = vmatpush.xpose.msra.mxu0 0.0
    %2701 = vmatpush.xpose.msra.mxu0 0.0
    %2702 = vmatpush.xpose.msra.mxu0 0.0
    %2703 = vmatpush.xpose.msra.mxu0 0.0
    %2704 = vmatpush.xpose.msra.mxu0 0.0
    %2705 = vmatpush.xpose.msra.mxu0 0.0
    %2706 = vmatpush.xpose.msra.mxu0 0.0
    %2707 = vmatpush.xpose.msra.mxu0 0.0
    %2708 = vmatpush.xpose.msra.mxu0 0.0
    %v2709 = vand.u32 %v441, 4294901760
    %2710 = vmatpush.xpose.msra.mxu0 %v2709
    %v2711 = vand.u32 %v311, 4294901760
    %2712 = vmatmul.f32.gmra.mxu0 %v2711
    %v2713 = vpop.f32.mrf.mxu0
    %v2714 = vadd.f32 %v2692, %v2713
    %2715 = vdwg.mxu0
    %2716 = vmatpush.xpose.msra.mxu0 0.0
    %2717 = vmatpush.xpose.msra.mxu0 0.0
    %2718 = vmatpush.xpose.msra.mxu0 0.0
    %2719 = vmatpush.xpose.msra.mxu0 0.0
    %2720 = vmatpush.xpose.msra.mxu0 0.0
    %2721 = vmatpush.xpose.msra.mxu0 0.0
    %2722 = vmatpush.xpose.msra.mxu0 0.0
    %2723 = vmatpush.xpose.msra.mxu0 0.0
    %2724 = vmatpush.xpose.msra.mxu0 0.0
    %2725 = vmatpush.xpose.msra.mxu0 0.0
    %2726 = vmatpush.xpose.msra.mxu0 0.0
    %2727 = vmatpush.xpose.msra.mxu0 0.0
    %2728 = vmatpush.xpose.msra.mxu0 0.0
    %2729 = vmatpush.xpose.msra.mxu0 0.0
    %2730 = vmatpush.xpose.msra.mxu0 0.0
    %v2731 = vand.u32 %v442, 4294901760
    %2732 = vmatpush.xpose.msra.mxu0 %v2731
    %v2733 = vand.u32 %v312, 4294901760
    %v2734 = vsub.f32 %v312, %v2733
    %v2735 = vand.u32 %v2734, 4294901760
    %v2736 = vsub.f32 %v2734, %v2735
    %v2737 = vand.u32 %v2736, 4294901760
    %2738 = vmatmul.f32.gmra.mxu0 %v2737
    %v2739 = vpop.f32.mrf.mxu0
    %v2740 = vadd.f32 %v2714, %v2739
    %2741 = vdwg.mxu0
    %2742 = vmatpush.xpose.msra.mxu0 0.0
    %2743 = vmatpush.xpose.msra.mxu0 0.0
    %2744 = vmatpush.xpose.msra.mxu0 0.0
    %2745 = vmatpush.xpose.msra.mxu0 0.0
    %2746 = vmatpush.xpose.msra.mxu0 0.0
    %2747 = vmatpush.xpose.msra.mxu0 0.0
    %2748 = vmatpush.xpose.msra.mxu0 0.0
    %2749 = vmatpush.xpose.msra.mxu0 0.0
    %2750 = vmatpush.xpose.msra.mxu0 0.0
    %2751 = vmatpush.xpose.msra.mxu0 0.0
    %2752 = vmatpush.xpose.msra.mxu0 0.0
    %2753 = vmatpush.xpose.msra.mxu0 0.0
    %2754 = vmatpush.xpose.msra.mxu0 0.0
    %2755 = vmatpush.xpose.msra.mxu0 0.0
    %2756 = vmatpush.xpose.msra.mxu0 0.0
    %v2757 = vand.u32 %v442, 4294901760
    %v2758 = vsub.f32 %v442, %v2757
    %v2759 = vand.u32 %v2758, 4294901760
    %v2760 = vsub.f32 %v2758, %v2759
    %v2761 = vand.u32 %v2760, 4294901760
    %2762 = vmatpush.xpose.msra.mxu0 %v2761
    %v2763 = vand.u32 %v312, 4294901760
    %2764 = vmatmul.f32.gmra.mxu0 %v2763
    %v2765 = vpop.f32.mrf.mxu0
    %v2766 = vadd.f32 %v2740, %v2765
    %2767 = vdwg.mxu0
    %2768 = vmatpush.xpose.msra.mxu0 0.0
    %2769 = vmatpush.xpose.msra.mxu0 0.0
    %2770 = vmatpush.xpose.msra.mxu0 0.0
    %2771 = vmatpush.xpose.msra.mxu0 0.0
    %2772 = vmatpush.xpose.msra.mxu0 0.0
    %2773 = vmatpush.xpose.msra.mxu0 0.0
    %2774 = vmatpush.xpose.msra.mxu0 0.0
    %2775 = vmatpush.xpose.msra.mxu0 0.0
    %2776 = vmatpush.xpose.msra.mxu0 0.0
    %2777 = vmatpush.xpose.msra.mxu0 0.0
    %2778 = vmatpush.xpose.msra.mxu0 0.0
    %2779 = vmatpush.xpose.msra.mxu0 0.0
    %2780 = vmatpush.xpose.msra.mxu0 0.0
    %2781 = vmatpush.xpose.msra.mxu0 0.0
    %2782 = vmatpush.xpose.msra.mxu0 0.0
    %v2783 = vand.u32 %v442, 4294901760
    %v2784 = vsub.f32 %v442, %v2783
    %2785 = vmatpush.xpose.msra.mxu0 %v2784
    %v2786 = vand.u32 %v312, 4294901760
    %v2787 = vsub.f32 %v312, %v2786
    %2788 = vmatmul.f32.gmra.mxu0 %v2787
    %v2789 = vpop.f32.mrf.mxu0
    %v2790 = vadd.f32 %v2766, %v2789
    %2791 = vdwg.mxu0
    %2792 = vmatpush.xpose.msra.mxu0 0.0
    %2793 = vmatpush.xpose.msra.mxu0 0.0
    %2794 = vmatpush.xpose.msra.mxu0 0.0
    %2795 = vmatpush.xpose.msra.mxu0 0.0
    %2796 = vmatpush.xpose.msra.mxu0 0.0
    %2797 = vmatpush.xpose.msra.mxu0 0.0
    %2798 = vmatpush.xpose.msra.mxu0 0.0
    %2799 = vmatpush.xpose.msra.mxu0 0.0
    %2800 = vmatpush.xpose.msra.mxu0 0.0
    %2801 = vmatpush.xpose.msra.mxu0 0.0
    %2802 = vmatpush.xpose.msra.mxu0 0.0
    %2803 = vmatpush.xpose.msra.mxu0 0.0
    %2804 = vmatpush.xpose.msra.mxu0 0.0
    %2805 = vmatpush.xpose.msra.mxu0 0.0
    %2806 = vmatpush.xpose.msra.mxu0 0.0
    %v2807 = vand.u32 %v442, 4294901760
    %2808 = vmatpush.xpose.msra.mxu0 %v2807
    %v2809 = vand.u32 %v312, 4294901760
    %v2810 = vsub.f32 %v312, %v2809
    %v2811 = vand.u32 %v2810, 4294901760
    %2812 = vmatmul.f32.gmra.mxu0 %v2811
    %v2813 = vpop.f32.mrf.mxu0
    %v2814 = vadd.f32 %v2790, %v2813
    %2815 = vdwg.mxu0
    %2816 = vmatpush.xpose.msra.mxu0 0.0
    %2817 = vmatpush.xpose.msra.mxu0 0.0
    %2818 = vmatpush.xpose.msra.mxu0 0.0
    %2819 = vmatpush.xpose.msra.mxu0 0.0
    %2820 = vmatpush.xpose.msra.mxu0 0.0
    %2821 = vmatpush.xpose.msra.mxu0 0.0
    %2822 = vmatpush.xpose.msra.mxu0 0.0
    %2823 = vmatpush.xpose.msra.mxu0 0.0
    %2824 = vmatpush.xpose.msra.mxu0 0.0
    %2825 = vmatpush.xpose.msra.mxu0 0.0
    %2826 = vmatpush.xpose.msra.mxu0 0.0
    %2827 = vmatpush.xpose.msra.mxu0 0.0
    %2828 = vmatpush.xpose.msra.mxu0 0.0
    %2829 = vmatpush.xpose.msra.mxu0 0.0
    %2830 = vmatpush.xpose.msra.mxu0 0.0
    %v2831 = vand.u32 %v442, 4294901760
    %v2832 = vsub.f32 %v442, %v2831
    %v2833 = vand.u32 %v2832, 4294901760
    %2834 = vmatpush.xpose.msra.mxu0 %v2833
    %v2835 = vand.u32 %v312, 4294901760
    %2836 = vmatmul.f32.gmra.mxu0 %v2835
    %v2837 = vpop.f32.mrf.mxu0
    %v2838 = vadd.f32 %v2814, %v2837
    %2839 = vdwg.mxu0
    %2840 = vmatpush.xpose.msra.mxu0 0.0
    %2841 = vmatpush.xpose.msra.mxu0 0.0
    %2842 = vmatpush.xpose.msra.mxu0 0.0
    %2843 = vmatpush.xpose.msra.mxu0 0.0
    %2844 = vmatpush.xpose.msra.mxu0 0.0
    %2845 = vmatpush.xpose.msra.mxu0 0.0
    %2846 = vmatpush.xpose.msra.mxu0 0.0
    %2847 = vmatpush.xpose.msra.mxu0 0.0
    %2848 = vmatpush.xpose.msra.mxu0 0.0
    %2849 = vmatpush.xpose.msra.mxu0 0.0
    %2850 = vmatpush.xpose.msra.mxu0 0.0
    %2851 = vmatpush.xpose.msra.mxu0 0.0
    %2852 = vmatpush.xpose.msra.mxu0 0.0
    %2853 = vmatpush.xpose.msra.mxu0 0.0
    %2854 = vmatpush.xpose.msra.mxu0 0.0
    %v2855 = vand.u32 %v442, 4294901760
    %2856 = vmatpush.xpose.msra.mxu0 %v2855
    %v2857 = vand.u32 %v312, 4294901760
    %2858 = vmatmul.f32.gmra.mxu0 %v2857
    %v2859 = vpop.f32.mrf.mxu0
    %v2860 = vadd.f32 %v2838, %v2859
    %2861 = vdwg.mxu0
    %2862 = vmatpush.xpose.msra.mxu0 0.0
    %2863 = vmatpush.xpose.msra.mxu0 0.0
    %2864 = vmatpush.xpose.msra.mxu0 0.0
    %2865 = vmatpush.xpose.msra.mxu0 0.0
    %2866 = vmatpush.xpose.msra.mxu0 0.0
    %2867 = vmatpush.xpose.msra.mxu0 0.0
    %2868 = vmatpush.xpose.msra.mxu0 0.0
    %2869 = vmatpush.xpose.msra.mxu0 0.0
    %2870 = vmatpush.xpose.msra.mxu0 0.0
    %2871 = vmatpush.xpose.msra.mxu0 0.0
    %2872 = vmatpush.xpose.msra.mxu0 0.0
    %2873 = vmatpush.xpose.msra.mxu0 0.0
    %2874 = vmatpush.xpose.msra.mxu0 0.0
    %2875 = vmatpush.xpose.msra.mxu0 0.0
    %2876 = vmatpush.xpose.msra.mxu0 0.0
    %v2877 = vand.u32 %v443, 4294901760
    %2878 = vmatpush.xpose.msra.mxu0 %v2877
    %v2879 = vand.u32 %v313, 4294901760
    %v2880 = vsub.f32 %v313, %v2879
    %v2881 = vand.u32 %v2880, 4294901760
    %v2882 = vsub.f32 %v2880, %v2881
    %v2883 = vand.u32 %v2882, 4294901760
    %2884 = vmatmul.f32.gmra.mxu0 %v2883
    %v2885 = vpop.f32.mrf.mxu0
    %v2886 = vadd.f32 %v2860, %v2885
    %2887 = vdwg.mxu0
    %2888 = vmatpush.xpose.msra.mxu0 0.0
    %2889 = vmatpush.xpose.msra.mxu0 0.0
    %2890 = vmatpush.xpose.msra.mxu0 0.0
    %2891 = vmatpush.xpose.msra.mxu0 0.0
    %2892 = vmatpush.xpose.msra.mxu0 0.0
    %2893 = vmatpush.xpose.msra.mxu0 0.0
    %2894 = vmatpush.xpose.msra.mxu0 0.0
    %2895 = vmatpush.xpose.msra.mxu0 0.0
    %2896 = vmatpush.xpose.msra.mxu0 0.0
    %2897 = vmatpush.xpose.msra.mxu0 0.0
    %2898 = vmatpush.xpose.msra.mxu0 0.0
    %2899 = vmatpush.xpose.msra.mxu0 0.0
    %2900 = vmatpush.xpose.msra.mxu0 0.0
    %2901 = vmatpush.xpose.msra.mxu0 0.0
    %2902 = vmatpush.xpose.msra.mxu0 0.0
    %v2903 = vand.u32 %v443, 4294901760
    %v2904 = vsub.f32 %v443, %v2903
    %v2905 = vand.u32 %v2904, 4294901760
    %v2906 = vsub.f32 %v2904, %v2905
    %v2907 = vand.u32 %v2906, 4294901760
    %2908 = vmatpush.xpose.msra.mxu0 %v2907
    %v2909 = vand.u32 %v313, 4294901760
    %2910 = vmatmul.f32.gmra.mxu0 %v2909
    %v2911 = vpop.f32.mrf.mxu0
    %v2912 = vadd.f32 %v2886, %v2911
    %2913 = vdwg.mxu0
    %2914 = vmatpush.xpose.msra.mxu0 0.0
    %2915 = vmatpush.xpose.msra.mxu0 0.0
    %2916 = vmatpush.xpose.msra.mxu0 0.0
    %2917 = vmatpush.xpose.msra.mxu0 0.0
    %2918 = vmatpush.xpose.msra.mxu0 0.0
    %2919 = vmatpush.xpose.msra.mxu0 0.0
    %2920 = vmatpush.xpose.msra.mxu0 0.0
    %2921 = vmatpush.xpose.msra.mxu0 0.0
    %2922 = vmatpush.xpose.msra.mxu0 0.0
    %2923 = vmatpush.xpose.msra.mxu0 0.0
    %2924 = vmatpush.xpose.msra.mxu0 0.0
    %2925 = vmatpush.xpose.msra.mxu0 0.0
    %2926 = vmatpush.xpose.msra.mxu0 0.0
    %2927 = vmatpush.xpose.msra.mxu0 0.0
    %2928 = vmatpush.xpose.msra.mxu0 0.0
    %v2929 = vand.u32 %v443, 4294901760
    %v2930 = vsub.f32 %v443, %v2929
    %2931 = vmatpush.xpose.msra.mxu0 %v2930
    %v2932 = vand.u32 %v313, 4294901760
    %v2933 = vsub.f32 %v313, %v2932
    %2934 = vmatmul.f32.gmra.mxu0 %v2933
    %v2935 = vpop.f32.mrf.mxu0
    %v2936 = vadd.f32 %v2912, %v2935
    %2937 = vdwg.mxu0
    %2938 = vmatpush.xpose.msra.mxu0 0.0
    %2939 = vmatpush.xpose.msra.mxu0 0.0
    %2940 = vmatpush.xpose.msra.mxu0 0.0
    %2941 = vmatpush.xpose.msra.mxu0 0.0
    %2942 = vmatpush.xpose.msra.mxu0 0.0
    %2943 = vmatpush.xpose.msra.mxu0 0.0
    %2944 = vmatpush.xpose.msra.mxu0 0.0
    %2945 = vmatpush.xpose.msra.mxu0 0.0
    %2946 = vmatpush.xpose.msra.mxu0 0.0
    %2947 = vmatpush.xpose.msra.mxu0 0.0
    %2948 = vmatpush.xpose.msra.mxu0 0.0
    %2949 = vmatpush.xpose.msra.mxu0 0.0
    %2950 = vmatpush.xpose.msra.mxu0 0.0
    %2951 = vmatpush.xpose.msra.mxu0 0.0
    %2952 = vmatpush.xpose.msra.mxu0 0.0
    %v2953 = vand.u32 %v443, 4294901760
    %2954 = vmatpush.xpose.msra.mxu0 %v2953
    %v2955 = vand.u32 %v313, 4294901760
    %v2956 = vsub.f32 %v313, %v2955
    %v2957 = vand.u32 %v2956, 4294901760
    %2958 = vmatmul.f32.gmra.mxu0 %v2957
    %v2959 = vpop.f32.mrf.mxu0
    %v2960 = vadd.f32 %v2936, %v2959
    %2961 = vdwg.mxu0
    %2962 = vmatpush.xpose.msra.mxu0 0.0
    %2963 = vmatpush.xpose.msra.mxu0 0.0
    %2964 = vmatpush.xpose.msra.mxu0 0.0
    %2965 = vmatpush.xpose.msra.mxu0 0.0
    %2966 = vmatpush.xpose.msra.mxu0 0.0
    %2967 = vmatpush.xpose.msra.mxu0 0.0
    %2968 = vmatpush.xpose.msra.mxu0 0.0
    %2969 = vmatpush.xpose.msra.mxu0 0.0
    %2970 = vmatpush.xpose.msra.mxu0 0.0
    %2971 = vmatpush.xpose.msra.mxu0 0.0
    %2972 = vmatpush.xpose.msra.mxu0 0.0
    %2973 = vmatpush.xpose.msra.mxu0 0.0
    %2974 = vmatpush.xpose.msra.mxu0 0.0
    %2975 = vmatpush.xpose.msra.mxu0 0.0
    %2976 = vmatpush.xpose.msra.mxu0 0.0
    %v2977 = vand.u32 %v443, 4294901760
    %v2978 = vsub.f32 %v443, %v2977
    %v2979 = vand.u32 %v2978, 4294901760
    %2980 = vmatpush.xpose.msra.mxu0 %v2979
    %v2981 = vand.u32 %v313, 4294901760
    %2982 = vmatmul.f32.gmra.mxu0 %v2981
    %v2983 = vpop.f32.mrf.mxu0
    %v2984 = vadd.f32 %v2960, %v2983
    %2985 = vdwg.mxu0
    %2986 = vmatpush.xpose.msra.mxu0 0.0
    %2987 = vmatpush.xpose.msra.mxu0 0.0
    %2988 = vmatpush.xpose.msra.mxu0 0.0
    %2989 = vmatpush.xpose.msra.mxu0 0.0
    %2990 = vmatpush.xpose.msra.mxu0 0.0
    %2991 = vmatpush.xpose.msra.mxu0 0.0
    %2992 = vmatpush.xpose.msra.mxu0 0.0
    %2993 = vmatpush.xpose.msra.mxu0 0.0
    %2994 = vmatpush.xpose.msra.mxu0 0.0
    %2995 = vmatpush.xpose.msra.mxu0 0.0
    %2996 = vmatpush.xpose.msra.mxu0 0.0
    %2997 = vmatpush.xpose.msra.mxu0 0.0
    %2998 = vmatpush.xpose.msra.mxu0 0.0
    %2999 = vmatpush.xpose.msra.mxu0 0.0
    %3000 = vmatpush.xpose.msra.mxu0 0.0
    %v3001 = vand.u32 %v443, 4294901760
    %3002 = vmatpush.xpose.msra.mxu0 %v3001
    %v3003 = vand.u32 %v313, 4294901760
    %3004 = vmatmul.f32.gmra.mxu0 %v3003
    %v3005 = vpop.f32.mrf.mxu0
    %v3006 = vadd.f32 %v2984, %v3005
    %3007 = vdwg.mxu0
    %3008 = vmatpush.xpose.msra.mxu0 0.0
    %3009 = vmatpush.xpose.msra.mxu0 0.0
    %3010 = vmatpush.xpose.msra.mxu0 0.0
    %3011 = vmatpush.xpose.msra.mxu0 0.0
    %3012 = vmatpush.xpose.msra.mxu0 0.0
    %3013 = vmatpush.xpose.msra.mxu0 0.0
    %3014 = vmatpush.xpose.msra.mxu0 0.0
    %3015 = vmatpush.xpose.msra.mxu0 0.0
    %3016 = vmatpush.xpose.msra.mxu0 0.0
    %3017 = vmatpush.xpose.msra.mxu0 0.0
    %3018 = vmatpush.xpose.msra.mxu0 0.0
    %3019 = vmatpush.xpose.msra.mxu0 0.0
    %3020 = vmatpush.xpose.msra.mxu0 0.0
    %3021 = vmatpush.xpose.msra.mxu0 0.0
    %3022 = vmatpush.xpose.msra.mxu0 0.0
    %v3023 = vand.u32 %v444, 4294901760
    %3024 = vmatpush.xpose.msra.mxu0 %v3023
    %v3025 = vand.u32 %v314, 4294901760
    %v3026 = vsub.f32 %v314, %v3025
    %v3027 = vand.u32 %v3026, 4294901760
    %v3028 = vsub.f32 %v3026, %v3027
    %v3029 = vand.u32 %v3028, 4294901760
    %3030 = vmatmul.f32.gmra.mxu0 %v3029
    %v3031 = vpop.f32.mrf.mxu0
    %v3032 = vadd.f32 %v3006, %v3031
    %3033 = vdwg.mxu0
    %3034 = vmatpush.xpose.msra.mxu0 0.0
    %3035 = vmatpush.xpose.msra.mxu0 0.0
    %3036 = vmatpush.xpose.msra.mxu0 0.0
    %3037 = vmatpush.xpose.msra.mxu0 0.0
    %3038 = vmatpush.xpose.msra.mxu0 0.0
    %3039 = vmatpush.xpose.msra.mxu0 0.0
    %3040 = vmatpush.xpose.msra.mxu0 0.0
    %3041 = vmatpush.xpose.msra.mxu0 0.0
    %3042 = vmatpush.xpose.msra.mxu0 0.0
    %3043 = vmatpush.xpose.msra.mxu0 0.0
    %3044 = vmatpush.xpose.msra.mxu0 0.0
    %3045 = vmatpush.xpose.msra.mxu0 0.0
    %3046 = vmatpush.xpose.msra.mxu0 0.0
    %3047 = vmatpush.xpose.msra.mxu0 0.0
    %3048 = vmatpush.xpose.msra.mxu0 0.0
    %v3049 = vand.u32 %v444, 4294901760
    %v3050 = vsub.f32 %v444, %v3049
    %v3051 = vand.u32 %v3050, 4294901760
    %v3052 = vsub.f32 %v3050, %v3051
    %v3053 = vand.u32 %v3052, 4294901760
    %3054 = vmatpush.xpose.msra.mxu0 %v3053
    %v3055 = vand.u32 %v314, 4294901760
    %3056 = vmatmul.f32.gmra.mxu0 %v3055
    %v3057 = vpop.f32.mrf.mxu0
    %v3058 = vadd.f32 %v3032, %v3057
    %3059 = vdwg.mxu0
    %3060 = vmatpush.xpose.msra.mxu0 0.0
    %3061 = vmatpush.xpose.msra.mxu0 0.0
    %3062 = vmatpush.xpose.msra.mxu0 0.0
    %3063 = vmatpush.xpose.msra.mxu0 0.0
    %3064 = vmatpush.xpose.msra.mxu0 0.0
    %3065 = vmatpush.xpose.msra.mxu0 0.0
    %3066 = vmatpush.xpose.msra.mxu0 0.0
    %3067 = vmatpush.xpose.msra.mxu0 0.0
    %3068 = vmatpush.xpose.msra.mxu0 0.0
    %3069 = vmatpush.xpose.msra.mxu0 0.0
    %3070 = vmatpush.xpose.msra.mxu0 0.0
    %3071 = vmatpush.xpose.msra.mxu0 0.0
    %3072 = vmatpush.xpose.msra.mxu0 0.0
    %3073 = vmatpush.xpose.msra.mxu0 0.0
    %3074 = vmatpush.xpose.msra.mxu0 0.0
    %v3075 = vand.u32 %v444, 4294901760
    %v3076 = vsub.f32 %v444, %v3075
    %3077 = vmatpush.xpose.msra.mxu0 %v3076
    %v3078 = vand.u32 %v314, 4294901760
    %v3079 = vsub.f32 %v314, %v3078
    %3080 = vmatmul.f32.gmra.mxu0 %v3079
    %v3081 = vpop.f32.mrf.mxu0
    %v3082 = vadd.f32 %v3058, %v3081
    %3083 = vdwg.mxu0
    %3084 = vmatpush.xpose.msra.mxu0 0.0
    %3085 = vmatpush.xpose.msra.mxu0 0.0
    %3086 = vmatpush.xpose.msra.mxu0 0.0
    %3087 = vmatpush.xpose.msra.mxu0 0.0
    %3088 = vmatpush.xpose.msra.mxu0 0.0
    %3089 = vmatpush.xpose.msra.mxu0 0.0
    %3090 = vmatpush.xpose.msra.mxu0 0.0
    %3091 = vmatpush.xpose.msra.mxu0 0.0
    %3092 = vmatpush.xpose.msra.mxu0 0.0
    %3093 = vmatpush.xpose.msra.mxu0 0.0
    %3094 = vmatpush.xpose.msra.mxu0 0.0
    %3095 = vmatpush.xpose.msra.mxu0 0.0
    %3096 = vmatpush.xpose.msra.mxu0 0.0
    %3097 = vmatpush.xpose.msra.mxu0 0.0
    %3098 = vmatpush.xpose.msra.mxu0 0.0
    %v3099 = vand.u32 %v444, 4294901760
    %3100 = vmatpush.xpose.msra.mxu0 %v3099
    %v3101 = vand.u32 %v314, 4294901760
    %v3102 = vsub.f32 %v314, %v3101
    %v3103 = vand.u32 %v3102, 4294901760
    %3104 = vmatmul.f32.gmra.mxu0 %v3103
    %v3105 = vpop.f32.mrf.mxu0
    %v3106 = vadd.f32 %v3082, %v3105
    %3107 = vdwg.mxu0
    %3108 = vmatpush.xpose.msra.mxu0 0.0
    %3109 = vmatpush.xpose.msra.mxu0 0.0
    %3110 = vmatpush.xpose.msra.mxu0 0.0
    %3111 = vmatpush.xpose.msra.mxu0 0.0
    %3112 = vmatpush.xpose.msra.mxu0 0.0
    %3113 = vmatpush.xpose.msra.mxu0 0.0
    %3114 = vmatpush.xpose.msra.mxu0 0.0
    %3115 = vmatpush.xpose.msra.mxu0 0.0
    %3116 = vmatpush.xpose.msra.mxu0 0.0
    %3117 = vmatpush.xpose.msra.mxu0 0.0
    %3118 = vmatpush.xpose.msra.mxu0 0.0
    %3119 = vmatpush.xpose.msra.mxu0 0.0
    %3120 = vmatpush.xpose.msra.mxu0 0.0
    %3121 = vmatpush.xpose.msra.mxu0 0.0
    %3122 = vmatpush.xpose.msra.mxu0 0.0
    %v3123 = vand.u32 %v444, 4294901760
    %v3124 = vsub.f32 %v444, %v3123
    %v3125 = vand.u32 %v3124, 4294901760
    %3126 = vmatpush.xpose.msra.mxu0 %v3125
    %v3127 = vand.u32 %v314, 4294901760
    %3128 = vmatmul.f32.gmra.mxu0 %v3127
    %v3129 = vpop.f32.mrf.mxu0
    %v3130 = vadd.f32 %v3106, %v3129
    %3131 = vdwg.mxu0
    %3132 = vmatpush.xpose.msra.mxu0 0.0
    %3133 = vmatpush.xpose.msra.mxu0 0.0
    %3134 = vmatpush.xpose.msra.mxu0 0.0
    %3135 = vmatpush.xpose.msra.mxu0 0.0
    %3136 = vmatpush.xpose.msra.mxu0 0.0
    %3137 = vmatpush.xpose.msra.mxu0 0.0
    %3138 = vmatpush.xpose.msra.mxu0 0.0
    %3139 = vmatpush.xpose.msra.mxu0 0.0
    %3140 = vmatpush.xpose.msra.mxu0 0.0
    %3141 = vmatpush.xpose.msra.mxu0 0.0
    %3142 = vmatpush.xpose.msra.mxu0 0.0
    %3143 = vmatpush.xpose.msra.mxu0 0.0
    %3144 = vmatpush.xpose.msra.mxu0 0.0
    %3145 = vmatpush.xpose.msra.mxu0 0.0
    %3146 = vmatpush.xpose.msra.mxu0 0.0
    %v3147 = vand.u32 %v444, 4294901760
    %3148 = vmatpush.xpose.msra.mxu0 %v3147
    %v3149 = vand.u32 %v314, 4294901760
    %3150 = vmatmul.f32.gmra.mxu0 %v3149
    %v3151 = vpop.f32.mrf.mxu0
    %v3152 = vadd.f32 %v3130, %v3151
    %3153 = vdwg.mxu0
    %3154 = vmatpush.xpose.msra.mxu0 0.0
    %3155 = vmatpush.xpose.msra.mxu0 0.0
    %3156 = vmatpush.xpose.msra.mxu0 0.0
    %3157 = vmatpush.xpose.msra.mxu0 0.0
    %3158 = vmatpush.xpose.msra.mxu0 0.0
    %3159 = vmatpush.xpose.msra.mxu0 0.0
    %3160 = vmatpush.xpose.msra.mxu0 0.0
    %3161 = vmatpush.xpose.msra.mxu0 0.0
    %3162 = vmatpush.xpose.msra.mxu0 0.0
    %3163 = vmatpush.xpose.msra.mxu0 0.0
    %3164 = vmatpush.xpose.msra.mxu0 0.0
    %3165 = vmatpush.xpose.msra.mxu0 0.0
    %3166 = vmatpush.xpose.msra.mxu0 0.0
    %3167 = vmatpush.xpose.msra.mxu0 0.0
    %3168 = vmatpush.xpose.msra.mxu0 0.0
    %v3169 = vand.u32 %v445, 4294901760
    %3170 = vmatpush.xpose.msra.mxu0 %v3169
    %v3171 = vand.u32 %v315, 4294901760
    %v3172 = vsub.f32 %v315, %v3171
    %v3173 = vand.u32 %v3172, 4294901760
    %v3174 = vsub.f32 %v3172, %v3173
    %v3175 = vand.u32 %v3174, 4294901760
    %3176 = vmatmul.f32.gmra.mxu0 %v3175
    %v3177 = vpop.f32.mrf.mxu0
    %v3178 = vadd.f32 %v3152, %v3177
    %3179 = vdwg.mxu0
    %3180 = vmatpush.xpose.msra.mxu0 0.0
    %3181 = vmatpush.xpose.msra.mxu0 0.0
    %3182 = vmatpush.xpose.msra.mxu0 0.0
    %3183 = vmatpush.xpose.msra.mxu0 0.0
    %3184 = vmatpush.xpose.msra.mxu0 0.0
    %3185 = vmatpush.xpose.msra.mxu0 0.0
    %3186 = vmatpush.xpose.msra.mxu0 0.0
    %3187 = vmatpush.xpose.msra.mxu0 0.0
    %3188 = vmatpush.xpose.msra.mxu0 0.0
    %3189 = vmatpush.xpose.msra.mxu0 0.0
    %3190 = vmatpush.xpose.msra.mxu0 0.0
    %3191 = vmatpush.xpose.msra.mxu0 0.0
    %3192 = vmatpush.xpose.msra.mxu0 0.0
    %3193 = vmatpush.xpose.msra.mxu0 0.0
    %3194 = vmatpush.xpose.msra.mxu0 0.0
    %v3195 = vand.u32 %v445, 4294901760
    %v3196 = vsub.f32 %v445, %v3195
    %v3197 = vand.u32 %v3196, 4294901760
    %v3198 = vsub.f32 %v3196, %v3197
    %v3199 = vand.u32 %v3198, 4294901760
    %3200 = vmatpush.xpose.msra.mxu0 %v3199
    %v3201 = vand.u32 %v315, 4294901760
    %3202 = vmatmul.f32.gmra.mxu0 %v3201
    %v3203 = vpop.f32.mrf.mxu0
    %v3204 = vadd.f32 %v3178, %v3203
    %3205 = vdwg.mxu0
    %3206 = vmatpush.xpose.msra.mxu0 0.0
    %3207 = vmatpush.xpose.msra.mxu0 0.0
    %3208 = vmatpush.xpose.msra.mxu0 0.0
    %3209 = vmatpush.xpose.msra.mxu0 0.0
    %3210 = vmatpush.xpose.msra.mxu0 0.0
    %3211 = vmatpush.xpose.msra.mxu0 0.0
    %3212 = vmatpush.xpose.msra.mxu0 0.0
    %3213 = vmatpush.xpose.msra.mxu0 0.0
    %3214 = vmatpush.xpose.msra.mxu0 0.0
    %3215 = vmatpush.xpose.msra.mxu0 0.0
    %3216 = vmatpush.xpose.msra.mxu0 0.0
    %3217 = vmatpush.xpose.msra.mxu0 0.0
    %3218 = vmatpush.xpose.msra.mxu0 0.0
    %3219 = vmatpush.xpose.msra.mxu0 0.0
    %3220 = vmatpush.xpose.msra.mxu0 0.0
    %v3221 = vand.u32 %v445, 4294901760
    %v3222 = vsub.f32 %v445, %v3221
    %3223 = vmatpush.xpose.msra.mxu0 %v3222
    %v3224 = vand.u32 %v315, 4294901760
    %v3225 = vsub.f32 %v315, %v3224
    %3226 = vmatmul.f32.gmra.mxu0 %v3225
    %v3227 = vpop.f32.mrf.mxu0
    %v3228 = vadd.f32 %v3204, %v3227
    %3229 = vdwg.mxu0
    %3230 = vmatpush.xpose.msra.mxu0 0.0
    %3231 = vmatpush.xpose.msra.mxu0 0.0
    %3232 = vmatpush.xpose.msra.mxu0 0.0
    %3233 = vmatpush.xpose.msra.mxu0 0.0
    %3234 = vmatpush.xpose.msra.mxu0 0.0
    %3235 = vmatpush.xpose.msra.mxu0 0.0
    %3236 = vmatpush.xpose.msra.mxu0 0.0
    %3237 = vmatpush.xpose.msra.mxu0 0.0
    %3238 = vmatpush.xpose.msra.mxu0 0.0
    %3239 = vmatpush.xpose.msra.mxu0 0.0
    %3240 = vmatpush.xpose.msra.mxu0 0.0
    %3241 = vmatpush.xpose.msra.mxu0 0.0
    %3242 = vmatpush.xpose.msra.mxu0 0.0
    %3243 = vmatpush.xpose.msra.mxu0 0.0
    %3244 = vmatpush.xpose.msra.mxu0 0.0
    %v3245 = vand.u32 %v445, 4294901760
    %3246 = vmatpush.xpose.msra.mxu0 %v3245
    %v3247 = vand.u32 %v315, 4294901760
    %v3248 = vsub.f32 %v315, %v3247
    %v3249 = vand.u32 %v3248, 4294901760
    %3250 = vmatmul.f32.gmra.mxu0 %v3249
    %v3251 = vpop.f32.mrf.mxu0
    %v3252 = vadd.f32 %v3228, %v3251
    %3253 = vdwg.mxu0
    %3254 = vmatpush.xpose.msra.mxu0 0.0
    %3255 = vmatpush.xpose.msra.mxu0 0.0
    %3256 = vmatpush.xpose.msra.mxu0 0.0
    %3257 = vmatpush.xpose.msra.mxu0 0.0
    %3258 = vmatpush.xpose.msra.mxu0 0.0
    %3259 = vmatpush.xpose.msra.mxu0 0.0
    %3260 = vmatpush.xpose.msra.mxu0 0.0
    %3261 = vmatpush.xpose.msra.mxu0 0.0
    %3262 = vmatpush.xpose.msra.mxu0 0.0
    %3263 = vmatpush.xpose.msra.mxu0 0.0
    %3264 = vmatpush.xpose.msra.mxu0 0.0
    %3265 = vmatpush.xpose.msra.mxu0 0.0
    %3266 = vmatpush.xpose.msra.mxu0 0.0
    %3267 = vmatpush.xpose.msra.mxu0 0.0
    %3268 = vmatpush.xpose.msra.mxu0 0.0
    %v3269 = vand.u32 %v445, 4294901760
    %v3270 = vsub.f32 %v445, %v3269
    %v3271 = vand.u32 %v3270, 4294901760
    %3272 = vmatpush.xpose.msra.mxu0 %v3271
    %v3273 = vand.u32 %v315, 4294901760
    %3274 = vmatmul.f32.gmra.mxu0 %v3273
    %v3275 = vpop.f32.mrf.mxu0
    %v3276 = vadd.f32 %v3252, %v3275
    %3277 = vdwg.mxu0
    %3278 = vmatpush.xpose.msra.mxu0 0.0
    %3279 = vmatpush.xpose.msra.mxu0 0.0
    %3280 = vmatpush.xpose.msra.mxu0 0.0
    %3281 = vmatpush.xpose.msra.mxu0 0.0
    %3282 = vmatpush.xpose.msra.mxu0 0.0
    %3283 = vmatpush.xpose.msra.mxu0 0.0
    %3284 = vmatpush.xpose.msra.mxu0 0.0
    %3285 = vmatpush.xpose.msra.mxu0 0.0
    %3286 = vmatpush.xpose.msra.mxu0 0.0
    %3287 = vmatpush.xpose.msra.mxu0 0.0
    %3288 = vmatpush.xpose.msra.mxu0 0.0
    %3289 = vmatpush.xpose.msra.mxu0 0.0
    %3290 = vmatpush.xpose.msra.mxu0 0.0
    %3291 = vmatpush.xpose.msra.mxu0 0.0
    %3292 = vmatpush.xpose.msra.mxu0 0.0
    %v3293 = vand.u32 %v445, 4294901760
    %3294 = vmatpush.xpose.msra.mxu0 %v3293
    %v3295 = vand.u32 %v315, 4294901760
    %3296 = vmatmul.f32.gmra.mxu0 %v3295
    %v3297 = vpop.f32.mrf.mxu0
    %v3298 = vadd.f32 %v3276, %v3297
    %3299 = vdwg.mxu0
    %3300 = vmatpush.xpose.msra.mxu0 0.0
    %3301 = vmatpush.xpose.msra.mxu0 0.0
    %3302 = vmatpush.xpose.msra.mxu0 0.0
    %3303 = vmatpush.xpose.msra.mxu0 0.0
    %3304 = vmatpush.xpose.msra.mxu0 0.0
    %3305 = vmatpush.xpose.msra.mxu0 0.0
    %3306 = vmatpush.xpose.msra.mxu0 0.0
    %3307 = vmatpush.xpose.msra.mxu0 0.0
    %3308 = vmatpush.xpose.msra.mxu0 0.0
    %3309 = vmatpush.xpose.msra.mxu0 0.0
    %3310 = vmatpush.xpose.msra.mxu0 0.0
    %3311 = vmatpush.xpose.msra.mxu0 0.0
    %3312 = vmatpush.xpose.msra.mxu0 0.0
    %3313 = vmatpush.xpose.msra.mxu0 0.0
    %3314 = vmatpush.xpose.msra.mxu0 0.0
    %v3315 = vand.u32 %v446, 4294901760
    %3316 = vmatpush.xpose.msra.mxu0 %v3315
    %v3317 = vand.u32 %v316, 4294901760
    %v3318 = vsub.f32 %v316, %v3317
    %v3319 = vand.u32 %v3318, 4294901760
    %v3320 = vsub.f32 %v3318, %v3319
    %v3321 = vand.u32 %v3320, 4294901760
    %3322 = vmatmul.f32.gmra.mxu0 %v3321
    %v3323 = vpop.f32.mrf.mxu0
    %v3324 = vadd.f32 %v3298, %v3323
    %3325 = vdwg.mxu0
    %3326 = vmatpush.xpose.msra.mxu0 0.0
    %3327 = vmatpush.xpose.msra.mxu0 0.0
    %3328 = vmatpush.xpose.msra.mxu0 0.0
    %3329 = vmatpush.xpose.msra.mxu0 0.0
    %3330 = vmatpush.xpose.msra.mxu0 0.0
    %3331 = vmatpush.xpose.msra.mxu0 0.0
    %3332 = vmatpush.xpose.msra.mxu0 0.0
    %3333 = vmatpush.xpose.msra.mxu0 0.0
    %3334 = vmatpush.xpose.msra.mxu0 0.0
    %3335 = vmatpush.xpose.msra.mxu0 0.0
    %3336 = vmatpush.xpose.msra.mxu0 0.0
    %3337 = vmatpush.xpose.msra.mxu0 0.0
    %3338 = vmatpush.xpose.msra.mxu0 0.0
    %3339 = vmatpush.xpose.msra.mxu0 0.0
    %3340 = vmatpush.xpose.msra.mxu0 0.0
    %v3341 = vand.u32 %v446, 4294901760
    %v3342 = vsub.f32 %v446, %v3341
    %v3343 = vand.u32 %v3342, 4294901760
    %v3344 = vsub.f32 %v3342, %v3343
    %v3345 = vand.u32 %v3344, 4294901760
    %3346 = vmatpush.xpose.msra.mxu0 %v3345
    %v3347 = vand.u32 %v316, 4294901760
    %3348 = vmatmul.f32.gmra.mxu0 %v3347
    %v3349 = vpop.f32.mrf.mxu0
    %v3350 = vadd.f32 %v3324, %v3349
    %3351 = vdwg.mxu0
    %3352 = vmatpush.xpose.msra.mxu0 0.0
    %3353 = vmatpush.xpose.msra.mxu0 0.0
    %3354 = vmatpush.xpose.msra.mxu0 0.0
    %3355 = vmatpush.xpose.msra.mxu0 0.0
    %3356 = vmatpush.xpose.msra.mxu0 0.0
    %3357 = vmatpush.xpose.msra.mxu0 0.0
    %3358 = vmatpush.xpose.msra.mxu0 0.0
    %3359 = vmatpush.xpose.msra.mxu0 0.0
    %3360 = vmatpush.xpose.msra.mxu0 0.0
    %3361 = vmatpush.xpose.msra.mxu0 0.0
    %3362 = vmatpush.xpose.msra.mxu0 0.0
    %3363 = vmatpush.xpose.msra.mxu0 0.0
    %3364 = vmatpush.xpose.msra.mxu0 0.0
    %3365 = vmatpush.xpose.msra.mxu0 0.0
    %3366 = vmatpush.xpose.msra.mxu0 0.0
    %v3367 = vand.u32 %v446, 4294901760
    %v3368 = vsub.f32 %v446, %v3367
    %3369 = vmatpush.xpose.msra.mxu0 %v3368
    %v3370 = vand.u32 %v316, 4294901760
    %v3371 = vsub.f32 %v316, %v3370
    %3372 = vmatmul.f32.gmra.mxu0 %v3371
    %v3373 = vpop.f32.mrf.mxu0
    %v3374 = vadd.f32 %v3350, %v3373
    %3375 = vdwg.mxu0
    %3376 = vmatpush.xpose.msra.mxu0 0.0
    %3377 = vmatpush.xpose.msra.mxu0 0.0
    %3378 = vmatpush.xpose.msra.mxu0 0.0
    %3379 = vmatpush.xpose.msra.mxu0 0.0
    %3380 = vmatpush.xpose.msra.mxu0 0.0
    %3381 = vmatpush.xpose.msra.mxu0 0.0
    %3382 = vmatpush.xpose.msra.mxu0 0.0
    %3383 = vmatpush.xpose.msra.mxu0 0.0
    %3384 = vmatpush.xpose.msra.mxu0 0.0
    %3385 = vmatpush.xpose.msra.mxu0 0.0
    %3386 = vmatpush.xpose.msra.mxu0 0.0
    %3387 = vmatpush.xpose.msra.mxu0 0.0
    %3388 = vmatpush.xpose.msra.mxu0 0.0
    %3389 = vmatpush.xpose.msra.mxu0 0.0
    %3390 = vmatpush.xpose.msra.mxu0 0.0
    %v3391 = vand.u32 %v446, 4294901760
    %3392 = vmatpush.xpose.msra.mxu0 %v3391
    %v3393 = vand.u32 %v316, 4294901760
    %v3394 = vsub.f32 %v316, %v3393
    %v3395 = vand.u32 %v3394, 4294901760
    %3396 = vmatmul.f32.gmra.mxu0 %v3395
    %v3397 = vpop.f32.mrf.mxu0
    %v3398 = vadd.f32 %v3374, %v3397
    %3399 = vdwg.mxu0
    %3400 = vmatpush.xpose.msra.mxu0 0.0
    %3401 = vmatpush.xpose.msra.mxu0 0.0
    %3402 = vmatpush.xpose.msra.mxu0 0.0
    %3403 = vmatpush.xpose.msra.mxu0 0.0
    %3404 = vmatpush.xpose.msra.mxu0 0.0
    %3405 = vmatpush.xpose.msra.mxu0 0.0
    %3406 = vmatpush.xpose.msra.mxu0 0.0
    %3407 = vmatpush.xpose.msra.mxu0 0.0
    %3408 = vmatpush.xpose.msra.mxu0 0.0
    %3409 = vmatpush.xpose.msra.mxu0 0.0
    %3410 = vmatpush.xpose.msra.mxu0 0.0
    %3411 = vmatpush.xpose.msra.mxu0 0.0
    %3412 = vmatpush.xpose.msra.mxu0 0.0
    %3413 = vmatpush.xpose.msra.mxu0 0.0
    %3414 = vmatpush.xpose.msra.mxu0 0.0
    %v3415 = vand.u32 %v446, 4294901760
    %v3416 = vsub.f32 %v446, %v3415
    %v3417 = vand.u32 %v3416, 4294901760
    %3418 = vmatpush.xpose.msra.mxu0 %v3417
    %v3419 = vand.u32 %v316, 4294901760
    %3420 = vmatmul.f32.gmra.mxu0 %v3419
    %v3421 = vpop.f32.mrf.mxu0
    %v3422 = vadd.f32 %v3398, %v3421
    %3423 = vdwg.mxu0
    %3424 = vmatpush.xpose.msra.mxu0 0.0
    %3425 = vmatpush.xpose.msra.mxu0 0.0
    %3426 = vmatpush.xpose.msra.mxu0 0.0
    %3427 = vmatpush.xpose.msra.mxu0 0.0
    %3428 = vmatpush.xpose.msra.mxu0 0.0
    %3429 = vmatpush.xpose.msra.mxu0 0.0
    %3430 = vmatpush.xpose.msra.mxu0 0.0
    %3431 = vmatpush.xpose.msra.mxu0 0.0
    %3432 = vmatpush.xpose.msra.mxu0 0.0
    %3433 = vmatpush.xpose.msra.mxu0 0.0
    %3434 = vmatpush.xpose.msra.mxu0 0.0
    %3435 = vmatpush.xpose.msra.mxu0 0.0
    %3436 = vmatpush.xpose.msra.mxu0 0.0
    %3437 = vmatpush.xpose.msra.mxu0 0.0
    %3438 = vmatpush.xpose.msra.mxu0 0.0
    %v3439 = vand.u32 %v446, 4294901760
    %3440 = vmatpush.xpose.msra.mxu0 %v3439
    %v3441 = vand.u32 %v316, 4294901760
    %3442 = vmatmul.f32.gmra.mxu0 %v3441
    %v3443 = vpop.f32.mrf.mxu0
    %v3444 = vadd.f32 %v3422, %v3443
    %3445 = vdwg.mxu0
    %3446 = vmatpush.xpose.msra.mxu0 0.0
    %3447 = vmatpush.xpose.msra.mxu0 0.0
    %3448 = vmatpush.xpose.msra.mxu0 0.0
    %3449 = vmatpush.xpose.msra.mxu0 0.0
    %3450 = vmatpush.xpose.msra.mxu0 0.0
    %3451 = vmatpush.xpose.msra.mxu0 0.0
    %3452 = vmatpush.xpose.msra.mxu0 0.0
    %3453 = vmatpush.xpose.msra.mxu0 0.0
    %3454 = vmatpush.xpose.msra.mxu0 0.0
    %3455 = vmatpush.xpose.msra.mxu0 0.0
    %3456 = vmatpush.xpose.msra.mxu0 0.0
    %3457 = vmatpush.xpose.msra.mxu0 0.0
    %3458 = vmatpush.xpose.msra.mxu0 0.0
    %3459 = vmatpush.xpose.msra.mxu0 0.0
    %3460 = vmatpush.xpose.msra.mxu0 0.0
    %v3461 = vand.u32 %v447, 4294901760
    %3462 = vmatpush.xpose.msra.mxu0 %v3461
    %v3463 = vand.u32 %v317, 4294901760
    %v3464 = vsub.f32 %v317, %v3463
    %v3465 = vand.u32 %v3464, 4294901760
    %v3466 = vsub.f32 %v3464, %v3465
    %v3467 = vand.u32 %v3466, 4294901760
    %3468 = vmatmul.f32.gmra.mxu0 %v3467
    %v3469 = vpop.f32.mrf.mxu0
    %v3470 = vadd.f32 %v3444, %v3469
    %3471 = vdwg.mxu0
    %3472 = vmatpush.xpose.msra.mxu0 0.0
    %3473 = vmatpush.xpose.msra.mxu0 0.0
    %3474 = vmatpush.xpose.msra.mxu0 0.0
    %3475 = vmatpush.xpose.msra.mxu0 0.0
    %3476 = vmatpush.xpose.msra.mxu0 0.0
    %3477 = vmatpush.xpose.msra.mxu0 0.0
    %3478 = vmatpush.xpose.msra.mxu0 0.0
    %3479 = vmatpush.xpose.msra.mxu0 0.0
    %3480 = vmatpush.xpose.msra.mxu0 0.0
    %3481 = vmatpush.xpose.msra.mxu0 0.0
    %3482 = vmatpush.xpose.msra.mxu0 0.0
    %3483 = vmatpush.xpose.msra.mxu0 0.0
    %3484 = vmatpush.xpose.msra.mxu0 0.0
    %3485 = vmatpush.xpose.msra.mxu0 0.0
    %3486 = vmatpush.xpose.msra.mxu0 0.0
    %v3487 = vand.u32 %v447, 4294901760
    %v3488 = vsub.f32 %v447, %v3487
    %v3489 = vand.u32 %v3488, 4294901760
    %v3490 = vsub.f32 %v3488, %v3489
    %v3491 = vand.u32 %v3490, 4294901760
    %3492 = vmatpush.xpose.msra.mxu0 %v3491
    %v3493 = vand.u32 %v317, 4294901760
    %3494 = vmatmul.f32.gmra.mxu0 %v3493
    %v3495 = vpop.f32.mrf.mxu0
    %v3496 = vadd.f32 %v3470, %v3495
    %3497 = vdwg.mxu0
    %3498 = vmatpush.xpose.msra.mxu0 0.0
    %3499 = vmatpush.xpose.msra.mxu0 0.0
    %3500 = vmatpush.xpose.msra.mxu0 0.0
    %3501 = vmatpush.xpose.msra.mxu0 0.0
    %3502 = vmatpush.xpose.msra.mxu0 0.0
    %3503 = vmatpush.xpose.msra.mxu0 0.0
    %3504 = vmatpush.xpose.msra.mxu0 0.0
    %3505 = vmatpush.xpose.msra.mxu0 0.0
    %3506 = vmatpush.xpose.msra.mxu0 0.0
    %3507 = vmatpush.xpose.msra.mxu0 0.0
    %3508 = vmatpush.xpose.msra.mxu0 0.0
    %3509 = vmatpush.xpose.msra.mxu0 0.0
    %3510 = vmatpush.xpose.msra.mxu0 0.0
    %3511 = vmatpush.xpose.msra.mxu0 0.0
    %3512 = vmatpush.xpose.msra.mxu0 0.0
    %v3513 = vand.u32 %v447, 4294901760
    %v3514 = vsub.f32 %v447, %v3513
    %3515 = vmatpush.xpose.msra.mxu0 %v3514
    %v3516 = vand.u32 %v317, 4294901760
    %v3517 = vsub.f32 %v317, %v3516
    %3518 = vmatmul.f32.gmra.mxu0 %v3517
    %v3519 = vpop.f32.mrf.mxu0
    %v3520 = vadd.f32 %v3496, %v3519
    %3521 = vdwg.mxu0
    %3522 = vmatpush.xpose.msra.mxu0 0.0
    %3523 = vmatpush.xpose.msra.mxu0 0.0
    %3524 = vmatpush.xpose.msra.mxu0 0.0
    %3525 = vmatpush.xpose.msra.mxu0 0.0
    %3526 = vmatpush.xpose.msra.mxu0 0.0
    %3527 = vmatpush.xpose.msra.mxu0 0.0
    %3528 = vmatpush.xpose.msra.mxu0 0.0
    %3529 = vmatpush.xpose.msra.mxu0 0.0
    %3530 = vmatpush.xpose.msra.mxu0 0.0
    %3531 = vmatpush.xpose.msra.mxu0 0.0
    %3532 = vmatpush.xpose.msra.mxu0 0.0
    %3533 = vmatpush.xpose.msra.mxu0 0.0
    %3534 = vmatpush.xpose.msra.mxu0 0.0
    %3535 = vmatpush.xpose.msra.mxu0 0.0
    %3536 = vmatpush.xpose.msra.mxu0 0.0
    %v3537 = vand.u32 %v447, 4294901760
    %3538 = vmatpush.xpose.msra.mxu0 %v3537
    %v3539 = vand.u32 %v317, 4294901760
    %v3540 = vsub.f32 %v317, %v3539
    %v3541 = vand.u32 %v3540, 4294901760
    %3542 = vmatmul.f32.gmra.mxu0 %v3541
    %v3543 = vpop.f32.mrf.mxu0
    %v3544 = vadd.f32 %v3520, %v3543
    %3545 = vdwg.mxu0
    %3546 = vmatpush.xpose.msra.mxu0 0.0
    %3547 = vmatpush.xpose.msra.mxu0 0.0
    %3548 = vmatpush.xpose.msra.mxu0 0.0
    %3549 = vmatpush.xpose.msra.mxu0 0.0
    %3550 = vmatpush.xpose.msra.mxu0 0.0
    %3551 = vmatpush.xpose.msra.mxu0 0.0
    %3552 = vmatpush.xpose.msra.mxu0 0.0
    %3553 = vmatpush.xpose.msra.mxu0 0.0
    %3554 = vmatpush.xpose.msra.mxu0 0.0
    %3555 = vmatpush.xpose.msra.mxu0 0.0
    %3556 = vmatpush.xpose.msra.mxu0 0.0
    %3557 = vmatpush.xpose.msra.mxu0 0.0
    %3558 = vmatpush.xpose.msra.mxu0 0.0
    %3559 = vmatpush.xpose.msra.mxu0 0.0
    %3560 = vmatpush.xpose.msra.mxu0 0.0
    %v3561 = vand.u32 %v447, 4294901760
    %v3562 = vsub.f32 %v447, %v3561
    %v3563 = vand.u32 %v3562, 4294901760
    %3564 = vmatpush.xpose.msra.mxu0 %v3563
    %v3565 = vand.u32 %v317, 4294901760
    %3566 = vmatmul.f32.gmra.mxu0 %v3565
    %v3567 = vpop.f32.mrf.mxu0
    %v3568 = vadd.f32 %v3544, %v3567
    %3569 = vdwg.mxu0
    %3570 = vmatpush.xpose.msra.mxu0 0.0
    %3571 = vmatpush.xpose.msra.mxu0 0.0
    %3572 = vmatpush.xpose.msra.mxu0 0.0
    %3573 = vmatpush.xpose.msra.mxu0 0.0
    %3574 = vmatpush.xpose.msra.mxu0 0.0
    %3575 = vmatpush.xpose.msra.mxu0 0.0
    %3576 = vmatpush.xpose.msra.mxu0 0.0
    %3577 = vmatpush.xpose.msra.mxu0 0.0
    %3578 = vmatpush.xpose.msra.mxu0 0.0
    %3579 = vmatpush.xpose.msra.mxu0 0.0
    %3580 = vmatpush.xpose.msra.mxu0 0.0
    %3581 = vmatpush.xpose.msra.mxu0 0.0
    %3582 = vmatpush.xpose.msra.mxu0 0.0
    %3583 = vmatpush.xpose.msra.mxu0 0.0
    %3584 = vmatpush.xpose.msra.mxu0 0.0
    %v3585 = vand.u32 %v447, 4294901760
    %3586 = vmatpush.xpose.msra.mxu0 %v3585
    %v3587 = vand.u32 %v317, 4294901760
    %3588 = vmatmul.f32.gmra.mxu0 %v3587
    %v3589 = vpop.f32.mrf.mxu0
    %v3590 = vadd.f32 %v3568, %v3589
    %3591 = vdwg.mxu0
    %3592 = vmatpush.xpose.msra.mxu0 0.0
    %3593 = vmatpush.xpose.msra.mxu0 0.0
    %3594 = vmatpush.xpose.msra.mxu0 0.0
    %3595 = vmatpush.xpose.msra.mxu0 0.0
    %3596 = vmatpush.xpose.msra.mxu0 0.0
    %3597 = vmatpush.xpose.msra.mxu0 0.0
    %3598 = vmatpush.xpose.msra.mxu0 0.0
    %3599 = vmatpush.xpose.msra.mxu0 0.0
    %3600 = vmatpush.xpose.msra.mxu0 0.0
    %3601 = vmatpush.xpose.msra.mxu0 0.0
    %3602 = vmatpush.xpose.msra.mxu0 0.0
    %3603 = vmatpush.xpose.msra.mxu0 0.0
    %3604 = vmatpush.xpose.msra.mxu0 0.0
    %3605 = vmatpush.xpose.msra.mxu0 0.0
    %3606 = vmatpush.xpose.msra.mxu0 0.0
    %v3607 = vand.u32 %v448, 4294901760
    %3608 = vmatpush.xpose.msra.mxu0 %v3607
    %v3609 = vand.u32 %v318, 4294901760
    %v3610 = vsub.f32 %v318, %v3609
    %v3611 = vand.u32 %v3610, 4294901760
    %v3612 = vsub.f32 %v3610, %v3611
    %v3613 = vand.u32 %v3612, 4294901760
    %3614 = vmatmul.f32.gmra.mxu0 %v3613
    %v3615 = vpop.f32.mrf.mxu0
    %v3616 = vadd.f32 %v3590, %v3615
    %3617 = vdwg.mxu0
    %3618 = vmatpush.xpose.msra.mxu0 0.0
    %3619 = vmatpush.xpose.msra.mxu0 0.0
    %3620 = vmatpush.xpose.msra.mxu0 0.0
    %3621 = vmatpush.xpose.msra.mxu0 0.0
    %3622 = vmatpush.xpose.msra.mxu0 0.0
    %3623 = vmatpush.xpose.msra.mxu0 0.0
    %3624 = vmatpush.xpose.msra.mxu0 0.0
    %3625 = vmatpush.xpose.msra.mxu0 0.0
    %3626 = vmatpush.xpose.msra.mxu0 0.0
    %3627 = vmatpush.xpose.msra.mxu0 0.0
    %3628 = vmatpush.xpose.msra.mxu0 0.0
    %3629 = vmatpush.xpose.msra.mxu0 0.0
    %3630 = vmatpush.xpose.msra.mxu0 0.0
    %3631 = vmatpush.xpose.msra.mxu0 0.0
    %3632 = vmatpush.xpose.msra.mxu0 0.0
    %v3633 = vand.u32 %v448, 4294901760
    %v3634 = vsub.f32 %v448, %v3633
    %v3635 = vand.u32 %v3634, 4294901760
    %v3636 = vsub.f32 %v3634, %v3635
    %v3637 = vand.u32 %v3636, 4294901760
    %3638 = vmatpush.xpose.msra.mxu0 %v3637
    %v3639 = vand.u32 %v318, 4294901760
    %3640 = vmatmul.f32.gmra.mxu0 %v3639
    %v3641 = vpop.f32.mrf.mxu0
    %v3642 = vadd.f32 %v3616, %v3641
    %3643 = vdwg.mxu0
    %3644 = vmatpush.xpose.msra.mxu0 0.0
    %3645 = vmatpush.xpose.msra.mxu0 0.0
    %3646 = vmatpush.xpose.msra.mxu0 0.0
    %3647 = vmatpush.xpose.msra.mxu0 0.0
    %3648 = vmatpush.xpose.msra.mxu0 0.0
    %3649 = vmatpush.xpose.msra.mxu0 0.0
    %3650 = vmatpush.xpose.msra.mxu0 0.0
    %3651 = vmatpush.xpose.msra.mxu0 0.0
    %3652 = vmatpush.xpose.msra.mxu0 0.0
    %3653 = vmatpush.xpose.msra.mxu0 0.0
    %3654 = vmatpush.xpose.msra.mxu0 0.0
    %3655 = vmatpush.xpose.msra.mxu0 0.0
    %3656 = vmatpush.xpose.msra.mxu0 0.0
    %3657 = vmatpush.xpose.msra.mxu0 0.0
    %3658 = vmatpush.xpose.msra.mxu0 0.0
    %v3659 = vand.u32 %v448, 4294901760
    %v3660 = vsub.f32 %v448, %v3659
    %3661 = vmatpush.xpose.msra.mxu0 %v3660
    %v3662 = vand.u32 %v318, 4294901760
    %v3663 = vsub.f32 %v318, %v3662
    %3664 = vmatmul.f32.gmra.mxu0 %v3663
    %v3665 = vpop.f32.mrf.mxu0
    %v3666 = vadd.f32 %v3642, %v3665
    %3667 = vdwg.mxu0
    %3668 = vmatpush.xpose.msra.mxu0 0.0
    %3669 = vmatpush.xpose.msra.mxu0 0.0
    %3670 = vmatpush.xpose.msra.mxu0 0.0
    %3671 = vmatpush.xpose.msra.mxu0 0.0
    %3672 = vmatpush.xpose.msra.mxu0 0.0
    %3673 = vmatpush.xpose.msra.mxu0 0.0
    %3674 = vmatpush.xpose.msra.mxu0 0.0
    %3675 = vmatpush.xpose.msra.mxu0 0.0
    %3676 = vmatpush.xpose.msra.mxu0 0.0
    %3677 = vmatpush.xpose.msra.mxu0 0.0
    %3678 = vmatpush.xpose.msra.mxu0 0.0
    %3679 = vmatpush.xpose.msra.mxu0 0.0
    %3680 = vmatpush.xpose.msra.mxu0 0.0
    %3681 = vmatpush.xpose.msra.mxu0 0.0
    %3682 = vmatpush.xpose.msra.mxu0 0.0
    %v3683 = vand.u32 %v448, 4294901760
    %3684 = vmatpush.xpose.msra.mxu0 %v3683
    %v3685 = vand.u32 %v318, 4294901760
    %v3686 = vsub.f32 %v318, %v3685
    %v3687 = vand.u32 %v3686, 4294901760
    %3688 = vmatmul.f32.gmra.mxu0 %v3687
    %v3689 = vpop.f32.mrf.mxu0
    %v3690 = vadd.f32 %v3666, %v3689
    %3691 = vdwg.mxu0
    %3692 = vmatpush.xpose.msra.mxu0 0.0
    %3693 = vmatpush.xpose.msra.mxu0 0.0
    %3694 = vmatpush.xpose.msra.mxu0 0.0
    %3695 = vmatpush.xpose.msra.mxu0 0.0
    %3696 = vmatpush.xpose.msra.mxu0 0.0
    %3697 = vmatpush.xpose.msra.mxu0 0.0
    %3698 = vmatpush.xpose.msra.mxu0 0.0
    %3699 = vmatpush.xpose.msra.mxu0 0.0
    %3700 = vmatpush.xpose.msra.mxu0 0.0
    %3701 = vmatpush.xpose.msra.mxu0 0.0
    %3702 = vmatpush.xpose.msra.mxu0 0.0
    %3703 = vmatpush.xpose.msra.mxu0 0.0
    %3704 = vmatpush.xpose.msra.mxu0 0.0
    %3705 = vmatpush.xpose.msra.mxu0 0.0
    %3706 = vmatpush.xpose.msra.mxu0 0.0
    %v3707 = vand.u32 %v448, 4294901760
    %v3708 = vsub.f32 %v448, %v3707
    %v3709 = vand.u32 %v3708, 4294901760
    %3710 = vmatpush.xpose.msra.mxu0 %v3709
    %v3711 = vand.u32 %v318, 4294901760
    %3712 = vmatmul.f32.gmra.mxu0 %v3711
    %v3713 = vpop.f32.mrf.mxu0
    %v3714 = vadd.f32 %v3690, %v3713
    %3715 = vdwg.mxu0
    %3716 = vmatpush.xpose.msra.mxu0 0.0
    %3717 = vmatpush.xpose.msra.mxu0 0.0
    %3718 = vmatpush.xpose.msra.mxu0 0.0
    %3719 = vmatpush.xpose.msra.mxu0 0.0
    %3720 = vmatpush.xpose.msra.mxu0 0.0
    %3721 = vmatpush.xpose.msra.mxu0 0.0
    %3722 = vmatpush.xpose.msra.mxu0 0.0
    %3723 = vmatpush.xpose.msra.mxu0 0.0
    %3724 = vmatpush.xpose.msra.mxu0 0.0
    %3725 = vmatpush.xpose.msra.mxu0 0.0
    %3726 = vmatpush.xpose.msra.mxu0 0.0
    %3727 = vmatpush.xpose.msra.mxu0 0.0
    %3728 = vmatpush.xpose.msra.mxu0 0.0
    %3729 = vmatpush.xpose.msra.mxu0 0.0
    %3730 = vmatpush.xpose.msra.mxu0 0.0
    %v3731 = vand.u32 %v448, 4294901760
    %3732 = vmatpush.xpose.msra.mxu0 %v3731
    %v3733 = vand.u32 %v318, 4294901760
    %3734 = vmatmul.f32.gmra.mxu0 %v3733
    %v3735 = vpop.f32.mrf.mxu0
    %v3736 = vadd.f32 %v3714, %v3735
    %3737 = vdwg.mxu0
    %3738 = vmatpush.xpose.msra.mxu0 0.0
    %3739 = vmatpush.xpose.msra.mxu0 0.0
    %3740 = vmatpush.xpose.msra.mxu0 0.0
    %3741 = vmatpush.xpose.msra.mxu0 0.0
    %3742 = vmatpush.xpose.msra.mxu0 0.0
    %3743 = vmatpush.xpose.msra.mxu0 0.0
    %3744 = vmatpush.xpose.msra.mxu0 0.0
    %3745 = vmatpush.xpose.msra.mxu0 0.0
    %3746 = vmatpush.xpose.msra.mxu0 0.0
    %3747 = vmatpush.xpose.msra.mxu0 0.0
    %3748 = vmatpush.xpose.msra.mxu0 0.0
    %3749 = vmatpush.xpose.msra.mxu0 0.0
    %3750 = vmatpush.xpose.msra.mxu0 0.0
    %3751 = vmatpush.xpose.msra.mxu0 0.0
    %3752 = vmatpush.xpose.msra.mxu0 0.0
    %v3753 = vand.u32 %v449, 4294901760
    %3754 = vmatpush.xpose.msra.mxu0 %v3753
    %v3755 = vand.u32 %v319, 4294901760
    %v3756 = vsub.f32 %v319, %v3755
    %v3757 = vand.u32 %v3756, 4294901760
    %v3758 = vsub.f32 %v3756, %v3757
    %v3759 = vand.u32 %v3758, 4294901760
    %3760 = vmatmul.f32.gmra.mxu0 %v3759
    %v3761 = vpop.f32.mrf.mxu0
    %v3762 = vadd.f32 %v3736, %v3761
    %3763 = vdwg.mxu0
    %3764 = vmatpush.xpose.msra.mxu0 0.0
    %3765 = vmatpush.xpose.msra.mxu0 0.0
    %3766 = vmatpush.xpose.msra.mxu0 0.0
    %3767 = vmatpush.xpose.msra.mxu0 0.0
    %3768 = vmatpush.xpose.msra.mxu0 0.0
    %3769 = vmatpush.xpose.msra.mxu0 0.0
    %3770 = vmatpush.xpose.msra.mxu0 0.0
    %3771 = vmatpush.xpose.msra.mxu0 0.0
    %3772 = vmatpush.xpose.msra.mxu0 0.0
    %3773 = vmatpush.xpose.msra.mxu0 0.0
    %3774 = vmatpush.xpose.msra.mxu0 0.0
    %3775 = vmatpush.xpose.msra.mxu0 0.0
    %3776 = vmatpush.xpose.msra.mxu0 0.0
    %3777 = vmatpush.xpose.msra.mxu0 0.0
    %3778 = vmatpush.xpose.msra.mxu0 0.0
    %v3779 = vand.u32 %v449, 4294901760
    %v3780 = vsub.f32 %v449, %v3779
    %v3781 = vand.u32 %v3780, 4294901760
    %v3782 = vsub.f32 %v3780, %v3781
    %v3783 = vand.u32 %v3782, 4294901760
    %3784 = vmatpush.xpose.msra.mxu0 %v3783
    %v3785 = vand.u32 %v319, 4294901760
    %3786 = vmatmul.f32.gmra.mxu0 %v3785
    %v3787 = vpop.f32.mrf.mxu0
    %v3788 = vadd.f32 %v3762, %v3787
    %3789 = vdwg.mxu0
    %3790 = vmatpush.xpose.msra.mxu0 0.0
    %3791 = vmatpush.xpose.msra.mxu0 0.0
    %3792 = vmatpush.xpose.msra.mxu0 0.0
    %3793 = vmatpush.xpose.msra.mxu0 0.0
    %3794 = vmatpush.xpose.msra.mxu0 0.0
    %3795 = vmatpush.xpose.msra.mxu0 0.0
    %3796 = vmatpush.xpose.msra.mxu0 0.0
    %3797 = vmatpush.xpose.msra.mxu0 0.0
    %3798 = vmatpush.xpose.msra.mxu0 0.0
    %3799 = vmatpush.xpose.msra.mxu0 0.0
    %3800 = vmatpush.xpose.msra.mxu0 0.0
    %3801 = vmatpush.xpose.msra.mxu0 0.0
    %3802 = vmatpush.xpose.msra.mxu0 0.0
    %3803 = vmatpush.xpose.msra.mxu0 0.0
    %3804 = vmatpush.xpose.msra.mxu0 0.0
    %v3805 = vand.u32 %v449, 4294901760
    %v3806 = vsub.f32 %v449, %v3805
    %3807 = vmatpush.xpose.msra.mxu0 %v3806
    %v3808 = vand.u32 %v319, 4294901760
    %v3809 = vsub.f32 %v319, %v3808
    %3810 = vmatmul.f32.gmra.mxu0 %v3809
    %v3811 = vpop.f32.mrf.mxu0
    %v3812 = vadd.f32 %v3788, %v3811
    %3813 = vdwg.mxu0
    %3814 = vmatpush.xpose.msra.mxu0 0.0
    %3815 = vmatpush.xpose.msra.mxu0 0.0
    %3816 = vmatpush.xpose.msra.mxu0 0.0
    %3817 = vmatpush.xpose.msra.mxu0 0.0
    %3818 = vmatpush.xpose.msra.mxu0 0.0
    %3819 = vmatpush.xpose.msra.mxu0 0.0
    %3820 = vmatpush.xpose.msra.mxu0 0.0
    %3821 = vmatpush.xpose.msra.mxu0 0.0
    %3822 = vmatpush.xpose.msra.mxu0 0.0
    %3823 = vmatpush.xpose.msra.mxu0 0.0
    %3824 = vmatpush.xpose.msra.mxu0 0.0
    %3825 = vmatpush.xpose.msra.mxu0 0.0
    %3826 = vmatpush.xpose.msra.mxu0 0.0
    %3827 = vmatpush.xpose.msra.mxu0 0.0
    %3828 = vmatpush.xpose.msra.mxu0 0.0
    %v3829 = vand.u32 %v449, 4294901760
    %3830 = vmatpush.xpose.msra.mxu0 %v3829
    %v3831 = vand.u32 %v319, 4294901760
    %v3832 = vsub.f32 %v319, %v3831
    %v3833 = vand.u32 %v3832, 4294901760
    %3834 = vmatmul.f32.gmra.mxu0 %v3833
    %v3835 = vpop.f32.mrf.mxu0
    %v3836 = vadd.f32 %v3812, %v3835
    %3837 = vdwg.mxu0
    %3838 = vmatpush.xpose.msra.mxu0 0.0
    %3839 = vmatpush.xpose.msra.mxu0 0.0
    %3840 = vmatpush.xpose.msra.mxu0 0.0
    %3841 = vmatpush.xpose.msra.mxu0 0.0
    %3842 = vmatpush.xpose.msra.mxu0 0.0
    %3843 = vmatpush.xpose.msra.mxu0 0.0
    %3844 = vmatpush.xpose.msra.mxu0 0.0
    %3845 = vmatpush.xpose.msra.mxu0 0.0
    %3846 = vmatpush.xpose.msra.mxu0 0.0
    %3847 = vmatpush.xpose.msra.mxu0 0.0
    %3848 = vmatpush.xpose.msra.mxu0 0.0
    %3849 = vmatpush.xpose.msra.mxu0 0.0
    %3850 = vmatpush.xpose.msra.mxu0 0.0
    %3851 = vmatpush.xpose.msra.mxu0 0.0
    %3852 = vmatpush.xpose.msra.mxu0 0.0
    %v3853 = vand.u32 %v449, 4294901760
    %v3854 = vsub.f32 %v449, %v3853
    %v3855 = vand.u32 %v3854, 4294901760
    %3856 = vmatpush.xpose.msra.mxu0 %v3855
    %v3857 = vand.u32 %v319, 4294901760
    %3858 = vmatmul.f32.gmra.mxu0 %v3857
    %v3859 = vpop.f32.mrf.mxu0
    %v3860 = vadd.f32 %v3836, %v3859
    %3861 = vdwg.mxu0
    %3862 = vmatpush.xpose.msra.mxu0 0.0
    %3863 = vmatpush.xpose.msra.mxu0 0.0
    %3864 = vmatpush.xpose.msra.mxu0 0.0
    %3865 = vmatpush.xpose.msra.mxu0 0.0
    %3866 = vmatpush.xpose.msra.mxu0 0.0
    %3867 = vmatpush.xpose.msra.mxu0 0.0
    %3868 = vmatpush.xpose.msra.mxu0 0.0
    %3869 = vmatpush.xpose.msra.mxu0 0.0
    %3870 = vmatpush.xpose.msra.mxu0 0.0
    %3871 = vmatpush.xpose.msra.mxu0 0.0
    %3872 = vmatpush.xpose.msra.mxu0 0.0
    %3873 = vmatpush.xpose.msra.mxu0 0.0
    %3874 = vmatpush.xpose.msra.mxu0 0.0
    %3875 = vmatpush.xpose.msra.mxu0 0.0
    %3876 = vmatpush.xpose.msra.mxu0 0.0
    %v3877 = vand.u32 %v449, 4294901760
    %3878 = vmatpush.xpose.msra.mxu0 %v3877
    %v3879 = vand.u32 %v319, 4294901760
    %3880 = vmatmul.f32.gmra.mxu0 %v3879
    %v3881 = vpop.f32.mrf.mxu0
    %v3882 = vadd.f32 %v3860, %v3881
    %3883 = vdwg.mxu0
    %3884 = vmatpush.xpose.msra.mxu0 0.0
    %3885 = vmatpush.xpose.msra.mxu0 0.0
    %3886 = vmatpush.xpose.msra.mxu0 0.0
    %3887 = vmatpush.xpose.msra.mxu0 0.0
    %3888 = vmatpush.xpose.msra.mxu0 0.0
    %3889 = vmatpush.xpose.msra.mxu0 0.0
    %3890 = vmatpush.xpose.msra.mxu0 0.0
    %3891 = vmatpush.xpose.msra.mxu0 0.0
    %3892 = vmatpush.xpose.msra.mxu0 0.0
    %3893 = vmatpush.xpose.msra.mxu0 0.0
    %3894 = vmatpush.xpose.msra.mxu0 0.0
    %3895 = vmatpush.xpose.msra.mxu0 0.0
    %3896 = vmatpush.xpose.msra.mxu0 0.0
    %3897 = vmatpush.xpose.msra.mxu0 0.0
    %3898 = vmatpush.xpose.msra.mxu0 0.0
    %v3899 = vand.u32 %v450, 4294901760
    %3900 = vmatpush.xpose.msra.mxu0 %v3899
    %v3901 = vand.u32 %v320, 4294901760
    %v3902 = vsub.f32 %v320, %v3901
    %v3903 = vand.u32 %v3902, 4294901760
    %v3904 = vsub.f32 %v3902, %v3903
    %v3905 = vand.u32 %v3904, 4294901760
    %3906 = vmatmul.f32.gmra.mxu0 %v3905
    %v3907 = vpop.f32.mrf.mxu0
    %v3908 = vadd.f32 %v3882, %v3907
    %3909 = vdwg.mxu0
    %3910 = vmatpush.xpose.msra.mxu0 0.0
    %3911 = vmatpush.xpose.msra.mxu0 0.0
    %3912 = vmatpush.xpose.msra.mxu0 0.0
    %3913 = vmatpush.xpose.msra.mxu0 0.0
    %3914 = vmatpush.xpose.msra.mxu0 0.0
    %3915 = vmatpush.xpose.msra.mxu0 0.0
    %3916 = vmatpush.xpose.msra.mxu0 0.0
    %3917 = vmatpush.xpose.msra.mxu0 0.0
    %3918 = vmatpush.xpose.msra.mxu0 0.0
    %3919 = vmatpush.xpose.msra.mxu0 0.0
    %3920 = vmatpush.xpose.msra.mxu0 0.0
    %3921 = vmatpush.xpose.msra.mxu0 0.0
    %3922 = vmatpush.xpose.msra.mxu0 0.0
    %3923 = vmatpush.xpose.msra.mxu0 0.0
    %3924 = vmatpush.xpose.msra.mxu0 0.0
    %v3925 = vand.u32 %v450, 4294901760
    %v3926 = vsub.f32 %v450, %v3925
    %v3927 = vand.u32 %v3926, 4294901760
    %v3928 = vsub.f32 %v3926, %v3927
    %v3929 = vand.u32 %v3928, 4294901760
    %3930 = vmatpush.xpose.msra.mxu0 %v3929
    %v3931 = vand.u32 %v320, 4294901760
    %3932 = vmatmul.f32.gmra.mxu0 %v3931
    %v3933 = vpop.f32.mrf.mxu0
    %v3934 = vadd.f32 %v3908, %v3933
    %3935 = vdwg.mxu0
    %3936 = vmatpush.xpose.msra.mxu0 0.0
    %3937 = vmatpush.xpose.msra.mxu0 0.0
    %3938 = vmatpush.xpose.msra.mxu0 0.0
    %3939 = vmatpush.xpose.msra.mxu0 0.0
    %3940 = vmatpush.xpose.msra.mxu0 0.0
    %3941 = vmatpush.xpose.msra.mxu0 0.0
    %3942 = vmatpush.xpose.msra.mxu0 0.0
    %3943 = vmatpush.xpose.msra.mxu0 0.0
    %3944 = vmatpush.xpose.msra.mxu0 0.0
    %3945 = vmatpush.xpose.msra.mxu0 0.0
    %3946 = vmatpush.xpose.msra.mxu0 0.0
    %3947 = vmatpush.xpose.msra.mxu0 0.0
    %3948 = vmatpush.xpose.msra.mxu0 0.0
    %3949 = vmatpush.xpose.msra.mxu0 0.0
    %3950 = vmatpush.xpose.msra.mxu0 0.0
    %v3951 = vand.u32 %v450, 4294901760
    %v3952 = vsub.f32 %v450, %v3951
    %3953 = vmatpush.xpose.msra.mxu0 %v3952
    %v3954 = vand.u32 %v320, 4294901760
    %v3955 = vsub.f32 %v320, %v3954
    %3956 = vmatmul.f32.gmra.mxu0 %v3955
    %v3957 = vpop.f32.mrf.mxu0
    %v3958 = vadd.f32 %v3934, %v3957
    %3959 = vdwg.mxu0
    %3960 = vmatpush.xpose.msra.mxu0 0.0
    %3961 = vmatpush.xpose.msra.mxu0 0.0
    %3962 = vmatpush.xpose.msra.mxu0 0.0
    %3963 = vmatpush.xpose.msra.mxu0 0.0
    %3964 = vmatpush.xpose.msra.mxu0 0.0
    %3965 = vmatpush.xpose.msra.mxu0 0.0
    %3966 = vmatpush.xpose.msra.mxu0 0.0
    %3967 = vmatpush.xpose.msra.mxu0 0.0
    %3968 = vmatpush.xpose.msra.mxu0 0.0
    %3969 = vmatpush.xpose.msra.mxu0 0.0
    %3970 = vmatpush.xpose.msra.mxu0 0.0
    %3971 = vmatpush.xpose.msra.mxu0 0.0
    %3972 = vmatpush.xpose.msra.mxu0 0.0
    %3973 = vmatpush.xpose.msra.mxu0 0.0
    %3974 = vmatpush.xpose.msra.mxu0 0.0
    %v3975 = vand.u32 %v450, 4294901760
    %3976 = vmatpush.xpose.msra.mxu0 %v3975
    %v3977 = vand.u32 %v320, 4294901760
    %v3978 = vsub.f32 %v320, %v3977
    %v3979 = vand.u32 %v3978, 4294901760
    %3980 = vmatmul.f32.gmra.mxu0 %v3979
    %v3981 = vpop.f32.mrf.mxu0
    %v3982 = vadd.f32 %v3958, %v3981
    %3983 = vdwg.mxu0
    %3984 = vmatpush.xpose.msra.mxu0 0.0
    %3985 = vmatpush.xpose.msra.mxu0 0.0
    %3986 = vmatpush.xpose.msra.mxu0 0.0
    %3987 = vmatpush.xpose.msra.mxu0 0.0
    %3988 = vmatpush.xpose.msra.mxu0 0.0
    %3989 = vmatpush.xpose.msra.mxu0 0.0
    %3990 = vmatpush.xpose.msra.mxu0 0.0
    %3991 = vmatpush.xpose.msra.mxu0 0.0
    %3992 = vmatpush.xpose.msra.mxu0 0.0
    %3993 = vmatpush.xpose.msra.mxu0 0.0
    %3994 = vmatpush.xpose.msra.mxu0 0.0
    %3995 = vmatpush.xpose.msra.mxu0 0.0
    %3996 = vmatpush.xpose.msra.mxu0 0.0
    %3997 = vmatpush.xpose.msra.mxu0 0.0
    %3998 = vmatpush.xpose.msra.mxu0 0.0
    %v3999 = vand.u32 %v450, 4294901760
    %v4000 = vsub.f32 %v450, %v3999
    %v4001 = vand.u32 %v4000, 4294901760
    %4002 = vmatpush.xpose.msra.mxu0 %v4001
    %v4003 = vand.u32 %v320, 4294901760
    %4004 = vmatmul.f32.gmra.mxu0 %v4003
    %v4005 = vpop.f32.mrf.mxu0
    %v4006 = vadd.f32 %v3982, %v4005
    %4007 = vdwg.mxu0
    %4008 = vmatpush.xpose.msra.mxu0 0.0
    %4009 = vmatpush.xpose.msra.mxu0 0.0
    %4010 = vmatpush.xpose.msra.mxu0 0.0
    %4011 = vmatpush.xpose.msra.mxu0 0.0
    %4012 = vmatpush.xpose.msra.mxu0 0.0
    %4013 = vmatpush.xpose.msra.mxu0 0.0
    %4014 = vmatpush.xpose.msra.mxu0 0.0
    %4015 = vmatpush.xpose.msra.mxu0 0.0
    %4016 = vmatpush.xpose.msra.mxu0 0.0
    %4017 = vmatpush.xpose.msra.mxu0 0.0
    %4018 = vmatpush.xpose.msra.mxu0 0.0
    %4019 = vmatpush.xpose.msra.mxu0 0.0
    %4020 = vmatpush.xpose.msra.mxu0 0.0
    %4021 = vmatpush.xpose.msra.mxu0 0.0
    %4022 = vmatpush.xpose.msra.mxu0 0.0
    %v4023 = vand.u32 %v450, 4294901760
    %4024 = vmatpush.xpose.msra.mxu0 %v4023
    %v4025 = vand.u32 %v320, 4294901760
    %4026 = vmatmul.f32.gmra.mxu0 %v4025
    %v4027 = vpop.f32.mrf.mxu0
    %v4028 = vadd.f32 %v4006, %v4027
    %4029 = vdwg.mxu0
    %4030 = vmatpush.xpose.msra.mxu0 0.0
    %4031 = vmatpush.xpose.msra.mxu0 0.0
    %4032 = vmatpush.xpose.msra.mxu0 0.0
    %4033 = vmatpush.xpose.msra.mxu0 0.0
    %4034 = vmatpush.xpose.msra.mxu0 0.0
    %4035 = vmatpush.xpose.msra.mxu0 0.0
    %4036 = vmatpush.xpose.msra.mxu0 0.0
    %4037 = vmatpush.xpose.msra.mxu0 0.0
    %4038 = vmatpush.xpose.msra.mxu0 0.0
    %4039 = vmatpush.xpose.msra.mxu0 0.0
    %4040 = vmatpush.xpose.msra.mxu0 0.0
    %4041 = vmatpush.xpose.msra.mxu0 0.0
    %4042 = vmatpush.xpose.msra.mxu0 0.0
    %4043 = vmatpush.xpose.msra.mxu0 0.0
    %4044 = vmatpush.xpose.msra.mxu0 0.0
    %v4045 = vand.u32 %v451, 4294901760
    %4046 = vmatpush.xpose.msra.mxu0 %v4045
    %v4047 = vand.u32 %v321, 4294901760
    %v4048 = vsub.f32 %v321, %v4047
    %v4049 = vand.u32 %v4048, 4294901760
    %v4050 = vsub.f32 %v4048, %v4049
    %v4051 = vand.u32 %v4050, 4294901760
    %4052 = vmatmul.f32.gmra.mxu0 %v4051
    %v4053 = vpop.f32.mrf.mxu0
    %v4054 = vadd.f32 %v4028, %v4053
    %4055 = vdwg.mxu0
    %4056 = vmatpush.xpose.msra.mxu0 0.0
    %4057 = vmatpush.xpose.msra.mxu0 0.0
    %4058 = vmatpush.xpose.msra.mxu0 0.0
    %4059 = vmatpush.xpose.msra.mxu0 0.0
    %4060 = vmatpush.xpose.msra.mxu0 0.0
    %4061 = vmatpush.xpose.msra.mxu0 0.0
    %4062 = vmatpush.xpose.msra.mxu0 0.0
    %4063 = vmatpush.xpose.msra.mxu0 0.0
    %4064 = vmatpush.xpose.msra.mxu0 0.0
    %4065 = vmatpush.xpose.msra.mxu0 0.0
    %4066 = vmatpush.xpose.msra.mxu0 0.0
    %4067 = vmatpush.xpose.msra.mxu0 0.0
    %4068 = vmatpush.xpose.msra.mxu0 0.0
    %4069 = vmatpush.xpose.msra.mxu0 0.0
    %4070 = vmatpush.xpose.msra.mxu0 0.0
    %v4071 = vand.u32 %v451, 4294901760
    %v4072 = vsub.f32 %v451, %v4071
    %v4073 = vand.u32 %v4072, 4294901760
    %v4074 = vsub.f32 %v4072, %v4073
    %v4075 = vand.u32 %v4074, 4294901760
    %4076 = vmatpush.xpose.msra.mxu0 %v4075
    %v4077 = vand.u32 %v321, 4294901760
    %4078 = vmatmul.f32.gmra.mxu0 %v4077
    %v4079 = vpop.f32.mrf.mxu0
    %v4080 = vadd.f32 %v4054, %v4079
    %4081 = vdwg.mxu0
    %4082 = vmatpush.xpose.msra.mxu0 0.0
    %4083 = vmatpush.xpose.msra.mxu0 0.0
    %4084 = vmatpush.xpose.msra.mxu0 0.0
    %4085 = vmatpush.xpose.msra.mxu0 0.0
    %4086 = vmatpush.xpose.msra.mxu0 0.0
    %4087 = vmatpush.xpose.msra.mxu0 0.0
    %4088 = vmatpush.xpose.msra.mxu0 0.0
    %4089 = vmatpush.xpose.msra.mxu0 0.0
    %4090 = vmatpush.xpose.msra.mxu0 0.0
    %4091 = vmatpush.xpose.msra.mxu0 0.0
    %4092 = vmatpush.xpose.msra.mxu0 0.0
    %4093 = vmatpush.xpose.msra.mxu0 0.0
    %4094 = vmatpush.xpose.msra.mxu0 0.0
    %4095 = vmatpush.xpose.msra.mxu0 0.0
    %4096 = vmatpush.xpose.msra.mxu0 0.0
    %v4097 = vand.u32 %v451, 4294901760
    %v4098 = vsub.f32 %v451, %v4097
    %4099 = vmatpush.xpose.msra.mxu0 %v4098
    %v4100 = vand.u32 %v321, 4294901760
    %v4101 = vsub.f32 %v321, %v4100
    %4102 = vmatmul.f32.gmra.mxu0 %v4101
    %v4103 = vpop.f32.mrf.mxu0
    %v4104 = vadd.f32 %v4080, %v4103
    %4105 = vdwg.mxu0
    %4106 = vmatpush.xpose.msra.mxu0 0.0
    %4107 = vmatpush.xpose.msra.mxu0 0.0
    %4108 = vmatpush.xpose.msra.mxu0 0.0
    %4109 = vmatpush.xpose.msra.mxu0 0.0
    %4110 = vmatpush.xpose.msra.mxu0 0.0
    %4111 = vmatpush.xpose.msra.mxu0 0.0
    %4112 = vmatpush.xpose.msra.mxu0 0.0
    %4113 = vmatpush.xpose.msra.mxu0 0.0
    %4114 = vmatpush.xpose.msra.mxu0 0.0
    %4115 = vmatpush.xpose.msra.mxu0 0.0
    %4116 = vmatpush.xpose.msra.mxu0 0.0
    %4117 = vmatpush.xpose.msra.mxu0 0.0
    %4118 = vmatpush.xpose.msra.mxu0 0.0
    %4119 = vmatpush.xpose.msra.mxu0 0.0
    %4120 = vmatpush.xpose.msra.mxu0 0.0
    %v4121 = vand.u32 %v451, 4294901760
    %4122 = vmatpush.xpose.msra.mxu0 %v4121
    %v4123 = vand.u32 %v321, 4294901760
    %v4124 = vsub.f32 %v321, %v4123
    %v4125 = vand.u32 %v4124, 4294901760
    %4126 = vmatmul.f32.gmra.mxu0 %v4125
    %v4127 = vpop.f32.mrf.mxu0
    %v4128 = vadd.f32 %v4104, %v4127
    %4129 = vdwg.mxu0
    %4130 = vmatpush.xpose.msra.mxu0 0.0
    %4131 = vmatpush.xpose.msra.mxu0 0.0
    %4132 = vmatpush.xpose.msra.mxu0 0.0
    %4133 = vmatpush.xpose.msra.mxu0 0.0
    %4134 = vmatpush.xpose.msra.mxu0 0.0
    %4135 = vmatpush.xpose.msra.mxu0 0.0
    %4136 = vmatpush.xpose.msra.mxu0 0.0
    %4137 = vmatpush.xpose.msra.mxu0 0.0
    %4138 = vmatpush.xpose.msra.mxu0 0.0
    %4139 = vmatpush.xpose.msra.mxu0 0.0
    %4140 = vmatpush.xpose.msra.mxu0 0.0
    %4141 = vmatpush.xpose.msra.mxu0 0.0
    %4142 = vmatpush.xpose.msra.mxu0 0.0
    %4143 = vmatpush.xpose.msra.mxu0 0.0
    %4144 = vmatpush.xpose.msra.mxu0 0.0
    %v4145 = vand.u32 %v451, 4294901760
    %v4146 = vsub.f32 %v451, %v4145
    %v4147 = vand.u32 %v4146, 4294901760
    %4148 = vmatpush.xpose.msra.mxu0 %v4147
    %v4149 = vand.u32 %v321, 4294901760
    %4150 = vmatmul.f32.gmra.mxu0 %v4149
    %v4151 = vpop.f32.mrf.mxu0
    %v4152 = vadd.f32 %v4128, %v4151
    %4153 = vdwg.mxu0
    %4154 = vmatpush.xpose.msra.mxu0 0.0
    %4155 = vmatpush.xpose.msra.mxu0 0.0
    %4156 = vmatpush.xpose.msra.mxu0 0.0
    %4157 = vmatpush.xpose.msra.mxu0 0.0
    %4158 = vmatpush.xpose.msra.mxu0 0.0
    %4159 = vmatpush.xpose.msra.mxu0 0.0
    %4160 = vmatpush.xpose.msra.mxu0 0.0
    %4161 = vmatpush.xpose.msra.mxu0 0.0
    %4162 = vmatpush.xpose.msra.mxu0 0.0
    %4163 = vmatpush.xpose.msra.mxu0 0.0
    %4164 = vmatpush.xpose.msra.mxu0 0.0
    %4165 = vmatpush.xpose.msra.mxu0 0.0
    %4166 = vmatpush.xpose.msra.mxu0 0.0
    %4167 = vmatpush.xpose.msra.mxu0 0.0
    %4168 = vmatpush.xpose.msra.mxu0 0.0
    %v4169 = vand.u32 %v451, 4294901760
    %4170 = vmatpush.xpose.msra.mxu0 %v4169
    %v4171 = vand.u32 %v321, 4294901760
    %4172 = vmatmul.f32.gmra.mxu0 %v4171
    %v4173 = vpop.f32.mrf.mxu0
    %v4174 = vadd.f32 %v4152, %v4173
    %4175 = vdwg.mxu0
    %4176 = vmatpush.xpose.msra.mxu0 0.0
    %4177 = vmatpush.xpose.msra.mxu0 0.0
    %4178 = vmatpush.xpose.msra.mxu0 0.0
    %4179 = vmatpush.xpose.msra.mxu0 0.0
    %4180 = vmatpush.xpose.msra.mxu0 0.0
    %4181 = vmatpush.xpose.msra.mxu0 0.0
    %4182 = vmatpush.xpose.msra.mxu0 0.0
    %4183 = vmatpush.xpose.msra.mxu0 0.0
    %4184 = vmatpush.xpose.msra.mxu0 0.0
    %4185 = vmatpush.xpose.msra.mxu0 0.0
    %4186 = vmatpush.xpose.msra.mxu0 0.0
    %4187 = vmatpush.xpose.msra.mxu0 0.0
    %4188 = vmatpush.xpose.msra.mxu0 0.0
    %4189 = vmatpush.xpose.msra.mxu0 0.0
    %4190 = vmatpush.xpose.msra.mxu0 0.0
    %v4191 = vand.u32 %v452, 4294901760
    %4192 = vmatpush.xpose.msra.mxu0 %v4191
    %v4193 = vand.u32 %v322, 4294901760
    %v4194 = vsub.f32 %v322, %v4193
    %v4195 = vand.u32 %v4194, 4294901760
    %v4196 = vsub.f32 %v4194, %v4195
    %v4197 = vand.u32 %v4196, 4294901760
    %4198 = vmatmul.f32.gmra.mxu0 %v4197
    %v4199 = vpop.f32.mrf.mxu0
    %v4200 = vadd.f32 %v4174, %v4199
    %4201 = vdwg.mxu0
    %4202 = vmatpush.xpose.msra.mxu0 0.0
    %4203 = vmatpush.xpose.msra.mxu0 0.0
    %4204 = vmatpush.xpose.msra.mxu0 0.0
    %4205 = vmatpush.xpose.msra.mxu0 0.0
    %4206 = vmatpush.xpose.msra.mxu0 0.0
    %4207 = vmatpush.xpose.msra.mxu0 0.0
    %4208 = vmatpush.xpose.msra.mxu0 0.0
    %4209 = vmatpush.xpose.msra.mxu0 0.0
    %4210 = vmatpush.xpose.msra.mxu0 0.0
    %4211 = vmatpush.xpose.msra.mxu0 0.0
    %4212 = vmatpush.xpose.msra.mxu0 0.0
    %4213 = vmatpush.xpose.msra.mxu0 0.0
    %4214 = vmatpush.xpose.msra.mxu0 0.0
    %4215 = vmatpush.xpose.msra.mxu0 0.0
    %4216 = vmatpush.xpose.msra.mxu0 0.0
    %v4217 = vand.u32 %v452, 4294901760
    %v4218 = vsub.f32 %v452, %v4217
    %v4219 = vand.u32 %v4218, 4294901760
    %v4220 = vsub.f32 %v4218, %v4219
    %v4221 = vand.u32 %v4220, 4294901760
    %4222 = vmatpush.xpose.msra.mxu0 %v4221
    %v4223 = vand.u32 %v322, 4294901760
    %4224 = vmatmul.f32.gmra.mxu0 %v4223
    %v4225 = vpop.f32.mrf.mxu0
    %v4226 = vadd.f32 %v4200, %v4225
    %4227 = vdwg.mxu0
    %4228 = vmatpush.xpose.msra.mxu0 0.0
    %4229 = vmatpush.xpose.msra.mxu0 0.0
    %4230 = vmatpush.xpose.msra.mxu0 0.0
    %4231 = vmatpush.xpose.msra.mxu0 0.0
    %4232 = vmatpush.xpose.msra.mxu0 0.0
    %4233 = vmatpush.xpose.msra.mxu0 0.0
    %4234 = vmatpush.xpose.msra.mxu0 0.0
    %4235 = vmatpush.xpose.msra.mxu0 0.0
    %4236 = vmatpush.xpose.msra.mxu0 0.0
    %4237 = vmatpush.xpose.msra.mxu0 0.0
    %4238 = vmatpush.xpose.msra.mxu0 0.0
    %4239 = vmatpush.xpose.msra.mxu0 0.0
    %4240 = vmatpush.xpose.msra.mxu0 0.0
    %4241 = vmatpush.xpose.msra.mxu0 0.0
    %4242 = vmatpush.xpose.msra.mxu0 0.0
    %v4243 = vand.u32 %v452, 4294901760
    %v4244 = vsub.f32 %v452, %v4243
    %4245 = vmatpush.xpose.msra.mxu0 %v4244
    %v4246 = vand.u32 %v322, 4294901760
    %v4247 = vsub.f32 %v322, %v4246
    %4248 = vmatmul.f32.gmra.mxu0 %v4247
    %v4249 = vpop.f32.mrf.mxu0
    %v4250 = vadd.f32 %v4226, %v4249
    %4251 = vdwg.mxu0
    %4252 = vmatpush.xpose.msra.mxu0 0.0
    %4253 = vmatpush.xpose.msra.mxu0 0.0
    %4254 = vmatpush.xpose.msra.mxu0 0.0
    %4255 = vmatpush.xpose.msra.mxu0 0.0
    %4256 = vmatpush.xpose.msra.mxu0 0.0
    %4257 = vmatpush.xpose.msra.mxu0 0.0
    %4258 = vmatpush.xpose.msra.mxu0 0.0
    %4259 = vmatpush.xpose.msra.mxu0 0.0
    %4260 = vmatpush.xpose.msra.mxu0 0.0
    %4261 = vmatpush.xpose.msra.mxu0 0.0
    %4262 = vmatpush.xpose.msra.mxu0 0.0
    %4263 = vmatpush.xpose.msra.mxu0 0.0
    %4264 = vmatpush.xpose.msra.mxu0 0.0
    %4265 = vmatpush.xpose.msra.mxu0 0.0
    %4266 = vmatpush.xpose.msra.mxu0 0.0
    %v4267 = vand.u32 %v452, 4294901760
    %4268 = vmatpush.xpose.msra.mxu0 %v4267
    %v4269 = vand.u32 %v322, 4294901760
    %v4270 = vsub.f32 %v322, %v4269
    %v4271 = vand.u32 %v4270, 4294901760
    %4272 = vmatmul.f32.gmra.mxu0 %v4271
    %v4273 = vpop.f32.mrf.mxu0
    %v4274 = vadd.f32 %v4250, %v4273
    %4275 = vdwg.mxu0
    %4276 = vmatpush.xpose.msra.mxu0 0.0
    %4277 = vmatpush.xpose.msra.mxu0 0.0
    %4278 = vmatpush.xpose.msra.mxu0 0.0
    %4279 = vmatpush.xpose.msra.mxu0 0.0
    %4280 = vmatpush.xpose.msra.mxu0 0.0
    %4281 = vmatpush.xpose.msra.mxu0 0.0
    %4282 = vmatpush.xpose.msra.mxu0 0.0
    %4283 = vmatpush.xpose.msra.mxu0 0.0
    %4284 = vmatpush.xpose.msra.mxu0 0.0
    %4285 = vmatpush.xpose.msra.mxu0 0.0
    %4286 = vmatpush.xpose.msra.mxu0 0.0
    %4287 = vmatpush.xpose.msra.mxu0 0.0
    %4288 = vmatpush.xpose.msra.mxu0 0.0
    %4289 = vmatpush.xpose.msra.mxu0 0.0
    %4290 = vmatpush.xpose.msra.mxu0 0.0
    %v4291 = vand.u32 %v452, 4294901760
    %v4292 = vsub.f32 %v452, %v4291
    %v4293 = vand.u32 %v4292, 4294901760
    %4294 = vmatpush.xpose.msra.mxu0 %v4293
    %v4295 = vand.u32 %v322, 4294901760
    %4296 = vmatmul.f32.gmra.mxu0 %v4295
    %v4297 = vpop.f32.mrf.mxu0
    %v4298 = vadd.f32 %v4274, %v4297
    %4299 = vdwg.mxu0
    %4300 = vmatpush.xpose.msra.mxu0 0.0
    %4301 = vmatpush.xpose.msra.mxu0 0.0
    %4302 = vmatpush.xpose.msra.mxu0 0.0
    %4303 = vmatpush.xpose.msra.mxu0 0.0
    %4304 = vmatpush.xpose.msra.mxu0 0.0
    %4305 = vmatpush.xpose.msra.mxu0 0.0
    %4306 = vmatpush.xpose.msra.mxu0 0.0
    %4307 = vmatpush.xpose.msra.mxu0 0.0
    %4308 = vmatpush.xpose.msra.mxu0 0.0
    %4309 = vmatpush.xpose.msra.mxu0 0.0
    %4310 = vmatpush.xpose.msra.mxu0 0.0
    %4311 = vmatpush.xpose.msra.mxu0 0.0
    %4312 = vmatpush.xpose.msra.mxu0 0.0
    %4313 = vmatpush.xpose.msra.mxu0 0.0
    %4314 = vmatpush.xpose.msra.mxu0 0.0
    %v4315 = vand.u32 %v452, 4294901760
    %4316 = vmatpush.xpose.msra.mxu0 %v4315
    %v4317 = vand.u32 %v322, 4294901760
    %4318 = vmatmul.f32.gmra.mxu0 %v4317
    %v4319 = vpop.f32.mrf.mxu0
    %v4320 = vadd.f32 %v4298, %v4319
    %4321 = vdwg.mxu0
    %4322 = vmatpush.xpose.msra.mxu0 0.0
    %4323 = vmatpush.xpose.msra.mxu0 0.0
    %4324 = vmatpush.xpose.msra.mxu0 0.0
    %4325 = vmatpush.xpose.msra.mxu0 0.0
    %4326 = vmatpush.xpose.msra.mxu0 0.0
    %4327 = vmatpush.xpose.msra.mxu0 0.0
    %4328 = vmatpush.xpose.msra.mxu0 0.0
    %4329 = vmatpush.xpose.msra.mxu0 0.0
    %4330 = vmatpush.xpose.msra.mxu0 0.0
    %4331 = vmatpush.xpose.msra.mxu0 0.0
    %4332 = vmatpush.xpose.msra.mxu0 0.0
    %4333 = vmatpush.xpose.msra.mxu0 0.0
    %4334 = vmatpush.xpose.msra.mxu0 0.0
    %4335 = vmatpush.xpose.msra.mxu0 0.0
    %4336 = vmatpush.xpose.msra.mxu0 0.0
    %v4337 = vand.u32 %v453, 4294901760
    %4338 = vmatpush.xpose.msra.mxu0 %v4337
    %v4339 = vand.u32 %v323, 4294901760
    %v4340 = vsub.f32 %v323, %v4339
    %v4341 = vand.u32 %v4340, 4294901760
    %v4342 = vsub.f32 %v4340, %v4341
    %v4343 = vand.u32 %v4342, 4294901760
    %4344 = vmatmul.f32.gmra.mxu0 %v4343
    %v4345 = vpop.f32.mrf.mxu0
    %v4346 = vadd.f32 %v4320, %v4345
    %4347 = vdwg.mxu0
    %4348 = vmatpush.xpose.msra.mxu0 0.0
    %4349 = vmatpush.xpose.msra.mxu0 0.0
    %4350 = vmatpush.xpose.msra.mxu0 0.0
    %4351 = vmatpush.xpose.msra.mxu0 0.0
    %4352 = vmatpush.xpose.msra.mxu0 0.0
    %4353 = vmatpush.xpose.msra.mxu0 0.0
    %4354 = vmatpush.xpose.msra.mxu0 0.0
    %4355 = vmatpush.xpose.msra.mxu0 0.0
    %4356 = vmatpush.xpose.msra.mxu0 0.0
    %4357 = vmatpush.xpose.msra.mxu0 0.0
    %4358 = vmatpush.xpose.msra.mxu0 0.0
    %4359 = vmatpush.xpose.msra.mxu0 0.0
    %4360 = vmatpush.xpose.msra.mxu0 0.0
    %4361 = vmatpush.xpose.msra.mxu0 0.0
    %4362 = vmatpush.xpose.msra.mxu0 0.0
    %v4363 = vand.u32 %v453, 4294901760
    %v4364 = vsub.f32 %v453, %v4363
    %v4365 = vand.u32 %v4364, 4294901760
    %v4366 = vsub.f32 %v4364, %v4365
    %v4367 = vand.u32 %v4366, 4294901760
    %4368 = vmatpush.xpose.msra.mxu0 %v4367
    %v4369 = vand.u32 %v323, 4294901760
    %4370 = vmatmul.f32.gmra.mxu0 %v4369
    %v4371 = vpop.f32.mrf.mxu0
    %v4372 = vadd.f32 %v4346, %v4371
    %4373 = vdwg.mxu0
    %4374 = vmatpush.xpose.msra.mxu0 0.0
    %4375 = vmatpush.xpose.msra.mxu0 0.0
    %4376 = vmatpush.xpose.msra.mxu0 0.0
    %4377 = vmatpush.xpose.msra.mxu0 0.0
    %4378 = vmatpush.xpose.msra.mxu0 0.0
    %4379 = vmatpush.xpose.msra.mxu0 0.0
    %4380 = vmatpush.xpose.msra.mxu0 0.0
    %4381 = vmatpush.xpose.msra.mxu0 0.0
    %4382 = vmatpush.xpose.msra.mxu0 0.0
    %4383 = vmatpush.xpose.msra.mxu0 0.0
    %4384 = vmatpush.xpose.msra.mxu0 0.0
    %4385 = vmatpush.xpose.msra.mxu0 0.0
    %4386 = vmatpush.xpose.msra.mxu0 0.0
    %4387 = vmatpush.xpose.msra.mxu0 0.0
    %4388 = vmatpush.xpose.msra.mxu0 0.0
    %v4389 = vand.u32 %v453, 4294901760
    %v4390 = vsub.f32 %v453, %v4389
    %4391 = vmatpush.xpose.msra.mxu0 %v4390
    %v4392 = vand.u32 %v323, 4294901760
    %v4393 = vsub.f32 %v323, %v4392
    %4394 = vmatmul.f32.gmra.mxu0 %v4393
    %v4395 = vpop.f32.mrf.mxu0
    %v4396 = vadd.f32 %v4372, %v4395
    %4397 = vdwg.mxu0
    %4398 = vmatpush.xpose.msra.mxu0 0.0
    %4399 = vmatpush.xpose.msra.mxu0 0.0
    %4400 = vmatpush.xpose.msra.mxu0 0.0
    %4401 = vmatpush.xpose.msra.mxu0 0.0
    %4402 = vmatpush.xpose.msra.mxu0 0.0
    %4403 = vmatpush.xpose.msra.mxu0 0.0
    %4404 = vmatpush.xpose.msra.mxu0 0.0
    %4405 = vmatpush.xpose.msra.mxu0 0.0
    %4406 = vmatpush.xpose.msra.mxu0 0.0
    %4407 = vmatpush.xpose.msra.mxu0 0.0
    %4408 = vmatpush.xpose.msra.mxu0 0.0
    %4409 = vmatpush.xpose.msra.mxu0 0.0
    %4410 = vmatpush.xpose.msra.mxu0 0.0
    %4411 = vmatpush.xpose.msra.mxu0 0.0
    %4412 = vmatpush.xpose.msra.mxu0 0.0
    %v4413 = vand.u32 %v453, 4294901760
    %4414 = vmatpush.xpose.msra.mxu0 %v4413
    %v4415 = vand.u32 %v323, 4294901760
    %v4416 = vsub.f32 %v323, %v4415
    %v4417 = vand.u32 %v4416, 4294901760
    %4418 = vmatmul.f32.gmra.mxu0 %v4417
    %v4419 = vpop.f32.mrf.mxu0
    %v4420 = vadd.f32 %v4396, %v4419
    %4421 = vdwg.mxu0
    %4422 = vmatpush.xpose.msra.mxu0 0.0
    %4423 = vmatpush.xpose.msra.mxu0 0.0
    %4424 = vmatpush.xpose.msra.mxu0 0.0
    %4425 = vmatpush.xpose.msra.mxu0 0.0
    %4426 = vmatpush.xpose.msra.mxu0 0.0
    %4427 = vmatpush.xpose.msra.mxu0 0.0
    %4428 = vmatpush.xpose.msra.mxu0 0.0
    %4429 = vmatpush.xpose.msra.mxu0 0.0
    %4430 = vmatpush.xpose.msra.mxu0 0.0
    %4431 = vmatpush.xpose.msra.mxu0 0.0
    %4432 = vmatpush.xpose.msra.mxu0 0.0
    %4433 = vmatpush.xpose.msra.mxu0 0.0
    %4434 = vmatpush.xpose.msra.mxu0 0.0
    %4435 = vmatpush.xpose.msra.mxu0 0.0
    %4436 = vmatpush.xpose.msra.mxu0 0.0
    %v4437 = vand.u32 %v453, 4294901760
    %v4438 = vsub.f32 %v453, %v4437
    %v4439 = vand.u32 %v4438, 4294901760
    %4440 = vmatpush.xpose.msra.mxu0 %v4439
    %v4441 = vand.u32 %v323, 4294901760
    %4442 = vmatmul.f32.gmra.mxu0 %v4441
    %v4443 = vpop.f32.mrf.mxu0
    %v4444 = vadd.f32 %v4420, %v4443
    %4445 = vdwg.mxu0
    %4446 = vmatpush.xpose.msra.mxu0 0.0
    %4447 = vmatpush.xpose.msra.mxu0 0.0
    %4448 = vmatpush.xpose.msra.mxu0 0.0
    %4449 = vmatpush.xpose.msra.mxu0 0.0
    %4450 = vmatpush.xpose.msra.mxu0 0.0
    %4451 = vmatpush.xpose.msra.mxu0 0.0
    %4452 = vmatpush.xpose.msra.mxu0 0.0
    %4453 = vmatpush.xpose.msra.mxu0 0.0
    %4454 = vmatpush.xpose.msra.mxu0 0.0
    %4455 = vmatpush.xpose.msra.mxu0 0.0
    %4456 = vmatpush.xpose.msra.mxu0 0.0
    %4457 = vmatpush.xpose.msra.mxu0 0.0
    %4458 = vmatpush.xpose.msra.mxu0 0.0
    %4459 = vmatpush.xpose.msra.mxu0 0.0
    %4460 = vmatpush.xpose.msra.mxu0 0.0
    %v4461 = vand.u32 %v453, 4294901760
    %4462 = vmatpush.xpose.msra.mxu0 %v4461
    %v4463 = vand.u32 %v323, 4294901760
    %4464 = vmatmul.f32.gmra.mxu0 %v4463
    %v4465 = vpop.f32.mrf.mxu0
    %v4466 = vadd.f32 %v4444, %v4465
    %4467 = vdwg.mxu0
    %4468 = vmatpush.xpose.msra.mxu0 0.0
    %4469 = vmatpush.xpose.msra.mxu0 0.0
    %4470 = vmatpush.xpose.msra.mxu0 0.0
    %4471 = vmatpush.xpose.msra.mxu0 0.0
    %4472 = vmatpush.xpose.msra.mxu0 0.0
    %4473 = vmatpush.xpose.msra.mxu0 0.0
    %4474 = vmatpush.xpose.msra.mxu0 0.0
    %4475 = vmatpush.xpose.msra.mxu0 0.0
    %4476 = vmatpush.xpose.msra.mxu0 0.0
    %4477 = vmatpush.xpose.msra.mxu0 0.0
    %4478 = vmatpush.xpose.msra.mxu0 0.0
    %4479 = vmatpush.xpose.msra.mxu0 0.0
    %4480 = vmatpush.xpose.msra.mxu0 0.0
    %4481 = vmatpush.xpose.msra.mxu0 0.0
    %4482 = vmatpush.xpose.msra.mxu0 0.0
    %v4483 = vand.u32 %v454, 4294901760
    %4484 = vmatpush.xpose.msra.mxu0 %v4483
    %v4485 = vand.u32 %v324, 4294901760
    %v4486 = vsub.f32 %v324, %v4485
    %v4487 = vand.u32 %v4486, 4294901760
    %v4488 = vsub.f32 %v4486, %v4487
    %v4489 = vand.u32 %v4488, 4294901760
    %4490 = vmatmul.f32.gmra.mxu0 %v4489
    %v4491 = vpop.f32.mrf.mxu0
    %v4492 = vadd.f32 %v4466, %v4491
    %4493 = vdwg.mxu0
    %4494 = vmatpush.xpose.msra.mxu0 0.0
    %4495 = vmatpush.xpose.msra.mxu0 0.0
    %4496 = vmatpush.xpose.msra.mxu0 0.0
    %4497 = vmatpush.xpose.msra.mxu0 0.0
    %4498 = vmatpush.xpose.msra.mxu0 0.0
    %4499 = vmatpush.xpose.msra.mxu0 0.0
    %4500 = vmatpush.xpose.msra.mxu0 0.0
    %4501 = vmatpush.xpose.msra.mxu0 0.0
    %4502 = vmatpush.xpose.msra.mxu0 0.0
    %4503 = vmatpush.xpose.msra.mxu0 0.0
    %4504 = vmatpush.xpose.msra.mxu0 0.0
    %4505 = vmatpush.xpose.msra.mxu0 0.0
    %4506 = vmatpush.xpose.msra.mxu0 0.0
    %4507 = vmatpush.xpose.msra.mxu0 0.0
    %4508 = vmatpush.xpose.msra.mxu0 0.0
    %v4509 = vand.u32 %v454, 4294901760
    %v4510 = vsub.f32 %v454, %v4509
    %v4511 = vand.u32 %v4510, 4294901760
    %v4512 = vsub.f32 %v4510, %v4511
    %v4513 = vand.u32 %v4512, 4294901760
    %4514 = vmatpush.xpose.msra.mxu0 %v4513
    %v4515 = vand.u32 %v324, 4294901760
    %4516 = vmatmul.f32.gmra.mxu0 %v4515
    %v4517 = vpop.f32.mrf.mxu0
    %v4518 = vadd.f32 %v4492, %v4517
    %4519 = vdwg.mxu0
    %4520 = vmatpush.xpose.msra.mxu0 0.0
    %4521 = vmatpush.xpose.msra.mxu0 0.0
    %4522 = vmatpush.xpose.msra.mxu0 0.0
    %4523 = vmatpush.xpose.msra.mxu0 0.0
    %4524 = vmatpush.xpose.msra.mxu0 0.0
    %4525 = vmatpush.xpose.msra.mxu0 0.0
    %4526 = vmatpush.xpose.msra.mxu0 0.0
    %4527 = vmatpush.xpose.msra.mxu0 0.0
    %4528 = vmatpush.xpose.msra.mxu0 0.0
    %4529 = vmatpush.xpose.msra.mxu0 0.0
    %4530 = vmatpush.xpose.msra.mxu0 0.0
    %4531 = vmatpush.xpose.msra.mxu0 0.0
    %4532 = vmatpush.xpose.msra.mxu0 0.0
    %4533 = vmatpush.xpose.msra.mxu0 0.0
    %4534 = vmatpush.xpose.msra.mxu0 0.0
    %v4535 = vand.u32 %v454, 4294901760
    %v4536 = vsub.f32 %v454, %v4535
    %4537 = vmatpush.xpose.msra.mxu0 %v4536
    %v4538 = vand.u32 %v324, 4294901760
    %v4539 = vsub.f32 %v324, %v4538
    %4540 = vmatmul.f32.gmra.mxu0 %v4539
    %v4541 = vpop.f32.mrf.mxu0
    %v4542 = vadd.f32 %v4518, %v4541
    %4543 = vdwg.mxu0
    %4544 = vmatpush.xpose.msra.mxu0 0.0
    %4545 = vmatpush.xpose.msra.mxu0 0.0
    %4546 = vmatpush.xpose.msra.mxu0 0.0
    %4547 = vmatpush.xpose.msra.mxu0 0.0
    %4548 = vmatpush.xpose.msra.mxu0 0.0
    %4549 = vmatpush.xpose.msra.mxu0 0.0
    %4550 = vmatpush.xpose.msra.mxu0 0.0
    %4551 = vmatpush.xpose.msra.mxu0 0.0
    %4552 = vmatpush.xpose.msra.mxu0 0.0
    %4553 = vmatpush.xpose.msra.mxu0 0.0
    %4554 = vmatpush.xpose.msra.mxu0 0.0
    %4555 = vmatpush.xpose.msra.mxu0 0.0
    %4556 = vmatpush.xpose.msra.mxu0 0.0
    %4557 = vmatpush.xpose.msra.mxu0 0.0
    %4558 = vmatpush.xpose.msra.mxu0 0.0
    %v4559 = vand.u32 %v454, 4294901760
    %4560 = vmatpush.xpose.msra.mxu0 %v4559
    %v4561 = vand.u32 %v324, 4294901760
    %v4562 = vsub.f32 %v324, %v4561
    %v4563 = vand.u32 %v4562, 4294901760
    %4564 = vmatmul.f32.gmra.mxu0 %v4563
    %v4565 = vpop.f32.mrf.mxu0
    %v4566 = vadd.f32 %v4542, %v4565
    %4567 = vdwg.mxu0
    %4568 = vmatpush.xpose.msra.mxu0 0.0
    %4569 = vmatpush.xpose.msra.mxu0 0.0
    %4570 = vmatpush.xpose.msra.mxu0 0.0
    %4571 = vmatpush.xpose.msra.mxu0 0.0
    %4572 = vmatpush.xpose.msra.mxu0 0.0
    %4573 = vmatpush.xpose.msra.mxu0 0.0
    %4574 = vmatpush.xpose.msra.mxu0 0.0
    %4575 = vmatpush.xpose.msra.mxu0 0.0
    %4576 = vmatpush.xpose.msra.mxu0 0.0
    %4577 = vmatpush.xpose.msra.mxu0 0.0
    %4578 = vmatpush.xpose.msra.mxu0 0.0
    %4579 = vmatpush.xpose.msra.mxu0 0.0
    %4580 = vmatpush.xpose.msra.mxu0 0.0
    %4581 = vmatpush.xpose.msra.mxu0 0.0
    %4582 = vmatpush.xpose.msra.mxu0 0.0
    %v4583 = vand.u32 %v454, 4294901760
    %v4584 = vsub.f32 %v454, %v4583
    %v4585 = vand.u32 %v4584, 4294901760
    %4586 = vmatpush.xpose.msra.mxu0 %v4585
    %v4587 = vand.u32 %v324, 4294901760
    %4588 = vmatmul.f32.gmra.mxu0 %v4587
    %v4589 = vpop.f32.mrf.mxu0
    %v4590 = vadd.f32 %v4566, %v4589
    %4591 = vdwg.mxu0
    %4592 = vmatpush.xpose.msra.mxu0 0.0
    %4593 = vmatpush.xpose.msra.mxu0 0.0
    %4594 = vmatpush.xpose.msra.mxu0 0.0
    %4595 = vmatpush.xpose.msra.mxu0 0.0
    %4596 = vmatpush.xpose.msra.mxu0 0.0
    %4597 = vmatpush.xpose.msra.mxu0 0.0
    %4598 = vmatpush.xpose.msra.mxu0 0.0
    %4599 = vmatpush.xpose.msra.mxu0 0.0
    %4600 = vmatpush.xpose.msra.mxu0 0.0
    %4601 = vmatpush.xpose.msra.mxu0 0.0
    %4602 = vmatpush.xpose.msra.mxu0 0.0
    %4603 = vmatpush.xpose.msra.mxu0 0.0
    %4604 = vmatpush.xpose.msra.mxu0 0.0
    %4605 = vmatpush.xpose.msra.mxu0 0.0
    %4606 = vmatpush.xpose.msra.mxu0 0.0
    %v4607 = vand.u32 %v454, 4294901760
    %4608 = vmatpush.xpose.msra.mxu0 %v4607
    %v4609 = vand.u32 %v324, 4294901760
    %4610 = vmatmul.f32.gmra.mxu0 %v4609
    %v4611 = vpop.f32.mrf.mxu0
    %v4612 = vadd.f32 %v4590, %v4611
    %4613 = vdwg.mxu0
    %4614 = vmatpush.xpose.msra.mxu0 0.0
    %4615 = vmatpush.xpose.msra.mxu0 0.0
    %4616 = vmatpush.xpose.msra.mxu0 0.0
    %4617 = vmatpush.xpose.msra.mxu0 0.0
    %4618 = vmatpush.xpose.msra.mxu0 0.0
    %4619 = vmatpush.xpose.msra.mxu0 0.0
    %4620 = vmatpush.xpose.msra.mxu0 0.0
    %4621 = vmatpush.xpose.msra.mxu0 0.0
    %4622 = vmatpush.xpose.msra.mxu0 0.0
    %4623 = vmatpush.xpose.msra.mxu0 0.0
    %4624 = vmatpush.xpose.msra.mxu0 0.0
    %4625 = vmatpush.xpose.msra.mxu0 0.0
    %4626 = vmatpush.xpose.msra.mxu0 0.0
    %4627 = vmatpush.xpose.msra.mxu0 0.0
    %4628 = vmatpush.xpose.msra.mxu0 0.0
    %v4629 = vand.u32 %v455, 4294901760
    %4630 = vmatpush.xpose.msra.mxu0 %v4629
    %v4631 = vand.u32 %v325, 4294901760
    %v4632 = vsub.f32 %v325, %v4631
    %v4633 = vand.u32 %v4632, 4294901760
    %v4634 = vsub.f32 %v4632, %v4633
    %v4635 = vand.u32 %v4634, 4294901760
    %4636 = vmatmul.f32.gmra.mxu0 %v4635
    %v4637 = vpop.f32.mrf.mxu0
    %v4638 = vadd.f32 %v4612, %v4637
    %4639 = vdwg.mxu0
    %4640 = vmatpush.xpose.msra.mxu0 0.0
    %4641 = vmatpush.xpose.msra.mxu0 0.0
    %4642 = vmatpush.xpose.msra.mxu0 0.0
    %4643 = vmatpush.xpose.msra.mxu0 0.0
    %4644 = vmatpush.xpose.msra.mxu0 0.0
    %4645 = vmatpush.xpose.msra.mxu0 0.0
    %4646 = vmatpush.xpose.msra.mxu0 0.0
    %4647 = vmatpush.xpose.msra.mxu0 0.0
    %4648 = vmatpush.xpose.msra.mxu0 0.0
    %4649 = vmatpush.xpose.msra.mxu0 0.0
    %4650 = vmatpush.xpose.msra.mxu0 0.0
    %4651 = vmatpush.xpose.msra.mxu0 0.0
    %4652 = vmatpush.xpose.msra.mxu0 0.0
    %4653 = vmatpush.xpose.msra.mxu0 0.0
    %4654 = vmatpush.xpose.msra.mxu0 0.0
    %v4655 = vand.u32 %v455, 4294901760
    %v4656 = vsub.f32 %v455, %v4655
    %v4657 = vand.u32 %v4656, 4294901760
    %v4658 = vsub.f32 %v4656, %v4657
    %v4659 = vand.u32 %v4658, 4294901760
    %4660 = vmatpush.xpose.msra.mxu0 %v4659
    %v4661 = vand.u32 %v325, 4294901760
    %4662 = vmatmul.f32.gmra.mxu0 %v4661
    %v4663 = vpop.f32.mrf.mxu0
    %v4664 = vadd.f32 %v4638, %v4663
    %4665 = vdwg.mxu0
    %4666 = vmatpush.xpose.msra.mxu0 0.0
    %4667 = vmatpush.xpose.msra.mxu0 0.0
    %4668 = vmatpush.xpose.msra.mxu0 0.0
    %4669 = vmatpush.xpose.msra.mxu0 0.0
    %4670 = vmatpush.xpose.msra.mxu0 0.0
    %4671 = vmatpush.xpose.msra.mxu0 0.0
    %4672 = vmatpush.xpose.msra.mxu0 0.0
    %4673 = vmatpush.xpose.msra.mxu0 0.0
    %4674 = vmatpush.xpose.msra.mxu0 0.0
    %4675 = vmatpush.xpose.msra.mxu0 0.0
    %4676 = vmatpush.xpose.msra.mxu0 0.0
    %4677 = vmatpush.xpose.msra.mxu0 0.0
    %4678 = vmatpush.xpose.msra.mxu0 0.0
    %4679 = vmatpush.xpose.msra.mxu0 0.0
    %4680 = vmatpush.xpose.msra.mxu0 0.0
    %v4681 = vand.u32 %v455, 4294901760
    %v4682 = vsub.f32 %v455, %v4681
    %4683 = vmatpush.xpose.msra.mxu0 %v4682
    %v4684 = vand.u32 %v325, 4294901760
    %v4685 = vsub.f32 %v325, %v4684
    %4686 = vmatmul.f32.gmra.mxu0 %v4685
    %v4687 = vpop.f32.mrf.mxu0
    %v4688 = vadd.f32 %v4664, %v4687
    %4689 = vdwg.mxu0
    %4690 = vmatpush.xpose.msra.mxu0 0.0
    %4691 = vmatpush.xpose.msra.mxu0 0.0
    %4692 = vmatpush.xpose.msra.mxu0 0.0
    %4693 = vmatpush.xpose.msra.mxu0 0.0
    %4694 = vmatpush.xpose.msra.mxu0 0.0
    %4695 = vmatpush.xpose.msra.mxu0 0.0
    %4696 = vmatpush.xpose.msra.mxu0 0.0
    %4697 = vmatpush.xpose.msra.mxu0 0.0
    %4698 = vmatpush.xpose.msra.mxu0 0.0
    %4699 = vmatpush.xpose.msra.mxu0 0.0
    %4700 = vmatpush.xpose.msra.mxu0 0.0
    %4701 = vmatpush.xpose.msra.mxu0 0.0
    %4702 = vmatpush.xpose.msra.mxu0 0.0
    %4703 = vmatpush.xpose.msra.mxu0 0.0
    %4704 = vmatpush.xpose.msra.mxu0 0.0
    %v4705 = vand.u32 %v455, 4294901760
    %4706 = vmatpush.xpose.msra.mxu0 %v4705
    %v4707 = vand.u32 %v325, 4294901760
    %v4708 = vsub.f32 %v325, %v4707
    %v4709 = vand.u32 %v4708, 4294901760
    %4710 = vmatmul.f32.gmra.mxu0 %v4709
    %v4711 = vpop.f32.mrf.mxu0
    %v4712 = vadd.f32 %v4688, %v4711
    %4713 = vdwg.mxu0
    %4714 = vmatpush.xpose.msra.mxu0 0.0
    %4715 = vmatpush.xpose.msra.mxu0 0.0
    %4716 = vmatpush.xpose.msra.mxu0 0.0
    %4717 = vmatpush.xpose.msra.mxu0 0.0
    %4718 = vmatpush.xpose.msra.mxu0 0.0
    %4719 = vmatpush.xpose.msra.mxu0 0.0
    %4720 = vmatpush.xpose.msra.mxu0 0.0
    %4721 = vmatpush.xpose.msra.mxu0 0.0
    %4722 = vmatpush.xpose.msra.mxu0 0.0
    %4723 = vmatpush.xpose.msra.mxu0 0.0
    %4724 = vmatpush.xpose.msra.mxu0 0.0
    %4725 = vmatpush.xpose.msra.mxu0 0.0
    %4726 = vmatpush.xpose.msra.mxu0 0.0
    %4727 = vmatpush.xpose.msra.mxu0 0.0
    %4728 = vmatpush.xpose.msra.mxu0 0.0
    %v4729 = vand.u32 %v455, 4294901760
    %v4730 = vsub.f32 %v455, %v4729
    %v4731 = vand.u32 %v4730, 4294901760
    %4732 = vmatpush.xpose.msra.mxu0 %v4731
    %v4733 = vand.u32 %v325, 4294901760
    %4734 = vmatmul.f32.gmra.mxu0 %v4733
    %v4735 = vpop.f32.mrf.mxu0
    %v4736 = vadd.f32 %v4712, %v4735
    %4737 = vdwg.mxu0
    %4738 = vmatpush.xpose.msra.mxu0 0.0
    %4739 = vmatpush.xpose.msra.mxu0 0.0
    %4740 = vmatpush.xpose.msra.mxu0 0.0
    %4741 = vmatpush.xpose.msra.mxu0 0.0
    %4742 = vmatpush.xpose.msra.mxu0 0.0
    %4743 = vmatpush.xpose.msra.mxu0 0.0
    %4744 = vmatpush.xpose.msra.mxu0 0.0
    %4745 = vmatpush.xpose.msra.mxu0 0.0
    %4746 = vmatpush.xpose.msra.mxu0 0.0
    %4747 = vmatpush.xpose.msra.mxu0 0.0
    %4748 = vmatpush.xpose.msra.mxu0 0.0
    %4749 = vmatpush.xpose.msra.mxu0 0.0
    %4750 = vmatpush.xpose.msra.mxu0 0.0
    %4751 = vmatpush.xpose.msra.mxu0 0.0
    %4752 = vmatpush.xpose.msra.mxu0 0.0
    %v4753 = vand.u32 %v455, 4294901760
    %4754 = vmatpush.xpose.msra.mxu0 %v4753
    %v4755 = vand.u32 %v325, 4294901760
    %4756 = vmatmul.f32.gmra.mxu0 %v4755
    %v4757 = vpop.f32.mrf.mxu0
    %v4758 = vadd.f32 %v4736, %v4757
    %4759 = vdwg.mxu0
    %4760 = vmatpush.xpose.msra.mxu0 0.0
    %4761 = vmatpush.xpose.msra.mxu0 0.0
    %4762 = vmatpush.xpose.msra.mxu0 0.0
    %4763 = vmatpush.xpose.msra.mxu0 0.0
    %4764 = vmatpush.xpose.msra.mxu0 0.0
    %4765 = vmatpush.xpose.msra.mxu0 0.0
    %4766 = vmatpush.xpose.msra.mxu0 0.0
    %4767 = vmatpush.xpose.msra.mxu0 0.0
    %4768 = vmatpush.xpose.msra.mxu0 0.0
    %4769 = vmatpush.xpose.msra.mxu0 0.0
    %4770 = vmatpush.xpose.msra.mxu0 0.0
    %4771 = vmatpush.xpose.msra.mxu0 0.0
    %4772 = vmatpush.xpose.msra.mxu0 0.0
    %4773 = vmatpush.xpose.msra.mxu0 0.0
    %4774 = vmatpush.xpose.msra.mxu0 0.0
    %v4775 = vand.u32 %v456, 4294901760
    %4776 = vmatpush.xpose.msra.mxu0 %v4775
    %v4777 = vand.u32 %v326, 4294901760
    %v4778 = vsub.f32 %v326, %v4777
    %v4779 = vand.u32 %v4778, 4294901760
    %v4780 = vsub.f32 %v4778, %v4779
    %v4781 = vand.u32 %v4780, 4294901760
    %4782 = vmatmul.f32.gmra.mxu0 %v4781
    %v4783 = vpop.f32.mrf.mxu0
    %v4784 = vadd.f32 %v4758, %v4783
    %4785 = vdwg.mxu0
    %4786 = vmatpush.xpose.msra.mxu0 0.0
    %4787 = vmatpush.xpose.msra.mxu0 0.0
    %4788 = vmatpush.xpose.msra.mxu0 0.0
    %4789 = vmatpush.xpose.msra.mxu0 0.0
    %4790 = vmatpush.xpose.msra.mxu0 0.0
    %4791 = vmatpush.xpose.msra.mxu0 0.0
    %4792 = vmatpush.xpose.msra.mxu0 0.0
    %4793 = vmatpush.xpose.msra.mxu0 0.0
    %4794 = vmatpush.xpose.msra.mxu0 0.0
    %4795 = vmatpush.xpose.msra.mxu0 0.0
    %4796 = vmatpush.xpose.msra.mxu0 0.0
    %4797 = vmatpush.xpose.msra.mxu0 0.0
    %4798 = vmatpush.xpose.msra.mxu0 0.0
    %4799 = vmatpush.xpose.msra.mxu0 0.0
    %4800 = vmatpush.xpose.msra.mxu0 0.0
    %v4801 = vand.u32 %v456, 4294901760
    %v4802 = vsub.f32 %v456, %v4801
    %v4803 = vand.u32 %v4802, 4294901760
    %v4804 = vsub.f32 %v4802, %v4803
    %v4805 = vand.u32 %v4804, 4294901760
    %4806 = vmatpush.xpose.msra.mxu0 %v4805
    %v4807 = vand.u32 %v326, 4294901760
    %4808 = vmatmul.f32.gmra.mxu0 %v4807
    %v4809 = vpop.f32.mrf.mxu0
    %v4810 = vadd.f32 %v4784, %v4809
    %4811 = vdwg.mxu0
    %4812 = vmatpush.xpose.msra.mxu0 0.0
    %4813 = vmatpush.xpose.msra.mxu0 0.0
    %4814 = vmatpush.xpose.msra.mxu0 0.0
    %4815 = vmatpush.xpose.msra.mxu0 0.0
    %4816 = vmatpush.xpose.msra.mxu0 0.0
    %4817 = vmatpush.xpose.msra.mxu0 0.0
    %4818 = vmatpush.xpose.msra.mxu0 0.0
    %4819 = vmatpush.xpose.msra.mxu0 0.0
    %4820 = vmatpush.xpose.msra.mxu0 0.0
    %4821 = vmatpush.xpose.msra.mxu0 0.0
    %4822 = vmatpush.xpose.msra.mxu0 0.0
    %4823 = vmatpush.xpose.msra.mxu0 0.0
    %4824 = vmatpush.xpose.msra.mxu0 0.0
    %4825 = vmatpush.xpose.msra.mxu0 0.0
    %4826 = vmatpush.xpose.msra.mxu0 0.0
    %v4827 = vand.u32 %v456, 4294901760
    %v4828 = vsub.f32 %v456, %v4827
    %4829 = vmatpush.xpose.msra.mxu0 %v4828
    %v4830 = vand.u32 %v326, 4294901760
    %v4831 = vsub.f32 %v326, %v4830
    %4832 = vmatmul.f32.gmra.mxu0 %v4831
    %v4833 = vpop.f32.mrf.mxu0
    %v4834 = vadd.f32 %v4810, %v4833
    %4835 = vdwg.mxu0
    %4836 = vmatpush.xpose.msra.mxu0 0.0
    %4837 = vmatpush.xpose.msra.mxu0 0.0
    %4838 = vmatpush.xpose.msra.mxu0 0.0
    %4839 = vmatpush.xpose.msra.mxu0 0.0
    %4840 = vmatpush.xpose.msra.mxu0 0.0
    %4841 = vmatpush.xpose.msra.mxu0 0.0
    %4842 = vmatpush.xpose.msra.mxu0 0.0
    %4843 = vmatpush.xpose.msra.mxu0 0.0
    %4844 = vmatpush.xpose.msra.mxu0 0.0
    %4845 = vmatpush.xpose.msra.mxu0 0.0
    %4846 = vmatpush.xpose.msra.mxu0 0.0
    %4847 = vmatpush.xpose.msra.mxu0 0.0
    %4848 = vmatpush.xpose.msra.mxu0 0.0
    %4849 = vmatpush.xpose.msra.mxu0 0.0
    %4850 = vmatpush.xpose.msra.mxu0 0.0
    %v4851 = vand.u32 %v456, 4294901760
    %4852 = vmatpush.xpose.msra.mxu0 %v4851
    %v4853 = vand.u32 %v326, 4294901760
    %v4854 = vsub.f32 %v326, %v4853
    %v4855 = vand.u32 %v4854, 4294901760
    %4856 = vmatmul.f32.gmra.mxu0 %v4855
    %v4857 = vpop.f32.mrf.mxu0
    %v4858 = vadd.f32 %v4834, %v4857
    %4859 = vdwg.mxu0
    %4860 = vmatpush.xpose.msra.mxu0 0.0
    %4861 = vmatpush.xpose.msra.mxu0 0.0
    %4862 = vmatpush.xpose.msra.mxu0 0.0
    %4863 = vmatpush.xpose.msra.mxu0 0.0
    %4864 = vmatpush.xpose.msra.mxu0 0.0
    %4865 = vmatpush.xpose.msra.mxu0 0.0
    %4866 = vmatpush.xpose.msra.mxu0 0.0
    %4867 = vmatpush.xpose.msra.mxu0 0.0
    %4868 = vmatpush.xpose.msra.mxu0 0.0
    %4869 = vmatpush.xpose.msra.mxu0 0.0
    %4870 = vmatpush.xpose.msra.mxu0 0.0
    %4871 = vmatpush.xpose.msra.mxu0 0.0
    %4872 = vmatpush.xpose.msra.mxu0 0.0
    %4873 = vmatpush.xpose.msra.mxu0 0.0
    %4874 = vmatpush.xpose.msra.mxu0 0.0
    %v4875 = vand.u32 %v456, 4294901760
    %v4876 = vsub.f32 %v456, %v4875
    %v4877 = vand.u32 %v4876, 4294901760
    %4878 = vmatpush.xpose.msra.mxu0 %v4877
    %v4879 = vand.u32 %v326, 4294901760
    %4880 = vmatmul.f32.gmra.mxu0 %v4879
    %v4881 = vpop.f32.mrf.mxu0
    %v4882 = vadd.f32 %v4858, %v4881
    %4883 = vdwg.mxu0
    %4884 = vmatpush.xpose.msra.mxu0 0.0
    %4885 = vmatpush.xpose.msra.mxu0 0.0
    %4886 = vmatpush.xpose.msra.mxu0 0.0
    %4887 = vmatpush.xpose.msra.mxu0 0.0
    %4888 = vmatpush.xpose.msra.mxu0 0.0
    %4889 = vmatpush.xpose.msra.mxu0 0.0
    %4890 = vmatpush.xpose.msra.mxu0 0.0
    %4891 = vmatpush.xpose.msra.mxu0 0.0
    %4892 = vmatpush.xpose.msra.mxu0 0.0
    %4893 = vmatpush.xpose.msra.mxu0 0.0
    %4894 = vmatpush.xpose.msra.mxu0 0.0
    %4895 = vmatpush.xpose.msra.mxu0 0.0
    %4896 = vmatpush.xpose.msra.mxu0 0.0
    %4897 = vmatpush.xpose.msra.mxu0 0.0
    %4898 = vmatpush.xpose.msra.mxu0 0.0
    %v4899 = vand.u32 %v456, 4294901760
    %4900 = vmatpush.xpose.msra.mxu0 %v4899
    %v4901 = vand.u32 %v326, 4294901760
    %4902 = vmatmul.f32.gmra.mxu0 %v4901
    %v4903 = vpop.f32.mrf.mxu0
    %v4904 = vadd.f32 %v4882, %v4903
    %4905 = vdwg.mxu0
    %4906 = vmatpush.xpose.msra.mxu0 0.0
    %4907 = vmatpush.xpose.msra.mxu0 0.0
    %4908 = vmatpush.xpose.msra.mxu0 0.0
    %4909 = vmatpush.xpose.msra.mxu0 0.0
    %4910 = vmatpush.xpose.msra.mxu0 0.0
    %4911 = vmatpush.xpose.msra.mxu0 0.0
    %4912 = vmatpush.xpose.msra.mxu0 0.0
    %4913 = vmatpush.xpose.msra.mxu0 0.0
    %4914 = vmatpush.xpose.msra.mxu0 0.0
    %4915 = vmatpush.xpose.msra.mxu0 0.0
    %4916 = vmatpush.xpose.msra.mxu0 0.0
    %4917 = vmatpush.xpose.msra.mxu0 0.0
    %4918 = vmatpush.xpose.msra.mxu0 0.0
    %4919 = vmatpush.xpose.msra.mxu0 0.0
    %4920 = vmatpush.xpose.msra.mxu0 0.0
    %v4921 = vand.u32 %v457, 4294901760
    %4922 = vmatpush.xpose.msra.mxu0 %v4921
    %v4923 = vand.u32 %v327, 4294901760
    %v4924 = vsub.f32 %v327, %v4923
    %v4925 = vand.u32 %v4924, 4294901760
    %v4926 = vsub.f32 %v4924, %v4925
    %v4927 = vand.u32 %v4926, 4294901760
    %4928 = vmatmul.f32.gmra.mxu0 %v4927
    %v4929 = vpop.f32.mrf.mxu0
    %v4930 = vadd.f32 %v4904, %v4929
    %4931 = vdwg.mxu0
    %4932 = vmatpush.xpose.msra.mxu0 0.0
    %4933 = vmatpush.xpose.msra.mxu0 0.0
    %4934 = vmatpush.xpose.msra.mxu0 0.0
    %4935 = vmatpush.xpose.msra.mxu0 0.0
    %4936 = vmatpush.xpose.msra.mxu0 0.0
    %4937 = vmatpush.xpose.msra.mxu0 0.0
    %4938 = vmatpush.xpose.msra.mxu0 0.0
    %4939 = vmatpush.xpose.msra.mxu0 0.0
    %4940 = vmatpush.xpose.msra.mxu0 0.0
    %4941 = vmatpush.xpose.msra.mxu0 0.0
    %4942 = vmatpush.xpose.msra.mxu0 0.0
    %4943 = vmatpush.xpose.msra.mxu0 0.0
    %4944 = vmatpush.xpose.msra.mxu0 0.0
    %4945 = vmatpush.xpose.msra.mxu0 0.0
    %4946 = vmatpush.xpose.msra.mxu0 0.0
    %v4947 = vand.u32 %v457, 4294901760
    %v4948 = vsub.f32 %v457, %v4947
    %v4949 = vand.u32 %v4948, 4294901760
    %v4950 = vsub.f32 %v4948, %v4949
    %v4951 = vand.u32 %v4950, 4294901760
    %4952 = vmatpush.xpose.msra.mxu0 %v4951
    %v4953 = vand.u32 %v327, 4294901760
    %4954 = vmatmul.f32.gmra.mxu0 %v4953
    %v4955 = vpop.f32.mrf.mxu0
    %v4956 = vadd.f32 %v4930, %v4955
    %4957 = vdwg.mxu0
    %4958 = vmatpush.xpose.msra.mxu0 0.0
    %4959 = vmatpush.xpose.msra.mxu0 0.0
    %4960 = vmatpush.xpose.msra.mxu0 0.0
    %4961 = vmatpush.xpose.msra.mxu0 0.0
    %4962 = vmatpush.xpose.msra.mxu0 0.0
    %4963 = vmatpush.xpose.msra.mxu0 0.0
    %4964 = vmatpush.xpose.msra.mxu0 0.0
    %4965 = vmatpush.xpose.msra.mxu0 0.0
    %4966 = vmatpush.xpose.msra.mxu0 0.0
    %4967 = vmatpush.xpose.msra.mxu0 0.0
    %4968 = vmatpush.xpose.msra.mxu0 0.0
    %4969 = vmatpush.xpose.msra.mxu0 0.0
    %4970 = vmatpush.xpose.msra.mxu0 0.0
    %4971 = vmatpush.xpose.msra.mxu0 0.0
    %4972 = vmatpush.xpose.msra.mxu0 0.0
    %v4973 = vand.u32 %v457, 4294901760
    %v4974 = vsub.f32 %v457, %v4973
    %4975 = vmatpush.xpose.msra.mxu0 %v4974
    %v4976 = vand.u32 %v327, 4294901760
    %v4977 = vsub.f32 %v327, %v4976
    %4978 = vmatmul.f32.gmra.mxu0 %v4977
    %v4979 = vpop.f32.mrf.mxu0
    %v4980 = vadd.f32 %v4956, %v4979
    %4981 = vdwg.mxu0
    %4982 = vmatpush.xpose.msra.mxu0 0.0
    %4983 = vmatpush.xpose.msra.mxu0 0.0
    %4984 = vmatpush.xpose.msra.mxu0 0.0
    %4985 = vmatpush.xpose.msra.mxu0 0.0
    %4986 = vmatpush.xpose.msra.mxu0 0.0
    %4987 = vmatpush.xpose.msra.mxu0 0.0
    %4988 = vmatpush.xpose.msra.mxu0 0.0
    %4989 = vmatpush.xpose.msra.mxu0 0.0
    %4990 = vmatpush.xpose.msra.mxu0 0.0
    %4991 = vmatpush.xpose.msra.mxu0 0.0
    %4992 = vmatpush.xpose.msra.mxu0 0.0
    %4993 = vmatpush.xpose.msra.mxu0 0.0
    %4994 = vmatpush.xpose.msra.mxu0 0.0
    %4995 = vmatpush.xpose.msra.mxu0 0.0
    %4996 = vmatpush.xpose.msra.mxu0 0.0
    %v4997 = vand.u32 %v457, 4294901760
    %4998 = vmatpush.xpose.msra.mxu0 %v4997
    %v4999 = vand.u32 %v327, 4294901760
    %v5000 = vsub.f32 %v327, %v4999
    %v5001 = vand.u32 %v5000, 4294901760
    %5002 = vmatmul.f32.gmra.mxu0 %v5001
    %v5003 = vpop.f32.mrf.mxu0
    %v5004 = vadd.f32 %v4980, %v5003
    %5005 = vdwg.mxu0
    %5006 = vmatpush.xpose.msra.mxu0 0.0
    %5007 = vmatpush.xpose.msra.mxu0 0.0
    %5008 = vmatpush.xpose.msra.mxu0 0.0
    %5009 = vmatpush.xpose.msra.mxu0 0.0
    %5010 = vmatpush.xpose.msra.mxu0 0.0
    %5011 = vmatpush.xpose.msra.mxu0 0.0
    %5012 = vmatpush.xpose.msra.mxu0 0.0
    %5013 = vmatpush.xpose.msra.mxu0 0.0
    %5014 = vmatpush.xpose.msra.mxu0 0.0
    %5015 = vmatpush.xpose.msra.mxu0 0.0
    %5016 = vmatpush.xpose.msra.mxu0 0.0
    %5017 = vmatpush.xpose.msra.mxu0 0.0
    %5018 = vmatpush.xpose.msra.mxu0 0.0
    %5019 = vmatpush.xpose.msra.mxu0 0.0
    %5020 = vmatpush.xpose.msra.mxu0 0.0
    %v5021 = vand.u32 %v457, 4294901760
    %v5022 = vsub.f32 %v457, %v5021
    %v5023 = vand.u32 %v5022, 4294901760
    %5024 = vmatpush.xpose.msra.mxu0 %v5023
    %v5025 = vand.u32 %v327, 4294901760
    %5026 = vmatmul.f32.gmra.mxu0 %v5025
    %v5027 = vpop.f32.mrf.mxu0
    %v5028 = vadd.f32 %v5004, %v5027
    %5029 = vdwg.mxu0
    %5030 = vmatpush.xpose.msra.mxu0 0.0
    %5031 = vmatpush.xpose.msra.mxu0 0.0
    %5032 = vmatpush.xpose.msra.mxu0 0.0
    %5033 = vmatpush.xpose.msra.mxu0 0.0
    %5034 = vmatpush.xpose.msra.mxu0 0.0
    %5035 = vmatpush.xpose.msra.mxu0 0.0
    %5036 = vmatpush.xpose.msra.mxu0 0.0
    %5037 = vmatpush.xpose.msra.mxu0 0.0
    %5038 = vmatpush.xpose.msra.mxu0 0.0
    %5039 = vmatpush.xpose.msra.mxu0 0.0
    %5040 = vmatpush.xpose.msra.mxu0 0.0
    %5041 = vmatpush.xpose.msra.mxu0 0.0
    %5042 = vmatpush.xpose.msra.mxu0 0.0
    %5043 = vmatpush.xpose.msra.mxu0 0.0
    %5044 = vmatpush.xpose.msra.mxu0 0.0
    %v5045 = vand.u32 %v457, 4294901760
    %5046 = vmatpush.xpose.msra.mxu0 %v5045
    %v5047 = vand.u32 %v327, 4294901760
    %5048 = vmatmul.f32.gmra.mxu0 %v5047
    %v5049 = vpop.f32.mrf.mxu0
    %v5050 = vadd.f32 %v5028, %v5049
    %5051 = vdwg.mxu0
    %5052 = vmatpush.xpose.msra.mxu0 0.0
    %5053 = vmatpush.xpose.msra.mxu0 0.0
    %5054 = vmatpush.xpose.msra.mxu0 0.0
    %5055 = vmatpush.xpose.msra.mxu0 0.0
    %5056 = vmatpush.xpose.msra.mxu0 0.0
    %5057 = vmatpush.xpose.msra.mxu0 0.0
    %5058 = vmatpush.xpose.msra.mxu0 0.0
    %5059 = vmatpush.xpose.msra.mxu0 0.0
    %5060 = vmatpush.xpose.msra.mxu0 0.0
    %5061 = vmatpush.xpose.msra.mxu0 0.0
    %5062 = vmatpush.xpose.msra.mxu0 0.0
    %5063 = vmatpush.xpose.msra.mxu0 0.0
    %5064 = vmatpush.xpose.msra.mxu0 0.0
    %5065 = vmatpush.xpose.msra.mxu0 0.0
    %5066 = vmatpush.xpose.msra.mxu0 0.0
    %v5067 = vand.u32 %v458, 4294901760
    %5068 = vmatpush.xpose.msra.mxu0 %v5067
    %v5069 = vand.u32 %v328, 4294901760
    %v5070 = vsub.f32 %v328, %v5069
    %v5071 = vand.u32 %v5070, 4294901760
    %v5072 = vsub.f32 %v5070, %v5071
    %v5073 = vand.u32 %v5072, 4294901760
    %5074 = vmatmul.f32.gmra.mxu0 %v5073
    %v5075 = vpop.f32.mrf.mxu0
    %v5076 = vadd.f32 %v5050, %v5075
    %5077 = vdwg.mxu0
    %5078 = vmatpush.xpose.msra.mxu0 0.0
    %5079 = vmatpush.xpose.msra.mxu0 0.0
    %5080 = vmatpush.xpose.msra.mxu0 0.0
    %5081 = vmatpush.xpose.msra.mxu0 0.0
    %5082 = vmatpush.xpose.msra.mxu0 0.0
    %5083 = vmatpush.xpose.msra.mxu0 0.0
    %5084 = vmatpush.xpose.msra.mxu0 0.0
    %5085 = vmatpush.xpose.msra.mxu0 0.0
    %5086 = vmatpush.xpose.msra.mxu0 0.0
    %5087 = vmatpush.xpose.msra.mxu0 0.0
    %5088 = vmatpush.xpose.msra.mxu0 0.0
    %5089 = vmatpush.xpose.msra.mxu0 0.0
    %5090 = vmatpush.xpose.msra.mxu0 0.0
    %5091 = vmatpush.xpose.msra.mxu0 0.0
    %5092 = vmatpush.xpose.msra.mxu0 0.0
    %v5093 = vand.u32 %v458, 4294901760
    %v5094 = vsub.f32 %v458, %v5093
    %v5095 = vand.u32 %v5094, 4294901760
    %v5096 = vsub.f32 %v5094, %v5095
    %v5097 = vand.u32 %v5096, 4294901760
    %5098 = vmatpush.xpose.msra.mxu0 %v5097
    %v5099 = vand.u32 %v328, 4294901760
    %5100 = vmatmul.f32.gmra.mxu0 %v5099
    %v5101 = vpop.f32.mrf.mxu0
    %v5102 = vadd.f32 %v5076, %v5101
    %5103 = vdwg.mxu0
    %5104 = vmatpush.xpose.msra.mxu0 0.0
    %5105 = vmatpush.xpose.msra.mxu0 0.0
    %5106 = vmatpush.xpose.msra.mxu0 0.0
    %5107 = vmatpush.xpose.msra.mxu0 0.0
    %5108 = vmatpush.xpose.msra.mxu0 0.0
    %5109 = vmatpush.xpose.msra.mxu0 0.0
    %5110 = vmatpush.xpose.msra.mxu0 0.0
    %5111 = vmatpush.xpose.msra.mxu0 0.0
    %5112 = vmatpush.xpose.msra.mxu0 0.0
    %5113 = vmatpush.xpose.msra.mxu0 0.0
    %5114 = vmatpush.xpose.msra.mxu0 0.0
    %5115 = vmatpush.xpose.msra.mxu0 0.0
    %5116 = vmatpush.xpose.msra.mxu0 0.0
    %5117 = vmatpush.xpose.msra.mxu0 0.0
    %5118 = vmatpush.xpose.msra.mxu0 0.0
    %v5119 = vand.u32 %v458, 4294901760
    %v5120 = vsub.f32 %v458, %v5119
    %5121 = vmatpush.xpose.msra.mxu0 %v5120
    %v5122 = vand.u32 %v328, 4294901760
    %v5123 = vsub.f32 %v328, %v5122
    %5124 = vmatmul.f32.gmra.mxu0 %v5123
    %v5125 = vpop.f32.mrf.mxu0
    %v5126 = vadd.f32 %v5102, %v5125
    %5127 = vdwg.mxu0
    %5128 = vmatpush.xpose.msra.mxu0 0.0
    %5129 = vmatpush.xpose.msra.mxu0 0.0
    %5130 = vmatpush.xpose.msra.mxu0 0.0
    %5131 = vmatpush.xpose.msra.mxu0 0.0
    %5132 = vmatpush.xpose.msra.mxu0 0.0
    %5133 = vmatpush.xpose.msra.mxu0 0.0
    %5134 = vmatpush.xpose.msra.mxu0 0.0
    %5135 = vmatpush.xpose.msra.mxu0 0.0
    %5136 = vmatpush.xpose.msra.mxu0 0.0
    %5137 = vmatpush.xpose.msra.mxu0 0.0
    %5138 = vmatpush.xpose.msra.mxu0 0.0
    %5139 = vmatpush.xpose.msra.mxu0 0.0
    %5140 = vmatpush.xpose.msra.mxu0 0.0
    %5141 = vmatpush.xpose.msra.mxu0 0.0
    %5142 = vmatpush.xpose.msra.mxu0 0.0
    %v5143 = vand.u32 %v458, 4294901760
    %5144 = vmatpush.xpose.msra.mxu0 %v5143
    %v5145 = vand.u32 %v328, 4294901760
    %v5146 = vsub.f32 %v328, %v5145
    %v5147 = vand.u32 %v5146, 4294901760
    %5148 = vmatmul.f32.gmra.mxu0 %v5147
    %v5149 = vpop.f32.mrf.mxu0
    %v5150 = vadd.f32 %v5126, %v5149
    %5151 = vdwg.mxu0
    %5152 = vmatpush.xpose.msra.mxu0 0.0
    %5153 = vmatpush.xpose.msra.mxu0 0.0
    %5154 = vmatpush.xpose.msra.mxu0 0.0
    %5155 = vmatpush.xpose.msra.mxu0 0.0
    %5156 = vmatpush.xpose.msra.mxu0 0.0
    %5157 = vmatpush.xpose.msra.mxu0 0.0
    %5158 = vmatpush.xpose.msra.mxu0 0.0
    %5159 = vmatpush.xpose.msra.mxu0 0.0
    %5160 = vmatpush.xpose.msra.mxu0 0.0
    %5161 = vmatpush.xpose.msra.mxu0 0.0
    %5162 = vmatpush.xpose.msra.mxu0 0.0
    %5163 = vmatpush.xpose.msra.mxu0 0.0
    %5164 = vmatpush.xpose.msra.mxu0 0.0
    %5165 = vmatpush.xpose.msra.mxu0 0.0
    %5166 = vmatpush.xpose.msra.mxu0 0.0
    %v5167 = vand.u32 %v458, 4294901760
    %v5168 = vsub.f32 %v458, %v5167
    %v5169 = vand.u32 %v5168, 4294901760
    %5170 = vmatpush.xpose.msra.mxu0 %v5169
    %v5171 = vand.u32 %v328, 4294901760
    %5172 = vmatmul.f32.gmra.mxu0 %v5171
    %v5173 = vpop.f32.mrf.mxu0
    %v5174 = vadd.f32 %v5150, %v5173
    %5175 = vdwg.mxu0
    %5176 = vmatpush.xpose.msra.mxu0 0.0
    %5177 = vmatpush.xpose.msra.mxu0 0.0
    %5178 = vmatpush.xpose.msra.mxu0 0.0
    %5179 = vmatpush.xpose.msra.mxu0 0.0
    %5180 = vmatpush.xpose.msra.mxu0 0.0
    %5181 = vmatpush.xpose.msra.mxu0 0.0
    %5182 = vmatpush.xpose.msra.mxu0 0.0
    %5183 = vmatpush.xpose.msra.mxu0 0.0
    %5184 = vmatpush.xpose.msra.mxu0 0.0
    %5185 = vmatpush.xpose.msra.mxu0 0.0
    %5186 = vmatpush.xpose.msra.mxu0 0.0
    %5187 = vmatpush.xpose.msra.mxu0 0.0
    %5188 = vmatpush.xpose.msra.mxu0 0.0
    %5189 = vmatpush.xpose.msra.mxu0 0.0
    %5190 = vmatpush.xpose.msra.mxu0 0.0
    %v5191 = vand.u32 %v458, 4294901760
    %5192 = vmatpush.xpose.msra.mxu0 %v5191
    %v5193 = vand.u32 %v328, 4294901760
    %5194 = vmatmul.f32.gmra.mxu0 %v5193
    %v5195 = vpop.f32.mrf.mxu0
    %v5196 = vadd.f32 %v5174, %v5195
    %5197 = vdwg.mxu0
    %5198 = vmatpush.xpose.msra.mxu0 0.0
    %5199 = vmatpush.xpose.msra.mxu0 0.0
    %5200 = vmatpush.xpose.msra.mxu0 0.0
    %5201 = vmatpush.xpose.msra.mxu0 0.0
    %5202 = vmatpush.xpose.msra.mxu0 0.0
    %5203 = vmatpush.xpose.msra.mxu0 0.0
    %5204 = vmatpush.xpose.msra.mxu0 0.0
    %5205 = vmatpush.xpose.msra.mxu0 0.0
    %5206 = vmatpush.xpose.msra.mxu0 0.0
    %5207 = vmatpush.xpose.msra.mxu0 0.0
    %5208 = vmatpush.xpose.msra.mxu0 0.0
    %5209 = vmatpush.xpose.msra.mxu0 0.0
    %5210 = vmatpush.xpose.msra.mxu0 0.0
    %5211 = vmatpush.xpose.msra.mxu0 0.0
    %5212 = vmatpush.xpose.msra.mxu0 0.0
    %v5213 = vand.u32 %v459, 4294901760
    %5214 = vmatpush.xpose.msra.mxu0 %v5213
    %v5215 = vand.u32 %v329, 4294901760
    %v5216 = vsub.f32 %v329, %v5215
    %v5217 = vand.u32 %v5216, 4294901760
    %v5218 = vsub.f32 %v5216, %v5217
    %v5219 = vand.u32 %v5218, 4294901760
    %5220 = vmatmul.f32.gmra.mxu0 %v5219
    %v5221 = vpop.f32.mrf.mxu0
    %v5222 = vadd.f32 %v5196, %v5221
    %5223 = vdwg.mxu0
    %5224 = vmatpush.xpose.msra.mxu0 0.0
    %5225 = vmatpush.xpose.msra.mxu0 0.0
    %5226 = vmatpush.xpose.msra.mxu0 0.0
    %5227 = vmatpush.xpose.msra.mxu0 0.0
    %5228 = vmatpush.xpose.msra.mxu0 0.0
    %5229 = vmatpush.xpose.msra.mxu0 0.0
    %5230 = vmatpush.xpose.msra.mxu0 0.0
    %5231 = vmatpush.xpose.msra.mxu0 0.0
    %5232 = vmatpush.xpose.msra.mxu0 0.0
    %5233 = vmatpush.xpose.msra.mxu0 0.0
    %5234 = vmatpush.xpose.msra.mxu0 0.0
    %5235 = vmatpush.xpose.msra.mxu0 0.0
    %5236 = vmatpush.xpose.msra.mxu0 0.0
    %5237 = vmatpush.xpose.msra.mxu0 0.0
    %5238 = vmatpush.xpose.msra.mxu0 0.0
    %v5239 = vand.u32 %v459, 4294901760
    %v5240 = vsub.f32 %v459, %v5239
    %v5241 = vand.u32 %v5240, 4294901760
    %v5242 = vsub.f32 %v5240, %v5241
    %v5243 = vand.u32 %v5242, 4294901760
    %5244 = vmatpush.xpose.msra.mxu0 %v5243
    %v5245 = vand.u32 %v329, 4294901760
    %5246 = vmatmul.f32.gmra.mxu0 %v5245
    %v5247 = vpop.f32.mrf.mxu0
    %v5248 = vadd.f32 %v5222, %v5247
    %5249 = vdwg.mxu0
    %5250 = vmatpush.xpose.msra.mxu0 0.0
    %5251 = vmatpush.xpose.msra.mxu0 0.0
    %5252 = vmatpush.xpose.msra.mxu0 0.0
    %5253 = vmatpush.xpose.msra.mxu0 0.0
    %5254 = vmatpush.xpose.msra.mxu0 0.0
    %5255 = vmatpush.xpose.msra.mxu0 0.0
    %5256 = vmatpush.xpose.msra.mxu0 0.0
    %5257 = vmatpush.xpose.msra.mxu0 0.0
    %5258 = vmatpush.xpose.msra.mxu0 0.0
    %5259 = vmatpush.xpose.msra.mxu0 0.0
    %5260 = vmatpush.xpose.msra.mxu0 0.0
    %5261 = vmatpush.xpose.msra.mxu0 0.0
    %5262 = vmatpush.xpose.msra.mxu0 0.0
    %5263 = vmatpush.xpose.msra.mxu0 0.0
    %5264 = vmatpush.xpose.msra.mxu0 0.0
    %v5265 = vand.u32 %v459, 4294901760
    %v5266 = vsub.f32 %v459, %v5265
    %5267 = vmatpush.xpose.msra.mxu0 %v5266
    %v5268 = vand.u32 %v329, 4294901760
    %v5269 = vsub.f32 %v329, %v5268
    %5270 = vmatmul.f32.gmra.mxu0 %v5269
    %v5271 = vpop.f32.mrf.mxu0
    %v5272 = vadd.f32 %v5248, %v5271
    %5273 = vdwg.mxu0
    %5274 = vmatpush.xpose.msra.mxu0 0.0
    %5275 = vmatpush.xpose.msra.mxu0 0.0
    %5276 = vmatpush.xpose.msra.mxu0 0.0
    %5277 = vmatpush.xpose.msra.mxu0 0.0
    %5278 = vmatpush.xpose.msra.mxu0 0.0
    %5279 = vmatpush.xpose.msra.mxu0 0.0
    %5280 = vmatpush.xpose.msra.mxu0 0.0
    %5281 = vmatpush.xpose.msra.mxu0 0.0
    %5282 = vmatpush.xpose.msra.mxu0 0.0
    %5283 = vmatpush.xpose.msra.mxu0 0.0
    %5284 = vmatpush.xpose.msra.mxu0 0.0
    %5285 = vmatpush.xpose.msra.mxu0 0.0
    %5286 = vmatpush.xpose.msra.mxu0 0.0
    %5287 = vmatpush.xpose.msra.mxu0 0.0
    %5288 = vmatpush.xpose.msra.mxu0 0.0
    %v5289 = vand.u32 %v459, 4294901760
    %5290 = vmatpush.xpose.msra.mxu0 %v5289
    %v5291 = vand.u32 %v329, 4294901760
    %v5292 = vsub.f32 %v329, %v5291
    %v5293 = vand.u32 %v5292, 4294901760
    %5294 = vmatmul.f32.gmra.mxu0 %v5293
    %v5295 = vpop.f32.mrf.mxu0
    %v5296 = vadd.f32 %v5272, %v5295
    %5297 = vdwg.mxu0
    %5298 = vmatpush.xpose.msra.mxu0 0.0
    %5299 = vmatpush.xpose.msra.mxu0 0.0
    %5300 = vmatpush.xpose.msra.mxu0 0.0
    %5301 = vmatpush.xpose.msra.mxu0 0.0
    %5302 = vmatpush.xpose.msra.mxu0 0.0
    %5303 = vmatpush.xpose.msra.mxu0 0.0
    %5304 = vmatpush.xpose.msra.mxu0 0.0
    %5305 = vmatpush.xpose.msra.mxu0 0.0
    %5306 = vmatpush.xpose.msra.mxu0 0.0
    %5307 = vmatpush.xpose.msra.mxu0 0.0
    %5308 = vmatpush.xpose.msra.mxu0 0.0
    %5309 = vmatpush.xpose.msra.mxu0 0.0
    %5310 = vmatpush.xpose.msra.mxu0 0.0
    %5311 = vmatpush.xpose.msra.mxu0 0.0
    %5312 = vmatpush.xpose.msra.mxu0 0.0
    %v5313 = vand.u32 %v459, 4294901760
    %v5314 = vsub.f32 %v459, %v5313
    %v5315 = vand.u32 %v5314, 4294901760
    %5316 = vmatpush.xpose.msra.mxu0 %v5315
    %v5317 = vand.u32 %v329, 4294901760
    %5318 = vmatmul.f32.gmra.mxu0 %v5317
    %v5319 = vpop.f32.mrf.mxu0
    %v5320 = vadd.f32 %v5296, %v5319
    %5321 = vdwg.mxu0
    %5322 = vmatpush.xpose.msra.mxu0 0.0
    %5323 = vmatpush.xpose.msra.mxu0 0.0
    %5324 = vmatpush.xpose.msra.mxu0 0.0
    %5325 = vmatpush.xpose.msra.mxu0 0.0
    %5326 = vmatpush.xpose.msra.mxu0 0.0
    %5327 = vmatpush.xpose.msra.mxu0 0.0
    %5328 = vmatpush.xpose.msra.mxu0 0.0
    %5329 = vmatpush.xpose.msra.mxu0 0.0
    %5330 = vmatpush.xpose.msra.mxu0 0.0
    %5331 = vmatpush.xpose.msra.mxu0 0.0
    %5332 = vmatpush.xpose.msra.mxu0 0.0
    %5333 = vmatpush.xpose.msra.mxu0 0.0
    %5334 = vmatpush.xpose.msra.mxu0 0.0
    %5335 = vmatpush.xpose.msra.mxu0 0.0
    %5336 = vmatpush.xpose.msra.mxu0 0.0
    %v5337 = vand.u32 %v459, 4294901760
    %5338 = vmatpush.xpose.msra.mxu0 %v5337
    %v5339 = vand.u32 %v329, 4294901760
    %5340 = vmatmul.f32.gmra.mxu0 %v5339
    %v5341 = vpop.f32.mrf.mxu0
    %v5342 = vadd.f32 %v5320, %v5341
    %5343 = vdwg.mxu0
    %5344 = vmatpush.xpose.msra.mxu0 0.0
    %5345 = vmatpush.xpose.msra.mxu0 0.0
    %5346 = vmatpush.xpose.msra.mxu0 0.0
    %5347 = vmatpush.xpose.msra.mxu0 0.0
    %5348 = vmatpush.xpose.msra.mxu0 0.0
    %5349 = vmatpush.xpose.msra.mxu0 0.0
    %5350 = vmatpush.xpose.msra.mxu0 0.0
    %5351 = vmatpush.xpose.msra.mxu0 0.0
    %5352 = vmatpush.xpose.msra.mxu0 0.0
    %5353 = vmatpush.xpose.msra.mxu0 0.0
    %5354 = vmatpush.xpose.msra.mxu0 0.0
    %5355 = vmatpush.xpose.msra.mxu0 0.0
    %5356 = vmatpush.xpose.msra.mxu0 0.0
    %5357 = vmatpush.xpose.msra.mxu0 0.0
    %5358 = vmatpush.xpose.msra.mxu0 0.0
    %v5359 = vand.u32 %v460, 4294901760
    %5360 = vmatpush.xpose.msra.mxu0 %v5359
    %v5361 = vand.u32 %v330, 4294901760
    %v5362 = vsub.f32 %v330, %v5361
    %v5363 = vand.u32 %v5362, 4294901760
    %v5364 = vsub.f32 %v5362, %v5363
    %v5365 = vand.u32 %v5364, 4294901760
    %5366 = vmatmul.f32.gmra.mxu0 %v5365
    %v5367 = vpop.f32.mrf.mxu0
    %v5368 = vadd.f32 %v5342, %v5367
    %5369 = vdwg.mxu0
    %5370 = vmatpush.xpose.msra.mxu0 0.0
    %5371 = vmatpush.xpose.msra.mxu0 0.0
    %5372 = vmatpush.xpose.msra.mxu0 0.0
    %5373 = vmatpush.xpose.msra.mxu0 0.0
    %5374 = vmatpush.xpose.msra.mxu0 0.0
    %5375 = vmatpush.xpose.msra.mxu0 0.0
    %5376 = vmatpush.xpose.msra.mxu0 0.0
    %5377 = vmatpush.xpose.msra.mxu0 0.0
    %5378 = vmatpush.xpose.msra.mxu0 0.0
    %5379 = vmatpush.xpose.msra.mxu0 0.0
    %5380 = vmatpush.xpose.msra.mxu0 0.0
    %5381 = vmatpush.xpose.msra.mxu0 0.0
    %5382 = vmatpush.xpose.msra.mxu0 0.0
    %5383 = vmatpush.xpose.msra.mxu0 0.0
    %5384 = vmatpush.xpose.msra.mxu0 0.0
    %v5385 = vand.u32 %v460, 4294901760
    %v5386 = vsub.f32 %v460, %v5385
    %v5387 = vand.u32 %v5386, 4294901760
    %v5388 = vsub.f32 %v5386, %v5387
    %v5389 = vand.u32 %v5388, 4294901760
    %5390 = vmatpush.xpose.msra.mxu0 %v5389
    %v5391 = vand.u32 %v330, 4294901760
    %5392 = vmatmul.f32.gmra.mxu0 %v5391
    %v5393 = vpop.f32.mrf.mxu0
    %v5394 = vadd.f32 %v5368, %v5393
    %5395 = vdwg.mxu0
    %5396 = vmatpush.xpose.msra.mxu0 0.0
    %5397 = vmatpush.xpose.msra.mxu0 0.0
    %5398 = vmatpush.xpose.msra.mxu0 0.0
    %5399 = vmatpush.xpose.msra.mxu0 0.0
    %5400 = vmatpush.xpose.msra.mxu0 0.0
    %5401 = vmatpush.xpose.msra.mxu0 0.0
    %5402 = vmatpush.xpose.msra.mxu0 0.0
    %5403 = vmatpush.xpose.msra.mxu0 0.0
    %5404 = vmatpush.xpose.msra.mxu0 0.0
    %5405 = vmatpush.xpose.msra.mxu0 0.0
    %5406 = vmatpush.xpose.msra.mxu0 0.0
    %5407 = vmatpush.xpose.msra.mxu0 0.0
    %5408 = vmatpush.xpose.msra.mxu0 0.0
    %5409 = vmatpush.xpose.msra.mxu0 0.0
    %5410 = vmatpush.xpose.msra.mxu0 0.0
    %v5411 = vand.u32 %v460, 4294901760
    %v5412 = vsub.f32 %v460, %v5411
    %5413 = vmatpush.xpose.msra.mxu0 %v5412
    %v5414 = vand.u32 %v330, 4294901760
    %v5415 = vsub.f32 %v330, %v5414
    %5416 = vmatmul.f32.gmra.mxu0 %v5415
    %v5417 = vpop.f32.mrf.mxu0
    %v5418 = vadd.f32 %v5394, %v5417
    %5419 = vdwg.mxu0
    %5420 = vmatpush.xpose.msra.mxu0 0.0
    %5421 = vmatpush.xpose.msra.mxu0 0.0
    %5422 = vmatpush.xpose.msra.mxu0 0.0
    %5423 = vmatpush.xpose.msra.mxu0 0.0
    %5424 = vmatpush.xpose.msra.mxu0 0.0
    %5425 = vmatpush.xpose.msra.mxu0 0.0
    %5426 = vmatpush.xpose.msra.mxu0 0.0
    %5427 = vmatpush.xpose.msra.mxu0 0.0
    %5428 = vmatpush.xpose.msra.mxu0 0.0
    %5429 = vmatpush.xpose.msra.mxu0 0.0
    %5430 = vmatpush.xpose.msra.mxu0 0.0
    %5431 = vmatpush.xpose.msra.mxu0 0.0
    %5432 = vmatpush.xpose.msra.mxu0 0.0
    %5433 = vmatpush.xpose.msra.mxu0 0.0
    %5434 = vmatpush.xpose.msra.mxu0 0.0
    %v5435 = vand.u32 %v460, 4294901760
    %5436 = vmatpush.xpose.msra.mxu0 %v5435
    %v5437 = vand.u32 %v330, 4294901760
    %v5438 = vsub.f32 %v330, %v5437
    %v5439 = vand.u32 %v5438, 4294901760
    %5440 = vmatmul.f32.gmra.mxu0 %v5439
    %v5441 = vpop.f32.mrf.mxu0
    %v5442 = vadd.f32 %v5418, %v5441
    %5443 = vdwg.mxu0
    %5444 = vmatpush.xpose.msra.mxu0 0.0
    %5445 = vmatpush.xpose.msra.mxu0 0.0
    %5446 = vmatpush.xpose.msra.mxu0 0.0
    %5447 = vmatpush.xpose.msra.mxu0 0.0
    %5448 = vmatpush.xpose.msra.mxu0 0.0
    %5449 = vmatpush.xpose.msra.mxu0 0.0
    %5450 = vmatpush.xpose.msra.mxu0 0.0
    %5451 = vmatpush.xpose.msra.mxu0 0.0
    %5452 = vmatpush.xpose.msra.mxu0 0.0
    %5453 = vmatpush.xpose.msra.mxu0 0.0
    %5454 = vmatpush.xpose.msra.mxu0 0.0
    %5455 = vmatpush.xpose.msra.mxu0 0.0
    %5456 = vmatpush.xpose.msra.mxu0 0.0
    %5457 = vmatpush.xpose.msra.mxu0 0.0
    %5458 = vmatpush.xpose.msra.mxu0 0.0
    %v5459 = vand.u32 %v460, 4294901760
    %v5460 = vsub.f32 %v460, %v5459
    %v5461 = vand.u32 %v5460, 4294901760
    %5462 = vmatpush.xpose.msra.mxu0 %v5461
    %v5463 = vand.u32 %v330, 4294901760
    %5464 = vmatmul.f32.gmra.mxu0 %v5463
    %v5465 = vpop.f32.mrf.mxu0
    %v5466 = vadd.f32 %v5442, %v5465
    %5467 = vdwg.mxu0
    %5468 = vmatpush.xpose.msra.mxu0 0.0
    %5469 = vmatpush.xpose.msra.mxu0 0.0
    %5470 = vmatpush.xpose.msra.mxu0 0.0
    %5471 = vmatpush.xpose.msra.mxu0 0.0
    %5472 = vmatpush.xpose.msra.mxu0 0.0
    %5473 = vmatpush.xpose.msra.mxu0 0.0
    %5474 = vmatpush.xpose.msra.mxu0 0.0
    %5475 = vmatpush.xpose.msra.mxu0 0.0
    %5476 = vmatpush.xpose.msra.mxu0 0.0
    %5477 = vmatpush.xpose.msra.mxu0 0.0
    %5478 = vmatpush.xpose.msra.mxu0 0.0
    %5479 = vmatpush.xpose.msra.mxu0 0.0
    %5480 = vmatpush.xpose.msra.mxu0 0.0
    %5481 = vmatpush.xpose.msra.mxu0 0.0
    %5482 = vmatpush.xpose.msra.mxu0 0.0
    %v5483 = vand.u32 %v460, 4294901760
    %5484 = vmatpush.xpose.msra.mxu0 %v5483
    %v5485 = vand.u32 %v330, 4294901760
    %5486 = vmatmul.f32.gmra.mxu0 %v5485
    %v5487 = vpop.f32.mrf.mxu0
    %v5488 = vadd.f32 %v5466, %v5487
    %5489 = vdwg.mxu0
    %5490 = vmatpush.xpose.msra.mxu0 0.0
    %5491 = vmatpush.xpose.msra.mxu0 0.0
    %5492 = vmatpush.xpose.msra.mxu0 0.0
    %5493 = vmatpush.xpose.msra.mxu0 0.0
    %5494 = vmatpush.xpose.msra.mxu0 0.0
    %5495 = vmatpush.xpose.msra.mxu0 0.0
    %5496 = vmatpush.xpose.msra.mxu0 0.0
    %5497 = vmatpush.xpose.msra.mxu0 0.0
    %5498 = vmatpush.xpose.msra.mxu0 0.0
    %5499 = vmatpush.xpose.msra.mxu0 0.0
    %5500 = vmatpush.xpose.msra.mxu0 0.0
    %5501 = vmatpush.xpose.msra.mxu0 0.0
    %5502 = vmatpush.xpose.msra.mxu0 0.0
    %5503 = vmatpush.xpose.msra.mxu0 0.0
    %5504 = vmatpush.xpose.msra.mxu0 0.0
    %v5505 = vand.u32 %v461, 4294901760
    %5506 = vmatpush.xpose.msra.mxu0 %v5505
    %v5507 = vand.u32 %v331, 4294901760
    %v5508 = vsub.f32 %v331, %v5507
    %v5509 = vand.u32 %v5508, 4294901760
    %v5510 = vsub.f32 %v5508, %v5509
    %v5511 = vand.u32 %v5510, 4294901760
    %5512 = vmatmul.f32.gmra.mxu0 %v5511
    %v5513 = vpop.f32.mrf.mxu0
    %v5514 = vadd.f32 %v5488, %v5513
    %5515 = vdwg.mxu0
    %5516 = vmatpush.xpose.msra.mxu0 0.0
    %5517 = vmatpush.xpose.msra.mxu0 0.0
    %5518 = vmatpush.xpose.msra.mxu0 0.0
    %5519 = vmatpush.xpose.msra.mxu0 0.0
    %5520 = vmatpush.xpose.msra.mxu0 0.0
    %5521 = vmatpush.xpose.msra.mxu0 0.0
    %5522 = vmatpush.xpose.msra.mxu0 0.0
    %5523 = vmatpush.xpose.msra.mxu0 0.0
    %5524 = vmatpush.xpose.msra.mxu0 0.0
    %5525 = vmatpush.xpose.msra.mxu0 0.0
    %5526 = vmatpush.xpose.msra.mxu0 0.0
    %5527 = vmatpush.xpose.msra.mxu0 0.0
    %5528 = vmatpush.xpose.msra.mxu0 0.0
    %5529 = vmatpush.xpose.msra.mxu0 0.0
    %5530 = vmatpush.xpose.msra.mxu0 0.0
    %v5531 = vand.u32 %v461, 4294901760
    %v5532 = vsub.f32 %v461, %v5531
    %v5533 = vand.u32 %v5532, 4294901760
    %v5534 = vsub.f32 %v5532, %v5533
    %v5535 = vand.u32 %v5534, 4294901760
    %5536 = vmatpush.xpose.msra.mxu0 %v5535
    %v5537 = vand.u32 %v331, 4294901760
    %5538 = vmatmul.f32.gmra.mxu0 %v5537
    %v5539 = vpop.f32.mrf.mxu0
    %v5540 = vadd.f32 %v5514, %v5539
    %5541 = vdwg.mxu0
    %5542 = vmatpush.xpose.msra.mxu0 0.0
    %5543 = vmatpush.xpose.msra.mxu0 0.0
    %5544 = vmatpush.xpose.msra.mxu0 0.0
    %5545 = vmatpush.xpose.msra.mxu0 0.0
    %5546 = vmatpush.xpose.msra.mxu0 0.0
    %5547 = vmatpush.xpose.msra.mxu0 0.0
    %5548 = vmatpush.xpose.msra.mxu0 0.0
    %5549 = vmatpush.xpose.msra.mxu0 0.0
    %5550 = vmatpush.xpose.msra.mxu0 0.0
    %5551 = vmatpush.xpose.msra.mxu0 0.0
    %5552 = vmatpush.xpose.msra.mxu0 0.0
    %5553 = vmatpush.xpose.msra.mxu0 0.0
    %5554 = vmatpush.xpose.msra.mxu0 0.0
    %5555 = vmatpush.xpose.msra.mxu0 0.0
    %5556 = vmatpush.xpose.msra.mxu0 0.0
    %v5557 = vand.u32 %v461, 4294901760
    %v5558 = vsub.f32 %v461, %v5557
    %5559 = vmatpush.xpose.msra.mxu0 %v5558
    %v5560 = vand.u32 %v331, 4294901760
    %v5561 = vsub.f32 %v331, %v5560
    %5562 = vmatmul.f32.gmra.mxu0 %v5561
    %v5563 = vpop.f32.mrf.mxu0
    %v5564 = vadd.f32 %v5540, %v5563
    %5565 = vdwg.mxu0
    %5566 = vmatpush.xpose.msra.mxu0 0.0
    %5567 = vmatpush.xpose.msra.mxu0 0.0
    %5568 = vmatpush.xpose.msra.mxu0 0.0
    %5569 = vmatpush.xpose.msra.mxu0 0.0
    %5570 = vmatpush.xpose.msra.mxu0 0.0
    %5571 = vmatpush.xpose.msra.mxu0 0.0
    %5572 = vmatpush.xpose.msra.mxu0 0.0
    %5573 = vmatpush.xpose.msra.mxu0 0.0
    %5574 = vmatpush.xpose.msra.mxu0 0.0
    %5575 = vmatpush.xpose.msra.mxu0 0.0
    %5576 = vmatpush.xpose.msra.mxu0 0.0
    %5577 = vmatpush.xpose.msra.mxu0 0.0
    %5578 = vmatpush.xpose.msra.mxu0 0.0
    %5579 = vmatpush.xpose.msra.mxu0 0.0
    %5580 = vmatpush.xpose.msra.mxu0 0.0
    %v5581 = vand.u32 %v461, 4294901760
    %5582 = vmatpush.xpose.msra.mxu0 %v5581
    %v5583 = vand.u32 %v331, 4294901760
    %v5584 = vsub.f32 %v331, %v5583
    %v5585 = vand.u32 %v5584, 4294901760
    %5586 = vmatmul.f32.gmra.mxu0 %v5585
    %v5587 = vpop.f32.mrf.mxu0
    %v5588 = vadd.f32 %v5564, %v5587
    %5589 = vdwg.mxu0
    %5590 = vmatpush.xpose.msra.mxu0 0.0
    %5591 = vmatpush.xpose.msra.mxu0 0.0
    %5592 = vmatpush.xpose.msra.mxu0 0.0
    %5593 = vmatpush.xpose.msra.mxu0 0.0
    %5594 = vmatpush.xpose.msra.mxu0 0.0
    %5595 = vmatpush.xpose.msra.mxu0 0.0
    %5596 = vmatpush.xpose.msra.mxu0 0.0
    %5597 = vmatpush.xpose.msra.mxu0 0.0
    %5598 = vmatpush.xpose.msra.mxu0 0.0
    %5599 = vmatpush.xpose.msra.mxu0 0.0
    %5600 = vmatpush.xpose.msra.mxu0 0.0
    %5601 = vmatpush.xpose.msra.mxu0 0.0
    %5602 = vmatpush.xpose.msra.mxu0 0.0
    %5603 = vmatpush.xpose.msra.mxu0 0.0
    %5604 = vmatpush.xpose.msra.mxu0 0.0
    %v5605 = vand.u32 %v461, 4294901760
    %v5606 = vsub.f32 %v461, %v5605
    %v5607 = vand.u32 %v5606, 4294901760
    %5608 = vmatpush.xpose.msra.mxu0 %v5607
    %v5609 = vand.u32 %v331, 4294901760
    %5610 = vmatmul.f32.gmra.mxu0 %v5609
    %v5611 = vpop.f32.mrf.mxu0
    %v5612 = vadd.f32 %v5588, %v5611
    %5613 = vdwg.mxu0
    %5614 = vmatpush.xpose.msra.mxu0 0.0
    %5615 = vmatpush.xpose.msra.mxu0 0.0
    %5616 = vmatpush.xpose.msra.mxu0 0.0
    %5617 = vmatpush.xpose.msra.mxu0 0.0
    %5618 = vmatpush.xpose.msra.mxu0 0.0
    %5619 = vmatpush.xpose.msra.mxu0 0.0
    %5620 = vmatpush.xpose.msra.mxu0 0.0
    %5621 = vmatpush.xpose.msra.mxu0 0.0
    %5622 = vmatpush.xpose.msra.mxu0 0.0
    %5623 = vmatpush.xpose.msra.mxu0 0.0
    %5624 = vmatpush.xpose.msra.mxu0 0.0
    %5625 = vmatpush.xpose.msra.mxu0 0.0
    %5626 = vmatpush.xpose.msra.mxu0 0.0
    %5627 = vmatpush.xpose.msra.mxu0 0.0
    %5628 = vmatpush.xpose.msra.mxu0 0.0
    %v5629 = vand.u32 %v461, 4294901760
    %5630 = vmatpush.xpose.msra.mxu0 %v5629
    %v5631 = vand.u32 %v331, 4294901760
    %5632 = vmatmul.f32.gmra.mxu0 %v5631
    %v5633 = vpop.f32.mrf.mxu0
    %v5634 = vadd.f32 %v5612, %v5633
    %5635 = vdwg.mxu0
    %5636 = vmatpush.xpose.msra.mxu0 0.0
    %5637 = vmatpush.xpose.msra.mxu0 0.0
    %5638 = vmatpush.xpose.msra.mxu0 0.0
    %5639 = vmatpush.xpose.msra.mxu0 0.0
    %5640 = vmatpush.xpose.msra.mxu0 0.0
    %5641 = vmatpush.xpose.msra.mxu0 0.0
    %5642 = vmatpush.xpose.msra.mxu0 0.0
    %5643 = vmatpush.xpose.msra.mxu0 0.0
    %5644 = vmatpush.xpose.msra.mxu0 0.0
    %5645 = vmatpush.xpose.msra.mxu0 0.0
    %5646 = vmatpush.xpose.msra.mxu0 0.0
    %5647 = vmatpush.xpose.msra.mxu0 0.0
    %5648 = vmatpush.xpose.msra.mxu0 0.0
    %5649 = vmatpush.xpose.msra.mxu0 0.0
    %5650 = vmatpush.xpose.msra.mxu0 0.0
    %v5651 = vand.u32 %v462, 4294901760
    %5652 = vmatpush.xpose.msra.mxu0 %v5651
    %v5653 = vand.u32 %v332, 4294901760
    %v5654 = vsub.f32 %v332, %v5653
    %v5655 = vand.u32 %v5654, 4294901760
    %v5656 = vsub.f32 %v5654, %v5655
    %v5657 = vand.u32 %v5656, 4294901760
    %5658 = vmatmul.f32.gmra.mxu0 %v5657
    %v5659 = vpop.f32.mrf.mxu0
    %v5660 = vadd.f32 %v5634, %v5659
    %5661 = vdwg.mxu0
    %5662 = vmatpush.xpose.msra.mxu0 0.0
    %5663 = vmatpush.xpose.msra.mxu0 0.0
    %5664 = vmatpush.xpose.msra.mxu0 0.0
    %5665 = vmatpush.xpose.msra.mxu0 0.0
    %5666 = vmatpush.xpose.msra.mxu0 0.0
    %5667 = vmatpush.xpose.msra.mxu0 0.0
    %5668 = vmatpush.xpose.msra.mxu0 0.0
    %5669 = vmatpush.xpose.msra.mxu0 0.0
    %5670 = vmatpush.xpose.msra.mxu0 0.0
    %5671 = vmatpush.xpose.msra.mxu0 0.0
    %5672 = vmatpush.xpose.msra.mxu0 0.0
    %5673 = vmatpush.xpose.msra.mxu0 0.0
    %5674 = vmatpush.xpose.msra.mxu0 0.0
    %5675 = vmatpush.xpose.msra.mxu0 0.0
    %5676 = vmatpush.xpose.msra.mxu0 0.0
    %v5677 = vand.u32 %v462, 4294901760
    %v5678 = vsub.f32 %v462, %v5677
    %v5679 = vand.u32 %v5678, 4294901760
    %v5680 = vsub.f32 %v5678, %v5679
    %v5681 = vand.u32 %v5680, 4294901760
    %5682 = vmatpush.xpose.msra.mxu0 %v5681
    %v5683 = vand.u32 %v332, 4294901760
    %5684 = vmatmul.f32.gmra.mxu0 %v5683
    %v5685 = vpop.f32.mrf.mxu0
    %v5686 = vadd.f32 %v5660, %v5685
    %5687 = vdwg.mxu0
    %5688 = vmatpush.xpose.msra.mxu0 0.0
    %5689 = vmatpush.xpose.msra.mxu0 0.0
    %5690 = vmatpush.xpose.msra.mxu0 0.0
    %5691 = vmatpush.xpose.msra.mxu0 0.0
    %5692 = vmatpush.xpose.msra.mxu0 0.0
    %5693 = vmatpush.xpose.msra.mxu0 0.0
    %5694 = vmatpush.xpose.msra.mxu0 0.0
    %5695 = vmatpush.xpose.msra.mxu0 0.0
    %5696 = vmatpush.xpose.msra.mxu0 0.0
    %5697 = vmatpush.xpose.msra.mxu0 0.0
    %5698 = vmatpush.xpose.msra.mxu0 0.0
    %5699 = vmatpush.xpose.msra.mxu0 0.0
    %5700 = vmatpush.xpose.msra.mxu0 0.0
    %5701 = vmatpush.xpose.msra.mxu0 0.0
    %5702 = vmatpush.xpose.msra.mxu0 0.0
    %v5703 = vand.u32 %v462, 4294901760
    %v5704 = vsub.f32 %v462, %v5703
    %5705 = vmatpush.xpose.msra.mxu0 %v5704
    %v5706 = vand.u32 %v332, 4294901760
    %v5707 = vsub.f32 %v332, %v5706
    %5708 = vmatmul.f32.gmra.mxu0 %v5707
    %v5709 = vpop.f32.mrf.mxu0
    %v5710 = vadd.f32 %v5686, %v5709
    %5711 = vdwg.mxu0
    %5712 = vmatpush.xpose.msra.mxu0 0.0
    %5713 = vmatpush.xpose.msra.mxu0 0.0
    %5714 = vmatpush.xpose.msra.mxu0 0.0
    %5715 = vmatpush.xpose.msra.mxu0 0.0
    %5716 = vmatpush.xpose.msra.mxu0 0.0
    %5717 = vmatpush.xpose.msra.mxu0 0.0
    %5718 = vmatpush.xpose.msra.mxu0 0.0
    %5719 = vmatpush.xpose.msra.mxu0 0.0
    %5720 = vmatpush.xpose.msra.mxu0 0.0
    %5721 = vmatpush.xpose.msra.mxu0 0.0
    %5722 = vmatpush.xpose.msra.mxu0 0.0
    %5723 = vmatpush.xpose.msra.mxu0 0.0
    %5724 = vmatpush.xpose.msra.mxu0 0.0
    %5725 = vmatpush.xpose.msra.mxu0 0.0
    %5726 = vmatpush.xpose.msra.mxu0 0.0
    %v5727 = vand.u32 %v462, 4294901760
    %5728 = vmatpush.xpose.msra.mxu0 %v5727
    %v5729 = vand.u32 %v332, 4294901760
    %v5730 = vsub.f32 %v332, %v5729
    %v5731 = vand.u32 %v5730, 4294901760
    %5732 = vmatmul.f32.gmra.mxu0 %v5731
    %v5733 = vpop.f32.mrf.mxu0
    %v5734 = vadd.f32 %v5710, %v5733
    %5735 = vdwg.mxu0
    %5736 = vmatpush.xpose.msra.mxu0 0.0
    %5737 = vmatpush.xpose.msra.mxu0 0.0
    %5738 = vmatpush.xpose.msra.mxu0 0.0
    %5739 = vmatpush.xpose.msra.mxu0 0.0
    %5740 = vmatpush.xpose.msra.mxu0 0.0
    %5741 = vmatpush.xpose.msra.mxu0 0.0
    %5742 = vmatpush.xpose.msra.mxu0 0.0
    %5743 = vmatpush.xpose.msra.mxu0 0.0
    %5744 = vmatpush.xpose.msra.mxu0 0.0
    %5745 = vmatpush.xpose.msra.mxu0 0.0
    %5746 = vmatpush.xpose.msra.mxu0 0.0
    %5747 = vmatpush.xpose.msra.mxu0 0.0
    %5748 = vmatpush.xpose.msra.mxu0 0.0
    %5749 = vmatpush.xpose.msra.mxu0 0.0
    %5750 = vmatpush.xpose.msra.mxu0 0.0
    %v5751 = vand.u32 %v462, 4294901760
    %v5752 = vsub.f32 %v462, %v5751
    %v5753 = vand.u32 %v5752, 4294901760
    %5754 = vmatpush.xpose.msra.mxu0 %v5753
    %v5755 = vand.u32 %v332, 4294901760
    %5756 = vmatmul.f32.gmra.mxu0 %v5755
    %v5757 = vpop.f32.mrf.mxu0
    %v5758 = vadd.f32 %v5734, %v5757
    %5759 = vdwg.mxu0
    %5760 = vmatpush.xpose.msra.mxu0 0.0
    %5761 = vmatpush.xpose.msra.mxu0 0.0
    %5762 = vmatpush.xpose.msra.mxu0 0.0
    %5763 = vmatpush.xpose.msra.mxu0 0.0
    %5764 = vmatpush.xpose.msra.mxu0 0.0
    %5765 = vmatpush.xpose.msra.mxu0 0.0
    %5766 = vmatpush.xpose.msra.mxu0 0.0
    %5767 = vmatpush.xpose.msra.mxu0 0.0
    %5768 = vmatpush.xpose.msra.mxu0 0.0
    %5769 = vmatpush.xpose.msra.mxu0 0.0
    %5770 = vmatpush.xpose.msra.mxu0 0.0
    %5771 = vmatpush.xpose.msra.mxu0 0.0
    %5772 = vmatpush.xpose.msra.mxu0 0.0
    %5773 = vmatpush.xpose.msra.mxu0 0.0
    %5774 = vmatpush.xpose.msra.mxu0 0.0
    %v5775 = vand.u32 %v462, 4294901760
    %5776 = vmatpush.xpose.msra.mxu0 %v5775
    %v5777 = vand.u32 %v332, 4294901760
    %5778 = vmatmul.f32.gmra.mxu0 %v5777
    %v5779 = vpop.f32.mrf.mxu0
    %v5780 = vadd.f32 %v5758, %v5779
    %5781 = vdwg.mxu0
    %5782 = vmatpush.xpose.msra.mxu0 0.0
    %5783 = vmatpush.xpose.msra.mxu0 0.0
    %5784 = vmatpush.xpose.msra.mxu0 0.0
    %5785 = vmatpush.xpose.msra.mxu0 0.0
    %5786 = vmatpush.xpose.msra.mxu0 0.0
    %5787 = vmatpush.xpose.msra.mxu0 0.0
    %5788 = vmatpush.xpose.msra.mxu0 0.0
    %5789 = vmatpush.xpose.msra.mxu0 0.0
    %5790 = vmatpush.xpose.msra.mxu0 0.0
    %5791 = vmatpush.xpose.msra.mxu0 0.0
    %5792 = vmatpush.xpose.msra.mxu0 0.0
    %5793 = vmatpush.xpose.msra.mxu0 0.0
    %5794 = vmatpush.xpose.msra.mxu0 0.0
    %5795 = vmatpush.xpose.msra.mxu0 0.0
    %5796 = vmatpush.xpose.msra.mxu0 0.0
    %v5797 = vand.u32 %v463, 4294901760
    %5798 = vmatpush.xpose.msra.mxu0 %v5797
    %v5799 = vand.u32 %v333, 4294901760
    %v5800 = vsub.f32 %v333, %v5799
    %v5801 = vand.u32 %v5800, 4294901760
    %v5802 = vsub.f32 %v5800, %v5801
    %v5803 = vand.u32 %v5802, 4294901760
    %5804 = vmatmul.f32.gmra.mxu0 %v5803
    %v5805 = vpop.f32.mrf.mxu0
    %v5806 = vadd.f32 %v5780, %v5805
    %5807 = vdwg.mxu0
    %5808 = vmatpush.xpose.msra.mxu0 0.0
    %5809 = vmatpush.xpose.msra.mxu0 0.0
    %5810 = vmatpush.xpose.msra.mxu0 0.0
    %5811 = vmatpush.xpose.msra.mxu0 0.0
    %5812 = vmatpush.xpose.msra.mxu0 0.0
    %5813 = vmatpush.xpose.msra.mxu0 0.0
    %5814 = vmatpush.xpose.msra.mxu0 0.0
    %5815 = vmatpush.xpose.msra.mxu0 0.0
    %5816 = vmatpush.xpose.msra.mxu0 0.0
    %5817 = vmatpush.xpose.msra.mxu0 0.0
    %5818 = vmatpush.xpose.msra.mxu0 0.0
    %5819 = vmatpush.xpose.msra.mxu0 0.0
    %5820 = vmatpush.xpose.msra.mxu0 0.0
    %5821 = vmatpush.xpose.msra.mxu0 0.0
    %5822 = vmatpush.xpose.msra.mxu0 0.0
    %v5823 = vand.u32 %v463, 4294901760
    %v5824 = vsub.f32 %v463, %v5823
    %v5825 = vand.u32 %v5824, 4294901760
    %v5826 = vsub.f32 %v5824, %v5825
    %v5827 = vand.u32 %v5826, 4294901760
    %5828 = vmatpush.xpose.msra.mxu0 %v5827
    %v5829 = vand.u32 %v333, 4294901760
    %5830 = vmatmul.f32.gmra.mxu0 %v5829
    %v5831 = vpop.f32.mrf.mxu0
    %v5832 = vadd.f32 %v5806, %v5831
    %5833 = vdwg.mxu0
    %5834 = vmatpush.xpose.msra.mxu0 0.0
    %5835 = vmatpush.xpose.msra.mxu0 0.0
    %5836 = vmatpush.xpose.msra.mxu0 0.0
    %5837 = vmatpush.xpose.msra.mxu0 0.0
    %5838 = vmatpush.xpose.msra.mxu0 0.0
    %5839 = vmatpush.xpose.msra.mxu0 0.0
    %5840 = vmatpush.xpose.msra.mxu0 0.0
    %5841 = vmatpush.xpose.msra.mxu0 0.0
    %5842 = vmatpush.xpose.msra.mxu0 0.0
    %5843 = vmatpush.xpose.msra.mxu0 0.0
    %5844 = vmatpush.xpose.msra.mxu0 0.0
    %5845 = vmatpush.xpose.msra.mxu0 0.0
    %5846 = vmatpush.xpose.msra.mxu0 0.0
    %5847 = vmatpush.xpose.msra.mxu0 0.0
    %5848 = vmatpush.xpose.msra.mxu0 0.0
    %v5849 = vand.u32 %v463, 4294901760
    %v5850 = vsub.f32 %v463, %v5849
    %5851 = vmatpush.xpose.msra.mxu0 %v5850
    %v5852 = vand.u32 %v333, 4294901760
    %v5853 = vsub.f32 %v333, %v5852
    %5854 = vmatmul.f32.gmra.mxu0 %v5853
    %v5855 = vpop.f32.mrf.mxu0
    %v5856 = vadd.f32 %v5832, %v5855
    %5857 = vdwg.mxu0
    %5858 = vmatpush.xpose.msra.mxu0 0.0
    %5859 = vmatpush.xpose.msra.mxu0 0.0
    %5860 = vmatpush.xpose.msra.mxu0 0.0
    %5861 = vmatpush.xpose.msra.mxu0 0.0
    %5862 = vmatpush.xpose.msra.mxu0 0.0
    %5863 = vmatpush.xpose.msra.mxu0 0.0
    %5864 = vmatpush.xpose.msra.mxu0 0.0
    %5865 = vmatpush.xpose.msra.mxu0 0.0
    %5866 = vmatpush.xpose.msra.mxu0 0.0
    %5867 = vmatpush.xpose.msra.mxu0 0.0
    %5868 = vmatpush.xpose.msra.mxu0 0.0
    %5869 = vmatpush.xpose.msra.mxu0 0.0
    %5870 = vmatpush.xpose.msra.mxu0 0.0
    %5871 = vmatpush.xpose.msra.mxu0 0.0
    %5872 = vmatpush.xpose.msra.mxu0 0.0
    %v5873 = vand.u32 %v463, 4294901760
    %5874 = vmatpush.xpose.msra.mxu0 %v5873
    %v5875 = vand.u32 %v333, 4294901760
    %v5876 = vsub.f32 %v333, %v5875
    %v5877 = vand.u32 %v5876, 4294901760
    %5878 = vmatmul.f32.gmra.mxu0 %v5877
    %v5879 = vpop.f32.mrf.mxu0
    %v5880 = vadd.f32 %v5856, %v5879
    %5881 = vdwg.mxu0
    %5882 = vmatpush.xpose.msra.mxu0 0.0
    %5883 = vmatpush.xpose.msra.mxu0 0.0
    %5884 = vmatpush.xpose.msra.mxu0 0.0
    %5885 = vmatpush.xpose.msra.mxu0 0.0
    %5886 = vmatpush.xpose.msra.mxu0 0.0
    %5887 = vmatpush.xpose.msra.mxu0 0.0
    %5888 = vmatpush.xpose.msra.mxu0 0.0
    %5889 = vmatpush.xpose.msra.mxu0 0.0
    %5890 = vmatpush.xpose.msra.mxu0 0.0
    %5891 = vmatpush.xpose.msra.mxu0 0.0
    %5892 = vmatpush.xpose.msra.mxu0 0.0
    %5893 = vmatpush.xpose.msra.mxu0 0.0
    %5894 = vmatpush.xpose.msra.mxu0 0.0
    %5895 = vmatpush.xpose.msra.mxu0 0.0
    %5896 = vmatpush.xpose.msra.mxu0 0.0
    %v5897 = vand.u32 %v463, 4294901760
    %v5898 = vsub.f32 %v463, %v5897
    %v5899 = vand.u32 %v5898, 4294901760
    %5900 = vmatpush.xpose.msra.mxu0 %v5899
    %v5901 = vand.u32 %v333, 4294901760
    %5902 = vmatmul.f32.gmra.mxu0 %v5901
    %v5903 = vpop.f32.mrf.mxu0
    %v5904 = vadd.f32 %v5880, %v5903
    %5905 = vdwg.mxu0
    %5906 = vmatpush.xpose.msra.mxu0 0.0
    %5907 = vmatpush.xpose.msra.mxu0 0.0
    %5908 = vmatpush.xpose.msra.mxu0 0.0
    %5909 = vmatpush.xpose.msra.mxu0 0.0
    %5910 = vmatpush.xpose.msra.mxu0 0.0
    %5911 = vmatpush.xpose.msra.mxu0 0.0
    %5912 = vmatpush.xpose.msra.mxu0 0.0
    %5913 = vmatpush.xpose.msra.mxu0 0.0
    %5914 = vmatpush.xpose.msra.mxu0 0.0
    %5915 = vmatpush.xpose.msra.mxu0 0.0
    %5916 = vmatpush.xpose.msra.mxu0 0.0
    %5917 = vmatpush.xpose.msra.mxu0 0.0
    %5918 = vmatpush.xpose.msra.mxu0 0.0
    %5919 = vmatpush.xpose.msra.mxu0 0.0
    %5920 = vmatpush.xpose.msra.mxu0 0.0
    %v5921 = vand.u32 %v463, 4294901760
    %5922 = vmatpush.xpose.msra.mxu0 %v5921
    %v5923 = vand.u32 %v333, 4294901760
    %5924 = vmatmul.f32.gmra.mxu0 %v5923
    %v5925 = vpop.f32.mrf.mxu0
    %v5926 = vadd.f32 %v5904, %v5925
    %5927 = vdwg.mxu0
    %5928 = vmatpush.xpose.msra.mxu0 0.0
    %5929 = vmatpush.xpose.msra.mxu0 0.0
    %5930 = vmatpush.xpose.msra.mxu0 0.0
    %5931 = vmatpush.xpose.msra.mxu0 0.0
    %5932 = vmatpush.xpose.msra.mxu0 0.0
    %5933 = vmatpush.xpose.msra.mxu0 0.0
    %5934 = vmatpush.xpose.msra.mxu0 0.0
    %5935 = vmatpush.xpose.msra.mxu0 0.0
    %5936 = vmatpush.xpose.msra.mxu0 0.0
    %5937 = vmatpush.xpose.msra.mxu0 0.0
    %5938 = vmatpush.xpose.msra.mxu0 0.0
    %5939 = vmatpush.xpose.msra.mxu0 0.0
    %5940 = vmatpush.xpose.msra.mxu0 0.0
    %5941 = vmatpush.xpose.msra.mxu0 0.0
    %5942 = vmatpush.xpose.msra.mxu0 0.0
    %v5943 = vand.u32 %v464, 4294901760
    %5944 = vmatpush.xpose.msra.mxu0 %v5943
    %v5945 = vand.u32 %v334, 4294901760
    %v5946 = vsub.f32 %v334, %v5945
    %v5947 = vand.u32 %v5946, 4294901760
    %v5948 = vsub.f32 %v5946, %v5947
    %v5949 = vand.u32 %v5948, 4294901760
    %5950 = vmatmul.f32.gmra.mxu0 %v5949
    %v5951 = vpop.f32.mrf.mxu0
    %v5952 = vadd.f32 %v5926, %v5951
    %5953 = vdwg.mxu0
    %5954 = vmatpush.xpose.msra.mxu0 0.0
    %5955 = vmatpush.xpose.msra.mxu0 0.0
    %5956 = vmatpush.xpose.msra.mxu0 0.0
    %5957 = vmatpush.xpose.msra.mxu0 0.0
    %5958 = vmatpush.xpose.msra.mxu0 0.0
    %5959 = vmatpush.xpose.msra.mxu0 0.0
    %5960 = vmatpush.xpose.msra.mxu0 0.0
    %5961 = vmatpush.xpose.msra.mxu0 0.0
    %5962 = vmatpush.xpose.msra.mxu0 0.0
    %5963 = vmatpush.xpose.msra.mxu0 0.0
    %5964 = vmatpush.xpose.msra.mxu0 0.0
    %5965 = vmatpush.xpose.msra.mxu0 0.0
    %5966 = vmatpush.xpose.msra.mxu0 0.0
    %5967 = vmatpush.xpose.msra.mxu0 0.0
    %5968 = vmatpush.xpose.msra.mxu0 0.0
    %v5969 = vand.u32 %v464, 4294901760
    %v5970 = vsub.f32 %v464, %v5969
    %v5971 = vand.u32 %v5970, 4294901760
    %v5972 = vsub.f32 %v5970, %v5971
    %v5973 = vand.u32 %v5972, 4294901760
    %5974 = vmatpush.xpose.msra.mxu0 %v5973
    %v5975 = vand.u32 %v334, 4294901760
    %5976 = vmatmul.f32.gmra.mxu0 %v5975
    %v5977 = vpop.f32.mrf.mxu0
    %v5978 = vadd.f32 %v5952, %v5977
    %5979 = vdwg.mxu0
    %5980 = vmatpush.xpose.msra.mxu0 0.0
    %5981 = vmatpush.xpose.msra.mxu0 0.0
    %5982 = vmatpush.xpose.msra.mxu0 0.0
    %5983 = vmatpush.xpose.msra.mxu0 0.0
    %5984 = vmatpush.xpose.msra.mxu0 0.0
    %5985 = vmatpush.xpose.msra.mxu0 0.0
    %5986 = vmatpush.xpose.msra.mxu0 0.0
    %5987 = vmatpush.xpose.msra.mxu0 0.0
    %5988 = vmatpush.xpose.msra.mxu0 0.0
    %5989 = vmatpush.xpose.msra.mxu0 0.0
    %5990 = vmatpush.xpose.msra.mxu0 0.0
    %5991 = vmatpush.xpose.msra.mxu0 0.0
    %5992 = vmatpush.xpose.msra.mxu0 0.0
    %5993 = vmatpush.xpose.msra.mxu0 0.0
    %5994 = vmatpush.xpose.msra.mxu0 0.0
    %v5995 = vand.u32 %v464, 4294901760
    %v5996 = vsub.f32 %v464, %v5995
    %5997 = vmatpush.xpose.msra.mxu0 %v5996
    %v5998 = vand.u32 %v334, 4294901760
    %v5999 = vsub.f32 %v334, %v5998
    %6000 = vmatmul.f32.gmra.mxu0 %v5999
    %v6001 = vpop.f32.mrf.mxu0
    %v6002 = vadd.f32 %v5978, %v6001
    %6003 = vdwg.mxu0
    %6004 = vmatpush.xpose.msra.mxu0 0.0
    %6005 = vmatpush.xpose.msra.mxu0 0.0
    %6006 = vmatpush.xpose.msra.mxu0 0.0
    %6007 = vmatpush.xpose.msra.mxu0 0.0
    %6008 = vmatpush.xpose.msra.mxu0 0.0
    %6009 = vmatpush.xpose.msra.mxu0 0.0
    %6010 = vmatpush.xpose.msra.mxu0 0.0
    %6011 = vmatpush.xpose.msra.mxu0 0.0
    %6012 = vmatpush.xpose.msra.mxu0 0.0
    %6013 = vmatpush.xpose.msra.mxu0 0.0
    %6014 = vmatpush.xpose.msra.mxu0 0.0
    %6015 = vmatpush.xpose.msra.mxu0 0.0
    %6016 = vmatpush.xpose.msra.mxu0 0.0
    %6017 = vmatpush.xpose.msra.mxu0 0.0
    %6018 = vmatpush.xpose.msra.mxu0 0.0
    %v6019 = vand.u32 %v464, 4294901760
    %6020 = vmatpush.xpose.msra.mxu0 %v6019
    %v6021 = vand.u32 %v334, 4294901760
    %v6022 = vsub.f32 %v334, %v6021
    %v6023 = vand.u32 %v6022, 4294901760
    %6024 = vmatmul.f32.gmra.mxu0 %v6023
    %v6025 = vpop.f32.mrf.mxu0
    %v6026 = vadd.f32 %v6002, %v6025
    %6027 = vdwg.mxu0
    %6028 = vmatpush.xpose.msra.mxu0 0.0
    %6029 = vmatpush.xpose.msra.mxu0 0.0
    %6030 = vmatpush.xpose.msra.mxu0 0.0
    %6031 = vmatpush.xpose.msra.mxu0 0.0
    %6032 = vmatpush.xpose.msra.mxu0 0.0
    %6033 = vmatpush.xpose.msra.mxu0 0.0
    %6034 = vmatpush.xpose.msra.mxu0 0.0
    %6035 = vmatpush.xpose.msra.mxu0 0.0
    %6036 = vmatpush.xpose.msra.mxu0 0.0
    %6037 = vmatpush.xpose.msra.mxu0 0.0
    %6038 = vmatpush.xpose.msra.mxu0 0.0
    %6039 = vmatpush.xpose.msra.mxu0 0.0
    %6040 = vmatpush.xpose.msra.mxu0 0.0
    %6041 = vmatpush.xpose.msra.mxu0 0.0
    %6042 = vmatpush.xpose.msra.mxu0 0.0
    %v6043 = vand.u32 %v464, 4294901760
    %v6044 = vsub.f32 %v464, %v6043
    %v6045 = vand.u32 %v6044, 4294901760
    %6046 = vmatpush.xpose.msra.mxu0 %v6045
    %v6047 = vand.u32 %v334, 4294901760
    %6048 = vmatmul.f32.gmra.mxu0 %v6047
    %v6049 = vpop.f32.mrf.mxu0
    %v6050 = vadd.f32 %v6026, %v6049
    %6051 = vdwg.mxu0
    %6052 = vmatpush.xpose.msra.mxu0 0.0
    %6053 = vmatpush.xpose.msra.mxu0 0.0
    %6054 = vmatpush.xpose.msra.mxu0 0.0
    %6055 = vmatpush.xpose.msra.mxu0 0.0
    %6056 = vmatpush.xpose.msra.mxu0 0.0
    %6057 = vmatpush.xpose.msra.mxu0 0.0
    %6058 = vmatpush.xpose.msra.mxu0 0.0
    %6059 = vmatpush.xpose.msra.mxu0 0.0
    %6060 = vmatpush.xpose.msra.mxu0 0.0
    %6061 = vmatpush.xpose.msra.mxu0 0.0
    %6062 = vmatpush.xpose.msra.mxu0 0.0
    %6063 = vmatpush.xpose.msra.mxu0 0.0
    %6064 = vmatpush.xpose.msra.mxu0 0.0
    %6065 = vmatpush.xpose.msra.mxu0 0.0
    %6066 = vmatpush.xpose.msra.mxu0 0.0
    %v6067 = vand.u32 %v464, 4294901760
    %6068 = vmatpush.xpose.msra.mxu0 %v6067
    %v6069 = vand.u32 %v334, 4294901760
    %6070 = vmatmul.f32.gmra.mxu0 %v6069
    %v6071 = vpop.f32.mrf.mxu0
    %v6072 = vadd.f32 %v6050, %v6071
    %6073 = vdwg.mxu0
    %6074 = vmatpush.xpose.msra.mxu0 0.0
    %6075 = vmatpush.xpose.msra.mxu0 0.0
    %6076 = vmatpush.xpose.msra.mxu0 0.0
    %6077 = vmatpush.xpose.msra.mxu0 0.0
    %6078 = vmatpush.xpose.msra.mxu0 0.0
    %6079 = vmatpush.xpose.msra.mxu0 0.0
    %6080 = vmatpush.xpose.msra.mxu0 0.0
    %6081 = vmatpush.xpose.msra.mxu0 0.0
    %6082 = vmatpush.xpose.msra.mxu0 0.0
    %6083 = vmatpush.xpose.msra.mxu0 0.0
    %6084 = vmatpush.xpose.msra.mxu0 0.0
    %6085 = vmatpush.xpose.msra.mxu0 0.0
    %6086 = vmatpush.xpose.msra.mxu0 0.0
    %6087 = vmatpush.xpose.msra.mxu0 0.0
    %6088 = vmatpush.xpose.msra.mxu0 0.0
    %v6089 = vand.u32 %v465, 4294901760
    %6090 = vmatpush.xpose.msra.mxu0 %v6089
    %v6091 = vand.u32 %v335, 4294901760
    %v6092 = vsub.f32 %v335, %v6091
    %v6093 = vand.u32 %v6092, 4294901760
    %v6094 = vsub.f32 %v6092, %v6093
    %v6095 = vand.u32 %v6094, 4294901760
    %6096 = vmatmul.f32.gmra.mxu0 %v6095
    %v6097 = vpop.f32.mrf.mxu0
    %v6098 = vadd.f32 %v6072, %v6097
    %6099 = vdwg.mxu0
    %6100 = vmatpush.xpose.msra.mxu0 0.0
    %6101 = vmatpush.xpose.msra.mxu0 0.0
    %6102 = vmatpush.xpose.msra.mxu0 0.0
    %6103 = vmatpush.xpose.msra.mxu0 0.0
    %6104 = vmatpush.xpose.msra.mxu0 0.0
    %6105 = vmatpush.xpose.msra.mxu0 0.0
    %6106 = vmatpush.xpose.msra.mxu0 0.0
    %6107 = vmatpush.xpose.msra.mxu0 0.0
    %6108 = vmatpush.xpose.msra.mxu0 0.0
    %6109 = vmatpush.xpose.msra.mxu0 0.0
    %6110 = vmatpush.xpose.msra.mxu0 0.0
    %6111 = vmatpush.xpose.msra.mxu0 0.0
    %6112 = vmatpush.xpose.msra.mxu0 0.0
    %6113 = vmatpush.xpose.msra.mxu0 0.0
    %6114 = vmatpush.xpose.msra.mxu0 0.0
    %v6115 = vand.u32 %v465, 4294901760
    %v6116 = vsub.f32 %v465, %v6115
    %v6117 = vand.u32 %v6116, 4294901760
    %v6118 = vsub.f32 %v6116, %v6117
    %v6119 = vand.u32 %v6118, 4294901760
    %6120 = vmatpush.xpose.msra.mxu0 %v6119
    %v6121 = vand.u32 %v335, 4294901760
    %6122 = vmatmul.f32.gmra.mxu0 %v6121
    %v6123 = vpop.f32.mrf.mxu0
    %v6124 = vadd.f32 %v6098, %v6123
    %6125 = vdwg.mxu0
    %6126 = vmatpush.xpose.msra.mxu0 0.0
    %6127 = vmatpush.xpose.msra.mxu0 0.0
    %6128 = vmatpush.xpose.msra.mxu0 0.0
    %6129 = vmatpush.xpose.msra.mxu0 0.0
    %6130 = vmatpush.xpose.msra.mxu0 0.0
    %6131 = vmatpush.xpose.msra.mxu0 0.0
    %6132 = vmatpush.xpose.msra.mxu0 0.0
    %6133 = vmatpush.xpose.msra.mxu0 0.0
    %6134 = vmatpush.xpose.msra.mxu0 0.0
    %6135 = vmatpush.xpose.msra.mxu0 0.0
    %6136 = vmatpush.xpose.msra.mxu0 0.0
    %6137 = vmatpush.xpose.msra.mxu0 0.0
    %6138 = vmatpush.xpose.msra.mxu0 0.0
    %6139 = vmatpush.xpose.msra.mxu0 0.0
    %6140 = vmatpush.xpose.msra.mxu0 0.0
    %v6141 = vand.u32 %v465, 4294901760
    %v6142 = vsub.f32 %v465, %v6141
    %6143 = vmatpush.xpose.msra.mxu0 %v6142
    %v6144 = vand.u32 %v335, 4294901760
    %v6145 = vsub.f32 %v335, %v6144
    %6146 = vmatmul.f32.gmra.mxu0 %v6145
    %v6147 = vpop.f32.mrf.mxu0
    %v6148 = vadd.f32 %v6124, %v6147
    %6149 = vdwg.mxu0
    %6150 = vmatpush.xpose.msra.mxu0 0.0
    %6151 = vmatpush.xpose.msra.mxu0 0.0
    %6152 = vmatpush.xpose.msra.mxu0 0.0
    %6153 = vmatpush.xpose.msra.mxu0 0.0
    %6154 = vmatpush.xpose.msra.mxu0 0.0
    %6155 = vmatpush.xpose.msra.mxu0 0.0
    %6156 = vmatpush.xpose.msra.mxu0 0.0
    %6157 = vmatpush.xpose.msra.mxu0 0.0
    %6158 = vmatpush.xpose.msra.mxu0 0.0
    %6159 = vmatpush.xpose.msra.mxu0 0.0
    %6160 = vmatpush.xpose.msra.mxu0 0.0
    %6161 = vmatpush.xpose.msra.mxu0 0.0
    %6162 = vmatpush.xpose.msra.mxu0 0.0
    %6163 = vmatpush.xpose.msra.mxu0 0.0
    %6164 = vmatpush.xpose.msra.mxu0 0.0
    %v6165 = vand.u32 %v465, 4294901760
    %6166 = vmatpush.xpose.msra.mxu0 %v6165
    %v6167 = vand.u32 %v335, 4294901760
    %v6168 = vsub.f32 %v335, %v6167
    %v6169 = vand.u32 %v6168, 4294901760
    %6170 = vmatmul.f32.gmra.mxu0 %v6169
    %v6171 = vpop.f32.mrf.mxu0
    %v6172 = vadd.f32 %v6148, %v6171
    %6173 = vdwg.mxu0
    %6174 = vmatpush.xpose.msra.mxu0 0.0
    %6175 = vmatpush.xpose.msra.mxu0 0.0
    %6176 = vmatpush.xpose.msra.mxu0 0.0
    %6177 = vmatpush.xpose.msra.mxu0 0.0
    %6178 = vmatpush.xpose.msra.mxu0 0.0
    %6179 = vmatpush.xpose.msra.mxu0 0.0
    %6180 = vmatpush.xpose.msra.mxu0 0.0
    %6181 = vmatpush.xpose.msra.mxu0 0.0
    %6182 = vmatpush.xpose.msra.mxu0 0.0
    %6183 = vmatpush.xpose.msra.mxu0 0.0
    %6184 = vmatpush.xpose.msra.mxu0 0.0
    %6185 = vmatpush.xpose.msra.mxu0 0.0
    %6186 = vmatpush.xpose.msra.mxu0 0.0
    %6187 = vmatpush.xpose.msra.mxu0 0.0
    %6188 = vmatpush.xpose.msra.mxu0 0.0
    %v6189 = vand.u32 %v465, 4294901760
    %v6190 = vsub.f32 %v465, %v6189
    %v6191 = vand.u32 %v6190, 4294901760
    %6192 = vmatpush.xpose.msra.mxu0 %v6191
    %v6193 = vand.u32 %v335, 4294901760
    %6194 = vmatmul.f32.gmra.mxu0 %v6193
    %v6195 = vpop.f32.mrf.mxu0
    %v6196 = vadd.f32 %v6172, %v6195
    %6197 = vdwg.mxu0
    %6198 = vmatpush.xpose.msra.mxu0 0.0
    %6199 = vmatpush.xpose.msra.mxu0 0.0
    %6200 = vmatpush.xpose.msra.mxu0 0.0
    %6201 = vmatpush.xpose.msra.mxu0 0.0
    %6202 = vmatpush.xpose.msra.mxu0 0.0
    %6203 = vmatpush.xpose.msra.mxu0 0.0
    %6204 = vmatpush.xpose.msra.mxu0 0.0
    %6205 = vmatpush.xpose.msra.mxu0 0.0
    %6206 = vmatpush.xpose.msra.mxu0 0.0
    %6207 = vmatpush.xpose.msra.mxu0 0.0
    %6208 = vmatpush.xpose.msra.mxu0 0.0
    %6209 = vmatpush.xpose.msra.mxu0 0.0
    %6210 = vmatpush.xpose.msra.mxu0 0.0
    %6211 = vmatpush.xpose.msra.mxu0 0.0
    %6212 = vmatpush.xpose.msra.mxu0 0.0
    %v6213 = vand.u32 %v465, 4294901760
    %6214 = vmatpush.xpose.msra.mxu0 %v6213
    %v6215 = vand.u32 %v335, 4294901760
    %6216 = vmatmul.f32.gmra.mxu0 %v6215
    %v6217 = vpop.f32.mrf.mxu0
    %v6218 = vadd.f32 %v6196, %v6217
    %6219 = vdwg.mxu0
    %6220 = vmatpush.xpose.msra.mxu0 0.0
    %6221 = vmatpush.xpose.msra.mxu0 0.0
    %6222 = vmatpush.xpose.msra.mxu0 0.0
    %6223 = vmatpush.xpose.msra.mxu0 0.0
    %6224 = vmatpush.xpose.msra.mxu0 0.0
    %6225 = vmatpush.xpose.msra.mxu0 0.0
    %6226 = vmatpush.xpose.msra.mxu0 0.0
    %6227 = vmatpush.xpose.msra.mxu0 0.0
    %6228 = vmatpush.xpose.msra.mxu0 0.0
    %6229 = vmatpush.xpose.msra.mxu0 0.0
    %6230 = vmatpush.xpose.msra.mxu0 0.0
    %6231 = vmatpush.xpose.msra.mxu0 0.0
    %6232 = vmatpush.xpose.msra.mxu0 0.0
    %6233 = vmatpush.xpose.msra.mxu0 0.0
    %6234 = vmatpush.xpose.msra.mxu0 0.0
    %v6235 = vand.u32 %v466, 4294901760
    %6236 = vmatpush.xpose.msra.mxu0 %v6235
    %v6237 = vand.u32 %v336, 4294901760
    %v6238 = vsub.f32 %v336, %v6237
    %v6239 = vand.u32 %v6238, 4294901760
    %v6240 = vsub.f32 %v6238, %v6239
    %v6241 = vand.u32 %v6240, 4294901760
    %6242 = vmatmul.f32.gmra.mxu0 %v6241
    %v6243 = vpop.f32.mrf.mxu0
    %v6244 = vadd.f32 %v6218, %v6243
    %6245 = vdwg.mxu0
    %6246 = vmatpush.xpose.msra.mxu0 0.0
    %6247 = vmatpush.xpose.msra.mxu0 0.0
    %6248 = vmatpush.xpose.msra.mxu0 0.0
    %6249 = vmatpush.xpose.msra.mxu0 0.0
    %6250 = vmatpush.xpose.msra.mxu0 0.0
    %6251 = vmatpush.xpose.msra.mxu0 0.0
    %6252 = vmatpush.xpose.msra.mxu0 0.0
    %6253 = vmatpush.xpose.msra.mxu0 0.0
    %6254 = vmatpush.xpose.msra.mxu0 0.0
    %6255 = vmatpush.xpose.msra.mxu0 0.0
    %6256 = vmatpush.xpose.msra.mxu0 0.0
    %6257 = vmatpush.xpose.msra.mxu0 0.0
    %6258 = vmatpush.xpose.msra.mxu0 0.0
    %6259 = vmatpush.xpose.msra.mxu0 0.0
    %6260 = vmatpush.xpose.msra.mxu0 0.0
    %v6261 = vand.u32 %v466, 4294901760
    %v6262 = vsub.f32 %v466, %v6261
    %v6263 = vand.u32 %v6262, 4294901760
    %v6264 = vsub.f32 %v6262, %v6263
    %v6265 = vand.u32 %v6264, 4294901760
    %6266 = vmatpush.xpose.msra.mxu0 %v6265
    %v6267 = vand.u32 %v336, 4294901760
    %6268 = vmatmul.f32.gmra.mxu0 %v6267
    %v6269 = vpop.f32.mrf.mxu0
    %v6270 = vadd.f32 %v6244, %v6269
    %6271 = vdwg.mxu0
    %6272 = vmatpush.xpose.msra.mxu0 0.0
    %6273 = vmatpush.xpose.msra.mxu0 0.0
    %6274 = vmatpush.xpose.msra.mxu0 0.0
    %6275 = vmatpush.xpose.msra.mxu0 0.0
    %6276 = vmatpush.xpose.msra.mxu0 0.0
    %6277 = vmatpush.xpose.msra.mxu0 0.0
    %6278 = vmatpush.xpose.msra.mxu0 0.0
    %6279 = vmatpush.xpose.msra.mxu0 0.0
    %6280 = vmatpush.xpose.msra.mxu0 0.0
    %6281 = vmatpush.xpose.msra.mxu0 0.0
    %6282 = vmatpush.xpose.msra.mxu0 0.0
    %6283 = vmatpush.xpose.msra.mxu0 0.0
    %6284 = vmatpush.xpose.msra.mxu0 0.0
    %6285 = vmatpush.xpose.msra.mxu0 0.0
    %6286 = vmatpush.xpose.msra.mxu0 0.0
    %v6287 = vand.u32 %v466, 4294901760
    %v6288 = vsub.f32 %v466, %v6287
    %6289 = vmatpush.xpose.msra.mxu0 %v6288
    %v6290 = vand.u32 %v336, 4294901760
    %v6291 = vsub.f32 %v336, %v6290
    %6292 = vmatmul.f32.gmra.mxu0 %v6291
    %v6293 = vpop.f32.mrf.mxu0
    %v6294 = vadd.f32 %v6270, %v6293
    %6295 = vdwg.mxu0
    %6296 = vmatpush.xpose.msra.mxu0 0.0
    %6297 = vmatpush.xpose.msra.mxu0 0.0
    %6298 = vmatpush.xpose.msra.mxu0 0.0
    %6299 = vmatpush.xpose.msra.mxu0 0.0
    %6300 = vmatpush.xpose.msra.mxu0 0.0
    %6301 = vmatpush.xpose.msra.mxu0 0.0
    %6302 = vmatpush.xpose.msra.mxu0 0.0
    %6303 = vmatpush.xpose.msra.mxu0 0.0
    %6304 = vmatpush.xpose.msra.mxu0 0.0
    %6305 = vmatpush.xpose.msra.mxu0 0.0
    %6306 = vmatpush.xpose.msra.mxu0 0.0
    %6307 = vmatpush.xpose.msra.mxu0 0.0
    %6308 = vmatpush.xpose.msra.mxu0 0.0
    %6309 = vmatpush.xpose.msra.mxu0 0.0
    %6310 = vmatpush.xpose.msra.mxu0 0.0
    %v6311 = vand.u32 %v466, 4294901760
    %6312 = vmatpush.xpose.msra.mxu0 %v6311
    %v6313 = vand.u32 %v336, 4294901760
    %v6314 = vsub.f32 %v336, %v6313
    %v6315 = vand.u32 %v6314, 4294901760
    %6316 = vmatmul.f32.gmra.mxu0 %v6315
    %v6317 = vpop.f32.mrf.mxu0
    %v6318 = vadd.f32 %v6294, %v6317
    %6319 = vdwg.mxu0
    %6320 = vmatpush.xpose.msra.mxu0 0.0
    %6321 = vmatpush.xpose.msra.mxu0 0.0
    %6322 = vmatpush.xpose.msra.mxu0 0.0
    %6323 = vmatpush.xpose.msra.mxu0 0.0
    %6324 = vmatpush.xpose.msra.mxu0 0.0
    %6325 = vmatpush.xpose.msra.mxu0 0.0
    %6326 = vmatpush.xpose.msra.mxu0 0.0
    %6327 = vmatpush.xpose.msra.mxu0 0.0
    %6328 = vmatpush.xpose.msra.mxu0 0.0
    %6329 = vmatpush.xpose.msra.mxu0 0.0
    %6330 = vmatpush.xpose.msra.mxu0 0.0
    %6331 = vmatpush.xpose.msra.mxu0 0.0
    %6332 = vmatpush.xpose.msra.mxu0 0.0
    %6333 = vmatpush.xpose.msra.mxu0 0.0
    %6334 = vmatpush.xpose.msra.mxu0 0.0
    %v6335 = vand.u32 %v466, 4294901760
    %v6336 = vsub.f32 %v466, %v6335
    %v6337 = vand.u32 %v6336, 4294901760
    %6338 = vmatpush.xpose.msra.mxu0 %v6337
    %v6339 = vand.u32 %v336, 4294901760
    %6340 = vmatmul.f32.gmra.mxu0 %v6339
    %v6341 = vpop.f32.mrf.mxu0
    %v6342 = vadd.f32 %v6318, %v6341
    %6343 = vdwg.mxu0
    %6344 = vmatpush.xpose.msra.mxu0 0.0
    %6345 = vmatpush.xpose.msra.mxu0 0.0
    %6346 = vmatpush.xpose.msra.mxu0 0.0
    %6347 = vmatpush.xpose.msra.mxu0 0.0
    %6348 = vmatpush.xpose.msra.mxu0 0.0
    %6349 = vmatpush.xpose.msra.mxu0 0.0
    %6350 = vmatpush.xpose.msra.mxu0 0.0
    %6351 = vmatpush.xpose.msra.mxu0 0.0
    %6352 = vmatpush.xpose.msra.mxu0 0.0
    %6353 = vmatpush.xpose.msra.mxu0 0.0
    %6354 = vmatpush.xpose.msra.mxu0 0.0
    %6355 = vmatpush.xpose.msra.mxu0 0.0
    %6356 = vmatpush.xpose.msra.mxu0 0.0
    %6357 = vmatpush.xpose.msra.mxu0 0.0
    %6358 = vmatpush.xpose.msra.mxu0 0.0
    %v6359 = vand.u32 %v466, 4294901760
    %6360 = vmatpush.xpose.msra.mxu0 %v6359
    %v6361 = vand.u32 %v336, 4294901760
    %6362 = vmatmul.f32.gmra.mxu0 %v6361
    %v6363 = vpop.f32.mrf.mxu0
    %v6364 = vadd.f32 %v6342, %v6363
    %6365 = vdwg.mxu0
    %6366 = vmatpush.xpose.msra.mxu0 0.0
    %6367 = vmatpush.xpose.msra.mxu0 0.0
    %6368 = vmatpush.xpose.msra.mxu0 0.0
    %6369 = vmatpush.xpose.msra.mxu0 0.0
    %6370 = vmatpush.xpose.msra.mxu0 0.0
    %6371 = vmatpush.xpose.msra.mxu0 0.0
    %6372 = vmatpush.xpose.msra.mxu0 0.0
    %6373 = vmatpush.xpose.msra.mxu0 0.0
    %6374 = vmatpush.xpose.msra.mxu0 0.0
    %6375 = vmatpush.xpose.msra.mxu0 0.0
    %6376 = vmatpush.xpose.msra.mxu0 0.0
    %6377 = vmatpush.xpose.msra.mxu0 0.0
    %6378 = vmatpush.xpose.msra.mxu0 0.0
    %6379 = vmatpush.xpose.msra.mxu0 0.0
    %6380 = vmatpush.xpose.msra.mxu0 0.0
    %v6381 = vand.u32 %v467, 4294901760
    %6382 = vmatpush.xpose.msra.mxu0 %v6381
    %v6383 = vand.u32 %v337, 4294901760
    %v6384 = vsub.f32 %v337, %v6383
    %v6385 = vand.u32 %v6384, 4294901760
    %v6386 = vsub.f32 %v6384, %v6385
    %v6387 = vand.u32 %v6386, 4294901760
    %6388 = vmatmul.f32.gmra.mxu0 %v6387
    %v6389 = vpop.f32.mrf.mxu0
    %v6390 = vadd.f32 %v6364, %v6389
    %6391 = vdwg.mxu0
    %6392 = vmatpush.xpose.msra.mxu0 0.0
    %6393 = vmatpush.xpose.msra.mxu0 0.0
    %6394 = vmatpush.xpose.msra.mxu0 0.0
    %6395 = vmatpush.xpose.msra.mxu0 0.0
    %6396 = vmatpush.xpose.msra.mxu0 0.0
    %6397 = vmatpush.xpose.msra.mxu0 0.0
    %6398 = vmatpush.xpose.msra.mxu0 0.0
    %6399 = vmatpush.xpose.msra.mxu0 0.0
    %6400 = vmatpush.xpose.msra.mxu0 0.0
    %6401 = vmatpush.xpose.msra.mxu0 0.0
    %6402 = vmatpush.xpose.msra.mxu0 0.0
    %6403 = vmatpush.xpose.msra.mxu0 0.0
    %6404 = vmatpush.xpose.msra.mxu0 0.0
    %6405 = vmatpush.xpose.msra.mxu0 0.0
    %6406 = vmatpush.xpose.msra.mxu0 0.0
    %v6407 = vand.u32 %v467, 4294901760
    %v6408 = vsub.f32 %v467, %v6407
    %v6409 = vand.u32 %v6408, 4294901760
    %v6410 = vsub.f32 %v6408, %v6409
    %v6411 = vand.u32 %v6410, 4294901760
    %6412 = vmatpush.xpose.msra.mxu0 %v6411
    %v6413 = vand.u32 %v337, 4294901760
    %6414 = vmatmul.f32.gmra.mxu0 %v6413
    %v6415 = vpop.f32.mrf.mxu0
    %v6416 = vadd.f32 %v6390, %v6415
    %6417 = vdwg.mxu0
    %6418 = vmatpush.xpose.msra.mxu0 0.0
    %6419 = vmatpush.xpose.msra.mxu0 0.0
    %6420 = vmatpush.xpose.msra.mxu0 0.0
    %6421 = vmatpush.xpose.msra.mxu0 0.0
    %6422 = vmatpush.xpose.msra.mxu0 0.0
    %6423 = vmatpush.xpose.msra.mxu0 0.0
    %6424 = vmatpush.xpose.msra.mxu0 0.0
    %6425 = vmatpush.xpose.msra.mxu0 0.0
    %6426 = vmatpush.xpose.msra.mxu0 0.0
    %6427 = vmatpush.xpose.msra.mxu0 0.0
    %6428 = vmatpush.xpose.msra.mxu0 0.0
    %6429 = vmatpush.xpose.msra.mxu0 0.0
    %6430 = vmatpush.xpose.msra.mxu0 0.0
    %6431 = vmatpush.xpose.msra.mxu0 0.0
    %6432 = vmatpush.xpose.msra.mxu0 0.0
    %v6433 = vand.u32 %v467, 4294901760
    %v6434 = vsub.f32 %v467, %v6433
    %6435 = vmatpush.xpose.msra.mxu0 %v6434
    %v6436 = vand.u32 %v337, 4294901760
    %v6437 = vsub.f32 %v337, %v6436
    %6438 = vmatmul.f32.gmra.mxu0 %v6437
    %v6439 = vpop.f32.mrf.mxu0
    %v6440 = vadd.f32 %v6416, %v6439
    %6441 = vdwg.mxu0
    %6442 = vmatpush.xpose.msra.mxu0 0.0
    %6443 = vmatpush.xpose.msra.mxu0 0.0
    %6444 = vmatpush.xpose.msra.mxu0 0.0
    %6445 = vmatpush.xpose.msra.mxu0 0.0
    %6446 = vmatpush.xpose.msra.mxu0 0.0
    %6447 = vmatpush.xpose.msra.mxu0 0.0
    %6448 = vmatpush.xpose.msra.mxu0 0.0
    %6449 = vmatpush.xpose.msra.mxu0 0.0
    %6450 = vmatpush.xpose.msra.mxu0 0.0
    %6451 = vmatpush.xpose.msra.mxu0 0.0
    %6452 = vmatpush.xpose.msra.mxu0 0.0
    %6453 = vmatpush.xpose.msra.mxu0 0.0
    %6454 = vmatpush.xpose.msra.mxu0 0.0
    %6455 = vmatpush.xpose.msra.mxu0 0.0
    %6456 = vmatpush.xpose.msra.mxu0 0.0
    %v6457 = vand.u32 %v467, 4294901760
    %6458 = vmatpush.xpose.msra.mxu0 %v6457
    %v6459 = vand.u32 %v337, 4294901760
    %v6460 = vsub.f32 %v337, %v6459
    %v6461 = vand.u32 %v6460, 4294901760
    %6462 = vmatmul.f32.gmra.mxu0 %v6461
    %v6463 = vpop.f32.mrf.mxu0
    %v6464 = vadd.f32 %v6440, %v6463
    %6465 = vdwg.mxu0
    %6466 = vmatpush.xpose.msra.mxu0 0.0
    %6467 = vmatpush.xpose.msra.mxu0 0.0
    %6468 = vmatpush.xpose.msra.mxu0 0.0
    %6469 = vmatpush.xpose.msra.mxu0 0.0
    %6470 = vmatpush.xpose.msra.mxu0 0.0
    %6471 = vmatpush.xpose.msra.mxu0 0.0
    %6472 = vmatpush.xpose.msra.mxu0 0.0
    %6473 = vmatpush.xpose.msra.mxu0 0.0
    %6474 = vmatpush.xpose.msra.mxu0 0.0
    %6475 = vmatpush.xpose.msra.mxu0 0.0
    %6476 = vmatpush.xpose.msra.mxu0 0.0
    %6477 = vmatpush.xpose.msra.mxu0 0.0
    %6478 = vmatpush.xpose.msra.mxu0 0.0
    %6479 = vmatpush.xpose.msra.mxu0 0.0
    %6480 = vmatpush.xpose.msra.mxu0 0.0
    %v6481 = vand.u32 %v467, 4294901760
    %v6482 = vsub.f32 %v467, %v6481
    %v6483 = vand.u32 %v6482, 4294901760
    %6484 = vmatpush.xpose.msra.mxu0 %v6483
    %v6485 = vand.u32 %v337, 4294901760
    %6486 = vmatmul.f32.gmra.mxu0 %v6485
    %v6487 = vpop.f32.mrf.mxu0
    %v6488 = vadd.f32 %v6464, %v6487
    %6489 = vdwg.mxu0
    %6490 = vmatpush.xpose.msra.mxu0 0.0
    %6491 = vmatpush.xpose.msra.mxu0 0.0
    %6492 = vmatpush.xpose.msra.mxu0 0.0
    %6493 = vmatpush.xpose.msra.mxu0 0.0
    %6494 = vmatpush.xpose.msra.mxu0 0.0
    %6495 = vmatpush.xpose.msra.mxu0 0.0
    %6496 = vmatpush.xpose.msra.mxu0 0.0
    %6497 = vmatpush.xpose.msra.mxu0 0.0
    %6498 = vmatpush.xpose.msra.mxu0 0.0
    %6499 = vmatpush.xpose.msra.mxu0 0.0
    %6500 = vmatpush.xpose.msra.mxu0 0.0
    %6501 = vmatpush.xpose.msra.mxu0 0.0
    %6502 = vmatpush.xpose.msra.mxu0 0.0
    %6503 = vmatpush.xpose.msra.mxu0 0.0
    %6504 = vmatpush.xpose.msra.mxu0 0.0
    %v6505 = vand.u32 %v467, 4294901760
    %6506 = vmatpush.xpose.msra.mxu0 %v6505
    %v6507 = vand.u32 %v337, 4294901760
    %6508 = vmatmul.f32.gmra.mxu0 %v6507
    %v6509 = vpop.f32.mrf.mxu0
    %v6510 = vadd.f32 %v6488, %v6509
    %6511 = vdwg.mxu0
    %6512 = vmatpush.xpose.msra.mxu0 0.0
    %6513 = vmatpush.xpose.msra.mxu0 0.0
    %6514 = vmatpush.xpose.msra.mxu0 0.0
    %6515 = vmatpush.xpose.msra.mxu0 0.0
    %6516 = vmatpush.xpose.msra.mxu0 0.0
    %6517 = vmatpush.xpose.msra.mxu0 0.0
    %6518 = vmatpush.xpose.msra.mxu0 0.0
    %6519 = vmatpush.xpose.msra.mxu0 0.0
    %6520 = vmatpush.xpose.msra.mxu0 0.0
    %6521 = vmatpush.xpose.msra.mxu0 0.0
    %6522 = vmatpush.xpose.msra.mxu0 0.0
    %6523 = vmatpush.xpose.msra.mxu0 0.0
    %6524 = vmatpush.xpose.msra.mxu0 0.0
    %6525 = vmatpush.xpose.msra.mxu0 0.0
    %6526 = vmatpush.xpose.msra.mxu0 0.0
    %v6527 = vand.u32 %v468, 4294901760
    %6528 = vmatpush.xpose.msra.mxu0 %v6527
    %v6529 = vand.u32 %v338, 4294901760
    %v6530 = vsub.f32 %v338, %v6529
    %v6531 = vand.u32 %v6530, 4294901760
    %v6532 = vsub.f32 %v6530, %v6531
    %v6533 = vand.u32 %v6532, 4294901760
    %6534 = vmatmul.f32.gmra.mxu0 %v6533
    %v6535 = vpop.f32.mrf.mxu0
    %v6536 = vadd.f32 %v6510, %v6535
    %6537 = vdwg.mxu0
    %6538 = vmatpush.xpose.msra.mxu0 0.0
    %6539 = vmatpush.xpose.msra.mxu0 0.0
    %6540 = vmatpush.xpose.msra.mxu0 0.0
    %6541 = vmatpush.xpose.msra.mxu0 0.0
    %6542 = vmatpush.xpose.msra.mxu0 0.0
    %6543 = vmatpush.xpose.msra.mxu0 0.0
    %6544 = vmatpush.xpose.msra.mxu0 0.0
    %6545 = vmatpush.xpose.msra.mxu0 0.0
    %6546 = vmatpush.xpose.msra.mxu0 0.0
    %6547 = vmatpush.xpose.msra.mxu0 0.0
    %6548 = vmatpush.xpose.msra.mxu0 0.0
    %6549 = vmatpush.xpose.msra.mxu0 0.0
    %6550 = vmatpush.xpose.msra.mxu0 0.0
    %6551 = vmatpush.xpose.msra.mxu0 0.0
    %6552 = vmatpush.xpose.msra.mxu0 0.0
    %v6553 = vand.u32 %v468, 4294901760
    %v6554 = vsub.f32 %v468, %v6553
    %v6555 = vand.u32 %v6554, 4294901760
    %v6556 = vsub.f32 %v6554, %v6555
    %v6557 = vand.u32 %v6556, 4294901760
    %6558 = vmatpush.xpose.msra.mxu0 %v6557
    %v6559 = vand.u32 %v338, 4294901760
    %6560 = vmatmul.f32.gmra.mxu0 %v6559
    %v6561 = vpop.f32.mrf.mxu0
    %v6562 = vadd.f32 %v6536, %v6561
    %6563 = vdwg.mxu0
    %6564 = vmatpush.xpose.msra.mxu0 0.0
    %6565 = vmatpush.xpose.msra.mxu0 0.0
    %6566 = vmatpush.xpose.msra.mxu0 0.0
    %6567 = vmatpush.xpose.msra.mxu0 0.0
    %6568 = vmatpush.xpose.msra.mxu0 0.0
    %6569 = vmatpush.xpose.msra.mxu0 0.0
    %6570 = vmatpush.xpose.msra.mxu0 0.0
    %6571 = vmatpush.xpose.msra.mxu0 0.0
    %6572 = vmatpush.xpose.msra.mxu0 0.0
    %6573 = vmatpush.xpose.msra.mxu0 0.0
    %6574 = vmatpush.xpose.msra.mxu0 0.0
    %6575 = vmatpush.xpose.msra.mxu0 0.0
    %6576 = vmatpush.xpose.msra.mxu0 0.0
    %6577 = vmatpush.xpose.msra.mxu0 0.0
    %6578 = vmatpush.xpose.msra.mxu0 0.0
    %v6579 = vand.u32 %v468, 4294901760
    %v6580 = vsub.f32 %v468, %v6579
    %6581 = vmatpush.xpose.msra.mxu0 %v6580
    %v6582 = vand.u32 %v338, 4294901760
    %v6583 = vsub.f32 %v338, %v6582
    %6584 = vmatmul.f32.gmra.mxu0 %v6583
    %v6585 = vpop.f32.mrf.mxu0
    %v6586 = vadd.f32 %v6562, %v6585
    %6587 = vdwg.mxu0
    %6588 = vmatpush.xpose.msra.mxu0 0.0
    %6589 = vmatpush.xpose.msra.mxu0 0.0
    %6590 = vmatpush.xpose.msra.mxu0 0.0
    %6591 = vmatpush.xpose.msra.mxu0 0.0
    %6592 = vmatpush.xpose.msra.mxu0 0.0
    %6593 = vmatpush.xpose.msra.mxu0 0.0
    %6594 = vmatpush.xpose.msra.mxu0 0.0
    %6595 = vmatpush.xpose.msra.mxu0 0.0
    %6596 = vmatpush.xpose.msra.mxu0 0.0
    %6597 = vmatpush.xpose.msra.mxu0 0.0
    %6598 = vmatpush.xpose.msra.mxu0 0.0
    %6599 = vmatpush.xpose.msra.mxu0 0.0
    %6600 = vmatpush.xpose.msra.mxu0 0.0
    %6601 = vmatpush.xpose.msra.mxu0 0.0
    %6602 = vmatpush.xpose.msra.mxu0 0.0
    %v6603 = vand.u32 %v468, 4294901760
    %6604 = vmatpush.xpose.msra.mxu0 %v6603
    %v6605 = vand.u32 %v338, 4294901760
    %v6606 = vsub.f32 %v338, %v6605
    %v6607 = vand.u32 %v6606, 4294901760
    %6608 = vmatmul.f32.gmra.mxu0 %v6607
    %v6609 = vpop.f32.mrf.mxu0
    %v6610 = vadd.f32 %v6586, %v6609
    %6611 = vdwg.mxu0
    %6612 = vmatpush.xpose.msra.mxu0 0.0
    %6613 = vmatpush.xpose.msra.mxu0 0.0
    %6614 = vmatpush.xpose.msra.mxu0 0.0
    %6615 = vmatpush.xpose.msra.mxu0 0.0
    %6616 = vmatpush.xpose.msra.mxu0 0.0
    %6617 = vmatpush.xpose.msra.mxu0 0.0
    %6618 = vmatpush.xpose.msra.mxu0 0.0
    %6619 = vmatpush.xpose.msra.mxu0 0.0
    %6620 = vmatpush.xpose.msra.mxu0 0.0
    %6621 = vmatpush.xpose.msra.mxu0 0.0
    %6622 = vmatpush.xpose.msra.mxu0 0.0
    %6623 = vmatpush.xpose.msra.mxu0 0.0
    %6624 = vmatpush.xpose.msra.mxu0 0.0
    %6625 = vmatpush.xpose.msra.mxu0 0.0
    %6626 = vmatpush.xpose.msra.mxu0 0.0
    %v6627 = vand.u32 %v468, 4294901760
    %v6628 = vsub.f32 %v468, %v6627
    %v6629 = vand.u32 %v6628, 4294901760
    %6630 = vmatpush.xpose.msra.mxu0 %v6629
    %v6631 = vand.u32 %v338, 4294901760
    %6632 = vmatmul.f32.gmra.mxu0 %v6631
    %v6633 = vpop.f32.mrf.mxu0
    %v6634 = vadd.f32 %v6610, %v6633
    %6635 = vdwg.mxu0
    %6636 = vmatpush.xpose.msra.mxu0 0.0
    %6637 = vmatpush.xpose.msra.mxu0 0.0
    %6638 = vmatpush.xpose.msra.mxu0 0.0
    %6639 = vmatpush.xpose.msra.mxu0 0.0
    %6640 = vmatpush.xpose.msra.mxu0 0.0
    %6641 = vmatpush.xpose.msra.mxu0 0.0
    %6642 = vmatpush.xpose.msra.mxu0 0.0
    %6643 = vmatpush.xpose.msra.mxu0 0.0
    %6644 = vmatpush.xpose.msra.mxu0 0.0
    %6645 = vmatpush.xpose.msra.mxu0 0.0
    %6646 = vmatpush.xpose.msra.mxu0 0.0
    %6647 = vmatpush.xpose.msra.mxu0 0.0
    %6648 = vmatpush.xpose.msra.mxu0 0.0
    %6649 = vmatpush.xpose.msra.mxu0 0.0
    %6650 = vmatpush.xpose.msra.mxu0 0.0
    %v6651 = vand.u32 %v468, 4294901760
    %6652 = vmatpush.xpose.msra.mxu0 %v6651
    %v6653 = vand.u32 %v338, 4294901760
    %6654 = vmatmul.f32.gmra.mxu0 %v6653
    %v6655 = vpop.f32.mrf.mxu0
    %v6656 = vadd.f32 %v6634, %v6655
    %6657 = vdwg.mxu0
    %6658 = vmatpush.xpose.msra.mxu0 0.0
    %6659 = vmatpush.xpose.msra.mxu0 0.0
    %6660 = vmatpush.xpose.msra.mxu0 0.0
    %6661 = vmatpush.xpose.msra.mxu0 0.0
    %6662 = vmatpush.xpose.msra.mxu0 0.0
    %6663 = vmatpush.xpose.msra.mxu0 0.0
    %6664 = vmatpush.xpose.msra.mxu0 0.0
    %6665 = vmatpush.xpose.msra.mxu0 0.0
    %6666 = vmatpush.xpose.msra.mxu0 0.0
    %6667 = vmatpush.xpose.msra.mxu0 0.0
    %6668 = vmatpush.xpose.msra.mxu0 0.0
    %6669 = vmatpush.xpose.msra.mxu0 0.0
    %6670 = vmatpush.xpose.msra.mxu0 0.0
    %6671 = vmatpush.xpose.msra.mxu0 0.0
    %6672 = vmatpush.xpose.msra.mxu0 0.0
    %v6673 = vand.u32 %v469, 4294901760
    %6674 = vmatpush.xpose.msra.mxu0 %v6673
    %v6675 = vand.u32 %v339, 4294901760
    %v6676 = vsub.f32 %v339, %v6675
    %v6677 = vand.u32 %v6676, 4294901760
    %v6678 = vsub.f32 %v6676, %v6677
    %v6679 = vand.u32 %v6678, 4294901760
    %6680 = vmatmul.f32.gmra.mxu0 %v6679
    %v6681 = vpop.f32.mrf.mxu0
    %v6682 = vadd.f32 %v6656, %v6681
    %6683 = vdwg.mxu0
    %6684 = vmatpush.xpose.msra.mxu0 0.0
    %6685 = vmatpush.xpose.msra.mxu0 0.0
    %6686 = vmatpush.xpose.msra.mxu0 0.0
    %6687 = vmatpush.xpose.msra.mxu0 0.0
    %6688 = vmatpush.xpose.msra.mxu0 0.0
    %6689 = vmatpush.xpose.msra.mxu0 0.0
    %6690 = vmatpush.xpose.msra.mxu0 0.0
    %6691 = vmatpush.xpose.msra.mxu0 0.0
    %6692 = vmatpush.xpose.msra.mxu0 0.0
    %6693 = vmatpush.xpose.msra.mxu0 0.0
    %6694 = vmatpush.xpose.msra.mxu0 0.0
    %6695 = vmatpush.xpose.msra.mxu0 0.0
    %6696 = vmatpush.xpose.msra.mxu0 0.0
    %6697 = vmatpush.xpose.msra.mxu0 0.0
    %6698 = vmatpush.xpose.msra.mxu0 0.0
    %v6699 = vand.u32 %v469, 4294901760
    %v6700 = vsub.f32 %v469, %v6699
    %v6701 = vand.u32 %v6700, 4294901760
    %v6702 = vsub.f32 %v6700, %v6701
    %v6703 = vand.u32 %v6702, 4294901760
    %6704 = vmatpush.xpose.msra.mxu0 %v6703
    %v6705 = vand.u32 %v339, 4294901760
    %6706 = vmatmul.f32.gmra.mxu0 %v6705
    %v6707 = vpop.f32.mrf.mxu0
    %v6708 = vadd.f32 %v6682, %v6707
    %6709 = vdwg.mxu0
    %6710 = vmatpush.xpose.msra.mxu0 0.0
    %6711 = vmatpush.xpose.msra.mxu0 0.0
    %6712 = vmatpush.xpose.msra.mxu0 0.0
    %6713 = vmatpush.xpose.msra.mxu0 0.0
    %6714 = vmatpush.xpose.msra.mxu0 0.0
    %6715 = vmatpush.xpose.msra.mxu0 0.0
    %6716 = vmatpush.xpose.msra.mxu0 0.0
    %6717 = vmatpush.xpose.msra.mxu0 0.0
    %6718 = vmatpush.xpose.msra.mxu0 0.0
    %6719 = vmatpush.xpose.msra.mxu0 0.0
    %6720 = vmatpush.xpose.msra.mxu0 0.0
    %6721 = vmatpush.xpose.msra.mxu0 0.0
    %6722 = vmatpush.xpose.msra.mxu0 0.0
    %6723 = vmatpush.xpose.msra.mxu0 0.0
    %6724 = vmatpush.xpose.msra.mxu0 0.0
    %v6725 = vand.u32 %v469, 4294901760
    %v6726 = vsub.f32 %v469, %v6725
    %6727 = vmatpush.xpose.msra.mxu0 %v6726
    %v6728 = vand.u32 %v339, 4294901760
    %v6729 = vsub.f32 %v339, %v6728
    %6730 = vmatmul.f32.gmra.mxu0 %v6729
    %v6731 = vpop.f32.mrf.mxu0
    %v6732 = vadd.f32 %v6708, %v6731
    %6733 = vdwg.mxu0
    %6734 = vmatpush.xpose.msra.mxu0 0.0
    %6735 = vmatpush.xpose.msra.mxu0 0.0
    %6736 = vmatpush.xpose.msra.mxu0 0.0
    %6737 = vmatpush.xpose.msra.mxu0 0.0
    %6738 = vmatpush.xpose.msra.mxu0 0.0
    %6739 = vmatpush.xpose.msra.mxu0 0.0
    %6740 = vmatpush.xpose.msra.mxu0 0.0
    %6741 = vmatpush.xpose.msra.mxu0 0.0
    %6742 = vmatpush.xpose.msra.mxu0 0.0
    %6743 = vmatpush.xpose.msra.mxu0 0.0
    %6744 = vmatpush.xpose.msra.mxu0 0.0
    %6745 = vmatpush.xpose.msra.mxu0 0.0
    %6746 = vmatpush.xpose.msra.mxu0 0.0
    %6747 = vmatpush.xpose.msra.mxu0 0.0
    %6748 = vmatpush.xpose.msra.mxu0 0.0
    %v6749 = vand.u32 %v469, 4294901760
    %6750 = vmatpush.xpose.msra.mxu0 %v6749
    %v6751 = vand.u32 %v339, 4294901760
    %v6752 = vsub.f32 %v339, %v6751
    %v6753 = vand.u32 %v6752, 4294901760
    %6754 = vmatmul.f32.gmra.mxu0 %v6753
    %v6755 = vpop.f32.mrf.mxu0
    %v6756 = vadd.f32 %v6732, %v6755
    %6757 = vdwg.mxu0
    %6758 = vmatpush.xpose.msra.mxu0 0.0
    %6759 = vmatpush.xpose.msra.mxu0 0.0
    %6760 = vmatpush.xpose.msra.mxu0 0.0
    %6761 = vmatpush.xpose.msra.mxu0 0.0
    %6762 = vmatpush.xpose.msra.mxu0 0.0
    %6763 = vmatpush.xpose.msra.mxu0 0.0
    %6764 = vmatpush.xpose.msra.mxu0 0.0
    %6765 = vmatpush.xpose.msra.mxu0 0.0
    %6766 = vmatpush.xpose.msra.mxu0 0.0
    %6767 = vmatpush.xpose.msra.mxu0 0.0
    %6768 = vmatpush.xpose.msra.mxu0 0.0
    %6769 = vmatpush.xpose.msra.mxu0 0.0
    %6770 = vmatpush.xpose.msra.mxu0 0.0
    %6771 = vmatpush.xpose.msra.mxu0 0.0
    %6772 = vmatpush.xpose.msra.mxu0 0.0
    %v6773 = vand.u32 %v469, 4294901760
    %v6774 = vsub.f32 %v469, %v6773
    %v6775 = vand.u32 %v6774, 4294901760
    %6776 = vmatpush.xpose.msra.mxu0 %v6775
    %v6777 = vand.u32 %v339, 4294901760
    %6778 = vmatmul.f32.gmra.mxu0 %v6777
    %v6779 = vpop.f32.mrf.mxu0
    %v6780 = vadd.f32 %v6756, %v6779
    %6781 = vdwg.mxu0
    %6782 = vmatpush.xpose.msra.mxu0 0.0
    %6783 = vmatpush.xpose.msra.mxu0 0.0
    %6784 = vmatpush.xpose.msra.mxu0 0.0
    %6785 = vmatpush.xpose.msra.mxu0 0.0
    %6786 = vmatpush.xpose.msra.mxu0 0.0
    %6787 = vmatpush.xpose.msra.mxu0 0.0
    %6788 = vmatpush.xpose.msra.mxu0 0.0
    %6789 = vmatpush.xpose.msra.mxu0 0.0
    %6790 = vmatpush.xpose.msra.mxu0 0.0
    %6791 = vmatpush.xpose.msra.mxu0 0.0
    %6792 = vmatpush.xpose.msra.mxu0 0.0
    %6793 = vmatpush.xpose.msra.mxu0 0.0
    %6794 = vmatpush.xpose.msra.mxu0 0.0
    %6795 = vmatpush.xpose.msra.mxu0 0.0
    %6796 = vmatpush.xpose.msra.mxu0 0.0
    %v6797 = vand.u32 %v469, 4294901760
    %6798 = vmatpush.xpose.msra.mxu0 %v6797
    %v6799 = vand.u32 %v339, 4294901760
    %6800 = vmatmul.f32.gmra.mxu0 %v6799
    %v6801 = vpop.f32.mrf.mxu0
    %v6802 = vadd.f32 %v6780, %v6801
    %6803 = vdwg.mxu0
    %6804 = vmatpush.xpose.msra.mxu0 0.0
    %6805 = vmatpush.xpose.msra.mxu0 0.0
    %6806 = vmatpush.xpose.msra.mxu0 0.0
    %6807 = vmatpush.xpose.msra.mxu0 0.0
    %6808 = vmatpush.xpose.msra.mxu0 0.0
    %6809 = vmatpush.xpose.msra.mxu0 0.0
    %6810 = vmatpush.xpose.msra.mxu0 0.0
    %6811 = vmatpush.xpose.msra.mxu0 0.0
    %6812 = vmatpush.xpose.msra.mxu0 0.0
    %6813 = vmatpush.xpose.msra.mxu0 0.0
    %6814 = vmatpush.xpose.msra.mxu0 0.0
    %6815 = vmatpush.xpose.msra.mxu0 0.0
    %6816 = vmatpush.xpose.msra.mxu0 0.0
    %6817 = vmatpush.xpose.msra.mxu0 0.0
    %6818 = vmatpush.xpose.msra.mxu0 0.0
    %v6819 = vand.u32 %v470, 4294901760
    %6820 = vmatpush.xpose.msra.mxu0 %v6819
    %v6821 = vand.u32 %v340, 4294901760
    %v6822 = vsub.f32 %v340, %v6821
    %v6823 = vand.u32 %v6822, 4294901760
    %v6824 = vsub.f32 %v6822, %v6823
    %v6825 = vand.u32 %v6824, 4294901760
    %6826 = vmatmul.f32.gmra.mxu0 %v6825
    %v6827 = vpop.f32.mrf.mxu0
    %v6828 = vadd.f32 %v6802, %v6827
    %6829 = vdwg.mxu0
    %6830 = vmatpush.xpose.msra.mxu0 0.0
    %6831 = vmatpush.xpose.msra.mxu0 0.0
    %6832 = vmatpush.xpose.msra.mxu0 0.0
    %6833 = vmatpush.xpose.msra.mxu0 0.0
    %6834 = vmatpush.xpose.msra.mxu0 0.0
    %6835 = vmatpush.xpose.msra.mxu0 0.0
    %6836 = vmatpush.xpose.msra.mxu0 0.0
    %6837 = vmatpush.xpose.msra.mxu0 0.0
    %6838 = vmatpush.xpose.msra.mxu0 0.0
    %6839 = vmatpush.xpose.msra.mxu0 0.0
    %6840 = vmatpush.xpose.msra.mxu0 0.0
    %6841 = vmatpush.xpose.msra.mxu0 0.0
    %6842 = vmatpush.xpose.msra.mxu0 0.0
    %6843 = vmatpush.xpose.msra.mxu0 0.0
    %6844 = vmatpush.xpose.msra.mxu0 0.0
    %v6845 = vand.u32 %v470, 4294901760
    %v6846 = vsub.f32 %v470, %v6845
    %v6847 = vand.u32 %v6846, 4294901760
    %v6848 = vsub.f32 %v6846, %v6847
    %v6849 = vand.u32 %v6848, 4294901760
    %6850 = vmatpush.xpose.msra.mxu0 %v6849
    %v6851 = vand.u32 %v340, 4294901760
    %6852 = vmatmul.f32.gmra.mxu0 %v6851
    %v6853 = vpop.f32.mrf.mxu0
    %v6854 = vadd.f32 %v6828, %v6853
    %6855 = vdwg.mxu0
    %6856 = vmatpush.xpose.msra.mxu0 0.0
    %6857 = vmatpush.xpose.msra.mxu0 0.0
    %6858 = vmatpush.xpose.msra.mxu0 0.0
    %6859 = vmatpush.xpose.msra.mxu0 0.0
    %6860 = vmatpush.xpose.msra.mxu0 0.0
    %6861 = vmatpush.xpose.msra.mxu0 0.0
    %6862 = vmatpush.xpose.msra.mxu0 0.0
    %6863 = vmatpush.xpose.msra.mxu0 0.0
    %6864 = vmatpush.xpose.msra.mxu0 0.0
    %6865 = vmatpush.xpose.msra.mxu0 0.0
    %6866 = vmatpush.xpose.msra.mxu0 0.0
    %6867 = vmatpush.xpose.msra.mxu0 0.0
    %6868 = vmatpush.xpose.msra.mxu0 0.0
    %6869 = vmatpush.xpose.msra.mxu0 0.0
    %6870 = vmatpush.xpose.msra.mxu0 0.0
    %v6871 = vand.u32 %v470, 4294901760
    %v6872 = vsub.f32 %v470, %v6871
    %6873 = vmatpush.xpose.msra.mxu0 %v6872
    %v6874 = vand.u32 %v340, 4294901760
    %v6875 = vsub.f32 %v340, %v6874
    %6876 = vmatmul.f32.gmra.mxu0 %v6875
    %v6877 = vpop.f32.mrf.mxu0
    %v6878 = vadd.f32 %v6854, %v6877
    %6879 = vdwg.mxu0
    %6880 = vmatpush.xpose.msra.mxu0 0.0
    %6881 = vmatpush.xpose.msra.mxu0 0.0
    %6882 = vmatpush.xpose.msra.mxu0 0.0
    %6883 = vmatpush.xpose.msra.mxu0 0.0
    %6884 = vmatpush.xpose.msra.mxu0 0.0
    %6885 = vmatpush.xpose.msra.mxu0 0.0
    %6886 = vmatpush.xpose.msra.mxu0 0.0
    %6887 = vmatpush.xpose.msra.mxu0 0.0
    %6888 = vmatpush.xpose.msra.mxu0 0.0
    %6889 = vmatpush.xpose.msra.mxu0 0.0
    %6890 = vmatpush.xpose.msra.mxu0 0.0
    %6891 = vmatpush.xpose.msra.mxu0 0.0
    %6892 = vmatpush.xpose.msra.mxu0 0.0
    %6893 = vmatpush.xpose.msra.mxu0 0.0
    %6894 = vmatpush.xpose.msra.mxu0 0.0
    %v6895 = vand.u32 %v470, 4294901760
    %6896 = vmatpush.xpose.msra.mxu0 %v6895
    %v6897 = vand.u32 %v340, 4294901760
    %v6898 = vsub.f32 %v340, %v6897
    %v6899 = vand.u32 %v6898, 4294901760
    %6900 = vmatmul.f32.gmra.mxu0 %v6899
    %v6901 = vpop.f32.mrf.mxu0
    %v6902 = vadd.f32 %v6878, %v6901
    %6903 = vdwg.mxu0
    %6904 = vmatpush.xpose.msra.mxu0 0.0
    %6905 = vmatpush.xpose.msra.mxu0 0.0
    %6906 = vmatpush.xpose.msra.mxu0 0.0
    %6907 = vmatpush.xpose.msra.mxu0 0.0
    %6908 = vmatpush.xpose.msra.mxu0 0.0
    %6909 = vmatpush.xpose.msra.mxu0 0.0
    %6910 = vmatpush.xpose.msra.mxu0 0.0
    %6911 = vmatpush.xpose.msra.mxu0 0.0
    %6912 = vmatpush.xpose.msra.mxu0 0.0
    %6913 = vmatpush.xpose.msra.mxu0 0.0
    %6914 = vmatpush.xpose.msra.mxu0 0.0
    %6915 = vmatpush.xpose.msra.mxu0 0.0
    %6916 = vmatpush.xpose.msra.mxu0 0.0
    %6917 = vmatpush.xpose.msra.mxu0 0.0
    %6918 = vmatpush.xpose.msra.mxu0 0.0
    %v6919 = vand.u32 %v470, 4294901760
    %v6920 = vsub.f32 %v470, %v6919
    %v6921 = vand.u32 %v6920, 4294901760
    %6922 = vmatpush.xpose.msra.mxu0 %v6921
    %v6923 = vand.u32 %v340, 4294901760
    %6924 = vmatmul.f32.gmra.mxu0 %v6923
    %v6925 = vpop.f32.mrf.mxu0
    %v6926 = vadd.f32 %v6902, %v6925
    %6927 = vdwg.mxu0
    %6928 = vmatpush.xpose.msra.mxu0 0.0
    %6929 = vmatpush.xpose.msra.mxu0 0.0
    %6930 = vmatpush.xpose.msra.mxu0 0.0
    %6931 = vmatpush.xpose.msra.mxu0 0.0
    %6932 = vmatpush.xpose.msra.mxu0 0.0
    %6933 = vmatpush.xpose.msra.mxu0 0.0
    %6934 = vmatpush.xpose.msra.mxu0 0.0
    %6935 = vmatpush.xpose.msra.mxu0 0.0
    %6936 = vmatpush.xpose.msra.mxu0 0.0
    %6937 = vmatpush.xpose.msra.mxu0 0.0
    %6938 = vmatpush.xpose.msra.mxu0 0.0
    %6939 = vmatpush.xpose.msra.mxu0 0.0
    %6940 = vmatpush.xpose.msra.mxu0 0.0
    %6941 = vmatpush.xpose.msra.mxu0 0.0
    %6942 = vmatpush.xpose.msra.mxu0 0.0
    %v6943 = vand.u32 %v470, 4294901760
    %6944 = vmatpush.xpose.msra.mxu0 %v6943
    %v6945 = vand.u32 %v340, 4294901760
    %6946 = vmatmul.f32.gmra.mxu0 %v6945
    %v6947 = vpop.f32.mrf.mxu0
    %v6948 = vadd.f32 %v6926, %v6947
    %6949 = vdwg.mxu0
    %6950 = vmatpush.xpose.msra.mxu0 0.0
    %6951 = vmatpush.xpose.msra.mxu0 0.0
    %6952 = vmatpush.xpose.msra.mxu0 0.0
    %6953 = vmatpush.xpose.msra.mxu0 0.0
    %6954 = vmatpush.xpose.msra.mxu0 0.0
    %6955 = vmatpush.xpose.msra.mxu0 0.0
    %6956 = vmatpush.xpose.msra.mxu0 0.0
    %6957 = vmatpush.xpose.msra.mxu0 0.0
    %6958 = vmatpush.xpose.msra.mxu0 0.0
    %6959 = vmatpush.xpose.msra.mxu0 0.0
    %6960 = vmatpush.xpose.msra.mxu0 0.0
    %6961 = vmatpush.xpose.msra.mxu0 0.0
    %6962 = vmatpush.xpose.msra.mxu0 0.0
    %6963 = vmatpush.xpose.msra.mxu0 0.0
    %6964 = vmatpush.xpose.msra.mxu0 0.0
    %v6965 = vand.u32 %v471, 4294901760
    %6966 = vmatpush.xpose.msra.mxu0 %v6965
    %v6967 = vand.u32 %v341, 4294901760
    %v6968 = vsub.f32 %v341, %v6967
    %v6969 = vand.u32 %v6968, 4294901760
    %v6970 = vsub.f32 %v6968, %v6969
    %v6971 = vand.u32 %v6970, 4294901760
    %6972 = vmatmul.f32.gmra.mxu0 %v6971
    %v6973 = vpop.f32.mrf.mxu0
    %v6974 = vadd.f32 %v6948, %v6973
    %6975 = vdwg.mxu0
    %6976 = vmatpush.xpose.msra.mxu0 0.0
    %6977 = vmatpush.xpose.msra.mxu0 0.0
    %6978 = vmatpush.xpose.msra.mxu0 0.0
    %6979 = vmatpush.xpose.msra.mxu0 0.0
    %6980 = vmatpush.xpose.msra.mxu0 0.0
    %6981 = vmatpush.xpose.msra.mxu0 0.0
    %6982 = vmatpush.xpose.msra.mxu0 0.0
    %6983 = vmatpush.xpose.msra.mxu0 0.0
    %6984 = vmatpush.xpose.msra.mxu0 0.0
    %6985 = vmatpush.xpose.msra.mxu0 0.0
    %6986 = vmatpush.xpose.msra.mxu0 0.0
    %6987 = vmatpush.xpose.msra.mxu0 0.0
    %6988 = vmatpush.xpose.msra.mxu0 0.0
    %6989 = vmatpush.xpose.msra.mxu0 0.0
    %6990 = vmatpush.xpose.msra.mxu0 0.0
    %v6991 = vand.u32 %v471, 4294901760
    %v6992 = vsub.f32 %v471, %v6991
    %v6993 = vand.u32 %v6992, 4294901760
    %v6994 = vsub.f32 %v6992, %v6993
    %v6995 = vand.u32 %v6994, 4294901760
    %6996 = vmatpush.xpose.msra.mxu0 %v6995
    %v6997 = vand.u32 %v341, 4294901760
    %6998 = vmatmul.f32.gmra.mxu0 %v6997
    %v6999 = vpop.f32.mrf.mxu0
    %v7000 = vadd.f32 %v6974, %v6999
    %7001 = vdwg.mxu0
    %7002 = vmatpush.xpose.msra.mxu0 0.0
    %7003 = vmatpush.xpose.msra.mxu0 0.0
    %7004 = vmatpush.xpose.msra.mxu0 0.0
    %7005 = vmatpush.xpose.msra.mxu0 0.0
    %7006 = vmatpush.xpose.msra.mxu0 0.0
    %7007 = vmatpush.xpose.msra.mxu0 0.0
    %7008 = vmatpush.xpose.msra.mxu0 0.0
    %7009 = vmatpush.xpose.msra.mxu0 0.0
    %7010 = vmatpush.xpose.msra.mxu0 0.0
    %7011 = vmatpush.xpose.msra.mxu0 0.0
    %7012 = vmatpush.xpose.msra.mxu0 0.0
    %7013 = vmatpush.xpose.msra.mxu0 0.0
    %7014 = vmatpush.xpose.msra.mxu0 0.0
    %7015 = vmatpush.xpose.msra.mxu0 0.0
    %7016 = vmatpush.xpose.msra.mxu0 0.0
    %v7017 = vand.u32 %v471, 4294901760
    %v7018 = vsub.f32 %v471, %v7017
    %7019 = vmatpush.xpose.msra.mxu0 %v7018
    %v7020 = vand.u32 %v341, 4294901760
    %v7021 = vsub.f32 %v341, %v7020
    %7022 = vmatmul.f32.gmra.mxu0 %v7021
    %v7023 = vpop.f32.mrf.mxu0
    %v7024 = vadd.f32 %v7000, %v7023
    %7025 = vdwg.mxu0
    %7026 = vmatpush.xpose.msra.mxu0 0.0
    %7027 = vmatpush.xpose.msra.mxu0 0.0
    %7028 = vmatpush.xpose.msra.mxu0 0.0
    %7029 = vmatpush.xpose.msra.mxu0 0.0
    %7030 = vmatpush.xpose.msra.mxu0 0.0
    %7031 = vmatpush.xpose.msra.mxu0 0.0
    %7032 = vmatpush.xpose.msra.mxu0 0.0
    %7033 = vmatpush.xpose.msra.mxu0 0.0
    %7034 = vmatpush.xpose.msra.mxu0 0.0
    %7035 = vmatpush.xpose.msra.mxu0 0.0
    %7036 = vmatpush.xpose.msra.mxu0 0.0
    %7037 = vmatpush.xpose.msra.mxu0 0.0
    %7038 = vmatpush.xpose.msra.mxu0 0.0
    %7039 = vmatpush.xpose.msra.mxu0 0.0
    %7040 = vmatpush.xpose.msra.mxu0 0.0
    %v7041 = vand.u32 %v471, 4294901760
    %7042 = vmatpush.xpose.msra.mxu0 %v7041
    %v7043 = vand.u32 %v341, 4294901760
    %v7044 = vsub.f32 %v341, %v7043
    %v7045 = vand.u32 %v7044, 4294901760
    %7046 = vmatmul.f32.gmra.mxu0 %v7045
    %v7047 = vpop.f32.mrf.mxu0
    %v7048 = vadd.f32 %v7024, %v7047
    %7049 = vdwg.mxu0
    %7050 = vmatpush.xpose.msra.mxu0 0.0
    %7051 = vmatpush.xpose.msra.mxu0 0.0
    %7052 = vmatpush.xpose.msra.mxu0 0.0
    %7053 = vmatpush.xpose.msra.mxu0 0.0
    %7054 = vmatpush.xpose.msra.mxu0 0.0
    %7055 = vmatpush.xpose.msra.mxu0 0.0
    %7056 = vmatpush.xpose.msra.mxu0 0.0
    %7057 = vmatpush.xpose.msra.mxu0 0.0
    %7058 = vmatpush.xpose.msra.mxu0 0.0
    %7059 = vmatpush.xpose.msra.mxu0 0.0
    %7060 = vmatpush.xpose.msra.mxu0 0.0
    %7061 = vmatpush.xpose.msra.mxu0 0.0
    %7062 = vmatpush.xpose.msra.mxu0 0.0
    %7063 = vmatpush.xpose.msra.mxu0 0.0
    %7064 = vmatpush.xpose.msra.mxu0 0.0
    %v7065 = vand.u32 %v471, 4294901760
    %v7066 = vsub.f32 %v471, %v7065
    %v7067 = vand.u32 %v7066, 4294901760
    %7068 = vmatpush.xpose.msra.mxu0 %v7067
    %v7069 = vand.u32 %v341, 4294901760
    %7070 = vmatmul.f32.gmra.mxu0 %v7069
    %v7071 = vpop.f32.mrf.mxu0
    %v7072 = vadd.f32 %v7048, %v7071
    %7073 = vdwg.mxu0
    %7074 = vmatpush.xpose.msra.mxu0 0.0
    %7075 = vmatpush.xpose.msra.mxu0 0.0
    %7076 = vmatpush.xpose.msra.mxu0 0.0
    %7077 = vmatpush.xpose.msra.mxu0 0.0
    %7078 = vmatpush.xpose.msra.mxu0 0.0
    %7079 = vmatpush.xpose.msra.mxu0 0.0
    %7080 = vmatpush.xpose.msra.mxu0 0.0
    %7081 = vmatpush.xpose.msra.mxu0 0.0
    %7082 = vmatpush.xpose.msra.mxu0 0.0
    %7083 = vmatpush.xpose.msra.mxu0 0.0
    %7084 = vmatpush.xpose.msra.mxu0 0.0
    %7085 = vmatpush.xpose.msra.mxu0 0.0
    %7086 = vmatpush.xpose.msra.mxu0 0.0
    %7087 = vmatpush.xpose.msra.mxu0 0.0
    %7088 = vmatpush.xpose.msra.mxu0 0.0
    %v7089 = vand.u32 %v471, 4294901760
    %7090 = vmatpush.xpose.msra.mxu0 %v7089
    %v7091 = vand.u32 %v341, 4294901760
    %7092 = vmatmul.f32.gmra.mxu0 %v7091
    %v7093 = vpop.f32.mrf.mxu0
    %v7094 = vadd.f32 %v7072, %v7093
    %7095 = vdwg.mxu0
    %7096 = vmatpush.xpose.msra.mxu0 0.0
    %7097 = vmatpush.xpose.msra.mxu0 0.0
    %7098 = vmatpush.xpose.msra.mxu0 0.0
    %7099 = vmatpush.xpose.msra.mxu0 0.0
    %7100 = vmatpush.xpose.msra.mxu0 0.0
    %7101 = vmatpush.xpose.msra.mxu0 0.0
    %7102 = vmatpush.xpose.msra.mxu0 0.0
    %7103 = vmatpush.xpose.msra.mxu0 0.0
    %7104 = vmatpush.xpose.msra.mxu0 0.0
    %7105 = vmatpush.xpose.msra.mxu0 0.0
    %7106 = vmatpush.xpose.msra.mxu0 0.0
    %7107 = vmatpush.xpose.msra.mxu0 0.0
    %7108 = vmatpush.xpose.msra.mxu0 0.0
    %7109 = vmatpush.xpose.msra.mxu0 0.0
    %7110 = vmatpush.xpose.msra.mxu0 0.0
    %v7111 = vand.u32 %v472, 4294901760
    %7112 = vmatpush.xpose.msra.mxu0 %v7111
    %v7113 = vand.u32 %v342, 4294901760
    %v7114 = vsub.f32 %v342, %v7113
    %v7115 = vand.u32 %v7114, 4294901760
    %v7116 = vsub.f32 %v7114, %v7115
    %v7117 = vand.u32 %v7116, 4294901760
    %7118 = vmatmul.f32.gmra.mxu0 %v7117
    %v7119 = vpop.f32.mrf.mxu0
    %v7120 = vadd.f32 %v7094, %v7119
    %7121 = vdwg.mxu0
    %7122 = vmatpush.xpose.msra.mxu0 0.0
    %7123 = vmatpush.xpose.msra.mxu0 0.0
    %7124 = vmatpush.xpose.msra.mxu0 0.0
    %7125 = vmatpush.xpose.msra.mxu0 0.0
    %7126 = vmatpush.xpose.msra.mxu0 0.0
    %7127 = vmatpush.xpose.msra.mxu0 0.0
    %7128 = vmatpush.xpose.msra.mxu0 0.0
    %7129 = vmatpush.xpose.msra.mxu0 0.0
    %7130 = vmatpush.xpose.msra.mxu0 0.0
    %7131 = vmatpush.xpose.msra.mxu0 0.0
    %7132 = vmatpush.xpose.msra.mxu0 0.0
    %7133 = vmatpush.xpose.msra.mxu0 0.0
    %7134 = vmatpush.xpose.msra.mxu0 0.0
    %7135 = vmatpush.xpose.msra.mxu0 0.0
    %7136 = vmatpush.xpose.msra.mxu0 0.0
    %v7137 = vand.u32 %v472, 4294901760
    %v7138 = vsub.f32 %v472, %v7137
    %v7139 = vand.u32 %v7138, 4294901760
    %v7140 = vsub.f32 %v7138, %v7139
    %v7141 = vand.u32 %v7140, 4294901760
    %7142 = vmatpush.xpose.msra.mxu0 %v7141
    %v7143 = vand.u32 %v342, 4294901760
    %7144 = vmatmul.f32.gmra.mxu0 %v7143
    %v7145 = vpop.f32.mrf.mxu0
    %v7146 = vadd.f32 %v7120, %v7145
    %7147 = vdwg.mxu0
    %7148 = vmatpush.xpose.msra.mxu0 0.0
    %7149 = vmatpush.xpose.msra.mxu0 0.0
    %7150 = vmatpush.xpose.msra.mxu0 0.0
    %7151 = vmatpush.xpose.msra.mxu0 0.0
    %7152 = vmatpush.xpose.msra.mxu0 0.0
    %7153 = vmatpush.xpose.msra.mxu0 0.0
    %7154 = vmatpush.xpose.msra.mxu0 0.0
    %7155 = vmatpush.xpose.msra.mxu0 0.0
    %7156 = vmatpush.xpose.msra.mxu0 0.0
    %7157 = vmatpush.xpose.msra.mxu0 0.0
    %7158 = vmatpush.xpose.msra.mxu0 0.0
    %7159 = vmatpush.xpose.msra.mxu0 0.0
    %7160 = vmatpush.xpose.msra.mxu0 0.0
    %7161 = vmatpush.xpose.msra.mxu0 0.0
    %7162 = vmatpush.xpose.msra.mxu0 0.0
    %v7163 = vand.u32 %v472, 4294901760
    %v7164 = vsub.f32 %v472, %v7163
    %7165 = vmatpush.xpose.msra.mxu0 %v7164
    %v7166 = vand.u32 %v342, 4294901760
    %v7167 = vsub.f32 %v342, %v7166
    %7168 = vmatmul.f32.gmra.mxu0 %v7167
    %v7169 = vpop.f32.mrf.mxu0
    %v7170 = vadd.f32 %v7146, %v7169
    %7171 = vdwg.mxu0
    %7172 = vmatpush.xpose.msra.mxu0 0.0
    %7173 = vmatpush.xpose.msra.mxu0 0.0
    %7174 = vmatpush.xpose.msra.mxu0 0.0
    %7175 = vmatpush.xpose.msra.mxu0 0.0
    %7176 = vmatpush.xpose.msra.mxu0 0.0
    %7177 = vmatpush.xpose.msra.mxu0 0.0
    %7178 = vmatpush.xpose.msra.mxu0 0.0
    %7179 = vmatpush.xpose.msra.mxu0 0.0
    %7180 = vmatpush.xpose.msra.mxu0 0.0
    %7181 = vmatpush.xpose.msra.mxu0 0.0
    %7182 = vmatpush.xpose.msra.mxu0 0.0
    %7183 = vmatpush.xpose.msra.mxu0 0.0
    %7184 = vmatpush.xpose.msra.mxu0 0.0
    %7185 = vmatpush.xpose.msra.mxu0 0.0
    %7186 = vmatpush.xpose.msra.mxu0 0.0
    %v7187 = vand.u32 %v472, 4294901760
    %7188 = vmatpush.xpose.msra.mxu0 %v7187
    %v7189 = vand.u32 %v342, 4294901760
    %v7190 = vsub.f32 %v342, %v7189
    %v7191 = vand.u32 %v7190, 4294901760
    %7192 = vmatmul.f32.gmra.mxu0 %v7191
    %v7193 = vpop.f32.mrf.mxu0
    %v7194 = vadd.f32 %v7170, %v7193
    %7195 = vdwg.mxu0
    %7196 = vmatpush.xpose.msra.mxu0 0.0
    %7197 = vmatpush.xpose.msra.mxu0 0.0
    %7198 = vmatpush.xpose.msra.mxu0 0.0
    %7199 = vmatpush.xpose.msra.mxu0 0.0
    %7200 = vmatpush.xpose.msra.mxu0 0.0
    %7201 = vmatpush.xpose.msra.mxu0 0.0
    %7202 = vmatpush.xpose.msra.mxu0 0.0
    %7203 = vmatpush.xpose.msra.mxu0 0.0
    %7204 = vmatpush.xpose.msra.mxu0 0.0
    %7205 = vmatpush.xpose.msra.mxu0 0.0
    %7206 = vmatpush.xpose.msra.mxu0 0.0
    %7207 = vmatpush.xpose.msra.mxu0 0.0
    %7208 = vmatpush.xpose.msra.mxu0 0.0
    %7209 = vmatpush.xpose.msra.mxu0 0.0
    %7210 = vmatpush.xpose.msra.mxu0 0.0
    %v7211 = vand.u32 %v472, 4294901760
    %v7212 = vsub.f32 %v472, %v7211
    %v7213 = vand.u32 %v7212, 4294901760
    %7214 = vmatpush.xpose.msra.mxu0 %v7213
    %v7215 = vand.u32 %v342, 4294901760
    %7216 = vmatmul.f32.gmra.mxu0 %v7215
    %v7217 = vpop.f32.mrf.mxu0
    %v7218 = vadd.f32 %v7194, %v7217
    %7219 = vdwg.mxu0
    %7220 = vmatpush.xpose.msra.mxu0 0.0
    %7221 = vmatpush.xpose.msra.mxu0 0.0
    %7222 = vmatpush.xpose.msra.mxu0 0.0
    %7223 = vmatpush.xpose.msra.mxu0 0.0
    %7224 = vmatpush.xpose.msra.mxu0 0.0
    %7225 = vmatpush.xpose.msra.mxu0 0.0
    %7226 = vmatpush.xpose.msra.mxu0 0.0
    %7227 = vmatpush.xpose.msra.mxu0 0.0
    %7228 = vmatpush.xpose.msra.mxu0 0.0
    %7229 = vmatpush.xpose.msra.mxu0 0.0
    %7230 = vmatpush.xpose.msra.mxu0 0.0
    %7231 = vmatpush.xpose.msra.mxu0 0.0
    %7232 = vmatpush.xpose.msra.mxu0 0.0
    %7233 = vmatpush.xpose.msra.mxu0 0.0
    %7234 = vmatpush.xpose.msra.mxu0 0.0
    %v7235 = vand.u32 %v472, 4294901760
    %7236 = vmatpush.xpose.msra.mxu0 %v7235
    %v7237 = vand.u32 %v342, 4294901760
    %7238 = vmatmul.f32.gmra.mxu0 %v7237
    %v7239 = vpop.f32.mrf.mxu0
    %v7240 = vadd.f32 %v7218, %v7239
    %7241 = vdwg.mxu0
    %7242 = vmatpush.xpose.msra.mxu0 0.0
    %7243 = vmatpush.xpose.msra.mxu0 0.0
    %7244 = vmatpush.xpose.msra.mxu0 0.0
    %7245 = vmatpush.xpose.msra.mxu0 0.0
    %7246 = vmatpush.xpose.msra.mxu0 0.0
    %7247 = vmatpush.xpose.msra.mxu0 0.0
    %7248 = vmatpush.xpose.msra.mxu0 0.0
    %7249 = vmatpush.xpose.msra.mxu0 0.0
    %7250 = vmatpush.xpose.msra.mxu0 0.0
    %7251 = vmatpush.xpose.msra.mxu0 0.0
    %7252 = vmatpush.xpose.msra.mxu0 0.0
    %7253 = vmatpush.xpose.msra.mxu0 0.0
    %7254 = vmatpush.xpose.msra.mxu0 0.0
    %7255 = vmatpush.xpose.msra.mxu0 0.0
    %7256 = vmatpush.xpose.msra.mxu0 0.0
    %v7257 = vand.u32 %v473, 4294901760
    %7258 = vmatpush.xpose.msra.mxu0 %v7257
    %v7259 = vand.u32 %v343, 4294901760
    %v7260 = vsub.f32 %v343, %v7259
    %v7261 = vand.u32 %v7260, 4294901760
    %v7262 = vsub.f32 %v7260, %v7261
    %v7263 = vand.u32 %v7262, 4294901760
    %7264 = vmatmul.f32.gmra.mxu0 %v7263
    %v7265 = vpop.f32.mrf.mxu0
    %v7266 = vadd.f32 %v7240, %v7265
    %7267 = vdwg.mxu0
    %7268 = vmatpush.xpose.msra.mxu0 0.0
    %7269 = vmatpush.xpose.msra.mxu0 0.0
    %7270 = vmatpush.xpose.msra.mxu0 0.0
    %7271 = vmatpush.xpose.msra.mxu0 0.0
    %7272 = vmatpush.xpose.msra.mxu0 0.0
    %7273 = vmatpush.xpose.msra.mxu0 0.0
    %7274 = vmatpush.xpose.msra.mxu0 0.0
    %7275 = vmatpush.xpose.msra.mxu0 0.0
    %7276 = vmatpush.xpose.msra.mxu0 0.0
    %7277 = vmatpush.xpose.msra.mxu0 0.0
    %7278 = vmatpush.xpose.msra.mxu0 0.0
    %7279 = vmatpush.xpose.msra.mxu0 0.0
    %7280 = vmatpush.xpose.msra.mxu0 0.0
    %7281 = vmatpush.xpose.msra.mxu0 0.0
    %7282 = vmatpush.xpose.msra.mxu0 0.0
    %v7283 = vand.u32 %v473, 4294901760
    %v7284 = vsub.f32 %v473, %v7283
    %v7285 = vand.u32 %v7284, 4294901760
    %v7286 = vsub.f32 %v7284, %v7285
    %v7287 = vand.u32 %v7286, 4294901760
    %7288 = vmatpush.xpose.msra.mxu0 %v7287
    %v7289 = vand.u32 %v343, 4294901760
    %7290 = vmatmul.f32.gmra.mxu0 %v7289
    %v7291 = vpop.f32.mrf.mxu0
    %v7292 = vadd.f32 %v7266, %v7291
    %7293 = vdwg.mxu0
    %7294 = vmatpush.xpose.msra.mxu0 0.0
    %7295 = vmatpush.xpose.msra.mxu0 0.0
    %7296 = vmatpush.xpose.msra.mxu0 0.0
    %7297 = vmatpush.xpose.msra.mxu0 0.0
    %7298 = vmatpush.xpose.msra.mxu0 0.0
    %7299 = vmatpush.xpose.msra.mxu0 0.0
    %7300 = vmatpush.xpose.msra.mxu0 0.0
    %7301 = vmatpush.xpose.msra.mxu0 0.0
    %7302 = vmatpush.xpose.msra.mxu0 0.0
    %7303 = vmatpush.xpose.msra.mxu0 0.0
    %7304 = vmatpush.xpose.msra.mxu0 0.0
    %7305 = vmatpush.xpose.msra.mxu0 0.0
    %7306 = vmatpush.xpose.msra.mxu0 0.0
    %7307 = vmatpush.xpose.msra.mxu0 0.0
    %7308 = vmatpush.xpose.msra.mxu0 0.0
    %v7309 = vand.u32 %v473, 4294901760
    %v7310 = vsub.f32 %v473, %v7309
    %7311 = vmatpush.xpose.msra.mxu0 %v7310
    %v7312 = vand.u32 %v343, 4294901760
    %v7313 = vsub.f32 %v343, %v7312
    %7314 = vmatmul.f32.gmra.mxu0 %v7313
    %v7315 = vpop.f32.mrf.mxu0
    %v7316 = vadd.f32 %v7292, %v7315
    %7317 = vdwg.mxu0
    %7318 = vmatpush.xpose.msra.mxu0 0.0
    %7319 = vmatpush.xpose.msra.mxu0 0.0
    %7320 = vmatpush.xpose.msra.mxu0 0.0
    %7321 = vmatpush.xpose.msra.mxu0 0.0
    %7322 = vmatpush.xpose.msra.mxu0 0.0
    %7323 = vmatpush.xpose.msra.mxu0 0.0
    %7324 = vmatpush.xpose.msra.mxu0 0.0
    %7325 = vmatpush.xpose.msra.mxu0 0.0
    %7326 = vmatpush.xpose.msra.mxu0 0.0
    %7327 = vmatpush.xpose.msra.mxu0 0.0
    %7328 = vmatpush.xpose.msra.mxu0 0.0
    %7329 = vmatpush.xpose.msra.mxu0 0.0
    %7330 = vmatpush.xpose.msra.mxu0 0.0
    %7331 = vmatpush.xpose.msra.mxu0 0.0
    %7332 = vmatpush.xpose.msra.mxu0 0.0
    %v7333 = vand.u32 %v473, 4294901760
    %7334 = vmatpush.xpose.msra.mxu0 %v7333
    %v7335 = vand.u32 %v343, 4294901760
    %v7336 = vsub.f32 %v343, %v7335
    %v7337 = vand.u32 %v7336, 4294901760
    %7338 = vmatmul.f32.gmra.mxu0 %v7337
    %v7339 = vpop.f32.mrf.mxu0
    %v7340 = vadd.f32 %v7316, %v7339
    %7341 = vdwg.mxu0
    %7342 = vmatpush.xpose.msra.mxu0 0.0
    %7343 = vmatpush.xpose.msra.mxu0 0.0
    %7344 = vmatpush.xpose.msra.mxu0 0.0
    %7345 = vmatpush.xpose.msra.mxu0 0.0
    %7346 = vmatpush.xpose.msra.mxu0 0.0
    %7347 = vmatpush.xpose.msra.mxu0 0.0
    %7348 = vmatpush.xpose.msra.mxu0 0.0
    %7349 = vmatpush.xpose.msra.mxu0 0.0
    %7350 = vmatpush.xpose.msra.mxu0 0.0
    %7351 = vmatpush.xpose.msra.mxu0 0.0
    %7352 = vmatpush.xpose.msra.mxu0 0.0
    %7353 = vmatpush.xpose.msra.mxu0 0.0
    %7354 = vmatpush.xpose.msra.mxu0 0.0
    %7355 = vmatpush.xpose.msra.mxu0 0.0
    %7356 = vmatpush.xpose.msra.mxu0 0.0
    %v7357 = vand.u32 %v473, 4294901760
    %v7358 = vsub.f32 %v473, %v7357
    %v7359 = vand.u32 %v7358, 4294901760
    %7360 = vmatpush.xpose.msra.mxu0 %v7359
    %v7361 = vand.u32 %v343, 4294901760
    %7362 = vmatmul.f32.gmra.mxu0 %v7361
    %v7363 = vpop.f32.mrf.mxu0
    %v7364 = vadd.f32 %v7340, %v7363
    %7365 = vdwg.mxu0
    %7366 = vmatpush.xpose.msra.mxu0 0.0
    %7367 = vmatpush.xpose.msra.mxu0 0.0
    %7368 = vmatpush.xpose.msra.mxu0 0.0
    %7369 = vmatpush.xpose.msra.mxu0 0.0
    %7370 = vmatpush.xpose.msra.mxu0 0.0
    %7371 = vmatpush.xpose.msra.mxu0 0.0
    %7372 = vmatpush.xpose.msra.mxu0 0.0
    %7373 = vmatpush.xpose.msra.mxu0 0.0
    %7374 = vmatpush.xpose.msra.mxu0 0.0
    %7375 = vmatpush.xpose.msra.mxu0 0.0
    %7376 = vmatpush.xpose.msra.mxu0 0.0
    %7377 = vmatpush.xpose.msra.mxu0 0.0
    %7378 = vmatpush.xpose.msra.mxu0 0.0
    %7379 = vmatpush.xpose.msra.mxu0 0.0
    %7380 = vmatpush.xpose.msra.mxu0 0.0
    %v7381 = vand.u32 %v473, 4294901760
    %7382 = vmatpush.xpose.msra.mxu0 %v7381
    %v7383 = vand.u32 %v343, 4294901760
    %7384 = vmatmul.f32.gmra.mxu0 %v7383
    %v7385 = vpop.f32.mrf.mxu0
    %v7386 = vadd.f32 %v7364, %v7385
    %7387 = vdwg.mxu0
    %7388 = vmatpush.xpose.msra.mxu0 0.0
    %7389 = vmatpush.xpose.msra.mxu0 0.0
    %7390 = vmatpush.xpose.msra.mxu0 0.0
    %7391 = vmatpush.xpose.msra.mxu0 0.0
    %7392 = vmatpush.xpose.msra.mxu0 0.0
    %7393 = vmatpush.xpose.msra.mxu0 0.0
    %7394 = vmatpush.xpose.msra.mxu0 0.0
    %7395 = vmatpush.xpose.msra.mxu0 0.0
    %7396 = vmatpush.xpose.msra.mxu0 0.0
    %7397 = vmatpush.xpose.msra.mxu0 0.0
    %7398 = vmatpush.xpose.msra.mxu0 0.0
    %7399 = vmatpush.xpose.msra.mxu0 0.0
    %7400 = vmatpush.xpose.msra.mxu0 0.0
    %7401 = vmatpush.xpose.msra.mxu0 0.0
    %7402 = vmatpush.xpose.msra.mxu0 0.0
    %v7403 = vand.u32 %v474, 4294901760
    %7404 = vmatpush.xpose.msra.mxu0 %v7403
    %v7405 = vand.u32 %v344, 4294901760
    %v7406 = vsub.f32 %v344, %v7405
    %v7407 = vand.u32 %v7406, 4294901760
    %v7408 = vsub.f32 %v7406, %v7407
    %v7409 = vand.u32 %v7408, 4294901760
    %7410 = vmatmul.f32.gmra.mxu0 %v7409
    %v7411 = vpop.f32.mrf.mxu0
    %v7412 = vadd.f32 %v7386, %v7411
    %7413 = vdwg.mxu0
    %7414 = vmatpush.xpose.msra.mxu0 0.0
    %7415 = vmatpush.xpose.msra.mxu0 0.0
    %7416 = vmatpush.xpose.msra.mxu0 0.0
    %7417 = vmatpush.xpose.msra.mxu0 0.0
    %7418 = vmatpush.xpose.msra.mxu0 0.0
    %7419 = vmatpush.xpose.msra.mxu0 0.0
    %7420 = vmatpush.xpose.msra.mxu0 0.0
    %7421 = vmatpush.xpose.msra.mxu0 0.0
    %7422 = vmatpush.xpose.msra.mxu0 0.0
    %7423 = vmatpush.xpose.msra.mxu0 0.0
    %7424 = vmatpush.xpose.msra.mxu0 0.0
    %7425 = vmatpush.xpose.msra.mxu0 0.0
    %7426 = vmatpush.xpose.msra.mxu0 0.0
    %7427 = vmatpush.xpose.msra.mxu0 0.0
    %7428 = vmatpush.xpose.msra.mxu0 0.0
    %v7429 = vand.u32 %v474, 4294901760
    %v7430 = vsub.f32 %v474, %v7429
    %v7431 = vand.u32 %v7430, 4294901760
    %v7432 = vsub.f32 %v7430, %v7431
    %v7433 = vand.u32 %v7432, 4294901760
    %7434 = vmatpush.xpose.msra.mxu0 %v7433
    %v7435 = vand.u32 %v344, 4294901760
    %7436 = vmatmul.f32.gmra.mxu0 %v7435
    %v7437 = vpop.f32.mrf.mxu0
    %v7438 = vadd.f32 %v7412, %v7437
    %7439 = vdwg.mxu0
    %7440 = vmatpush.xpose.msra.mxu0 0.0
    %7441 = vmatpush.xpose.msra.mxu0 0.0
    %7442 = vmatpush.xpose.msra.mxu0 0.0
    %7443 = vmatpush.xpose.msra.mxu0 0.0
    %7444 = vmatpush.xpose.msra.mxu0 0.0
    %7445 = vmatpush.xpose.msra.mxu0 0.0
    %7446 = vmatpush.xpose.msra.mxu0 0.0
    %7447 = vmatpush.xpose.msra.mxu0 0.0
    %7448 = vmatpush.xpose.msra.mxu0 0.0
    %7449 = vmatpush.xpose.msra.mxu0 0.0
    %7450 = vmatpush.xpose.msra.mxu0 0.0
    %7451 = vmatpush.xpose.msra.mxu0 0.0
    %7452 = vmatpush.xpose.msra.mxu0 0.0
    %7453 = vmatpush.xpose.msra.mxu0 0.0
    %7454 = vmatpush.xpose.msra.mxu0 0.0
    %v7455 = vand.u32 %v474, 4294901760
    %v7456 = vsub.f32 %v474, %v7455
    %7457 = vmatpush.xpose.msra.mxu0 %v7456
    %v7458 = vand.u32 %v344, 4294901760
    %v7459 = vsub.f32 %v344, %v7458
    %7460 = vmatmul.f32.gmra.mxu0 %v7459
    %v7461 = vpop.f32.mrf.mxu0
    %v7462 = vadd.f32 %v7438, %v7461
    %7463 = vdwg.mxu0
    %7464 = vmatpush.xpose.msra.mxu0 0.0
    %7465 = vmatpush.xpose.msra.mxu0 0.0
    %7466 = vmatpush.xpose.msra.mxu0 0.0
    %7467 = vmatpush.xpose.msra.mxu0 0.0
    %7468 = vmatpush.xpose.msra.mxu0 0.0
    %7469 = vmatpush.xpose.msra.mxu0 0.0
    %7470 = vmatpush.xpose.msra.mxu0 0.0
    %7471 = vmatpush.xpose.msra.mxu0 0.0
    %7472 = vmatpush.xpose.msra.mxu0 0.0
    %7473 = vmatpush.xpose.msra.mxu0 0.0
    %7474 = vmatpush.xpose.msra.mxu0 0.0
    %7475 = vmatpush.xpose.msra.mxu0 0.0
    %7476 = vmatpush.xpose.msra.mxu0 0.0
    %7477 = vmatpush.xpose.msra.mxu0 0.0
    %7478 = vmatpush.xpose.msra.mxu0 0.0
    %v7479 = vand.u32 %v474, 4294901760
    %7480 = vmatpush.xpose.msra.mxu0 %v7479
    %v7481 = vand.u32 %v344, 4294901760
    %v7482 = vsub.f32 %v344, %v7481
    %v7483 = vand.u32 %v7482, 4294901760
    %7484 = vmatmul.f32.gmra.mxu0 %v7483
    %v7485 = vpop.f32.mrf.mxu0
    %v7486 = vadd.f32 %v7462, %v7485
    %7487 = vdwg.mxu0
    %7488 = vmatpush.xpose.msra.mxu0 0.0
    %7489 = vmatpush.xpose.msra.mxu0 0.0
    %7490 = vmatpush.xpose.msra.mxu0 0.0
    %7491 = vmatpush.xpose.msra.mxu0 0.0
    %7492 = vmatpush.xpose.msra.mxu0 0.0
    %7493 = vmatpush.xpose.msra.mxu0 0.0
    %7494 = vmatpush.xpose.msra.mxu0 0.0
    %7495 = vmatpush.xpose.msra.mxu0 0.0
    %7496 = vmatpush.xpose.msra.mxu0 0.0
    %7497 = vmatpush.xpose.msra.mxu0 0.0
    %7498 = vmatpush.xpose.msra.mxu0 0.0
    %7499 = vmatpush.xpose.msra.mxu0 0.0
    %7500 = vmatpush.xpose.msra.mxu0 0.0
    %7501 = vmatpush.xpose.msra.mxu0 0.0
    %7502 = vmatpush.xpose.msra.mxu0 0.0
    %v7503 = vand.u32 %v474, 4294901760
    %v7504 = vsub.f32 %v474, %v7503
    %v7505 = vand.u32 %v7504, 4294901760
    %7506 = vmatpush.xpose.msra.mxu0 %v7505
    %v7507 = vand.u32 %v344, 4294901760
    %7508 = vmatmul.f32.gmra.mxu0 %v7507
    %v7509 = vpop.f32.mrf.mxu0
    %v7510 = vadd.f32 %v7486, %v7509
    %7511 = vdwg.mxu0
    %7512 = vmatpush.xpose.msra.mxu0 0.0
    %7513 = vmatpush.xpose.msra.mxu0 0.0
    %7514 = vmatpush.xpose.msra.mxu0 0.0
    %7515 = vmatpush.xpose.msra.mxu0 0.0
    %7516 = vmatpush.xpose.msra.mxu0 0.0
    %7517 = vmatpush.xpose.msra.mxu0 0.0
    %7518 = vmatpush.xpose.msra.mxu0 0.0
    %7519 = vmatpush.xpose.msra.mxu0 0.0
    %7520 = vmatpush.xpose.msra.mxu0 0.0
    %7521 = vmatpush.xpose.msra.mxu0 0.0
    %7522 = vmatpush.xpose.msra.mxu0 0.0
    %7523 = vmatpush.xpose.msra.mxu0 0.0
    %7524 = vmatpush.xpose.msra.mxu0 0.0
    %7525 = vmatpush.xpose.msra.mxu0 0.0
    %7526 = vmatpush.xpose.msra.mxu0 0.0
    %v7527 = vand.u32 %v474, 4294901760
    %7528 = vmatpush.xpose.msra.mxu0 %v7527
    %v7529 = vand.u32 %v344, 4294901760
    %7530 = vmatmul.f32.gmra.mxu0 %v7529
    %v7531 = vpop.f32.mrf.mxu0
    %v7532 = vadd.f32 %v7510, %v7531
    %7533 = vdwg.mxu0
    %7534 = vmatpush.xpose.msra.mxu0 0.0
    %7535 = vmatpush.xpose.msra.mxu0 0.0
    %7536 = vmatpush.xpose.msra.mxu0 0.0
    %7537 = vmatpush.xpose.msra.mxu0 0.0
    %7538 = vmatpush.xpose.msra.mxu0 0.0
    %7539 = vmatpush.xpose.msra.mxu0 0.0
    %7540 = vmatpush.xpose.msra.mxu0 0.0
    %7541 = vmatpush.xpose.msra.mxu0 0.0
    %7542 = vmatpush.xpose.msra.mxu0 0.0
    %7543 = vmatpush.xpose.msra.mxu0 0.0
    %7544 = vmatpush.xpose.msra.mxu0 0.0
    %7545 = vmatpush.xpose.msra.mxu0 0.0
    %7546 = vmatpush.xpose.msra.mxu0 0.0
    %7547 = vmatpush.xpose.msra.mxu0 0.0
    %7548 = vmatpush.xpose.msra.mxu0 0.0
    %v7549 = vand.u32 %v475, 4294901760
    %7550 = vmatpush.xpose.msra.mxu0 %v7549
    %v7551 = vand.u32 %v345, 4294901760
    %v7552 = vsub.f32 %v345, %v7551
    %v7553 = vand.u32 %v7552, 4294901760
    %v7554 = vsub.f32 %v7552, %v7553
    %v7555 = vand.u32 %v7554, 4294901760
    %7556 = vmatmul.f32.gmra.mxu0 %v7555
    %v7557 = vpop.f32.mrf.mxu0
    %v7558 = vadd.f32 %v7532, %v7557
    %7559 = vdwg.mxu0
    %7560 = vmatpush.xpose.msra.mxu0 0.0
    %7561 = vmatpush.xpose.msra.mxu0 0.0
    %7562 = vmatpush.xpose.msra.mxu0 0.0
    %7563 = vmatpush.xpose.msra.mxu0 0.0
    %7564 = vmatpush.xpose.msra.mxu0 0.0
    %7565 = vmatpush.xpose.msra.mxu0 0.0
    %7566 = vmatpush.xpose.msra.mxu0 0.0
    %7567 = vmatpush.xpose.msra.mxu0 0.0
    %7568 = vmatpush.xpose.msra.mxu0 0.0
    %7569 = vmatpush.xpose.msra.mxu0 0.0
    %7570 = vmatpush.xpose.msra.mxu0 0.0
    %7571 = vmatpush.xpose.msra.mxu0 0.0
    %7572 = vmatpush.xpose.msra.mxu0 0.0
    %7573 = vmatpush.xpose.msra.mxu0 0.0
    %7574 = vmatpush.xpose.msra.mxu0 0.0
    %v7575 = vand.u32 %v475, 4294901760
    %v7576 = vsub.f32 %v475, %v7575
    %v7577 = vand.u32 %v7576, 4294901760
    %v7578 = vsub.f32 %v7576, %v7577
    %v7579 = vand.u32 %v7578, 4294901760
    %7580 = vmatpush.xpose.msra.mxu0 %v7579
    %v7581 = vand.u32 %v345, 4294901760
    %7582 = vmatmul.f32.gmra.mxu0 %v7581
    %v7583 = vpop.f32.mrf.mxu0
    %v7584 = vadd.f32 %v7558, %v7583
    %7585 = vdwg.mxu0
    %7586 = vmatpush.xpose.msra.mxu0 0.0
    %7587 = vmatpush.xpose.msra.mxu0 0.0
    %7588 = vmatpush.xpose.msra.mxu0 0.0
    %7589 = vmatpush.xpose.msra.mxu0 0.0
    %7590 = vmatpush.xpose.msra.mxu0 0.0
    %7591 = vmatpush.xpose.msra.mxu0 0.0
    %7592 = vmatpush.xpose.msra.mxu0 0.0
    %7593 = vmatpush.xpose.msra.mxu0 0.0
    %7594 = vmatpush.xpose.msra.mxu0 0.0
    %7595 = vmatpush.xpose.msra.mxu0 0.0
    %7596 = vmatpush.xpose.msra.mxu0 0.0
    %7597 = vmatpush.xpose.msra.mxu0 0.0
    %7598 = vmatpush.xpose.msra.mxu0 0.0
    %7599 = vmatpush.xpose.msra.mxu0 0.0
    %7600 = vmatpush.xpose.msra.mxu0 0.0
    %v7601 = vand.u32 %v475, 4294901760
    %v7602 = vsub.f32 %v475, %v7601
    %7603 = vmatpush.xpose.msra.mxu0 %v7602
    %v7604 = vand.u32 %v345, 4294901760
    %v7605 = vsub.f32 %v345, %v7604
    %7606 = vmatmul.f32.gmra.mxu0 %v7605
    %v7607 = vpop.f32.mrf.mxu0
    %v7608 = vadd.f32 %v7584, %v7607
    %7609 = vdwg.mxu0
    %7610 = vmatpush.xpose.msra.mxu0 0.0
    %7611 = vmatpush.xpose.msra.mxu0 0.0
    %7612 = vmatpush.xpose.msra.mxu0 0.0
    %7613 = vmatpush.xpose.msra.mxu0 0.0
    %7614 = vmatpush.xpose.msra.mxu0 0.0
    %7615 = vmatpush.xpose.msra.mxu0 0.0
    %7616 = vmatpush.xpose.msra.mxu0 0.0
    %7617 = vmatpush.xpose.msra.mxu0 0.0
    %7618 = vmatpush.xpose.msra.mxu0 0.0
    %7619 = vmatpush.xpose.msra.mxu0 0.0
    %7620 = vmatpush.xpose.msra.mxu0 0.0
    %7621 = vmatpush.xpose.msra.mxu0 0.0
    %7622 = vmatpush.xpose.msra.mxu0 0.0
    %7623 = vmatpush.xpose.msra.mxu0 0.0
    %7624 = vmatpush.xpose.msra.mxu0 0.0
    %v7625 = vand.u32 %v475, 4294901760
    %7626 = vmatpush.xpose.msra.mxu0 %v7625
    %v7627 = vand.u32 %v345, 4294901760
    %v7628 = vsub.f32 %v345, %v7627
    %v7629 = vand.u32 %v7628, 4294901760
    %7630 = vmatmul.f32.gmra.mxu0 %v7629
    %v7631 = vpop.f32.mrf.mxu0
    %v7632 = vadd.f32 %v7608, %v7631
    %7633 = vdwg.mxu0
    %7634 = vmatpush.xpose.msra.mxu0 0.0
    %7635 = vmatpush.xpose.msra.mxu0 0.0
    %7636 = vmatpush.xpose.msra.mxu0 0.0
    %7637 = vmatpush.xpose.msra.mxu0 0.0
    %7638 = vmatpush.xpose.msra.mxu0 0.0
    %7639 = vmatpush.xpose.msra.mxu0 0.0
    %7640 = vmatpush.xpose.msra.mxu0 0.0
    %7641 = vmatpush.xpose.msra.mxu0 0.0
    %7642 = vmatpush.xpose.msra.mxu0 0.0
    %7643 = vmatpush.xpose.msra.mxu0 0.0
    %7644 = vmatpush.xpose.msra.mxu0 0.0
    %7645 = vmatpush.xpose.msra.mxu0 0.0
    %7646 = vmatpush.xpose.msra.mxu0 0.0
    %7647 = vmatpush.xpose.msra.mxu0 0.0
    %7648 = vmatpush.xpose.msra.mxu0 0.0
    %v7649 = vand.u32 %v475, 4294901760
    %v7650 = vsub.f32 %v475, %v7649
    %v7651 = vand.u32 %v7650, 4294901760
    %7652 = vmatpush.xpose.msra.mxu0 %v7651
    %v7653 = vand.u32 %v345, 4294901760
    %7654 = vmatmul.f32.gmra.mxu0 %v7653
    %v7655 = vpop.f32.mrf.mxu0
    %v7656 = vadd.f32 %v7632, %v7655
    %7657 = vdwg.mxu0
    %7658 = vmatpush.xpose.msra.mxu0 0.0
    %7659 = vmatpush.xpose.msra.mxu0 0.0
    %7660 = vmatpush.xpose.msra.mxu0 0.0
    %7661 = vmatpush.xpose.msra.mxu0 0.0
    %7662 = vmatpush.xpose.msra.mxu0 0.0
    %7663 = vmatpush.xpose.msra.mxu0 0.0
    %7664 = vmatpush.xpose.msra.mxu0 0.0
    %7665 = vmatpush.xpose.msra.mxu0 0.0
    %7666 = vmatpush.xpose.msra.mxu0 0.0
    %7667 = vmatpush.xpose.msra.mxu0 0.0
    %7668 = vmatpush.xpose.msra.mxu0 0.0
    %7669 = vmatpush.xpose.msra.mxu0 0.0
    %7670 = vmatpush.xpose.msra.mxu0 0.0
    %7671 = vmatpush.xpose.msra.mxu0 0.0
    %7672 = vmatpush.xpose.msra.mxu0 0.0
    %v7673 = vand.u32 %v475, 4294901760
    %7674 = vmatpush.xpose.msra.mxu0 %v7673
    %v7675 = vand.u32 %v345, 4294901760
    %7676 = vmatmul.f32.gmra.mxu0 %v7675
    %v7677 = vpop.f32.mrf.mxu0
    %v7678 = vadd.f32 %v7656, %v7677
    %7679 = vdwg.mxu0
    %7680 = vmatpush.xpose.msra.mxu0 0.0
    %7681 = vmatpush.xpose.msra.mxu0 0.0
    %7682 = vmatpush.xpose.msra.mxu0 0.0
    %7683 = vmatpush.xpose.msra.mxu0 0.0
    %7684 = vmatpush.xpose.msra.mxu0 0.0
    %7685 = vmatpush.xpose.msra.mxu0 0.0
    %7686 = vmatpush.xpose.msra.mxu0 0.0
    %7687 = vmatpush.xpose.msra.mxu0 0.0
    %7688 = vmatpush.xpose.msra.mxu0 0.0
    %7689 = vmatpush.xpose.msra.mxu0 0.0
    %7690 = vmatpush.xpose.msra.mxu0 0.0
    %7691 = vmatpush.xpose.msra.mxu0 0.0
    %7692 = vmatpush.xpose.msra.mxu0 0.0
    %7693 = vmatpush.xpose.msra.mxu0 0.0
    %7694 = vmatpush.xpose.msra.mxu0 0.0
    %v7695 = vand.u32 %v476, 4294901760
    %7696 = vmatpush.xpose.msra.mxu0 %v7695
    %v7697 = vand.u32 %v346, 4294901760
    %v7698 = vsub.f32 %v346, %v7697
    %v7699 = vand.u32 %v7698, 4294901760
    %v7700 = vsub.f32 %v7698, %v7699
    %v7701 = vand.u32 %v7700, 4294901760
    %7702 = vmatmul.f32.gmra.mxu0 %v7701
    %v7703 = vpop.f32.mrf.mxu0
    %v7704 = vadd.f32 %v7678, %v7703
    %7705 = vdwg.mxu0
    %7706 = vmatpush.xpose.msra.mxu0 0.0
    %7707 = vmatpush.xpose.msra.mxu0 0.0
    %7708 = vmatpush.xpose.msra.mxu0 0.0
    %7709 = vmatpush.xpose.msra.mxu0 0.0
    %7710 = vmatpush.xpose.msra.mxu0 0.0
    %7711 = vmatpush.xpose.msra.mxu0 0.0
    %7712 = vmatpush.xpose.msra.mxu0 0.0
    %7713 = vmatpush.xpose.msra.mxu0 0.0
    %7714 = vmatpush.xpose.msra.mxu0 0.0
    %7715 = vmatpush.xpose.msra.mxu0 0.0
    %7716 = vmatpush.xpose.msra.mxu0 0.0
    %7717 = vmatpush.xpose.msra.mxu0 0.0
    %7718 = vmatpush.xpose.msra.mxu0 0.0
    %7719 = vmatpush.xpose.msra.mxu0 0.0
    %7720 = vmatpush.xpose.msra.mxu0 0.0
    %v7721 = vand.u32 %v476, 4294901760
    %v7722 = vsub.f32 %v476, %v7721
    %v7723 = vand.u32 %v7722, 4294901760
    %v7724 = vsub.f32 %v7722, %v7723
    %v7725 = vand.u32 %v7724, 4294901760
    %7726 = vmatpush.xpose.msra.mxu0 %v7725
    %v7727 = vand.u32 %v346, 4294901760
    %7728 = vmatmul.f32.gmra.mxu0 %v7727
    %v7729 = vpop.f32.mrf.mxu0
    %v7730 = vadd.f32 %v7704, %v7729
    %7731 = vdwg.mxu0
    %7732 = vmatpush.xpose.msra.mxu0 0.0
    %7733 = vmatpush.xpose.msra.mxu0 0.0
    %7734 = vmatpush.xpose.msra.mxu0 0.0
    %7735 = vmatpush.xpose.msra.mxu0 0.0
    %7736 = vmatpush.xpose.msra.mxu0 0.0
    %7737 = vmatpush.xpose.msra.mxu0 0.0
    %7738 = vmatpush.xpose.msra.mxu0 0.0
    %7739 = vmatpush.xpose.msra.mxu0 0.0
    %7740 = vmatpush.xpose.msra.mxu0 0.0
    %7741 = vmatpush.xpose.msra.mxu0 0.0
    %7742 = vmatpush.xpose.msra.mxu0 0.0
    %7743 = vmatpush.xpose.msra.mxu0 0.0
    %7744 = vmatpush.xpose.msra.mxu0 0.0
    %7745 = vmatpush.xpose.msra.mxu0 0.0
    %7746 = vmatpush.xpose.msra.mxu0 0.0
    %v7747 = vand.u32 %v476, 4294901760
    %v7748 = vsub.f32 %v476, %v7747
    %7749 = vmatpush.xpose.msra.mxu0 %v7748
    %v7750 = vand.u32 %v346, 4294901760
    %v7751 = vsub.f32 %v346, %v7750
    %7752 = vmatmul.f32.gmra.mxu0 %v7751
    %v7753 = vpop.f32.mrf.mxu0
    %v7754 = vadd.f32 %v7730, %v7753
    %7755 = vdwg.mxu0
    %7756 = vmatpush.xpose.msra.mxu0 0.0
    %7757 = vmatpush.xpose.msra.mxu0 0.0
    %7758 = vmatpush.xpose.msra.mxu0 0.0
    %7759 = vmatpush.xpose.msra.mxu0 0.0
    %7760 = vmatpush.xpose.msra.mxu0 0.0
    %7761 = vmatpush.xpose.msra.mxu0 0.0
    %7762 = vmatpush.xpose.msra.mxu0 0.0
    %7763 = vmatpush.xpose.msra.mxu0 0.0
    %7764 = vmatpush.xpose.msra.mxu0 0.0
    %7765 = vmatpush.xpose.msra.mxu0 0.0
    %7766 = vmatpush.xpose.msra.mxu0 0.0
    %7767 = vmatpush.xpose.msra.mxu0 0.0
    %7768 = vmatpush.xpose.msra.mxu0 0.0
    %7769 = vmatpush.xpose.msra.mxu0 0.0
    %7770 = vmatpush.xpose.msra.mxu0 0.0
    %v7771 = vand.u32 %v476, 4294901760
    %7772 = vmatpush.xpose.msra.mxu0 %v7771
    %v7773 = vand.u32 %v346, 4294901760
    %v7774 = vsub.f32 %v346, %v7773
    %v7775 = vand.u32 %v7774, 4294901760
    %7776 = vmatmul.f32.gmra.mxu0 %v7775
    %v7777 = vpop.f32.mrf.mxu0
    %v7778 = vadd.f32 %v7754, %v7777
    %7779 = vdwg.mxu0
    %7780 = vmatpush.xpose.msra.mxu0 0.0
    %7781 = vmatpush.xpose.msra.mxu0 0.0
    %7782 = vmatpush.xpose.msra.mxu0 0.0
    %7783 = vmatpush.xpose.msra.mxu0 0.0
    %7784 = vmatpush.xpose.msra.mxu0 0.0
    %7785 = vmatpush.xpose.msra.mxu0 0.0
    %7786 = vmatpush.xpose.msra.mxu0 0.0
    %7787 = vmatpush.xpose.msra.mxu0 0.0
    %7788 = vmatpush.xpose.msra.mxu0 0.0
    %7789 = vmatpush.xpose.msra.mxu0 0.0
    %7790 = vmatpush.xpose.msra.mxu0 0.0
    %7791 = vmatpush.xpose.msra.mxu0 0.0
    %7792 = vmatpush.xpose.msra.mxu0 0.0
    %7793 = vmatpush.xpose.msra.mxu0 0.0
    %7794 = vmatpush.xpose.msra.mxu0 0.0
    %v7795 = vand.u32 %v476, 4294901760
    %v7796 = vsub.f32 %v476, %v7795
    %v7797 = vand.u32 %v7796, 4294901760
    %7798 = vmatpush.xpose.msra.mxu0 %v7797
    %v7799 = vand.u32 %v346, 4294901760
    %7800 = vmatmul.f32.gmra.mxu0 %v7799
    %v7801 = vpop.f32.mrf.mxu0
    %v7802 = vadd.f32 %v7778, %v7801
    %7803 = vdwg.mxu0
    %7804 = vmatpush.xpose.msra.mxu0 0.0
    %7805 = vmatpush.xpose.msra.mxu0 0.0
    %7806 = vmatpush.xpose.msra.mxu0 0.0
    %7807 = vmatpush.xpose.msra.mxu0 0.0
    %7808 = vmatpush.xpose.msra.mxu0 0.0
    %7809 = vmatpush.xpose.msra.mxu0 0.0
    %7810 = vmatpush.xpose.msra.mxu0 0.0
    %7811 = vmatpush.xpose.msra.mxu0 0.0
    %7812 = vmatpush.xpose.msra.mxu0 0.0
    %7813 = vmatpush.xpose.msra.mxu0 0.0
    %7814 = vmatpush.xpose.msra.mxu0 0.0
    %7815 = vmatpush.xpose.msra.mxu0 0.0
    %7816 = vmatpush.xpose.msra.mxu0 0.0
    %7817 = vmatpush.xpose.msra.mxu0 0.0
    %7818 = vmatpush.xpose.msra.mxu0 0.0
    %v7819 = vand.u32 %v476, 4294901760
    %7820 = vmatpush.xpose.msra.mxu0 %v7819
    %v7821 = vand.u32 %v346, 4294901760
    %7822 = vmatmul.f32.gmra.mxu0 %v7821
    %v7823 = vpop.f32.mrf.mxu0
    %v7824 = vadd.f32 %v7802, %v7823
    %7825 = vdwg.mxu0
    %7826 = vmatpush.xpose.msra.mxu0 0.0
    %7827 = vmatpush.xpose.msra.mxu0 0.0
    %7828 = vmatpush.xpose.msra.mxu0 0.0
    %7829 = vmatpush.xpose.msra.mxu0 0.0
    %7830 = vmatpush.xpose.msra.mxu0 0.0
    %7831 = vmatpush.xpose.msra.mxu0 0.0
    %7832 = vmatpush.xpose.msra.mxu0 0.0
    %7833 = vmatpush.xpose.msra.mxu0 0.0
    %7834 = vmatpush.xpose.msra.mxu0 0.0
    %7835 = vmatpush.xpose.msra.mxu0 0.0
    %7836 = vmatpush.xpose.msra.mxu0 0.0
    %7837 = vmatpush.xpose.msra.mxu0 0.0
    %7838 = vmatpush.xpose.msra.mxu0 0.0
    %7839 = vmatpush.xpose.msra.mxu0 0.0
    %7840 = vmatpush.xpose.msra.mxu0 0.0
    %v7841 = vand.u32 %v477, 4294901760
    %7842 = vmatpush.xpose.msra.mxu0 %v7841
    %v7843 = vand.u32 %v347, 4294901760
    %v7844 = vsub.f32 %v347, %v7843
    %v7845 = vand.u32 %v7844, 4294901760
    %v7846 = vsub.f32 %v7844, %v7845
    %v7847 = vand.u32 %v7846, 4294901760
    %7848 = vmatmul.f32.gmra.mxu0 %v7847
    %v7849 = vpop.f32.mrf.mxu0
    %v7850 = vadd.f32 %v7824, %v7849
    %7851 = vdwg.mxu0
    %7852 = vmatpush.xpose.msra.mxu0 0.0
    %7853 = vmatpush.xpose.msra.mxu0 0.0
    %7854 = vmatpush.xpose.msra.mxu0 0.0
    %7855 = vmatpush.xpose.msra.mxu0 0.0
    %7856 = vmatpush.xpose.msra.mxu0 0.0
    %7857 = vmatpush.xpose.msra.mxu0 0.0
    %7858 = vmatpush.xpose.msra.mxu0 0.0
    %7859 = vmatpush.xpose.msra.mxu0 0.0
    %7860 = vmatpush.xpose.msra.mxu0 0.0
    %7861 = vmatpush.xpose.msra.mxu0 0.0
    %7862 = vmatpush.xpose.msra.mxu0 0.0
    %7863 = vmatpush.xpose.msra.mxu0 0.0
    %7864 = vmatpush.xpose.msra.mxu0 0.0
    %7865 = vmatpush.xpose.msra.mxu0 0.0
    %7866 = vmatpush.xpose.msra.mxu0 0.0
    %v7867 = vand.u32 %v477, 4294901760
    %v7868 = vsub.f32 %v477, %v7867
    %v7869 = vand.u32 %v7868, 4294901760
    %v7870 = vsub.f32 %v7868, %v7869
    %v7871 = vand.u32 %v7870, 4294901760
    %7872 = vmatpush.xpose.msra.mxu0 %v7871
    %v7873 = vand.u32 %v347, 4294901760
    %7874 = vmatmul.f32.gmra.mxu0 %v7873
    %v7875 = vpop.f32.mrf.mxu0
    %v7876 = vadd.f32 %v7850, %v7875
    %7877 = vdwg.mxu0
    %7878 = vmatpush.xpose.msra.mxu0 0.0
    %7879 = vmatpush.xpose.msra.mxu0 0.0
    %7880 = vmatpush.xpose.msra.mxu0 0.0
    %7881 = vmatpush.xpose.msra.mxu0 0.0
    %7882 = vmatpush.xpose.msra.mxu0 0.0
    %7883 = vmatpush.xpose.msra.mxu0 0.0
    %7884 = vmatpush.xpose.msra.mxu0 0.0
    %7885 = vmatpush.xpose.msra.mxu0 0.0
    %7886 = vmatpush.xpose.msra.mxu0 0.0
    %7887 = vmatpush.xpose.msra.mxu0 0.0
    %7888 = vmatpush.xpose.msra.mxu0 0.0
    %7889 = vmatpush.xpose.msra.mxu0 0.0
    %7890 = vmatpush.xpose.msra.mxu0 0.0
    %7891 = vmatpush.xpose.msra.mxu0 0.0
    %7892 = vmatpush.xpose.msra.mxu0 0.0
    %v7893 = vand.u32 %v477, 4294901760
    %v7894 = vsub.f32 %v477, %v7893
    %7895 = vmatpush.xpose.msra.mxu0 %v7894
    %v7896 = vand.u32 %v347, 4294901760
    %v7897 = vsub.f32 %v347, %v7896
    %7898 = vmatmul.f32.gmra.mxu0 %v7897
    %v7899 = vpop.f32.mrf.mxu0
    %v7900 = vadd.f32 %v7876, %v7899
    %7901 = vdwg.mxu0
    %7902 = vmatpush.xpose.msra.mxu0 0.0
    %7903 = vmatpush.xpose.msra.mxu0 0.0
    %7904 = vmatpush.xpose.msra.mxu0 0.0
    %7905 = vmatpush.xpose.msra.mxu0 0.0
    %7906 = vmatpush.xpose.msra.mxu0 0.0
    %7907 = vmatpush.xpose.msra.mxu0 0.0
    %7908 = vmatpush.xpose.msra.mxu0 0.0
    %7909 = vmatpush.xpose.msra.mxu0 0.0
    %7910 = vmatpush.xpose.msra.mxu0 0.0
    %7911 = vmatpush.xpose.msra.mxu0 0.0
    %7912 = vmatpush.xpose.msra.mxu0 0.0
    %7913 = vmatpush.xpose.msra.mxu0 0.0
    %7914 = vmatpush.xpose.msra.mxu0 0.0
    %7915 = vmatpush.xpose.msra.mxu0 0.0
    %7916 = vmatpush.xpose.msra.mxu0 0.0
    %v7917 = vand.u32 %v477, 4294901760
    %7918 = vmatpush.xpose.msra.mxu0 %v7917
    %v7919 = vand.u32 %v347, 4294901760
    %v7920 = vsub.f32 %v347, %v7919
    %v7921 = vand.u32 %v7920, 4294901760
    %7922 = vmatmul.f32.gmra.mxu0 %v7921
    %v7923 = vpop.f32.mrf.mxu0
    %v7924 = vadd.f32 %v7900, %v7923
    %7925 = vdwg.mxu0
    %7926 = vmatpush.xpose.msra.mxu0 0.0
    %7927 = vmatpush.xpose.msra.mxu0 0.0
    %7928 = vmatpush.xpose.msra.mxu0 0.0
    %7929 = vmatpush.xpose.msra.mxu0 0.0
    %7930 = vmatpush.xpose.msra.mxu0 0.0
    %7931 = vmatpush.xpose.msra.mxu0 0.0
    %7932 = vmatpush.xpose.msra.mxu0 0.0
    %7933 = vmatpush.xpose.msra.mxu0 0.0
    %7934 = vmatpush.xpose.msra.mxu0 0.0
    %7935 = vmatpush.xpose.msra.mxu0 0.0
    %7936 = vmatpush.xpose.msra.mxu0 0.0
    %7937 = vmatpush.xpose.msra.mxu0 0.0
    %7938 = vmatpush.xpose.msra.mxu0 0.0
    %7939 = vmatpush.xpose.msra.mxu0 0.0
    %7940 = vmatpush.xpose.msra.mxu0 0.0
    %v7941 = vand.u32 %v477, 4294901760
    %v7942 = vsub.f32 %v477, %v7941
    %v7943 = vand.u32 %v7942, 4294901760
    %7944 = vmatpush.xpose.msra.mxu0 %v7943
    %v7945 = vand.u32 %v347, 4294901760
    %7946 = vmatmul.f32.gmra.mxu0 %v7945
    %v7947 = vpop.f32.mrf.mxu0
    %v7948 = vadd.f32 %v7924, %v7947
    %7949 = vdwg.mxu0
    %7950 = vmatpush.xpose.msra.mxu0 0.0
    %7951 = vmatpush.xpose.msra.mxu0 0.0
    %7952 = vmatpush.xpose.msra.mxu0 0.0
    %7953 = vmatpush.xpose.msra.mxu0 0.0
    %7954 = vmatpush.xpose.msra.mxu0 0.0
    %7955 = vmatpush.xpose.msra.mxu0 0.0
    %7956 = vmatpush.xpose.msra.mxu0 0.0
    %7957 = vmatpush.xpose.msra.mxu0 0.0
    %7958 = vmatpush.xpose.msra.mxu0 0.0
    %7959 = vmatpush.xpose.msra.mxu0 0.0
    %7960 = vmatpush.xpose.msra.mxu0 0.0
    %7961 = vmatpush.xpose.msra.mxu0 0.0
    %7962 = vmatpush.xpose.msra.mxu0 0.0
    %7963 = vmatpush.xpose.msra.mxu0 0.0
    %7964 = vmatpush.xpose.msra.mxu0 0.0
    %v7965 = vand.u32 %v477, 4294901760
    %7966 = vmatpush.xpose.msra.mxu0 %v7965
    %v7967 = vand.u32 %v347, 4294901760
    %7968 = vmatmul.f32.gmra.mxu0 %v7967
    %v7969 = vpop.f32.mrf.mxu0
    %v7970 = vadd.f32 %v7948, %v7969
    %7971 = vdwg.mxu0
    %7972 = vmatpush.xpose.msra.mxu0 0.0
    %7973 = vmatpush.xpose.msra.mxu0 0.0
    %7974 = vmatpush.xpose.msra.mxu0 0.0
    %7975 = vmatpush.xpose.msra.mxu0 0.0
    %7976 = vmatpush.xpose.msra.mxu0 0.0
    %7977 = vmatpush.xpose.msra.mxu0 0.0
    %7978 = vmatpush.xpose.msra.mxu0 0.0
    %7979 = vmatpush.xpose.msra.mxu0 0.0
    %7980 = vmatpush.xpose.msra.mxu0 0.0
    %7981 = vmatpush.xpose.msra.mxu0 0.0
    %7982 = vmatpush.xpose.msra.mxu0 0.0
    %7983 = vmatpush.xpose.msra.mxu0 0.0
    %7984 = vmatpush.xpose.msra.mxu0 0.0
    %7985 = vmatpush.xpose.msra.mxu0 0.0
    %7986 = vmatpush.xpose.msra.mxu0 0.0
    %v7987 = vand.u32 %v478, 4294901760
    %7988 = vmatpush.xpose.msra.mxu0 %v7987
    %v7989 = vand.u32 %v348, 4294901760
    %v7990 = vsub.f32 %v348, %v7989
    %v7991 = vand.u32 %v7990, 4294901760
    %v7992 = vsub.f32 %v7990, %v7991
    %v7993 = vand.u32 %v7992, 4294901760
    %7994 = vmatmul.f32.gmra.mxu0 %v7993
    %v7995 = vpop.f32.mrf.mxu0
    %v7996 = vadd.f32 %v7970, %v7995
    %7997 = vdwg.mxu0
    %7998 = vmatpush.xpose.msra.mxu0 0.0
    %7999 = vmatpush.xpose.msra.mxu0 0.0
    %8000 = vmatpush.xpose.msra.mxu0 0.0
    %8001 = vmatpush.xpose.msra.mxu0 0.0
    %8002 = vmatpush.xpose.msra.mxu0 0.0
    %8003 = vmatpush.xpose.msra.mxu0 0.0
    %8004 = vmatpush.xpose.msra.mxu0 0.0
    %8005 = vmatpush.xpose.msra.mxu0 0.0
    %8006 = vmatpush.xpose.msra.mxu0 0.0
    %8007 = vmatpush.xpose.msra.mxu0 0.0
    %8008 = vmatpush.xpose.msra.mxu0 0.0
    %8009 = vmatpush.xpose.msra.mxu0 0.0
    %8010 = vmatpush.xpose.msra.mxu0 0.0
    %8011 = vmatpush.xpose.msra.mxu0 0.0
    %8012 = vmatpush.xpose.msra.mxu0 0.0
    %v8013 = vand.u32 %v478, 4294901760
    %v8014 = vsub.f32 %v478, %v8013
    %v8015 = vand.u32 %v8014, 4294901760
    %v8016 = vsub.f32 %v8014, %v8015
    %v8017 = vand.u32 %v8016, 4294901760
    %8018 = vmatpush.xpose.msra.mxu0 %v8017
    %v8019 = vand.u32 %v348, 4294901760
    %8020 = vmatmul.f32.gmra.mxu0 %v8019
    %v8021 = vpop.f32.mrf.mxu0
    %v8022 = vadd.f32 %v7996, %v8021
    %8023 = vdwg.mxu0
    %8024 = vmatpush.xpose.msra.mxu0 0.0
    %8025 = vmatpush.xpose.msra.mxu0 0.0
    %8026 = vmatpush.xpose.msra.mxu0 0.0
    %8027 = vmatpush.xpose.msra.mxu0 0.0
    %8028 = vmatpush.xpose.msra.mxu0 0.0
    %8029 = vmatpush.xpose.msra.mxu0 0.0
    %8030 = vmatpush.xpose.msra.mxu0 0.0
    %8031 = vmatpush.xpose.msra.mxu0 0.0
    %8032 = vmatpush.xpose.msra.mxu0 0.0
    %8033 = vmatpush.xpose.msra.mxu0 0.0
    %8034 = vmatpush.xpose.msra.mxu0 0.0
    %8035 = vmatpush.xpose.msra.mxu0 0.0
    %8036 = vmatpush.xpose.msra.mxu0 0.0
    %8037 = vmatpush.xpose.msra.mxu0 0.0
    %8038 = vmatpush.xpose.msra.mxu0 0.0
    %v8039 = vand.u32 %v478, 4294901760
    %v8040 = vsub.f32 %v478, %v8039
    %8041 = vmatpush.xpose.msra.mxu0 %v8040
    %v8042 = vand.u32 %v348, 4294901760
    %v8043 = vsub.f32 %v348, %v8042
    %8044 = vmatmul.f32.gmra.mxu0 %v8043
    %v8045 = vpop.f32.mrf.mxu0
    %v8046 = vadd.f32 %v8022, %v8045
    %8047 = vdwg.mxu0
    %8048 = vmatpush.xpose.msra.mxu0 0.0
    %8049 = vmatpush.xpose.msra.mxu0 0.0
    %8050 = vmatpush.xpose.msra.mxu0 0.0
    %8051 = vmatpush.xpose.msra.mxu0 0.0
    %8052 = vmatpush.xpose.msra.mxu0 0.0
    %8053 = vmatpush.xpose.msra.mxu0 0.0
    %8054 = vmatpush.xpose.msra.mxu0 0.0
    %8055 = vmatpush.xpose.msra.mxu0 0.0
    %8056 = vmatpush.xpose.msra.mxu0 0.0
    %8057 = vmatpush.xpose.msra.mxu0 0.0
    %8058 = vmatpush.xpose.msra.mxu0 0.0
    %8059 = vmatpush.xpose.msra.mxu0 0.0
    %8060 = vmatpush.xpose.msra.mxu0 0.0
    %8061 = vmatpush.xpose.msra.mxu0 0.0
    %8062 = vmatpush.xpose.msra.mxu0 0.0
    %v8063 = vand.u32 %v478, 4294901760
    %8064 = vmatpush.xpose.msra.mxu0 %v8063
    %v8065 = vand.u32 %v348, 4294901760
    %v8066 = vsub.f32 %v348, %v8065
    %v8067 = vand.u32 %v8066, 4294901760
    %8068 = vmatmul.f32.gmra.mxu0 %v8067
    %v8069 = vpop.f32.mrf.mxu0
    %v8070 = vadd.f32 %v8046, %v8069
    %8071 = vdwg.mxu0
    %8072 = vmatpush.xpose.msra.mxu0 0.0
    %8073 = vmatpush.xpose.msra.mxu0 0.0
    %8074 = vmatpush.xpose.msra.mxu0 0.0
    %8075 = vmatpush.xpose.msra.mxu0 0.0
    %8076 = vmatpush.xpose.msra.mxu0 0.0
    %8077 = vmatpush.xpose.msra.mxu0 0.0
    %8078 = vmatpush.xpose.msra.mxu0 0.0
    %8079 = vmatpush.xpose.msra.mxu0 0.0
    %8080 = vmatpush.xpose.msra.mxu0 0.0
    %8081 = vmatpush.xpose.msra.mxu0 0.0
    %8082 = vmatpush.xpose.msra.mxu0 0.0
    %8083 = vmatpush.xpose.msra.mxu0 0.0
    %8084 = vmatpush.xpose.msra.mxu0 0.0
    %8085 = vmatpush.xpose.msra.mxu0 0.0
    %8086 = vmatpush.xpose.msra.mxu0 0.0
    %v8087 = vand.u32 %v478, 4294901760
    %v8088 = vsub.f32 %v478, %v8087
    %v8089 = vand.u32 %v8088, 4294901760
    %8090 = vmatpush.xpose.msra.mxu0 %v8089
    %v8091 = vand.u32 %v348, 4294901760
    %8092 = vmatmul.f32.gmra.mxu0 %v8091
    %v8093 = vpop.f32.mrf.mxu0
    %v8094 = vadd.f32 %v8070, %v8093
    %8095 = vdwg.mxu0
    %8096 = vmatpush.xpose.msra.mxu0 0.0
    %8097 = vmatpush.xpose.msra.mxu0 0.0
    %8098 = vmatpush.xpose.msra.mxu0 0.0
    %8099 = vmatpush.xpose.msra.mxu0 0.0
    %8100 = vmatpush.xpose.msra.mxu0 0.0
    %8101 = vmatpush.xpose.msra.mxu0 0.0
    %8102 = vmatpush.xpose.msra.mxu0 0.0
    %8103 = vmatpush.xpose.msra.mxu0 0.0
    %8104 = vmatpush.xpose.msra.mxu0 0.0
    %8105 = vmatpush.xpose.msra.mxu0 0.0
    %8106 = vmatpush.xpose.msra.mxu0 0.0
    %8107 = vmatpush.xpose.msra.mxu0 0.0
    %8108 = vmatpush.xpose.msra.mxu0 0.0
    %8109 = vmatpush.xpose.msra.mxu0 0.0
    %8110 = vmatpush.xpose.msra.mxu0 0.0
    %v8111 = vand.u32 %v478, 4294901760
    %8112 = vmatpush.xpose.msra.mxu0 %v8111
    %v8113 = vand.u32 %v348, 4294901760
    %8114 = vmatmul.f32.gmra.mxu0 %v8113
    %v8115 = vpop.f32.mrf.mxu0
    %v8116 = vadd.f32 %v8094, %v8115
    %8117 = vdwg.mxu0
    %8118 = vmatpush.xpose.msra.mxu0 0.0
    %8119 = vmatpush.xpose.msra.mxu0 0.0
    %8120 = vmatpush.xpose.msra.mxu0 0.0
    %8121 = vmatpush.xpose.msra.mxu0 0.0
    %8122 = vmatpush.xpose.msra.mxu0 0.0
    %8123 = vmatpush.xpose.msra.mxu0 0.0
    %8124 = vmatpush.xpose.msra.mxu0 0.0
    %8125 = vmatpush.xpose.msra.mxu0 0.0
    %8126 = vmatpush.xpose.msra.mxu0 0.0
    %8127 = vmatpush.xpose.msra.mxu0 0.0
    %8128 = vmatpush.xpose.msra.mxu0 0.0
    %8129 = vmatpush.xpose.msra.mxu0 0.0
    %8130 = vmatpush.xpose.msra.mxu0 0.0
    %8131 = vmatpush.xpose.msra.mxu0 0.0
    %8132 = vmatpush.xpose.msra.mxu0 0.0
    %v8133 = vand.u32 %v479, 4294901760
    %8134 = vmatpush.xpose.msra.mxu0 %v8133
    %v8135 = vand.u32 %v349, 4294901760
    %v8136 = vsub.f32 %v349, %v8135
    %v8137 = vand.u32 %v8136, 4294901760
    %v8138 = vsub.f32 %v8136, %v8137
    %v8139 = vand.u32 %v8138, 4294901760
    %8140 = vmatmul.f32.gmra.mxu0 %v8139
    %v8141 = vpop.f32.mrf.mxu0
    %v8142 = vadd.f32 %v8116, %v8141
    %8143 = vdwg.mxu0
    %8144 = vmatpush.xpose.msra.mxu0 0.0
    %8145 = vmatpush.xpose.msra.mxu0 0.0
    %8146 = vmatpush.xpose.msra.mxu0 0.0
    %8147 = vmatpush.xpose.msra.mxu0 0.0
    %8148 = vmatpush.xpose.msra.mxu0 0.0
    %8149 = vmatpush.xpose.msra.mxu0 0.0
    %8150 = vmatpush.xpose.msra.mxu0 0.0
    %8151 = vmatpush.xpose.msra.mxu0 0.0
    %8152 = vmatpush.xpose.msra.mxu0 0.0
    %8153 = vmatpush.xpose.msra.mxu0 0.0
    %8154 = vmatpush.xpose.msra.mxu0 0.0
    %8155 = vmatpush.xpose.msra.mxu0 0.0
    %8156 = vmatpush.xpose.msra.mxu0 0.0
    %8157 = vmatpush.xpose.msra.mxu0 0.0
    %8158 = vmatpush.xpose.msra.mxu0 0.0
    %v8159 = vand.u32 %v479, 4294901760
    %v8160 = vsub.f32 %v479, %v8159
    %v8161 = vand.u32 %v8160, 4294901760
    %v8162 = vsub.f32 %v8160, %v8161
    %v8163 = vand.u32 %v8162, 4294901760
    %8164 = vmatpush.xpose.msra.mxu0 %v8163
    %v8165 = vand.u32 %v349, 4294901760
    %8166 = vmatmul.f32.gmra.mxu0 %v8165
    %v8167 = vpop.f32.mrf.mxu0
    %v8168 = vadd.f32 %v8142, %v8167
    %8169 = vdwg.mxu0
    %8170 = vmatpush.xpose.msra.mxu0 0.0
    %8171 = vmatpush.xpose.msra.mxu0 0.0
    %8172 = vmatpush.xpose.msra.mxu0 0.0
    %8173 = vmatpush.xpose.msra.mxu0 0.0
    %8174 = vmatpush.xpose.msra.mxu0 0.0
    %8175 = vmatpush.xpose.msra.mxu0 0.0
    %8176 = vmatpush.xpose.msra.mxu0 0.0
    %8177 = vmatpush.xpose.msra.mxu0 0.0
    %8178 = vmatpush.xpose.msra.mxu0 0.0
    %8179 = vmatpush.xpose.msra.mxu0 0.0
    %8180 = vmatpush.xpose.msra.mxu0 0.0
    %8181 = vmatpush.xpose.msra.mxu0 0.0
    %8182 = vmatpush.xpose.msra.mxu0 0.0
    %8183 = vmatpush.xpose.msra.mxu0 0.0
    %8184 = vmatpush.xpose.msra.mxu0 0.0
    %v8185 = vand.u32 %v479, 4294901760
    %v8186 = vsub.f32 %v479, %v8185
    %8187 = vmatpush.xpose.msra.mxu0 %v8186
    %v8188 = vand.u32 %v349, 4294901760
    %v8189 = vsub.f32 %v349, %v8188
    %8190 = vmatmul.f32.gmra.mxu0 %v8189
    %v8191 = vpop.f32.mrf.mxu0
    %v8192 = vadd.f32 %v8168, %v8191
    %8193 = vdwg.mxu0
    %8194 = vmatpush.xpose.msra.mxu0 0.0
    %8195 = vmatpush.xpose.msra.mxu0 0.0
    %8196 = vmatpush.xpose.msra.mxu0 0.0
    %8197 = vmatpush.xpose.msra.mxu0 0.0
    %8198 = vmatpush.xpose.msra.mxu0 0.0
    %8199 = vmatpush.xpose.msra.mxu0 0.0
    %8200 = vmatpush.xpose.msra.mxu0 0.0
    %8201 = vmatpush.xpose.msra.mxu0 0.0
    %8202 = vmatpush.xpose.msra.mxu0 0.0
    %8203 = vmatpush.xpose.msra.mxu0 0.0
    %8204 = vmatpush.xpose.msra.mxu0 0.0
    %8205 = vmatpush.xpose.msra.mxu0 0.0
    %8206 = vmatpush.xpose.msra.mxu0 0.0
    %8207 = vmatpush.xpose.msra.mxu0 0.0
    %8208 = vmatpush.xpose.msra.mxu0 0.0
    %v8209 = vand.u32 %v479, 4294901760
    %8210 = vmatpush.xpose.msra.mxu0 %v8209
    %v8211 = vand.u32 %v349, 4294901760
    %v8212 = vsub.f32 %v349, %v8211
    %v8213 = vand.u32 %v8212, 4294901760
    %8214 = vmatmul.f32.gmra.mxu0 %v8213
    %v8215 = vpop.f32.mrf.mxu0
    %v8216 = vadd.f32 %v8192, %v8215
    %8217 = vdwg.mxu0
    %8218 = vmatpush.xpose.msra.mxu0 0.0
    %8219 = vmatpush.xpose.msra.mxu0 0.0
    %8220 = vmatpush.xpose.msra.mxu0 0.0
    %8221 = vmatpush.xpose.msra.mxu0 0.0
    %8222 = vmatpush.xpose.msra.mxu0 0.0
    %8223 = vmatpush.xpose.msra.mxu0 0.0
    %8224 = vmatpush.xpose.msra.mxu0 0.0
    %8225 = vmatpush.xpose.msra.mxu0 0.0
    %8226 = vmatpush.xpose.msra.mxu0 0.0
    %8227 = vmatpush.xpose.msra.mxu0 0.0
    %8228 = vmatpush.xpose.msra.mxu0 0.0
    %8229 = vmatpush.xpose.msra.mxu0 0.0
    %8230 = vmatpush.xpose.msra.mxu0 0.0
    %8231 = vmatpush.xpose.msra.mxu0 0.0
    %8232 = vmatpush.xpose.msra.mxu0 0.0
    %v8233 = vand.u32 %v479, 4294901760
    %v8234 = vsub.f32 %v479, %v8233
    %v8235 = vand.u32 %v8234, 4294901760
    %8236 = vmatpush.xpose.msra.mxu0 %v8235
    %v8237 = vand.u32 %v349, 4294901760
    %8238 = vmatmul.f32.gmra.mxu0 %v8237
    %v8239 = vpop.f32.mrf.mxu0
    %v8240 = vadd.f32 %v8216, %v8239
    %8241 = vdwg.mxu0
    %8242 = vmatpush.xpose.msra.mxu0 0.0
    %8243 = vmatpush.xpose.msra.mxu0 0.0
    %8244 = vmatpush.xpose.msra.mxu0 0.0
    %8245 = vmatpush.xpose.msra.mxu0 0.0
    %8246 = vmatpush.xpose.msra.mxu0 0.0
    %8247 = vmatpush.xpose.msra.mxu0 0.0
    %8248 = vmatpush.xpose.msra.mxu0 0.0
    %8249 = vmatpush.xpose.msra.mxu0 0.0
    %8250 = vmatpush.xpose.msra.mxu0 0.0
    %8251 = vmatpush.xpose.msra.mxu0 0.0
    %8252 = vmatpush.xpose.msra.mxu0 0.0
    %8253 = vmatpush.xpose.msra.mxu0 0.0
    %8254 = vmatpush.xpose.msra.mxu0 0.0
    %8255 = vmatpush.xpose.msra.mxu0 0.0
    %8256 = vmatpush.xpose.msra.mxu0 0.0
    %v8257 = vand.u32 %v479, 4294901760
    %8258 = vmatpush.xpose.msra.mxu0 %v8257
    %v8259 = vand.u32 %v349, 4294901760
    %8260 = vmatmul.f32.gmra.mxu0 %v8259
    %v8261 = vpop.f32.mrf.mxu0
    %v8262 = vadd.f32 %v8240, %v8261
    %8263 = vdwg.mxu0
    %8264 = vmatpush.xpose.msra.mxu0 0.0
    %8265 = vmatpush.xpose.msra.mxu0 0.0
    %8266 = vmatpush.xpose.msra.mxu0 0.0
    %8267 = vmatpush.xpose.msra.mxu0 0.0
    %8268 = vmatpush.xpose.msra.mxu0 0.0
    %8269 = vmatpush.xpose.msra.mxu0 0.0
    %8270 = vmatpush.xpose.msra.mxu0 0.0
    %8271 = vmatpush.xpose.msra.mxu0 0.0
    %8272 = vmatpush.xpose.msra.mxu0 0.0
    %8273 = vmatpush.xpose.msra.mxu0 0.0
    %8274 = vmatpush.xpose.msra.mxu0 0.0
    %8275 = vmatpush.xpose.msra.mxu0 0.0
    %8276 = vmatpush.xpose.msra.mxu0 0.0
    %8277 = vmatpush.xpose.msra.mxu0 0.0
    %8278 = vmatpush.xpose.msra.mxu0 0.0
    %v8279 = vand.u32 %v480, 4294901760
    %8280 = vmatpush.xpose.msra.mxu0 %v8279
    %v8281 = vand.u32 %v350, 4294901760
    %v8282 = vsub.f32 %v350, %v8281
    %v8283 = vand.u32 %v8282, 4294901760
    %v8284 = vsub.f32 %v8282, %v8283
    %v8285 = vand.u32 %v8284, 4294901760
    %8286 = vmatmul.f32.gmra.mxu0 %v8285
    %v8287 = vpop.f32.mrf.mxu0
    %v8288 = vadd.f32 %v8262, %v8287
    %8289 = vdwg.mxu0
    %8290 = vmatpush.xpose.msra.mxu0 0.0
    %8291 = vmatpush.xpose.msra.mxu0 0.0
    %8292 = vmatpush.xpose.msra.mxu0 0.0
    %8293 = vmatpush.xpose.msra.mxu0 0.0
    %8294 = vmatpush.xpose.msra.mxu0 0.0
    %8295 = vmatpush.xpose.msra.mxu0 0.0
    %8296 = vmatpush.xpose.msra.mxu0 0.0
    %8297 = vmatpush.xpose.msra.mxu0 0.0
    %8298 = vmatpush.xpose.msra.mxu0 0.0
    %8299 = vmatpush.xpose.msra.mxu0 0.0
    %8300 = vmatpush.xpose.msra.mxu0 0.0
    %8301 = vmatpush.xpose.msra.mxu0 0.0
    %8302 = vmatpush.xpose.msra.mxu0 0.0
    %8303 = vmatpush.xpose.msra.mxu0 0.0
    %8304 = vmatpush.xpose.msra.mxu0 0.0
    %v8305 = vand.u32 %v480, 4294901760
    %v8306 = vsub.f32 %v480, %v8305
    %v8307 = vand.u32 %v8306, 4294901760
    %v8308 = vsub.f32 %v8306, %v8307
    %v8309 = vand.u32 %v8308, 4294901760
    %8310 = vmatpush.xpose.msra.mxu0 %v8309
    %v8311 = vand.u32 %v350, 4294901760
    %8312 = vmatmul.f32.gmra.mxu0 %v8311
    %v8313 = vpop.f32.mrf.mxu0
    %v8314 = vadd.f32 %v8288, %v8313
    %8315 = vdwg.mxu0
    %8316 = vmatpush.xpose.msra.mxu0 0.0
    %8317 = vmatpush.xpose.msra.mxu0 0.0
    %8318 = vmatpush.xpose.msra.mxu0 0.0
    %8319 = vmatpush.xpose.msra.mxu0 0.0
    %8320 = vmatpush.xpose.msra.mxu0 0.0
    %8321 = vmatpush.xpose.msra.mxu0 0.0
    %8322 = vmatpush.xpose.msra.mxu0 0.0
    %8323 = vmatpush.xpose.msra.mxu0 0.0
    %8324 = vmatpush.xpose.msra.mxu0 0.0
    %8325 = vmatpush.xpose.msra.mxu0 0.0
    %8326 = vmatpush.xpose.msra.mxu0 0.0
    %8327 = vmatpush.xpose.msra.mxu0 0.0
    %8328 = vmatpush.xpose.msra.mxu0 0.0
    %8329 = vmatpush.xpose.msra.mxu0 0.0
    %8330 = vmatpush.xpose.msra.mxu0 0.0
    %v8331 = vand.u32 %v480, 4294901760
    %v8332 = vsub.f32 %v480, %v8331
    %8333 = vmatpush.xpose.msra.mxu0 %v8332
    %v8334 = vand.u32 %v350, 4294901760
    %v8335 = vsub.f32 %v350, %v8334
    %8336 = vmatmul.f32.gmra.mxu0 %v8335
    %v8337 = vpop.f32.mrf.mxu0
    %v8338 = vadd.f32 %v8314, %v8337
    %8339 = vdwg.mxu0
    %8340 = vmatpush.xpose.msra.mxu0 0.0
    %8341 = vmatpush.xpose.msra.mxu0 0.0
    %8342 = vmatpush.xpose.msra.mxu0 0.0
    %8343 = vmatpush.xpose.msra.mxu0 0.0
    %8344 = vmatpush.xpose.msra.mxu0 0.0
    %8345 = vmatpush.xpose.msra.mxu0 0.0
    %8346 = vmatpush.xpose.msra.mxu0 0.0
    %8347 = vmatpush.xpose.msra.mxu0 0.0
    %8348 = vmatpush.xpose.msra.mxu0 0.0
    %8349 = vmatpush.xpose.msra.mxu0 0.0
    %8350 = vmatpush.xpose.msra.mxu0 0.0
    %8351 = vmatpush.xpose.msra.mxu0 0.0
    %8352 = vmatpush.xpose.msra.mxu0 0.0
    %8353 = vmatpush.xpose.msra.mxu0 0.0
    %8354 = vmatpush.xpose.msra.mxu0 0.0
    %v8355 = vand.u32 %v480, 4294901760
    %8356 = vmatpush.xpose.msra.mxu0 %v8355
    %v8357 = vand.u32 %v350, 4294901760
    %v8358 = vsub.f32 %v350, %v8357
    %v8359 = vand.u32 %v8358, 4294901760
    %8360 = vmatmul.f32.gmra.mxu0 %v8359
    %v8361 = vpop.f32.mrf.mxu0
    %v8362 = vadd.f32 %v8338, %v8361
    %8363 = vdwg.mxu0
    %8364 = vmatpush.xpose.msra.mxu0 0.0
    %8365 = vmatpush.xpose.msra.mxu0 0.0
    %8366 = vmatpush.xpose.msra.mxu0 0.0
    %8367 = vmatpush.xpose.msra.mxu0 0.0
    %8368 = vmatpush.xpose.msra.mxu0 0.0
    %8369 = vmatpush.xpose.msra.mxu0 0.0
    %8370 = vmatpush.xpose.msra.mxu0 0.0
    %8371 = vmatpush.xpose.msra.mxu0 0.0
    %8372 = vmatpush.xpose.msra.mxu0 0.0
    %8373 = vmatpush.xpose.msra.mxu0 0.0
    %8374 = vmatpush.xpose.msra.mxu0 0.0
    %8375 = vmatpush.xpose.msra.mxu0 0.0
    %8376 = vmatpush.xpose.msra.mxu0 0.0
    %8377 = vmatpush.xpose.msra.mxu0 0.0
    %8378 = vmatpush.xpose.msra.mxu0 0.0
    %v8379 = vand.u32 %v480, 4294901760
    %v8380 = vsub.f32 %v480, %v8379
    %v8381 = vand.u32 %v8380, 4294901760
    %8382 = vmatpush.xpose.msra.mxu0 %v8381
    %v8383 = vand.u32 %v350, 4294901760
    %8384 = vmatmul.f32.gmra.mxu0 %v8383
    %v8385 = vpop.f32.mrf.mxu0
    %v8386 = vadd.f32 %v8362, %v8385
    %8387 = vdwg.mxu0
    %8388 = vmatpush.xpose.msra.mxu0 0.0
    %8389 = vmatpush.xpose.msra.mxu0 0.0
    %8390 = vmatpush.xpose.msra.mxu0 0.0
    %8391 = vmatpush.xpose.msra.mxu0 0.0
    %8392 = vmatpush.xpose.msra.mxu0 0.0
    %8393 = vmatpush.xpose.msra.mxu0 0.0
    %8394 = vmatpush.xpose.msra.mxu0 0.0
    %8395 = vmatpush.xpose.msra.mxu0 0.0
    %8396 = vmatpush.xpose.msra.mxu0 0.0
    %8397 = vmatpush.xpose.msra.mxu0 0.0
    %8398 = vmatpush.xpose.msra.mxu0 0.0
    %8399 = vmatpush.xpose.msra.mxu0 0.0
    %8400 = vmatpush.xpose.msra.mxu0 0.0
    %8401 = vmatpush.xpose.msra.mxu0 0.0
    %8402 = vmatpush.xpose.msra.mxu0 0.0
    %v8403 = vand.u32 %v480, 4294901760
    %8404 = vmatpush.xpose.msra.mxu0 %v8403
    %v8405 = vand.u32 %v350, 4294901760
    %8406 = vmatmul.f32.gmra.mxu0 %v8405
    %v8407 = vpop.f32.mrf.mxu0
    %v8408 = vadd.f32 %v8386, %v8407
    %8409 = vdwg.mxu0
    %8410 = vmatpush.xpose.msra.mxu0 0.0
    %8411 = vmatpush.xpose.msra.mxu0 0.0
    %8412 = vmatpush.xpose.msra.mxu0 0.0
    %8413 = vmatpush.xpose.msra.mxu0 0.0
    %8414 = vmatpush.xpose.msra.mxu0 0.0
    %8415 = vmatpush.xpose.msra.mxu0 0.0
    %8416 = vmatpush.xpose.msra.mxu0 0.0
    %8417 = vmatpush.xpose.msra.mxu0 0.0
    %8418 = vmatpush.xpose.msra.mxu0 0.0
    %8419 = vmatpush.xpose.msra.mxu0 0.0
    %8420 = vmatpush.xpose.msra.mxu0 0.0
    %8421 = vmatpush.xpose.msra.mxu0 0.0
    %8422 = vmatpush.xpose.msra.mxu0 0.0
    %8423 = vmatpush.xpose.msra.mxu0 0.0
    %8424 = vmatpush.xpose.msra.mxu0 0.0
    %v8425 = vand.u32 %v481, 4294901760
    %8426 = vmatpush.xpose.msra.mxu0 %v8425
    %v8427 = vand.u32 %v351, 4294901760
    %v8428 = vsub.f32 %v351, %v8427
    %v8429 = vand.u32 %v8428, 4294901760
    %v8430 = vsub.f32 %v8428, %v8429
    %v8431 = vand.u32 %v8430, 4294901760
    %8432 = vmatmul.f32.gmra.mxu0 %v8431
    %v8433 = vpop.f32.mrf.mxu0
    %v8434 = vadd.f32 %v8408, %v8433
    %8435 = vdwg.mxu0
    %8436 = vmatpush.xpose.msra.mxu0 0.0
    %8437 = vmatpush.xpose.msra.mxu0 0.0
    %8438 = vmatpush.xpose.msra.mxu0 0.0
    %8439 = vmatpush.xpose.msra.mxu0 0.0
    %8440 = vmatpush.xpose.msra.mxu0 0.0
    %8441 = vmatpush.xpose.msra.mxu0 0.0
    %8442 = vmatpush.xpose.msra.mxu0 0.0
    %8443 = vmatpush.xpose.msra.mxu0 0.0
    %8444 = vmatpush.xpose.msra.mxu0 0.0
    %8445 = vmatpush.xpose.msra.mxu0 0.0
    %8446 = vmatpush.xpose.msra.mxu0 0.0
    %8447 = vmatpush.xpose.msra.mxu0 0.0
    %8448 = vmatpush.xpose.msra.mxu0 0.0
    %8449 = vmatpush.xpose.msra.mxu0 0.0
    %8450 = vmatpush.xpose.msra.mxu0 0.0
    %v8451 = vand.u32 %v481, 4294901760
    %v8452 = vsub.f32 %v481, %v8451
    %v8453 = vand.u32 %v8452, 4294901760
    %v8454 = vsub.f32 %v8452, %v8453
    %v8455 = vand.u32 %v8454, 4294901760
    %8456 = vmatpush.xpose.msra.mxu0 %v8455
    %v8457 = vand.u32 %v351, 4294901760
    %8458 = vmatmul.f32.gmra.mxu0 %v8457
    %v8459 = vpop.f32.mrf.mxu0
    %v8460 = vadd.f32 %v8434, %v8459
    %8461 = vdwg.mxu0
    %8462 = vmatpush.xpose.msra.mxu0 0.0
    %8463 = vmatpush.xpose.msra.mxu0 0.0
    %8464 = vmatpush.xpose.msra.mxu0 0.0
    %8465 = vmatpush.xpose.msra.mxu0 0.0
    %8466 = vmatpush.xpose.msra.mxu0 0.0
    %8467 = vmatpush.xpose.msra.mxu0 0.0
    %8468 = vmatpush.xpose.msra.mxu0 0.0
    %8469 = vmatpush.xpose.msra.mxu0 0.0
    %8470 = vmatpush.xpose.msra.mxu0 0.0
    %8471 = vmatpush.xpose.msra.mxu0 0.0
    %8472 = vmatpush.xpose.msra.mxu0 0.0
    %8473 = vmatpush.xpose.msra.mxu0 0.0
    %8474 = vmatpush.xpose.msra.mxu0 0.0
    %8475 = vmatpush.xpose.msra.mxu0 0.0
    %8476 = vmatpush.xpose.msra.mxu0 0.0
    %v8477 = vand.u32 %v481, 4294901760
    %v8478 = vsub.f32 %v481, %v8477
    %8479 = vmatpush.xpose.msra.mxu0 %v8478
    %v8480 = vand.u32 %v351, 4294901760
    %v8481 = vsub.f32 %v351, %v8480
    %8482 = vmatmul.f32.gmra.mxu0 %v8481
    %v8483 = vpop.f32.mrf.mxu0
    %v8484 = vadd.f32 %v8460, %v8483
    %8485 = vdwg.mxu0
    %8486 = vmatpush.xpose.msra.mxu0 0.0
    %8487 = vmatpush.xpose.msra.mxu0 0.0
    %8488 = vmatpush.xpose.msra.mxu0 0.0
    %8489 = vmatpush.xpose.msra.mxu0 0.0
    %8490 = vmatpush.xpose.msra.mxu0 0.0
    %8491 = vmatpush.xpose.msra.mxu0 0.0
    %8492 = vmatpush.xpose.msra.mxu0 0.0
    %8493 = vmatpush.xpose.msra.mxu0 0.0
    %8494 = vmatpush.xpose.msra.mxu0 0.0
    %8495 = vmatpush.xpose.msra.mxu0 0.0
    %8496 = vmatpush.xpose.msra.mxu0 0.0
    %8497 = vmatpush.xpose.msra.mxu0 0.0
    %8498 = vmatpush.xpose.msra.mxu0 0.0
    %8499 = vmatpush.xpose.msra.mxu0 0.0
    %8500 = vmatpush.xpose.msra.mxu0 0.0
    %v8501 = vand.u32 %v481, 4294901760
    %8502 = vmatpush.xpose.msra.mxu0 %v8501
    %v8503 = vand.u32 %v351, 4294901760
    %v8504 = vsub.f32 %v351, %v8503
    %v8505 = vand.u32 %v8504, 4294901760
    %8506 = vmatmul.f32.gmra.mxu0 %v8505
    %v8507 = vpop.f32.mrf.mxu0
    %v8508 = vadd.f32 %v8484, %v8507
    %8509 = vdwg.mxu0
    %8510 = vmatpush.xpose.msra.mxu0 0.0
    %8511 = vmatpush.xpose.msra.mxu0 0.0
    %8512 = vmatpush.xpose.msra.mxu0 0.0
    %8513 = vmatpush.xpose.msra.mxu0 0.0
    %8514 = vmatpush.xpose.msra.mxu0 0.0
    %8515 = vmatpush.xpose.msra.mxu0 0.0
    %8516 = vmatpush.xpose.msra.mxu0 0.0
    %8517 = vmatpush.xpose.msra.mxu0 0.0
    %8518 = vmatpush.xpose.msra.mxu0 0.0
    %8519 = vmatpush.xpose.msra.mxu0 0.0
    %8520 = vmatpush.xpose.msra.mxu0 0.0
    %8521 = vmatpush.xpose.msra.mxu0 0.0
    %8522 = vmatpush.xpose.msra.mxu0 0.0
    %8523 = vmatpush.xpose.msra.mxu0 0.0
    %8524 = vmatpush.xpose.msra.mxu0 0.0
    %v8525 = vand.u32 %v481, 4294901760
    %v8526 = vsub.f32 %v481, %v8525
    %v8527 = vand.u32 %v8526, 4294901760
    %8528 = vmatpush.xpose.msra.mxu0 %v8527
    %v8529 = vand.u32 %v351, 4294901760
    %8530 = vmatmul.f32.gmra.mxu0 %v8529
    %v8531 = vpop.f32.mrf.mxu0
    %v8532 = vadd.f32 %v8508, %v8531
    %8533 = vdwg.mxu0
    %8534 = vmatpush.xpose.msra.mxu0 0.0
    %8535 = vmatpush.xpose.msra.mxu0 0.0
    %8536 = vmatpush.xpose.msra.mxu0 0.0
    %8537 = vmatpush.xpose.msra.mxu0 0.0
    %8538 = vmatpush.xpose.msra.mxu0 0.0
    %8539 = vmatpush.xpose.msra.mxu0 0.0
    %8540 = vmatpush.xpose.msra.mxu0 0.0
    %8541 = vmatpush.xpose.msra.mxu0 0.0
    %8542 = vmatpush.xpose.msra.mxu0 0.0
    %8543 = vmatpush.xpose.msra.mxu0 0.0
    %8544 = vmatpush.xpose.msra.mxu0 0.0
    %8545 = vmatpush.xpose.msra.mxu0 0.0
    %8546 = vmatpush.xpose.msra.mxu0 0.0
    %8547 = vmatpush.xpose.msra.mxu0 0.0
    %8548 = vmatpush.xpose.msra.mxu0 0.0
    %v8549 = vand.u32 %v481, 4294901760
    %8550 = vmatpush.xpose.msra.mxu0 %v8549
    %v8551 = vand.u32 %v351, 4294901760
    %8552 = vmatmul.f32.gmra.mxu0 %v8551
    %v8553 = vpop.f32.mrf.mxu0
    %v8554 = vadd.f32 %v8532, %v8553
    %8555 = vdwg.mxu0
    %8556 = vmatpush.xpose.msra.mxu0 0.0
    %8557 = vmatpush.xpose.msra.mxu0 0.0
    %8558 = vmatpush.xpose.msra.mxu0 0.0
    %8559 = vmatpush.xpose.msra.mxu0 0.0
    %8560 = vmatpush.xpose.msra.mxu0 0.0
    %8561 = vmatpush.xpose.msra.mxu0 0.0
    %8562 = vmatpush.xpose.msra.mxu0 0.0
    %8563 = vmatpush.xpose.msra.mxu0 0.0
    %8564 = vmatpush.xpose.msra.mxu0 0.0
    %8565 = vmatpush.xpose.msra.mxu0 0.0
    %8566 = vmatpush.xpose.msra.mxu0 0.0
    %8567 = vmatpush.xpose.msra.mxu0 0.0
    %8568 = vmatpush.xpose.msra.mxu0 0.0
    %8569 = vmatpush.xpose.msra.mxu0 0.0
    %8570 = vmatpush.xpose.msra.mxu0 0.0
    %v8571 = vand.u32 %v482, 4294901760
    %8572 = vmatpush.xpose.msra.mxu0 %v8571
    %v8573 = vand.u32 %v352, 4294901760
    %v8574 = vsub.f32 %v352, %v8573
    %v8575 = vand.u32 %v8574, 4294901760
    %v8576 = vsub.f32 %v8574, %v8575
    %v8577 = vand.u32 %v8576, 4294901760
    %8578 = vmatmul.f32.gmra.mxu0 %v8577
    %v8579 = vpop.f32.mrf.mxu0
    %v8580 = vadd.f32 %v8554, %v8579
    %8581 = vdwg.mxu0
    %8582 = vmatpush.xpose.msra.mxu0 0.0
    %8583 = vmatpush.xpose.msra.mxu0 0.0
    %8584 = vmatpush.xpose.msra.mxu0 0.0
    %8585 = vmatpush.xpose.msra.mxu0 0.0
    %8586 = vmatpush.xpose.msra.mxu0 0.0
    %8587 = vmatpush.xpose.msra.mxu0 0.0
    %8588 = vmatpush.xpose.msra.mxu0 0.0
    %8589 = vmatpush.xpose.msra.mxu0 0.0
    %8590 = vmatpush.xpose.msra.mxu0 0.0
    %8591 = vmatpush.xpose.msra.mxu0 0.0
    %8592 = vmatpush.xpose.msra.mxu0 0.0
    %8593 = vmatpush.xpose.msra.mxu0 0.0
    %8594 = vmatpush.xpose.msra.mxu0 0.0
    %8595 = vmatpush.xpose.msra.mxu0 0.0
    %8596 = vmatpush.xpose.msra.mxu0 0.0
    %v8597 = vand.u32 %v482, 4294901760
    %v8598 = vsub.f32 %v482, %v8597
    %v8599 = vand.u32 %v8598, 4294901760
    %v8600 = vsub.f32 %v8598, %v8599
    %v8601 = vand.u32 %v8600, 4294901760
    %8602 = vmatpush.xpose.msra.mxu0 %v8601
    %v8603 = vand.u32 %v352, 4294901760
    %8604 = vmatmul.f32.gmra.mxu0 %v8603
    %v8605 = vpop.f32.mrf.mxu0
    %v8606 = vadd.f32 %v8580, %v8605
    %8607 = vdwg.mxu0
    %8608 = vmatpush.xpose.msra.mxu0 0.0
    %8609 = vmatpush.xpose.msra.mxu0 0.0
    %8610 = vmatpush.xpose.msra.mxu0 0.0
    %8611 = vmatpush.xpose.msra.mxu0 0.0
    %8612 = vmatpush.xpose.msra.mxu0 0.0
    %8613 = vmatpush.xpose.msra.mxu0 0.0
    %8614 = vmatpush.xpose.msra.mxu0 0.0
    %8615 = vmatpush.xpose.msra.mxu0 0.0
    %8616 = vmatpush.xpose.msra.mxu0 0.0
    %8617 = vmatpush.xpose.msra.mxu0 0.0
    %8618 = vmatpush.xpose.msra.mxu0 0.0
    %8619 = vmatpush.xpose.msra.mxu0 0.0
    %8620 = vmatpush.xpose.msra.mxu0 0.0
    %8621 = vmatpush.xpose.msra.mxu0 0.0
    %8622 = vmatpush.xpose.msra.mxu0 0.0
    %v8623 = vand.u32 %v482, 4294901760
    %v8624 = vsub.f32 %v482, %v8623
    %8625 = vmatpush.xpose.msra.mxu0 %v8624
    %v8626 = vand.u32 %v352, 4294901760
    %v8627 = vsub.f32 %v352, %v8626
    %8628 = vmatmul.f32.gmra.mxu0 %v8627
    %v8629 = vpop.f32.mrf.mxu0
    %v8630 = vadd.f32 %v8606, %v8629
    %8631 = vdwg.mxu0
    %8632 = vmatpush.xpose.msra.mxu0 0.0
    %8633 = vmatpush.xpose.msra.mxu0 0.0
    %8634 = vmatpush.xpose.msra.mxu0 0.0
    %8635 = vmatpush.xpose.msra.mxu0 0.0
    %8636 = vmatpush.xpose.msra.mxu0 0.0
    %8637 = vmatpush.xpose.msra.mxu0 0.0
    %8638 = vmatpush.xpose.msra.mxu0 0.0
    %8639 = vmatpush.xpose.msra.mxu0 0.0
    %8640 = vmatpush.xpose.msra.mxu0 0.0
    %8641 = vmatpush.xpose.msra.mxu0 0.0
    %8642 = vmatpush.xpose.msra.mxu0 0.0
    %8643 = vmatpush.xpose.msra.mxu0 0.0
    %8644 = vmatpush.xpose.msra.mxu0 0.0
    %8645 = vmatpush.xpose.msra.mxu0 0.0
    %8646 = vmatpush.xpose.msra.mxu0 0.0
    %v8647 = vand.u32 %v482, 4294901760
    %8648 = vmatpush.xpose.msra.mxu0 %v8647
    %v8649 = vand.u32 %v352, 4294901760
    %v8650 = vsub.f32 %v352, %v8649
    %v8651 = vand.u32 %v8650, 4294901760
    %8652 = vmatmul.f32.gmra.mxu0 %v8651
    %v8653 = vpop.f32.mrf.mxu0
    %v8654 = vadd.f32 %v8630, %v8653
    %8655 = vdwg.mxu0
    %8656 = vmatpush.xpose.msra.mxu0 0.0
    %8657 = vmatpush.xpose.msra.mxu0 0.0
    %8658 = vmatpush.xpose.msra.mxu0 0.0
    %8659 = vmatpush.xpose.msra.mxu0 0.0
    %8660 = vmatpush.xpose.msra.mxu0 0.0
    %8661 = vmatpush.xpose.msra.mxu0 0.0
    %8662 = vmatpush.xpose.msra.mxu0 0.0
    %8663 = vmatpush.xpose.msra.mxu0 0.0
    %8664 = vmatpush.xpose.msra.mxu0 0.0
    %8665 = vmatpush.xpose.msra.mxu0 0.0
    %8666 = vmatpush.xpose.msra.mxu0 0.0
    %8667 = vmatpush.xpose.msra.mxu0 0.0
    %8668 = vmatpush.xpose.msra.mxu0 0.0
    %8669 = vmatpush.xpose.msra.mxu0 0.0
    %8670 = vmatpush.xpose.msra.mxu0 0.0
    %v8671 = vand.u32 %v482, 4294901760
    %v8672 = vsub.f32 %v482, %v8671
    %v8673 = vand.u32 %v8672, 4294901760
    %8674 = vmatpush.xpose.msra.mxu0 %v8673
    %v8675 = vand.u32 %v352, 4294901760
    %8676 = vmatmul.f32.gmra.mxu0 %v8675
    %v8677 = vpop.f32.mrf.mxu0
    %v8678 = vadd.f32 %v8654, %v8677
    %8679 = vdwg.mxu0
    %8680 = vmatpush.xpose.msra.mxu0 0.0
    %8681 = vmatpush.xpose.msra.mxu0 0.0
    %8682 = vmatpush.xpose.msra.mxu0 0.0
    %8683 = vmatpush.xpose.msra.mxu0 0.0
    %8684 = vmatpush.xpose.msra.mxu0 0.0
    %8685 = vmatpush.xpose.msra.mxu0 0.0
    %8686 = vmatpush.xpose.msra.mxu0 0.0
    %8687 = vmatpush.xpose.msra.mxu0 0.0
    %8688 = vmatpush.xpose.msra.mxu0 0.0
    %8689 = vmatpush.xpose.msra.mxu0 0.0
    %8690 = vmatpush.xpose.msra.mxu0 0.0
    %8691 = vmatpush.xpose.msra.mxu0 0.0
    %8692 = vmatpush.xpose.msra.mxu0 0.0
    %8693 = vmatpush.xpose.msra.mxu0 0.0
    %8694 = vmatpush.xpose.msra.mxu0 0.0
    %v8695 = vand.u32 %v482, 4294901760
    %8696 = vmatpush.xpose.msra.mxu0 %v8695
    %v8697 = vand.u32 %v352, 4294901760
    %8698 = vmatmul.f32.gmra.mxu0 %v8697
    %v8699 = vpop.f32.mrf.mxu0
    %v8700 = vadd.f32 %v8678, %v8699
    %8701 = vdwg.mxu0
    %8702 = vmatpush.xpose.msra.mxu0 0.0
    %8703 = vmatpush.xpose.msra.mxu0 0.0
    %8704 = vmatpush.xpose.msra.mxu0 0.0
    %8705 = vmatpush.xpose.msra.mxu0 0.0
    %8706 = vmatpush.xpose.msra.mxu0 0.0
    %8707 = vmatpush.xpose.msra.mxu0 0.0
    %8708 = vmatpush.xpose.msra.mxu0 0.0
    %8709 = vmatpush.xpose.msra.mxu0 0.0
    %8710 = vmatpush.xpose.msra.mxu0 0.0
    %8711 = vmatpush.xpose.msra.mxu0 0.0
    %8712 = vmatpush.xpose.msra.mxu0 0.0
    %8713 = vmatpush.xpose.msra.mxu0 0.0
    %8714 = vmatpush.xpose.msra.mxu0 0.0
    %8715 = vmatpush.xpose.msra.mxu0 0.0
    %8716 = vmatpush.xpose.msra.mxu0 0.0
    %v8717 = vand.u32 %v483, 4294901760
    %8718 = vmatpush.xpose.msra.mxu0 %v8717
    %v8719 = vand.u32 %v353, 4294901760
    %v8720 = vsub.f32 %v353, %v8719
    %v8721 = vand.u32 %v8720, 4294901760
    %v8722 = vsub.f32 %v8720, %v8721
    %v8723 = vand.u32 %v8722, 4294901760
    %8724 = vmatmul.f32.gmra.mxu0 %v8723
    %v8725 = vpop.f32.mrf.mxu0
    %v8726 = vadd.f32 %v8700, %v8725
    %8727 = vdwg.mxu0
    %8728 = vmatpush.xpose.msra.mxu0 0.0
    %8729 = vmatpush.xpose.msra.mxu0 0.0
    %8730 = vmatpush.xpose.msra.mxu0 0.0
    %8731 = vmatpush.xpose.msra.mxu0 0.0
    %8732 = vmatpush.xpose.msra.mxu0 0.0
    %8733 = vmatpush.xpose.msra.mxu0 0.0
    %8734 = vmatpush.xpose.msra.mxu0 0.0
    %8735 = vmatpush.xpose.msra.mxu0 0.0
    %8736 = vmatpush.xpose.msra.mxu0 0.0
    %8737 = vmatpush.xpose.msra.mxu0 0.0
    %8738 = vmatpush.xpose.msra.mxu0 0.0
    %8739 = vmatpush.xpose.msra.mxu0 0.0
    %8740 = vmatpush.xpose.msra.mxu0 0.0
    %8741 = vmatpush.xpose.msra.mxu0 0.0
    %8742 = vmatpush.xpose.msra.mxu0 0.0
    %v8743 = vand.u32 %v483, 4294901760
    %v8744 = vsub.f32 %v483, %v8743
    %v8745 = vand.u32 %v8744, 4294901760
    %v8746 = vsub.f32 %v8744, %v8745
    %v8747 = vand.u32 %v8746, 4294901760
    %8748 = vmatpush.xpose.msra.mxu0 %v8747
    %v8749 = vand.u32 %v353, 4294901760
    %8750 = vmatmul.f32.gmra.mxu0 %v8749
    %v8751 = vpop.f32.mrf.mxu0
    %v8752 = vadd.f32 %v8726, %v8751
    %8753 = vdwg.mxu0
    %8754 = vmatpush.xpose.msra.mxu0 0.0
    %8755 = vmatpush.xpose.msra.mxu0 0.0
    %8756 = vmatpush.xpose.msra.mxu0 0.0
    %8757 = vmatpush.xpose.msra.mxu0 0.0
    %8758 = vmatpush.xpose.msra.mxu0 0.0
    %8759 = vmatpush.xpose.msra.mxu0 0.0
    %8760 = vmatpush.xpose.msra.mxu0 0.0
    %8761 = vmatpush.xpose.msra.mxu0 0.0
    %8762 = vmatpush.xpose.msra.mxu0 0.0
    %8763 = vmatpush.xpose.msra.mxu0 0.0
    %8764 = vmatpush.xpose.msra.mxu0 0.0
    %8765 = vmatpush.xpose.msra.mxu0 0.0
    %8766 = vmatpush.xpose.msra.mxu0 0.0
    %8767 = vmatpush.xpose.msra.mxu0 0.0
    %8768 = vmatpush.xpose.msra.mxu0 0.0
    %v8769 = vand.u32 %v483, 4294901760
    %v8770 = vsub.f32 %v483, %v8769
    %8771 = vmatpush.xpose.msra.mxu0 %v8770
    %v8772 = vand.u32 %v353, 4294901760
    %v8773 = vsub.f32 %v353, %v8772
    %8774 = vmatmul.f32.gmra.mxu0 %v8773
    %v8775 = vpop.f32.mrf.mxu0
    %v8776 = vadd.f32 %v8752, %v8775
    %8777 = vdwg.mxu0
    %8778 = vmatpush.xpose.msra.mxu0 0.0
    %8779 = vmatpush.xpose.msra.mxu0 0.0
    %8780 = vmatpush.xpose.msra.mxu0 0.0
    %8781 = vmatpush.xpose.msra.mxu0 0.0
    %8782 = vmatpush.xpose.msra.mxu0 0.0
    %8783 = vmatpush.xpose.msra.mxu0 0.0
    %8784 = vmatpush.xpose.msra.mxu0 0.0
    %8785 = vmatpush.xpose.msra.mxu0 0.0
    %8786 = vmatpush.xpose.msra.mxu0 0.0
    %8787 = vmatpush.xpose.msra.mxu0 0.0
    %8788 = vmatpush.xpose.msra.mxu0 0.0
    %8789 = vmatpush.xpose.msra.mxu0 0.0
    %8790 = vmatpush.xpose.msra.mxu0 0.0
    %8791 = vmatpush.xpose.msra.mxu0 0.0
    %8792 = vmatpush.xpose.msra.mxu0 0.0
    %v8793 = vand.u32 %v483, 4294901760
    %8794 = vmatpush.xpose.msra.mxu0 %v8793
    %v8795 = vand.u32 %v353, 4294901760
    %v8796 = vsub.f32 %v353, %v8795
    %v8797 = vand.u32 %v8796, 4294901760
    %8798 = vmatmul.f32.gmra.mxu0 %v8797
    %v8799 = vpop.f32.mrf.mxu0
    %v8800 = vadd.f32 %v8776, %v8799
    %8801 = vdwg.mxu0
    %8802 = vmatpush.xpose.msra.mxu0 0.0
    %8803 = vmatpush.xpose.msra.mxu0 0.0
    %8804 = vmatpush.xpose.msra.mxu0 0.0
    %8805 = vmatpush.xpose.msra.mxu0 0.0
    %8806 = vmatpush.xpose.msra.mxu0 0.0
    %8807 = vmatpush.xpose.msra.mxu0 0.0
    %8808 = vmatpush.xpose.msra.mxu0 0.0
    %8809 = vmatpush.xpose.msra.mxu0 0.0
    %8810 = vmatpush.xpose.msra.mxu0 0.0
    %8811 = vmatpush.xpose.msra.mxu0 0.0
    %8812 = vmatpush.xpose.msra.mxu0 0.0
    %8813 = vmatpush.xpose.msra.mxu0 0.0
    %8814 = vmatpush.xpose.msra.mxu0 0.0
    %8815 = vmatpush.xpose.msra.mxu0 0.0
    %8816 = vmatpush.xpose.msra.mxu0 0.0
    %v8817 = vand.u32 %v483, 4294901760
    %v8818 = vsub.f32 %v483, %v8817
    %v8819 = vand.u32 %v8818, 4294901760
    %8820 = vmatpush.xpose.msra.mxu0 %v8819
    %v8821 = vand.u32 %v353, 4294901760
    %8822 = vmatmul.f32.gmra.mxu0 %v8821
    %v8823 = vpop.f32.mrf.mxu0
    %v8824 = vadd.f32 %v8800, %v8823
    %8825 = vdwg.mxu0
    %8826 = vmatpush.xpose.msra.mxu0 0.0
    %8827 = vmatpush.xpose.msra.mxu0 0.0
    %8828 = vmatpush.xpose.msra.mxu0 0.0
    %8829 = vmatpush.xpose.msra.mxu0 0.0
    %8830 = vmatpush.xpose.msra.mxu0 0.0
    %8831 = vmatpush.xpose.msra.mxu0 0.0
    %8832 = vmatpush.xpose.msra.mxu0 0.0
    %8833 = vmatpush.xpose.msra.mxu0 0.0
    %8834 = vmatpush.xpose.msra.mxu0 0.0
    %8835 = vmatpush.xpose.msra.mxu0 0.0
    %8836 = vmatpush.xpose.msra.mxu0 0.0
    %8837 = vmatpush.xpose.msra.mxu0 0.0
    %8838 = vmatpush.xpose.msra.mxu0 0.0
    %8839 = vmatpush.xpose.msra.mxu0 0.0
    %8840 = vmatpush.xpose.msra.mxu0 0.0
    %v8841 = vand.u32 %v483, 4294901760
    %8842 = vmatpush.xpose.msra.mxu0 %v8841
    %v8843 = vand.u32 %v353, 4294901760
    %8844 = vmatmul.f32.gmra.mxu0 %v8843
    %v8845 = vpop.f32.mrf.mxu0
    %v8846 = vadd.f32 %v8824, %v8845
    %8847 = vdwg.mxu0
    %8848 = vmatpush.xpose.msra.mxu0 0.0
    %8849 = vmatpush.xpose.msra.mxu0 0.0
    %8850 = vmatpush.xpose.msra.mxu0 0.0
    %8851 = vmatpush.xpose.msra.mxu0 0.0
    %8852 = vmatpush.xpose.msra.mxu0 0.0
    %8853 = vmatpush.xpose.msra.mxu0 0.0
    %8854 = vmatpush.xpose.msra.mxu0 0.0
    %8855 = vmatpush.xpose.msra.mxu0 0.0
    %8856 = vmatpush.xpose.msra.mxu0 0.0
    %8857 = vmatpush.xpose.msra.mxu0 0.0
    %8858 = vmatpush.xpose.msra.mxu0 0.0
    %8859 = vmatpush.xpose.msra.mxu0 0.0
    %8860 = vmatpush.xpose.msra.mxu0 0.0
    %8861 = vmatpush.xpose.msra.mxu0 0.0
    %8862 = vmatpush.xpose.msra.mxu0 0.0
    %v8863 = vand.u32 %v484, 4294901760
    %8864 = vmatpush.xpose.msra.mxu0 %v8863
    %v8865 = vand.u32 %v354, 4294901760
    %v8866 = vsub.f32 %v354, %v8865
    %v8867 = vand.u32 %v8866, 4294901760
    %v8868 = vsub.f32 %v8866, %v8867
    %v8869 = vand.u32 %v8868, 4294901760
    %8870 = vmatmul.f32.gmra.mxu0 %v8869
    %v8871 = vpop.f32.mrf.mxu0
    %v8872 = vadd.f32 %v8846, %v8871
    %8873 = vdwg.mxu0
    %8874 = vmatpush.xpose.msra.mxu0 0.0
    %8875 = vmatpush.xpose.msra.mxu0 0.0
    %8876 = vmatpush.xpose.msra.mxu0 0.0
    %8877 = vmatpush.xpose.msra.mxu0 0.0
    %8878 = vmatpush.xpose.msra.mxu0 0.0
    %8879 = vmatpush.xpose.msra.mxu0 0.0
    %8880 = vmatpush.xpose.msra.mxu0 0.0
    %8881 = vmatpush.xpose.msra.mxu0 0.0
    %8882 = vmatpush.xpose.msra.mxu0 0.0
    %8883 = vmatpush.xpose.msra.mxu0 0.0
    %8884 = vmatpush.xpose.msra.mxu0 0.0
    %8885 = vmatpush.xpose.msra.mxu0 0.0
    %8886 = vmatpush.xpose.msra.mxu0 0.0
    %8887 = vmatpush.xpose.msra.mxu0 0.0
    %8888 = vmatpush.xpose.msra.mxu0 0.0
    %v8889 = vand.u32 %v484, 4294901760
    %v8890 = vsub.f32 %v484, %v8889
    %v8891 = vand.u32 %v8890, 4294901760
    %v8892 = vsub.f32 %v8890, %v8891
    %v8893 = vand.u32 %v8892, 4294901760
    %8894 = vmatpush.xpose.msra.mxu0 %v8893
    %v8895 = vand.u32 %v354, 4294901760
    %8896 = vmatmul.f32.gmra.mxu0 %v8895
    %v8897 = vpop.f32.mrf.mxu0
    %v8898 = vadd.f32 %v8872, %v8897
    %8899 = vdwg.mxu0
    %8900 = vmatpush.xpose.msra.mxu0 0.0
    %8901 = vmatpush.xpose.msra.mxu0 0.0
    %8902 = vmatpush.xpose.msra.mxu0 0.0
    %8903 = vmatpush.xpose.msra.mxu0 0.0
    %8904 = vmatpush.xpose.msra.mxu0 0.0
    %8905 = vmatpush.xpose.msra.mxu0 0.0
    %8906 = vmatpush.xpose.msra.mxu0 0.0
    %8907 = vmatpush.xpose.msra.mxu0 0.0
    %8908 = vmatpush.xpose.msra.mxu0 0.0
    %8909 = vmatpush.xpose.msra.mxu0 0.0
    %8910 = vmatpush.xpose.msra.mxu0 0.0
    %8911 = vmatpush.xpose.msra.mxu0 0.0
    %8912 = vmatpush.xpose.msra.mxu0 0.0
    %8913 = vmatpush.xpose.msra.mxu0 0.0
    %8914 = vmatpush.xpose.msra.mxu0 0.0
    %v8915 = vand.u32 %v484, 4294901760
    %v8916 = vsub.f32 %v484, %v8915
    %8917 = vmatpush.xpose.msra.mxu0 %v8916
    %v8918 = vand.u32 %v354, 4294901760
    %v8919 = vsub.f32 %v354, %v8918
    %8920 = vmatmul.f32.gmra.mxu0 %v8919
    %v8921 = vpop.f32.mrf.mxu0
    %v8922 = vadd.f32 %v8898, %v8921
    %8923 = vdwg.mxu0
    %8924 = vmatpush.xpose.msra.mxu0 0.0
    %8925 = vmatpush.xpose.msra.mxu0 0.0
    %8926 = vmatpush.xpose.msra.mxu0 0.0
    %8927 = vmatpush.xpose.msra.mxu0 0.0
    %8928 = vmatpush.xpose.msra.mxu0 0.0
    %8929 = vmatpush.xpose.msra.mxu0 0.0
    %8930 = vmatpush.xpose.msra.mxu0 0.0
    %8931 = vmatpush.xpose.msra.mxu0 0.0
    %8932 = vmatpush.xpose.msra.mxu0 0.0
    %8933 = vmatpush.xpose.msra.mxu0 0.0
    %8934 = vmatpush.xpose.msra.mxu0 0.0
    %8935 = vmatpush.xpose.msra.mxu0 0.0
    %8936 = vmatpush.xpose.msra.mxu0 0.0
    %8937 = vmatpush.xpose.msra.mxu0 0.0
    %8938 = vmatpush.xpose.msra.mxu0 0.0
    %v8939 = vand.u32 %v484, 4294901760
    %8940 = vmatpush.xpose.msra.mxu0 %v8939
    %v8941 = vand.u32 %v354, 4294901760
    %v8942 = vsub.f32 %v354, %v8941
    %v8943 = vand.u32 %v8942, 4294901760
    %8944 = vmatmul.f32.gmra.mxu0 %v8943
    %v8945 = vpop.f32.mrf.mxu0
    %v8946 = vadd.f32 %v8922, %v8945
    %8947 = vdwg.mxu0
    %8948 = vmatpush.xpose.msra.mxu0 0.0
    %8949 = vmatpush.xpose.msra.mxu0 0.0
    %8950 = vmatpush.xpose.msra.mxu0 0.0
    %8951 = vmatpush.xpose.msra.mxu0 0.0
    %8952 = vmatpush.xpose.msra.mxu0 0.0
    %8953 = vmatpush.xpose.msra.mxu0 0.0
    %8954 = vmatpush.xpose.msra.mxu0 0.0
    %8955 = vmatpush.xpose.msra.mxu0 0.0
    %8956 = vmatpush.xpose.msra.mxu0 0.0
    %8957 = vmatpush.xpose.msra.mxu0 0.0
    %8958 = vmatpush.xpose.msra.mxu0 0.0
    %8959 = vmatpush.xpose.msra.mxu0 0.0
    %8960 = vmatpush.xpose.msra.mxu0 0.0
    %8961 = vmatpush.xpose.msra.mxu0 0.0
    %8962 = vmatpush.xpose.msra.mxu0 0.0
    %v8963 = vand.u32 %v484, 4294901760
    %v8964 = vsub.f32 %v484, %v8963
    %v8965 = vand.u32 %v8964, 4294901760
    %8966 = vmatpush.xpose.msra.mxu0 %v8965
    %v8967 = vand.u32 %v354, 4294901760
    %8968 = vmatmul.f32.gmra.mxu0 %v8967
    %v8969 = vpop.f32.mrf.mxu0
    %v8970 = vadd.f32 %v8946, %v8969
    %8971 = vdwg.mxu0
    %8972 = vmatpush.xpose.msra.mxu0 0.0
    %8973 = vmatpush.xpose.msra.mxu0 0.0
    %8974 = vmatpush.xpose.msra.mxu0 0.0
    %8975 = vmatpush.xpose.msra.mxu0 0.0
    %8976 = vmatpush.xpose.msra.mxu0 0.0
    %8977 = vmatpush.xpose.msra.mxu0 0.0
    %8978 = vmatpush.xpose.msra.mxu0 0.0
    %8979 = vmatpush.xpose.msra.mxu0 0.0
    %8980 = vmatpush.xpose.msra.mxu0 0.0
    %8981 = vmatpush.xpose.msra.mxu0 0.0
    %8982 = vmatpush.xpose.msra.mxu0 0.0
    %8983 = vmatpush.xpose.msra.mxu0 0.0
    %8984 = vmatpush.xpose.msra.mxu0 0.0
    %8985 = vmatpush.xpose.msra.mxu0 0.0
    %8986 = vmatpush.xpose.msra.mxu0 0.0
    %v8987 = vand.u32 %v484, 4294901760
    %8988 = vmatpush.xpose.msra.mxu0 %v8987
    %v8989 = vand.u32 %v354, 4294901760
    %8990 = vmatmul.f32.gmra.mxu0 %v8989
    %v8991 = vpop.f32.mrf.mxu0
    %v8992 = vadd.f32 %v8970, %v8991
    %8993 = vdwg.mxu0
    %8994 = vmatpush.xpose.msra.mxu0 0.0
    %8995 = vmatpush.xpose.msra.mxu0 0.0
    %8996 = vmatpush.xpose.msra.mxu0 0.0
    %8997 = vmatpush.xpose.msra.mxu0 0.0
    %8998 = vmatpush.xpose.msra.mxu0 0.0
    %8999 = vmatpush.xpose.msra.mxu0 0.0
    %9000 = vmatpush.xpose.msra.mxu0 0.0
    %9001 = vmatpush.xpose.msra.mxu0 0.0
    %9002 = vmatpush.xpose.msra.mxu0 0.0
    %9003 = vmatpush.xpose.msra.mxu0 0.0
    %9004 = vmatpush.xpose.msra.mxu0 0.0
    %9005 = vmatpush.xpose.msra.mxu0 0.0
    %9006 = vmatpush.xpose.msra.mxu0 0.0
    %9007 = vmatpush.xpose.msra.mxu0 0.0
    %9008 = vmatpush.xpose.msra.mxu0 0.0
    %v9009 = vand.u32 %v485, 4294901760
    %9010 = vmatpush.xpose.msra.mxu0 %v9009
    %v9011 = vand.u32 %v355, 4294901760
    %v9012 = vsub.f32 %v355, %v9011
    %v9013 = vand.u32 %v9012, 4294901760
    %v9014 = vsub.f32 %v9012, %v9013
    %v9015 = vand.u32 %v9014, 4294901760
    %9016 = vmatmul.f32.gmra.mxu0 %v9015
    %v9017 = vpop.f32.mrf.mxu0
    %v9018 = vadd.f32 %v8992, %v9017
    %9019 = vdwg.mxu0
    %9020 = vmatpush.xpose.msra.mxu0 0.0
    %9021 = vmatpush.xpose.msra.mxu0 0.0
    %9022 = vmatpush.xpose.msra.mxu0 0.0
    %9023 = vmatpush.xpose.msra.mxu0 0.0
    %9024 = vmatpush.xpose.msra.mxu0 0.0
    %9025 = vmatpush.xpose.msra.mxu0 0.0
    %9026 = vmatpush.xpose.msra.mxu0 0.0
    %9027 = vmatpush.xpose.msra.mxu0 0.0
    %9028 = vmatpush.xpose.msra.mxu0 0.0
    %9029 = vmatpush.xpose.msra.mxu0 0.0
    %9030 = vmatpush.xpose.msra.mxu0 0.0
    %9031 = vmatpush.xpose.msra.mxu0 0.0
    %9032 = vmatpush.xpose.msra.mxu0 0.0
    %9033 = vmatpush.xpose.msra.mxu0 0.0
    %9034 = vmatpush.xpose.msra.mxu0 0.0
    %v9035 = vand.u32 %v485, 4294901760
    %v9036 = vsub.f32 %v485, %v9035
    %v9037 = vand.u32 %v9036, 4294901760
    %v9038 = vsub.f32 %v9036, %v9037
    %v9039 = vand.u32 %v9038, 4294901760
    %9040 = vmatpush.xpose.msra.mxu0 %v9039
    %v9041 = vand.u32 %v355, 4294901760
    %9042 = vmatmul.f32.gmra.mxu0 %v9041
    %v9043 = vpop.f32.mrf.mxu0
    %v9044 = vadd.f32 %v9018, %v9043
    %9045 = vdwg.mxu0
    %9046 = vmatpush.xpose.msra.mxu0 0.0
    %9047 = vmatpush.xpose.msra.mxu0 0.0
    %9048 = vmatpush.xpose.msra.mxu0 0.0
    %9049 = vmatpush.xpose.msra.mxu0 0.0
    %9050 = vmatpush.xpose.msra.mxu0 0.0
    %9051 = vmatpush.xpose.msra.mxu0 0.0
    %9052 = vmatpush.xpose.msra.mxu0 0.0
    %9053 = vmatpush.xpose.msra.mxu0 0.0
    %9054 = vmatpush.xpose.msra.mxu0 0.0
    %9055 = vmatpush.xpose.msra.mxu0 0.0
    %9056 = vmatpush.xpose.msra.mxu0 0.0
    %9057 = vmatpush.xpose.msra.mxu0 0.0
    %9058 = vmatpush.xpose.msra.mxu0 0.0
    %9059 = vmatpush.xpose.msra.mxu0 0.0
    %9060 = vmatpush.xpose.msra.mxu0 0.0
    %v9061 = vand.u32 %v485, 4294901760
    %v9062 = vsub.f32 %v485, %v9061
    %9063 = vmatpush.xpose.msra.mxu0 %v9062
    %v9064 = vand.u32 %v355, 4294901760
    %v9065 = vsub.f32 %v355, %v9064
    %9066 = vmatmul.f32.gmra.mxu0 %v9065
    %v9067 = vpop.f32.mrf.mxu0
    %v9068 = vadd.f32 %v9044, %v9067
    %9069 = vdwg.mxu0
    %9070 = vmatpush.xpose.msra.mxu0 0.0
    %9071 = vmatpush.xpose.msra.mxu0 0.0
    %9072 = vmatpush.xpose.msra.mxu0 0.0
    %9073 = vmatpush.xpose.msra.mxu0 0.0
    %9074 = vmatpush.xpose.msra.mxu0 0.0
    %9075 = vmatpush.xpose.msra.mxu0 0.0
    %9076 = vmatpush.xpose.msra.mxu0 0.0
    %9077 = vmatpush.xpose.msra.mxu0 0.0
    %9078 = vmatpush.xpose.msra.mxu0 0.0
    %9079 = vmatpush.xpose.msra.mxu0 0.0
    %9080 = vmatpush.xpose.msra.mxu0 0.0
    %9081 = vmatpush.xpose.msra.mxu0 0.0
    %9082 = vmatpush.xpose.msra.mxu0 0.0
    %9083 = vmatpush.xpose.msra.mxu0 0.0
    %9084 = vmatpush.xpose.msra.mxu0 0.0
    %v9085 = vand.u32 %v485, 4294901760
    %9086 = vmatpush.xpose.msra.mxu0 %v9085
    %v9087 = vand.u32 %v355, 4294901760
    %v9088 = vsub.f32 %v355, %v9087
    %v9089 = vand.u32 %v9088, 4294901760
    %9090 = vmatmul.f32.gmra.mxu0 %v9089
    %v9091 = vpop.f32.mrf.mxu0
    %v9092 = vadd.f32 %v9068, %v9091
    %9093 = vdwg.mxu0
    %9094 = vmatpush.xpose.msra.mxu0 0.0
    %9095 = vmatpush.xpose.msra.mxu0 0.0
    %9096 = vmatpush.xpose.msra.mxu0 0.0
    %9097 = vmatpush.xpose.msra.mxu0 0.0
    %9098 = vmatpush.xpose.msra.mxu0 0.0
    %9099 = vmatpush.xpose.msra.mxu0 0.0
    %9100 = vmatpush.xpose.msra.mxu0 0.0
    %9101 = vmatpush.xpose.msra.mxu0 0.0
    %9102 = vmatpush.xpose.msra.mxu0 0.0
    %9103 = vmatpush.xpose.msra.mxu0 0.0
    %9104 = vmatpush.xpose.msra.mxu0 0.0
    %9105 = vmatpush.xpose.msra.mxu0 0.0
    %9106 = vmatpush.xpose.msra.mxu0 0.0
    %9107 = vmatpush.xpose.msra.mxu0 0.0
    %9108 = vmatpush.xpose.msra.mxu0 0.0
    %v9109 = vand.u32 %v485, 4294901760
    %v9110 = vsub.f32 %v485, %v9109
    %v9111 = vand.u32 %v9110, 4294901760
    %9112 = vmatpush.xpose.msra.mxu0 %v9111
    %v9113 = vand.u32 %v355, 4294901760
    %9114 = vmatmul.f32.gmra.mxu0 %v9113
    %v9115 = vpop.f32.mrf.mxu0
    %v9116 = vadd.f32 %v9092, %v9115
    %9117 = vdwg.mxu0
    %9118 = vmatpush.xpose.msra.mxu0 0.0
    %9119 = vmatpush.xpose.msra.mxu0 0.0
    %9120 = vmatpush.xpose.msra.mxu0 0.0
    %9121 = vmatpush.xpose.msra.mxu0 0.0
    %9122 = vmatpush.xpose.msra.mxu0 0.0
    %9123 = vmatpush.xpose.msra.mxu0 0.0
    %9124 = vmatpush.xpose.msra.mxu0 0.0
    %9125 = vmatpush.xpose.msra.mxu0 0.0
    %9126 = vmatpush.xpose.msra.mxu0 0.0
    %9127 = vmatpush.xpose.msra.mxu0 0.0
    %9128 = vmatpush.xpose.msra.mxu0 0.0
    %9129 = vmatpush.xpose.msra.mxu0 0.0
    %9130 = vmatpush.xpose.msra.mxu0 0.0
    %9131 = vmatpush.xpose.msra.mxu0 0.0
    %9132 = vmatpush.xpose.msra.mxu0 0.0
    %v9133 = vand.u32 %v485, 4294901760
    %9134 = vmatpush.xpose.msra.mxu0 %v9133
    %v9135 = vand.u32 %v355, 4294901760
    %9136 = vmatmul.f32.gmra.mxu0 %v9135
    %v9137 = vpop.f32.mrf.mxu0
    %v9138 = vadd.f32 %v9116, %v9137
    %9139 = vdwg.mxu0
    %9140 = vmatpush.xpose.msra.mxu0 0.0
    %9141 = vmatpush.xpose.msra.mxu0 0.0
    %9142 = vmatpush.xpose.msra.mxu0 0.0
    %9143 = vmatpush.xpose.msra.mxu0 0.0
    %9144 = vmatpush.xpose.msra.mxu0 0.0
    %9145 = vmatpush.xpose.msra.mxu0 0.0
    %9146 = vmatpush.xpose.msra.mxu0 0.0
    %9147 = vmatpush.xpose.msra.mxu0 0.0
    %9148 = vmatpush.xpose.msra.mxu0 0.0
    %9149 = vmatpush.xpose.msra.mxu0 0.0
    %9150 = vmatpush.xpose.msra.mxu0 0.0
    %9151 = vmatpush.xpose.msra.mxu0 0.0
    %9152 = vmatpush.xpose.msra.mxu0 0.0
    %9153 = vmatpush.xpose.msra.mxu0 0.0
    %9154 = vmatpush.xpose.msra.mxu0 0.0
    %v9155 = vand.u32 %v486, 4294901760
    %9156 = vmatpush.xpose.msra.mxu0 %v9155
    %v9157 = vand.u32 %v356, 4294901760
    %v9158 = vsub.f32 %v356, %v9157
    %v9159 = vand.u32 %v9158, 4294901760
    %v9160 = vsub.f32 %v9158, %v9159
    %v9161 = vand.u32 %v9160, 4294901760
    %9162 = vmatmul.f32.gmra.mxu0 %v9161
    %v9163 = vpop.f32.mrf.mxu0
    %v9164 = vadd.f32 %v9138, %v9163
    %9165 = vdwg.mxu0
    %9166 = vmatpush.xpose.msra.mxu0 0.0
    %9167 = vmatpush.xpose.msra.mxu0 0.0
    %9168 = vmatpush.xpose.msra.mxu0 0.0
    %9169 = vmatpush.xpose.msra.mxu0 0.0
    %9170 = vmatpush.xpose.msra.mxu0 0.0
    %9171 = vmatpush.xpose.msra.mxu0 0.0
    %9172 = vmatpush.xpose.msra.mxu0 0.0
    %9173 = vmatpush.xpose.msra.mxu0 0.0
    %9174 = vmatpush.xpose.msra.mxu0 0.0
    %9175 = vmatpush.xpose.msra.mxu0 0.0
    %9176 = vmatpush.xpose.msra.mxu0 0.0
    %9177 = vmatpush.xpose.msra.mxu0 0.0
    %9178 = vmatpush.xpose.msra.mxu0 0.0
    %9179 = vmatpush.xpose.msra.mxu0 0.0
    %9180 = vmatpush.xpose.msra.mxu0 0.0
    %v9181 = vand.u32 %v486, 4294901760
    %v9182 = vsub.f32 %v486, %v9181
    %v9183 = vand.u32 %v9182, 4294901760
    %v9184 = vsub.f32 %v9182, %v9183
    %v9185 = vand.u32 %v9184, 4294901760
    %9186 = vmatpush.xpose.msra.mxu0 %v9185
    %v9187 = vand.u32 %v356, 4294901760
    %9188 = vmatmul.f32.gmra.mxu0 %v9187
    %v9189 = vpop.f32.mrf.mxu0
    %v9190 = vadd.f32 %v9164, %v9189
    %9191 = vdwg.mxu0
    %9192 = vmatpush.xpose.msra.mxu0 0.0
    %9193 = vmatpush.xpose.msra.mxu0 0.0
    %9194 = vmatpush.xpose.msra.mxu0 0.0
    %9195 = vmatpush.xpose.msra.mxu0 0.0
    %9196 = vmatpush.xpose.msra.mxu0 0.0
    %9197 = vmatpush.xpose.msra.mxu0 0.0
    %9198 = vmatpush.xpose.msra.mxu0 0.0
    %9199 = vmatpush.xpose.msra.mxu0 0.0
    %9200 = vmatpush.xpose.msra.mxu0 0.0
    %9201 = vmatpush.xpose.msra.mxu0 0.0
    %9202 = vmatpush.xpose.msra.mxu0 0.0
    %9203 = vmatpush.xpose.msra.mxu0 0.0
    %9204 = vmatpush.xpose.msra.mxu0 0.0
    %9205 = vmatpush.xpose.msra.mxu0 0.0
    %9206 = vmatpush.xpose.msra.mxu0 0.0
    %v9207 = vand.u32 %v486, 4294901760
    %v9208 = vsub.f32 %v486, %v9207
    %9209 = vmatpush.xpose.msra.mxu0 %v9208
    %v9210 = vand.u32 %v356, 4294901760
    %v9211 = vsub.f32 %v356, %v9210
    %9212 = vmatmul.f32.gmra.mxu0 %v9211
    %v9213 = vpop.f32.mrf.mxu0
    %v9214 = vadd.f32 %v9190, %v9213
    %9215 = vdwg.mxu0
    %9216 = vmatpush.xpose.msra.mxu0 0.0
    %9217 = vmatpush.xpose.msra.mxu0 0.0
    %9218 = vmatpush.xpose.msra.mxu0 0.0
    %9219 = vmatpush.xpose.msra.mxu0 0.0
    %9220 = vmatpush.xpose.msra.mxu0 0.0
    %9221 = vmatpush.xpose.msra.mxu0 0.0
    %9222 = vmatpush.xpose.msra.mxu0 0.0
    %9223 = vmatpush.xpose.msra.mxu0 0.0
    %9224 = vmatpush.xpose.msra.mxu0 0.0
    %9225 = vmatpush.xpose.msra.mxu0 0.0
    %9226 = vmatpush.xpose.msra.mxu0 0.0
    %9227 = vmatpush.xpose.msra.mxu0 0.0
    %9228 = vmatpush.xpose.msra.mxu0 0.0
    %9229 = vmatpush.xpose.msra.mxu0 0.0
    %9230 = vmatpush.xpose.msra.mxu0 0.0
    %v9231 = vand.u32 %v486, 4294901760
    %9232 = vmatpush.xpose.msra.mxu0 %v9231
    %v9233 = vand.u32 %v356, 4294901760
    %v9234 = vsub.f32 %v356, %v9233
    %v9235 = vand.u32 %v9234, 4294901760
    %9236 = vmatmul.f32.gmra.mxu0 %v9235
    %v9237 = vpop.f32.mrf.mxu0
    %v9238 = vadd.f32 %v9214, %v9237
    %9239 = vdwg.mxu0
    %9240 = vmatpush.xpose.msra.mxu0 0.0
    %9241 = vmatpush.xpose.msra.mxu0 0.0
    %9242 = vmatpush.xpose.msra.mxu0 0.0
    %9243 = vmatpush.xpose.msra.mxu0 0.0
    %9244 = vmatpush.xpose.msra.mxu0 0.0
    %9245 = vmatpush.xpose.msra.mxu0 0.0
    %9246 = vmatpush.xpose.msra.mxu0 0.0
    %9247 = vmatpush.xpose.msra.mxu0 0.0
    %9248 = vmatpush.xpose.msra.mxu0 0.0
    %9249 = vmatpush.xpose.msra.mxu0 0.0
    %9250 = vmatpush.xpose.msra.mxu0 0.0
    %9251 = vmatpush.xpose.msra.mxu0 0.0
    %9252 = vmatpush.xpose.msra.mxu0 0.0
    %9253 = vmatpush.xpose.msra.mxu0 0.0
    %9254 = vmatpush.xpose.msra.mxu0 0.0
    %v9255 = vand.u32 %v486, 4294901760
    %v9256 = vsub.f32 %v486, %v9255
    %v9257 = vand.u32 %v9256, 4294901760
    %9258 = vmatpush.xpose.msra.mxu0 %v9257
    %v9259 = vand.u32 %v356, 4294901760
    %9260 = vmatmul.f32.gmra.mxu0 %v9259
    %v9261 = vpop.f32.mrf.mxu0
    %v9262 = vadd.f32 %v9238, %v9261
    %9263 = vdwg.mxu0
    %9264 = vmatpush.xpose.msra.mxu0 0.0
    %9265 = vmatpush.xpose.msra.mxu0 0.0
    %9266 = vmatpush.xpose.msra.mxu0 0.0
    %9267 = vmatpush.xpose.msra.mxu0 0.0
    %9268 = vmatpush.xpose.msra.mxu0 0.0
    %9269 = vmatpush.xpose.msra.mxu0 0.0
    %9270 = vmatpush.xpose.msra.mxu0 0.0
    %9271 = vmatpush.xpose.msra.mxu0 0.0
    %9272 = vmatpush.xpose.msra.mxu0 0.0
    %9273 = vmatpush.xpose.msra.mxu0 0.0
    %9274 = vmatpush.xpose.msra.mxu0 0.0
    %9275 = vmatpush.xpose.msra.mxu0 0.0
    %9276 = vmatpush.xpose.msra.mxu0 0.0
    %9277 = vmatpush.xpose.msra.mxu0 0.0
    %9278 = vmatpush.xpose.msra.mxu0 0.0
    %v9279 = vand.u32 %v486, 4294901760
    %9280 = vmatpush.xpose.msra.mxu0 %v9279
    %v9281 = vand.u32 %v356, 4294901760
    %9282 = vmatmul.f32.gmra.mxu0 %v9281
    %v9283 = vpop.f32.mrf.mxu0
    %v9284 = vadd.f32 %v9262, %v9283
    %9285 = vdwg.mxu0
    %9286 = vmatpush.xpose.msra.mxu0 0.0
    %9287 = vmatpush.xpose.msra.mxu0 0.0
    %9288 = vmatpush.xpose.msra.mxu0 0.0
    %9289 = vmatpush.xpose.msra.mxu0 0.0
    %9290 = vmatpush.xpose.msra.mxu0 0.0
    %9291 = vmatpush.xpose.msra.mxu0 0.0
    %9292 = vmatpush.xpose.msra.mxu0 0.0
    %9293 = vmatpush.xpose.msra.mxu0 0.0
    %9294 = vmatpush.xpose.msra.mxu0 0.0
    %9295 = vmatpush.xpose.msra.mxu0 0.0
    %9296 = vmatpush.xpose.msra.mxu0 0.0
    %9297 = vmatpush.xpose.msra.mxu0 0.0
    %9298 = vmatpush.xpose.msra.mxu0 0.0
    %9299 = vmatpush.xpose.msra.mxu0 0.0
    %9300 = vmatpush.xpose.msra.mxu0 0.0
    %v9301 = vand.u32 %v487, 4294901760
    %9302 = vmatpush.xpose.msra.mxu0 %v9301
    %v9303 = vand.u32 %v357, 4294901760
    %v9304 = vsub.f32 %v357, %v9303
    %v9305 = vand.u32 %v9304, 4294901760
    %v9306 = vsub.f32 %v9304, %v9305
    %v9307 = vand.u32 %v9306, 4294901760
    %9308 = vmatmul.f32.gmra.mxu0 %v9307
    %v9309 = vpop.f32.mrf.mxu0
    %v9310 = vadd.f32 %v9284, %v9309
    %9311 = vdwg.mxu0
    %9312 = vmatpush.xpose.msra.mxu0 0.0
    %9313 = vmatpush.xpose.msra.mxu0 0.0
    %9314 = vmatpush.xpose.msra.mxu0 0.0
    %9315 = vmatpush.xpose.msra.mxu0 0.0
    %9316 = vmatpush.xpose.msra.mxu0 0.0
    %9317 = vmatpush.xpose.msra.mxu0 0.0
    %9318 = vmatpush.xpose.msra.mxu0 0.0
    %9319 = vmatpush.xpose.msra.mxu0 0.0
    %9320 = vmatpush.xpose.msra.mxu0 0.0
    %9321 = vmatpush.xpose.msra.mxu0 0.0
    %9322 = vmatpush.xpose.msra.mxu0 0.0
    %9323 = vmatpush.xpose.msra.mxu0 0.0
    %9324 = vmatpush.xpose.msra.mxu0 0.0
    %9325 = vmatpush.xpose.msra.mxu0 0.0
    %9326 = vmatpush.xpose.msra.mxu0 0.0
    %v9327 = vand.u32 %v487, 4294901760
    %v9328 = vsub.f32 %v487, %v9327
    %v9329 = vand.u32 %v9328, 4294901760
    %v9330 = vsub.f32 %v9328, %v9329
    %v9331 = vand.u32 %v9330, 4294901760
    %9332 = vmatpush.xpose.msra.mxu0 %v9331
    %v9333 = vand.u32 %v357, 4294901760
    %9334 = vmatmul.f32.gmra.mxu0 %v9333
    %v9335 = vpop.f32.mrf.mxu0
    %v9336 = vadd.f32 %v9310, %v9335
    %9337 = vdwg.mxu0
    %9338 = vmatpush.xpose.msra.mxu0 0.0
    %9339 = vmatpush.xpose.msra.mxu0 0.0
    %9340 = vmatpush.xpose.msra.mxu0 0.0
    %9341 = vmatpush.xpose.msra.mxu0 0.0
    %9342 = vmatpush.xpose.msra.mxu0 0.0
    %9343 = vmatpush.xpose.msra.mxu0 0.0
    %9344 = vmatpush.xpose.msra.mxu0 0.0
    %9345 = vmatpush.xpose.msra.mxu0 0.0
    %9346 = vmatpush.xpose.msra.mxu0 0.0
    %9347 = vmatpush.xpose.msra.mxu0 0.0
    %9348 = vmatpush.xpose.msra.mxu0 0.0
    %9349 = vmatpush.xpose.msra.mxu0 0.0
    %9350 = vmatpush.xpose.msra.mxu0 0.0
    %9351 = vmatpush.xpose.msra.mxu0 0.0
    %9352 = vmatpush.xpose.msra.mxu0 0.0
    %v9353 = vand.u32 %v487, 4294901760
    %v9354 = vsub.f32 %v487, %v9353
    %9355 = vmatpush.xpose.msra.mxu0 %v9354
    %v9356 = vand.u32 %v357, 4294901760
    %v9357 = vsub.f32 %v357, %v9356
    %9358 = vmatmul.f32.gmra.mxu0 %v9357
    %v9359 = vpop.f32.mrf.mxu0
    %v9360 = vadd.f32 %v9336, %v9359
    %9361 = vdwg.mxu0
    %9362 = vmatpush.xpose.msra.mxu0 0.0
    %9363 = vmatpush.xpose.msra.mxu0 0.0
    %9364 = vmatpush.xpose.msra.mxu0 0.0
    %9365 = vmatpush.xpose.msra.mxu0 0.0
    %9366 = vmatpush.xpose.msra.mxu0 0.0
    %9367 = vmatpush.xpose.msra.mxu0 0.0
    %9368 = vmatpush.xpose.msra.mxu0 0.0
    %9369 = vmatpush.xpose.msra.mxu0 0.0
    %9370 = vmatpush.xpose.msra.mxu0 0.0
    %9371 = vmatpush.xpose.msra.mxu0 0.0
    %9372 = vmatpush.xpose.msra.mxu0 0.0
    %9373 = vmatpush.xpose.msra.mxu0 0.0
    %9374 = vmatpush.xpose.msra.mxu0 0.0
    %9375 = vmatpush.xpose.msra.mxu0 0.0
    %9376 = vmatpush.xpose.msra.mxu0 0.0
    %v9377 = vand.u32 %v487, 4294901760
    %9378 = vmatpush.xpose.msra.mxu0 %v9377
    %v9379 = vand.u32 %v357, 4294901760
    %v9380 = vsub.f32 %v357, %v9379
    %v9381 = vand.u32 %v9380, 4294901760
    %9382 = vmatmul.f32.gmra.mxu0 %v9381
    %v9383 = vpop.f32.mrf.mxu0
    %v9384 = vadd.f32 %v9360, %v9383
    %9385 = vdwg.mxu0
    %9386 = vmatpush.xpose.msra.mxu0 0.0
    %9387 = vmatpush.xpose.msra.mxu0 0.0
    %9388 = vmatpush.xpose.msra.mxu0 0.0
    %9389 = vmatpush.xpose.msra.mxu0 0.0
    %9390 = vmatpush.xpose.msra.mxu0 0.0
    %9391 = vmatpush.xpose.msra.mxu0 0.0
    %9392 = vmatpush.xpose.msra.mxu0 0.0
    %9393 = vmatpush.xpose.msra.mxu0 0.0
    %9394 = vmatpush.xpose.msra.mxu0 0.0
    %9395 = vmatpush.xpose.msra.mxu0 0.0
    %9396 = vmatpush.xpose.msra.mxu0 0.0
    %9397 = vmatpush.xpose.msra.mxu0 0.0
    %9398 = vmatpush.xpose.msra.mxu0 0.0
    %9399 = vmatpush.xpose.msra.mxu0 0.0
    %9400 = vmatpush.xpose.msra.mxu0 0.0
    %v9401 = vand.u32 %v487, 4294901760
    %v9402 = vsub.f32 %v487, %v9401
    %v9403 = vand.u32 %v9402, 4294901760
    %9404 = vmatpush.xpose.msra.mxu0 %v9403
    %v9405 = vand.u32 %v357, 4294901760
    %9406 = vmatmul.f32.gmra.mxu0 %v9405
    %v9407 = vpop.f32.mrf.mxu0
    %v9408 = vadd.f32 %v9384, %v9407
    %9409 = vdwg.mxu0
    %9410 = vmatpush.xpose.msra.mxu0 0.0
    %9411 = vmatpush.xpose.msra.mxu0 0.0
    %9412 = vmatpush.xpose.msra.mxu0 0.0
    %9413 = vmatpush.xpose.msra.mxu0 0.0
    %9414 = vmatpush.xpose.msra.mxu0 0.0
    %9415 = vmatpush.xpose.msra.mxu0 0.0
    %9416 = vmatpush.xpose.msra.mxu0 0.0
    %9417 = vmatpush.xpose.msra.mxu0 0.0
    %9418 = vmatpush.xpose.msra.mxu0 0.0
    %9419 = vmatpush.xpose.msra.mxu0 0.0
    %9420 = vmatpush.xpose.msra.mxu0 0.0
    %9421 = vmatpush.xpose.msra.mxu0 0.0
    %9422 = vmatpush.xpose.msra.mxu0 0.0
    %9423 = vmatpush.xpose.msra.mxu0 0.0
    %9424 = vmatpush.xpose.msra.mxu0 0.0
    %v9425 = vand.u32 %v487, 4294901760
    %9426 = vmatpush.xpose.msra.mxu0 %v9425
    %v9427 = vand.u32 %v357, 4294901760
    %9428 = vmatmul.f32.gmra.mxu0 %v9427
    %v9429 = vpop.f32.mrf.mxu0
    %v9430 = vadd.f32 %v9408, %v9429
    %9431 = vdwg.mxu0
    %9432 = vmatpush.xpose.msra.mxu0 0.0
    %9433 = vmatpush.xpose.msra.mxu0 0.0
    %9434 = vmatpush.xpose.msra.mxu0 0.0
    %9435 = vmatpush.xpose.msra.mxu0 0.0
    %9436 = vmatpush.xpose.msra.mxu0 0.0
    %9437 = vmatpush.xpose.msra.mxu0 0.0
    %9438 = vmatpush.xpose.msra.mxu0 0.0
    %9439 = vmatpush.xpose.msra.mxu0 0.0
    %9440 = vmatpush.xpose.msra.mxu0 0.0
    %9441 = vmatpush.xpose.msra.mxu0 0.0
    %9442 = vmatpush.xpose.msra.mxu0 0.0
    %9443 = vmatpush.xpose.msra.mxu0 0.0
    %9444 = vmatpush.xpose.msra.mxu0 0.0
    %9445 = vmatpush.xpose.msra.mxu0 0.0
    %9446 = vmatpush.xpose.msra.mxu0 0.0
    %v9447 = vand.u32 %v488, 4294901760
    %9448 = vmatpush.xpose.msra.mxu0 %v9447
    %v9449 = vand.u32 %v358, 4294901760
    %v9450 = vsub.f32 %v358, %v9449
    %v9451 = vand.u32 %v9450, 4294901760
    %v9452 = vsub.f32 %v9450, %v9451
    %v9453 = vand.u32 %v9452, 4294901760
    %9454 = vmatmul.f32.gmra.mxu0 %v9453
    %v9455 = vpop.f32.mrf.mxu0
    %v9456 = vadd.f32 %v9430, %v9455
    %9457 = vdwg.mxu0
    %9458 = vmatpush.xpose.msra.mxu0 0.0
    %9459 = vmatpush.xpose.msra.mxu0 0.0
    %9460 = vmatpush.xpose.msra.mxu0 0.0
    %9461 = vmatpush.xpose.msra.mxu0 0.0
    %9462 = vmatpush.xpose.msra.mxu0 0.0
    %9463 = vmatpush.xpose.msra.mxu0 0.0
    %9464 = vmatpush.xpose.msra.mxu0 0.0
    %9465 = vmatpush.xpose.msra.mxu0 0.0
    %9466 = vmatpush.xpose.msra.mxu0 0.0
    %9467 = vmatpush.xpose.msra.mxu0 0.0
    %9468 = vmatpush.xpose.msra.mxu0 0.0
    %9469 = vmatpush.xpose.msra.mxu0 0.0
    %9470 = vmatpush.xpose.msra.mxu0 0.0
    %9471 = vmatpush.xpose.msra.mxu0 0.0
    %9472 = vmatpush.xpose.msra.mxu0 0.0
    %v9473 = vand.u32 %v488, 4294901760
    %v9474 = vsub.f32 %v488, %v9473
    %v9475 = vand.u32 %v9474, 4294901760
    %v9476 = vsub.f32 %v9474, %v9475
    %v9477 = vand.u32 %v9476, 4294901760
    %9478 = vmatpush.xpose.msra.mxu0 %v9477
    %v9479 = vand.u32 %v358, 4294901760
    %9480 = vmatmul.f32.gmra.mxu0 %v9479
    %v9481 = vpop.f32.mrf.mxu0
    %v9482 = vadd.f32 %v9456, %v9481
    %9483 = vdwg.mxu0
    %9484 = vmatpush.xpose.msra.mxu0 0.0
    %9485 = vmatpush.xpose.msra.mxu0 0.0
    %9486 = vmatpush.xpose.msra.mxu0 0.0
    %9487 = vmatpush.xpose.msra.mxu0 0.0
    %9488 = vmatpush.xpose.msra.mxu0 0.0
    %9489 = vmatpush.xpose.msra.mxu0 0.0
    %9490 = vmatpush.xpose.msra.mxu0 0.0
    %9491 = vmatpush.xpose.msra.mxu0 0.0
    %9492 = vmatpush.xpose.msra.mxu0 0.0
    %9493 = vmatpush.xpose.msra.mxu0 0.0
    %9494 = vmatpush.xpose.msra.mxu0 0.0
    %9495 = vmatpush.xpose.msra.mxu0 0.0
    %9496 = vmatpush.xpose.msra.mxu0 0.0
    %9497 = vmatpush.xpose.msra.mxu0 0.0
    %9498 = vmatpush.xpose.msra.mxu0 0.0
    %v9499 = vand.u32 %v488, 4294901760
    %v9500 = vsub.f32 %v488, %v9499
    %9501 = vmatpush.xpose.msra.mxu0 %v9500
    %v9502 = vand.u32 %v358, 4294901760
    %v9503 = vsub.f32 %v358, %v9502
    %9504 = vmatmul.f32.gmra.mxu0 %v9503
    %v9505 = vpop.f32.mrf.mxu0
    %v9506 = vadd.f32 %v9482, %v9505
    %9507 = vdwg.mxu0
    %9508 = vmatpush.xpose.msra.mxu0 0.0
    %9509 = vmatpush.xpose.msra.mxu0 0.0
    %9510 = vmatpush.xpose.msra.mxu0 0.0
    %9511 = vmatpush.xpose.msra.mxu0 0.0
    %9512 = vmatpush.xpose.msra.mxu0 0.0
    %9513 = vmatpush.xpose.msra.mxu0 0.0
    %9514 = vmatpush.xpose.msra.mxu0 0.0
    %9515 = vmatpush.xpose.msra.mxu0 0.0
    %9516 = vmatpush.xpose.msra.mxu0 0.0
    %9517 = vmatpush.xpose.msra.mxu0 0.0
    %9518 = vmatpush.xpose.msra.mxu0 0.0
    %9519 = vmatpush.xpose.msra.mxu0 0.0
    %9520 = vmatpush.xpose.msra.mxu0 0.0
    %9521 = vmatpush.xpose.msra.mxu0 0.0
    %9522 = vmatpush.xpose.msra.mxu0 0.0
    %v9523 = vand.u32 %v488, 4294901760
    %9524 = vmatpush.xpose.msra.mxu0 %v9523
    %v9525 = vand.u32 %v358, 4294901760
    %v9526 = vsub.f32 %v358, %v9525
    %v9527 = vand.u32 %v9526, 4294901760
    %9528 = vmatmul.f32.gmra.mxu0 %v9527
    %v9529 = vpop.f32.mrf.mxu0
    %v9530 = vadd.f32 %v9506, %v9529
    %9531 = vdwg.mxu0
    %9532 = vmatpush.xpose.msra.mxu0 0.0
    %9533 = vmatpush.xpose.msra.mxu0 0.0
    %9534 = vmatpush.xpose.msra.mxu0 0.0
    %9535 = vmatpush.xpose.msra.mxu0 0.0
    %9536 = vmatpush.xpose.msra.mxu0 0.0
    %9537 = vmatpush.xpose.msra.mxu0 0.0
    %9538 = vmatpush.xpose.msra.mxu0 0.0
    %9539 = vmatpush.xpose.msra.mxu0 0.0
    %9540 = vmatpush.xpose.msra.mxu0 0.0
    %9541 = vmatpush.xpose.msra.mxu0 0.0
    %9542 = vmatpush.xpose.msra.mxu0 0.0
    %9543 = vmatpush.xpose.msra.mxu0 0.0
    %9544 = vmatpush.xpose.msra.mxu0 0.0
    %9545 = vmatpush.xpose.msra.mxu0 0.0
    %9546 = vmatpush.xpose.msra.mxu0 0.0
    %v9547 = vand.u32 %v488, 4294901760
    %v9548 = vsub.f32 %v488, %v9547
    %v9549 = vand.u32 %v9548, 4294901760
    %9550 = vmatpush.xpose.msra.mxu0 %v9549
    %v9551 = vand.u32 %v358, 4294901760
    %9552 = vmatmul.f32.gmra.mxu0 %v9551
    %v9553 = vpop.f32.mrf.mxu0
    %v9554 = vadd.f32 %v9530, %v9553
    %9555 = vdwg.mxu0
    %9556 = vmatpush.xpose.msra.mxu0 0.0
    %9557 = vmatpush.xpose.msra.mxu0 0.0
    %9558 = vmatpush.xpose.msra.mxu0 0.0
    %9559 = vmatpush.xpose.msra.mxu0 0.0
    %9560 = vmatpush.xpose.msra.mxu0 0.0
    %9561 = vmatpush.xpose.msra.mxu0 0.0
    %9562 = vmatpush.xpose.msra.mxu0 0.0
    %9563 = vmatpush.xpose.msra.mxu0 0.0
    %9564 = vmatpush.xpose.msra.mxu0 0.0
    %9565 = vmatpush.xpose.msra.mxu0 0.0
    %9566 = vmatpush.xpose.msra.mxu0 0.0
    %9567 = vmatpush.xpose.msra.mxu0 0.0
    %9568 = vmatpush.xpose.msra.mxu0 0.0
    %9569 = vmatpush.xpose.msra.mxu0 0.0
    %9570 = vmatpush.xpose.msra.mxu0 0.0
    %v9571 = vand.u32 %v488, 4294901760
    %9572 = vmatpush.xpose.msra.mxu0 %v9571
    %v9573 = vand.u32 %v358, 4294901760
    %9574 = vmatmul.f32.gmra.mxu0 %v9573
    %v9575 = vpop.f32.mrf.mxu0
    %v9576 = vadd.f32 %v9554, %v9575
    %9577 = vdwg.mxu0
    %9578 = vmatpush.xpose.msra.mxu0 0.0
    %9579 = vmatpush.xpose.msra.mxu0 0.0
    %9580 = vmatpush.xpose.msra.mxu0 0.0
    %9581 = vmatpush.xpose.msra.mxu0 0.0
    %9582 = vmatpush.xpose.msra.mxu0 0.0
    %9583 = vmatpush.xpose.msra.mxu0 0.0
    %9584 = vmatpush.xpose.msra.mxu0 0.0
    %9585 = vmatpush.xpose.msra.mxu0 0.0
    %9586 = vmatpush.xpose.msra.mxu0 0.0
    %9587 = vmatpush.xpose.msra.mxu0 0.0
    %9588 = vmatpush.xpose.msra.mxu0 0.0
    %9589 = vmatpush.xpose.msra.mxu0 0.0
    %9590 = vmatpush.xpose.msra.mxu0 0.0
    %9591 = vmatpush.xpose.msra.mxu0 0.0
    %9592 = vmatpush.xpose.msra.mxu0 0.0
    %v9593 = vand.u32 %v489, 4294901760
    %9594 = vmatpush.xpose.msra.mxu0 %v9593
    %v9595 = vand.u32 %v359, 4294901760
    %v9596 = vsub.f32 %v359, %v9595
    %v9597 = vand.u32 %v9596, 4294901760
    %v9598 = vsub.f32 %v9596, %v9597
    %v9599 = vand.u32 %v9598, 4294901760
    %9600 = vmatmul.f32.gmra.mxu0 %v9599
    %v9601 = vpop.f32.mrf.mxu0
    %v9602 = vadd.f32 %v9576, %v9601
    %9603 = vdwg.mxu0
    %9604 = vmatpush.xpose.msra.mxu0 0.0
    %9605 = vmatpush.xpose.msra.mxu0 0.0
    %9606 = vmatpush.xpose.msra.mxu0 0.0
    %9607 = vmatpush.xpose.msra.mxu0 0.0
    %9608 = vmatpush.xpose.msra.mxu0 0.0
    %9609 = vmatpush.xpose.msra.mxu0 0.0
    %9610 = vmatpush.xpose.msra.mxu0 0.0
    %9611 = vmatpush.xpose.msra.mxu0 0.0
    %9612 = vmatpush.xpose.msra.mxu0 0.0
    %9613 = vmatpush.xpose.msra.mxu0 0.0
    %9614 = vmatpush.xpose.msra.mxu0 0.0
    %9615 = vmatpush.xpose.msra.mxu0 0.0
    %9616 = vmatpush.xpose.msra.mxu0 0.0
    %9617 = vmatpush.xpose.msra.mxu0 0.0
    %9618 = vmatpush.xpose.msra.mxu0 0.0
    %v9619 = vand.u32 %v489, 4294901760
    %v9620 = vsub.f32 %v489, %v9619
    %v9621 = vand.u32 %v9620, 4294901760
    %v9622 = vsub.f32 %v9620, %v9621
    %v9623 = vand.u32 %v9622, 4294901760
    %9624 = vmatpush.xpose.msra.mxu0 %v9623
    %v9625 = vand.u32 %v359, 4294901760
    %9626 = vmatmul.f32.gmra.mxu0 %v9625
    %v9627 = vpop.f32.mrf.mxu0
    %v9628 = vadd.f32 %v9602, %v9627
    %9629 = vdwg.mxu0
    %9630 = vmatpush.xpose.msra.mxu0 0.0
    %9631 = vmatpush.xpose.msra.mxu0 0.0
    %9632 = vmatpush.xpose.msra.mxu0 0.0
    %9633 = vmatpush.xpose.msra.mxu0 0.0
    %9634 = vmatpush.xpose.msra.mxu0 0.0
    %9635 = vmatpush.xpose.msra.mxu0 0.0
    %9636 = vmatpush.xpose.msra.mxu0 0.0
    %9637 = vmatpush.xpose.msra.mxu0 0.0
    %9638 = vmatpush.xpose.msra.mxu0 0.0
    %9639 = vmatpush.xpose.msra.mxu0 0.0
    %9640 = vmatpush.xpose.msra.mxu0 0.0
    %9641 = vmatpush.xpose.msra.mxu0 0.0
    %9642 = vmatpush.xpose.msra.mxu0 0.0
    %9643 = vmatpush.xpose.msra.mxu0 0.0
    %9644 = vmatpush.xpose.msra.mxu0 0.0
    %v9645 = vand.u32 %v489, 4294901760
    %v9646 = vsub.f32 %v489, %v9645
    %9647 = vmatpush.xpose.msra.mxu0 %v9646
    %v9648 = vand.u32 %v359, 4294901760
    %v9649 = vsub.f32 %v359, %v9648
    %9650 = vmatmul.f32.gmra.mxu0 %v9649
    %v9651 = vpop.f32.mrf.mxu0
    %v9652 = vadd.f32 %v9628, %v9651
    %9653 = vdwg.mxu0
    %9654 = vmatpush.xpose.msra.mxu0 0.0
    %9655 = vmatpush.xpose.msra.mxu0 0.0
    %9656 = vmatpush.xpose.msra.mxu0 0.0
    %9657 = vmatpush.xpose.msra.mxu0 0.0
    %9658 = vmatpush.xpose.msra.mxu0 0.0
    %9659 = vmatpush.xpose.msra.mxu0 0.0
    %9660 = vmatpush.xpose.msra.mxu0 0.0
    %9661 = vmatpush.xpose.msra.mxu0 0.0
    %9662 = vmatpush.xpose.msra.mxu0 0.0
    %9663 = vmatpush.xpose.msra.mxu0 0.0
    %9664 = vmatpush.xpose.msra.mxu0 0.0
    %9665 = vmatpush.xpose.msra.mxu0 0.0
    %9666 = vmatpush.xpose.msra.mxu0 0.0
    %9667 = vmatpush.xpose.msra.mxu0 0.0
    %9668 = vmatpush.xpose.msra.mxu0 0.0
    %v9669 = vand.u32 %v489, 4294901760
    %9670 = vmatpush.xpose.msra.mxu0 %v9669
    %v9671 = vand.u32 %v359, 4294901760
    %v9672 = vsub.f32 %v359, %v9671
    %v9673 = vand.u32 %v9672, 4294901760
    %9674 = vmatmul.f32.gmra.mxu0 %v9673
    %v9675 = vpop.f32.mrf.mxu0
    %v9676 = vadd.f32 %v9652, %v9675
    %9677 = vdwg.mxu0
    %9678 = vmatpush.xpose.msra.mxu0 0.0
    %9679 = vmatpush.xpose.msra.mxu0 0.0
    %9680 = vmatpush.xpose.msra.mxu0 0.0
    %9681 = vmatpush.xpose.msra.mxu0 0.0
    %9682 = vmatpush.xpose.msra.mxu0 0.0
    %9683 = vmatpush.xpose.msra.mxu0 0.0
    %9684 = vmatpush.xpose.msra.mxu0 0.0
    %9685 = vmatpush.xpose.msra.mxu0 0.0
    %9686 = vmatpush.xpose.msra.mxu0 0.0
    %9687 = vmatpush.xpose.msra.mxu0 0.0
    %9688 = vmatpush.xpose.msra.mxu0 0.0
    %9689 = vmatpush.xpose.msra.mxu0 0.0
    %9690 = vmatpush.xpose.msra.mxu0 0.0
    %9691 = vmatpush.xpose.msra.mxu0 0.0
    %9692 = vmatpush.xpose.msra.mxu0 0.0
    %v9693 = vand.u32 %v489, 4294901760
    %v9694 = vsub.f32 %v489, %v9693
    %v9695 = vand.u32 %v9694, 4294901760
    %9696 = vmatpush.xpose.msra.mxu0 %v9695
    %v9697 = vand.u32 %v359, 4294901760
    %9698 = vmatmul.f32.gmra.mxu0 %v9697
    %v9699 = vpop.f32.mrf.mxu0
    %v9700 = vadd.f32 %v9676, %v9699
    %9701 = vdwg.mxu0
    %9702 = vmatpush.xpose.msra.mxu0 0.0
    %9703 = vmatpush.xpose.msra.mxu0 0.0
    %9704 = vmatpush.xpose.msra.mxu0 0.0
    %9705 = vmatpush.xpose.msra.mxu0 0.0
    %9706 = vmatpush.xpose.msra.mxu0 0.0
    %9707 = vmatpush.xpose.msra.mxu0 0.0
    %9708 = vmatpush.xpose.msra.mxu0 0.0
    %9709 = vmatpush.xpose.msra.mxu0 0.0
    %9710 = vmatpush.xpose.msra.mxu0 0.0
    %9711 = vmatpush.xpose.msra.mxu0 0.0
    %9712 = vmatpush.xpose.msra.mxu0 0.0
    %9713 = vmatpush.xpose.msra.mxu0 0.0
    %9714 = vmatpush.xpose.msra.mxu0 0.0
    %9715 = vmatpush.xpose.msra.mxu0 0.0
    %9716 = vmatpush.xpose.msra.mxu0 0.0
    %v9717 = vand.u32 %v489, 4294901760
    %9718 = vmatpush.xpose.msra.mxu0 %v9717
    %v9719 = vand.u32 %v359, 4294901760
    %9720 = vmatmul.f32.gmra.mxu0 %v9719
    %v9721 = vpop.f32.mrf.mxu0
    %v9722 = vadd.f32 %v9700, %v9721
    %9723 = vdwg.mxu0
    %9724 = vmatpush.xpose.msra.mxu0 0.0
    %9725 = vmatpush.xpose.msra.mxu0 0.0
    %9726 = vmatpush.xpose.msra.mxu0 0.0
    %9727 = vmatpush.xpose.msra.mxu0 0.0
    %9728 = vmatpush.xpose.msra.mxu0 0.0
    %9729 = vmatpush.xpose.msra.mxu0 0.0
    %9730 = vmatpush.xpose.msra.mxu0 0.0
    %9731 = vmatpush.xpose.msra.mxu0 0.0
    %9732 = vmatpush.xpose.msra.mxu0 0.0
    %9733 = vmatpush.xpose.msra.mxu0 0.0
    %9734 = vmatpush.xpose.msra.mxu0 0.0
    %9735 = vmatpush.xpose.msra.mxu0 0.0
    %9736 = vmatpush.xpose.msra.mxu0 0.0
    %9737 = vmatpush.xpose.msra.mxu0 0.0
    %9738 = vmatpush.xpose.msra.mxu0 0.0
    %v9739 = vand.u32 %v490, 4294901760
    %9740 = vmatpush.xpose.msra.mxu0 %v9739
    %v9741 = vand.u32 %v360, 4294901760
    %v9742 = vsub.f32 %v360, %v9741
    %v9743 = vand.u32 %v9742, 4294901760
    %v9744 = vsub.f32 %v9742, %v9743
    %v9745 = vand.u32 %v9744, 4294901760
    %9746 = vmatmul.f32.gmra.mxu0 %v9745
    %v9747 = vpop.f32.mrf.mxu0
    %v9748 = vadd.f32 %v9722, %v9747
    %9749 = vdwg.mxu0
    %9750 = vmatpush.xpose.msra.mxu0 0.0
    %9751 = vmatpush.xpose.msra.mxu0 0.0
    %9752 = vmatpush.xpose.msra.mxu0 0.0
    %9753 = vmatpush.xpose.msra.mxu0 0.0
    %9754 = vmatpush.xpose.msra.mxu0 0.0
    %9755 = vmatpush.xpose.msra.mxu0 0.0
    %9756 = vmatpush.xpose.msra.mxu0 0.0
    %9757 = vmatpush.xpose.msra.mxu0 0.0
    %9758 = vmatpush.xpose.msra.mxu0 0.0
    %9759 = vmatpush.xpose.msra.mxu0 0.0
    %9760 = vmatpush.xpose.msra.mxu0 0.0
    %9761 = vmatpush.xpose.msra.mxu0 0.0
    %9762 = vmatpush.xpose.msra.mxu0 0.0
    %9763 = vmatpush.xpose.msra.mxu0 0.0
    %9764 = vmatpush.xpose.msra.mxu0 0.0
    %v9765 = vand.u32 %v490, 4294901760
    %v9766 = vsub.f32 %v490, %v9765
    %v9767 = vand.u32 %v9766, 4294901760
    %v9768 = vsub.f32 %v9766, %v9767
    %v9769 = vand.u32 %v9768, 4294901760
    %9770 = vmatpush.xpose.msra.mxu0 %v9769
    %v9771 = vand.u32 %v360, 4294901760
    %9772 = vmatmul.f32.gmra.mxu0 %v9771
    %v9773 = vpop.f32.mrf.mxu0
    %v9774 = vadd.f32 %v9748, %v9773
    %9775 = vdwg.mxu0
    %9776 = vmatpush.xpose.msra.mxu0 0.0
    %9777 = vmatpush.xpose.msra.mxu0 0.0
    %9778 = vmatpush.xpose.msra.mxu0 0.0
    %9779 = vmatpush.xpose.msra.mxu0 0.0
    %9780 = vmatpush.xpose.msra.mxu0 0.0
    %9781 = vmatpush.xpose.msra.mxu0 0.0
    %9782 = vmatpush.xpose.msra.mxu0 0.0
    %9783 = vmatpush.xpose.msra.mxu0 0.0
    %9784 = vmatpush.xpose.msra.mxu0 0.0
    %9785 = vmatpush.xpose.msra.mxu0 0.0
    %9786 = vmatpush.xpose.msra.mxu0 0.0
    %9787 = vmatpush.xpose.msra.mxu0 0.0
    %9788 = vmatpush.xpose.msra.mxu0 0.0
    %9789 = vmatpush.xpose.msra.mxu0 0.0
    %9790 = vmatpush.xpose.msra.mxu0 0.0
    %v9791 = vand.u32 %v490, 4294901760
    %v9792 = vsub.f32 %v490, %v9791
    %9793 = vmatpush.xpose.msra.mxu0 %v9792
    %v9794 = vand.u32 %v360, 4294901760
    %v9795 = vsub.f32 %v360, %v9794
    %9796 = vmatmul.f32.gmra.mxu0 %v9795
    %v9797 = vpop.f32.mrf.mxu0
    %v9798 = vadd.f32 %v9774, %v9797
    %9799 = vdwg.mxu0
    %9800 = vmatpush.xpose.msra.mxu0 0.0
    %9801 = vmatpush.xpose.msra.mxu0 0.0
    %9802 = vmatpush.xpose.msra.mxu0 0.0
    %9803 = vmatpush.xpose.msra.mxu0 0.0
    %9804 = vmatpush.xpose.msra.mxu0 0.0
    %9805 = vmatpush.xpose.msra.mxu0 0.0
    %9806 = vmatpush.xpose.msra.mxu0 0.0
    %9807 = vmatpush.xpose.msra.mxu0 0.0
    %9808 = vmatpush.xpose.msra.mxu0 0.0
    %9809 = vmatpush.xpose.msra.mxu0 0.0
    %9810 = vmatpush.xpose.msra.mxu0 0.0
    %9811 = vmatpush.xpose.msra.mxu0 0.0
    %9812 = vmatpush.xpose.msra.mxu0 0.0
    %9813 = vmatpush.xpose.msra.mxu0 0.0
    %9814 = vmatpush.xpose.msra.mxu0 0.0
    %v9815 = vand.u32 %v490, 4294901760
    %9816 = vmatpush.xpose.msra.mxu0 %v9815
    %v9817 = vand.u32 %v360, 4294901760
    %v9818 = vsub.f32 %v360, %v9817
    %v9819 = vand.u32 %v9818, 4294901760
    %9820 = vmatmul.f32.gmra.mxu0 %v9819
    %v9821 = vpop.f32.mrf.mxu0
    %v9822 = vadd.f32 %v9798, %v9821
    %9823 = vdwg.mxu0
    %9824 = vmatpush.xpose.msra.mxu0 0.0
    %9825 = vmatpush.xpose.msra.mxu0 0.0
    %9826 = vmatpush.xpose.msra.mxu0 0.0
    %9827 = vmatpush.xpose.msra.mxu0 0.0
    %9828 = vmatpush.xpose.msra.mxu0 0.0
    %9829 = vmatpush.xpose.msra.mxu0 0.0
    %9830 = vmatpush.xpose.msra.mxu0 0.0
    %9831 = vmatpush.xpose.msra.mxu0 0.0
    %9832 = vmatpush.xpose.msra.mxu0 0.0
    %9833 = vmatpush.xpose.msra.mxu0 0.0
    %9834 = vmatpush.xpose.msra.mxu0 0.0
    %9835 = vmatpush.xpose.msra.mxu0 0.0
    %9836 = vmatpush.xpose.msra.mxu0 0.0
    %9837 = vmatpush.xpose.msra.mxu0 0.0
    %9838 = vmatpush.xpose.msra.mxu0 0.0
    %v9839 = vand.u32 %v490, 4294901760
    %v9840 = vsub.f32 %v490, %v9839
    %v9841 = vand.u32 %v9840, 4294901760
    %9842 = vmatpush.xpose.msra.mxu0 %v9841
    %v9843 = vand.u32 %v360, 4294901760
    %9844 = vmatmul.f32.gmra.mxu0 %v9843
    %v9845 = vpop.f32.mrf.mxu0
    %v9846 = vadd.f32 %v9822, %v9845
    %9847 = vdwg.mxu0
    %9848 = vmatpush.xpose.msra.mxu0 0.0
    %9849 = vmatpush.xpose.msra.mxu0 0.0
    %9850 = vmatpush.xpose.msra.mxu0 0.0
    %9851 = vmatpush.xpose.msra.mxu0 0.0
    %9852 = vmatpush.xpose.msra.mxu0 0.0
    %9853 = vmatpush.xpose.msra.mxu0 0.0
    %9854 = vmatpush.xpose.msra.mxu0 0.0
    %9855 = vmatpush.xpose.msra.mxu0 0.0
    %9856 = vmatpush.xpose.msra.mxu0 0.0
    %9857 = vmatpush.xpose.msra.mxu0 0.0
    %9858 = vmatpush.xpose.msra.mxu0 0.0
    %9859 = vmatpush.xpose.msra.mxu0 0.0
    %9860 = vmatpush.xpose.msra.mxu0 0.0
    %9861 = vmatpush.xpose.msra.mxu0 0.0
    %9862 = vmatpush.xpose.msra.mxu0 0.0
    %v9863 = vand.u32 %v490, 4294901760
    %9864 = vmatpush.xpose.msra.mxu0 %v9863
    %v9865 = vand.u32 %v360, 4294901760
    %9866 = vmatmul.f32.gmra.mxu0 %v9865
    %v9867 = vpop.f32.mrf.mxu0
    %v9868 = vadd.f32 %v9846, %v9867
    %9869 = vdwg.mxu0
    %9870 = vmatpush.xpose.msra.mxu0 0.0
    %9871 = vmatpush.xpose.msra.mxu0 0.0
    %9872 = vmatpush.xpose.msra.mxu0 0.0
    %9873 = vmatpush.xpose.msra.mxu0 0.0
    %9874 = vmatpush.xpose.msra.mxu0 0.0
    %9875 = vmatpush.xpose.msra.mxu0 0.0
    %9876 = vmatpush.xpose.msra.mxu0 0.0
    %9877 = vmatpush.xpose.msra.mxu0 0.0
    %9878 = vmatpush.xpose.msra.mxu0 0.0
    %9879 = vmatpush.xpose.msra.mxu0 0.0
    %9880 = vmatpush.xpose.msra.mxu0 0.0
    %9881 = vmatpush.xpose.msra.mxu0 0.0
    %9882 = vmatpush.xpose.msra.mxu0 0.0
    %9883 = vmatpush.xpose.msra.mxu0 0.0
    %9884 = vmatpush.xpose.msra.mxu0 0.0
    %v9885 = vand.u32 %v491, 4294901760
    %9886 = vmatpush.xpose.msra.mxu0 %v9885
    %v9887 = vand.u32 %v361, 4294901760
    %v9888 = vsub.f32 %v361, %v9887
    %v9889 = vand.u32 %v9888, 4294901760
    %v9890 = vsub.f32 %v9888, %v9889
    %v9891 = vand.u32 %v9890, 4294901760
    %9892 = vmatmul.f32.gmra.mxu0 %v9891
    %v9893 = vpop.f32.mrf.mxu0
    %v9894 = vadd.f32 %v9868, %v9893
    %9895 = vdwg.mxu0
    %9896 = vmatpush.xpose.msra.mxu0 0.0
    %9897 = vmatpush.xpose.msra.mxu0 0.0
    %9898 = vmatpush.xpose.msra.mxu0 0.0
    %9899 = vmatpush.xpose.msra.mxu0 0.0
    %9900 = vmatpush.xpose.msra.mxu0 0.0
    %9901 = vmatpush.xpose.msra.mxu0 0.0
    %9902 = vmatpush.xpose.msra.mxu0 0.0
    %9903 = vmatpush.xpose.msra.mxu0 0.0
    %9904 = vmatpush.xpose.msra.mxu0 0.0
    %9905 = vmatpush.xpose.msra.mxu0 0.0
    %9906 = vmatpush.xpose.msra.mxu0 0.0
    %9907 = vmatpush.xpose.msra.mxu0 0.0
    %9908 = vmatpush.xpose.msra.mxu0 0.0
    %9909 = vmatpush.xpose.msra.mxu0 0.0
    %9910 = vmatpush.xpose.msra.mxu0 0.0
    %v9911 = vand.u32 %v491, 4294901760
    %v9912 = vsub.f32 %v491, %v9911
    %v9913 = vand.u32 %v9912, 4294901760
    %v9914 = vsub.f32 %v9912, %v9913
    %v9915 = vand.u32 %v9914, 4294901760
    %9916 = vmatpush.xpose.msra.mxu0 %v9915
    %v9917 = vand.u32 %v361, 4294901760
    %9918 = vmatmul.f32.gmra.mxu0 %v9917
    %v9919 = vpop.f32.mrf.mxu0
    %v9920 = vadd.f32 %v9894, %v9919
    %9921 = vdwg.mxu0
    %9922 = vmatpush.xpose.msra.mxu0 0.0
    %9923 = vmatpush.xpose.msra.mxu0 0.0
    %9924 = vmatpush.xpose.msra.mxu0 0.0
    %9925 = vmatpush.xpose.msra.mxu0 0.0
    %9926 = vmatpush.xpose.msra.mxu0 0.0
    %9927 = vmatpush.xpose.msra.mxu0 0.0
    %9928 = vmatpush.xpose.msra.mxu0 0.0
    %9929 = vmatpush.xpose.msra.mxu0 0.0
    %9930 = vmatpush.xpose.msra.mxu0 0.0
    %9931 = vmatpush.xpose.msra.mxu0 0.0
    %9932 = vmatpush.xpose.msra.mxu0 0.0
    %9933 = vmatpush.xpose.msra.mxu0 0.0
    %9934 = vmatpush.xpose.msra.mxu0 0.0
    %9935 = vmatpush.xpose.msra.mxu0 0.0
    %9936 = vmatpush.xpose.msra.mxu0 0.0
    %v9937 = vand.u32 %v491, 4294901760
    %v9938 = vsub.f32 %v491, %v9937
    %9939 = vmatpush.xpose.msra.mxu0 %v9938
    %v9940 = vand.u32 %v361, 4294901760
    %v9941 = vsub.f32 %v361, %v9940
    %9942 = vmatmul.f32.gmra.mxu0 %v9941
    %v9943 = vpop.f32.mrf.mxu0
    %v9944 = vadd.f32 %v9920, %v9943
    %9945 = vdwg.mxu0
    %9946 = vmatpush.xpose.msra.mxu0 0.0
    %9947 = vmatpush.xpose.msra.mxu0 0.0
    %9948 = vmatpush.xpose.msra.mxu0 0.0
    %9949 = vmatpush.xpose.msra.mxu0 0.0
    %9950 = vmatpush.xpose.msra.mxu0 0.0
    %9951 = vmatpush.xpose.msra.mxu0 0.0
    %9952 = vmatpush.xpose.msra.mxu0 0.0
    %9953 = vmatpush.xpose.msra.mxu0 0.0
    %9954 = vmatpush.xpose.msra.mxu0 0.0
    %9955 = vmatpush.xpose.msra.mxu0 0.0
    %9956 = vmatpush.xpose.msra.mxu0 0.0
    %9957 = vmatpush.xpose.msra.mxu0 0.0
    %9958 = vmatpush.xpose.msra.mxu0 0.0
    %9959 = vmatpush.xpose.msra.mxu0 0.0
    %9960 = vmatpush.xpose.msra.mxu0 0.0
    %v9961 = vand.u32 %v491, 4294901760
    %9962 = vmatpush.xpose.msra.mxu0 %v9961
    %v9963 = vand.u32 %v361, 4294901760
    %v9964 = vsub.f32 %v361, %v9963
    %v9965 = vand.u32 %v9964, 4294901760
    %9966 = vmatmul.f32.gmra.mxu0 %v9965
    %v9967 = vpop.f32.mrf.mxu0
    %v9968 = vadd.f32 %v9944, %v9967
    %9969 = vdwg.mxu0
    %9970 = vmatpush.xpose.msra.mxu0 0.0
    %9971 = vmatpush.xpose.msra.mxu0 0.0
    %9972 = vmatpush.xpose.msra.mxu0 0.0
    %9973 = vmatpush.xpose.msra.mxu0 0.0
    %9974 = vmatpush.xpose.msra.mxu0 0.0
    %9975 = vmatpush.xpose.msra.mxu0 0.0
    %9976 = vmatpush.xpose.msra.mxu0 0.0
    %9977 = vmatpush.xpose.msra.mxu0 0.0
    %9978 = vmatpush.xpose.msra.mxu0 0.0
    %9979 = vmatpush.xpose.msra.mxu0 0.0
    %9980 = vmatpush.xpose.msra.mxu0 0.0
    %9981 = vmatpush.xpose.msra.mxu0 0.0
    %9982 = vmatpush.xpose.msra.mxu0 0.0
    %9983 = vmatpush.xpose.msra.mxu0 0.0
    %9984 = vmatpush.xpose.msra.mxu0 0.0
    %v9985 = vand.u32 %v491, 4294901760
    %v9986 = vsub.f32 %v491, %v9985
    %v9987 = vand.u32 %v9986, 4294901760
    %9988 = vmatpush.xpose.msra.mxu0 %v9987
    %v9989 = vand.u32 %v361, 4294901760
    %9990 = vmatmul.f32.gmra.mxu0 %v9989
    %v9991 = vpop.f32.mrf.mxu0
    %v9992 = vadd.f32 %v9968, %v9991
    %9993 = vdwg.mxu0
    %9994 = vmatpush.xpose.msra.mxu0 0.0
    %9995 = vmatpush.xpose.msra.mxu0 0.0
    %9996 = vmatpush.xpose.msra.mxu0 0.0
    %9997 = vmatpush.xpose.msra.mxu0 0.0
    %9998 = vmatpush.xpose.msra.mxu0 0.0
    %9999 = vmatpush.xpose.msra.mxu0 0.0
    %10000 = vmatpush.xpose.msra.mxu0 0.0
    %10001 = vmatpush.xpose.msra.mxu0 0.0
    %10002 = vmatpush.xpose.msra.mxu0 0.0
    %10003 = vmatpush.xpose.msra.mxu0 0.0
    %10004 = vmatpush.xpose.msra.mxu0 0.0
    %10005 = vmatpush.xpose.msra.mxu0 0.0
    %10006 = vmatpush.xpose.msra.mxu0 0.0
    %10007 = vmatpush.xpose.msra.mxu0 0.0
    %10008 = vmatpush.xpose.msra.mxu0 0.0
    %v10009 = vand.u32 %v491, 4294901760
    %10010 = vmatpush.xpose.msra.mxu0 %v10009
    %v10011 = vand.u32 %v361, 4294901760
    %10012 = vmatmul.f32.gmra.mxu0 %v10011
    %v10013 = vpop.f32.mrf.mxu0
    %v10014 = vadd.f32 %v9992, %v10013
    %10015 = vdwg.mxu0
    %10016 = vmatpush.xpose.msra.mxu0 0.0
    %10017 = vmatpush.xpose.msra.mxu0 0.0
    %10018 = vmatpush.xpose.msra.mxu0 0.0
    %10019 = vmatpush.xpose.msra.mxu0 0.0
    %10020 = vmatpush.xpose.msra.mxu0 0.0
    %10021 = vmatpush.xpose.msra.mxu0 0.0
    %10022 = vmatpush.xpose.msra.mxu0 0.0
    %10023 = vmatpush.xpose.msra.mxu0 0.0
    %10024 = vmatpush.xpose.msra.mxu0 0.0
    %10025 = vmatpush.xpose.msra.mxu0 0.0
    %10026 = vmatpush.xpose.msra.mxu0 0.0
    %10027 = vmatpush.xpose.msra.mxu0 0.0
    %10028 = vmatpush.xpose.msra.mxu0 0.0
    %10029 = vmatpush.xpose.msra.mxu0 0.0
    %10030 = vmatpush.xpose.msra.mxu0 0.0
    %v10031 = vand.u32 %v492, 4294901760
    %10032 = vmatpush.xpose.msra.mxu0 %v10031
    %v10033 = vand.u32 %v362, 4294901760
    %v10034 = vsub.f32 %v362, %v10033
    %v10035 = vand.u32 %v10034, 4294901760
    %v10036 = vsub.f32 %v10034, %v10035
    %v10037 = vand.u32 %v10036, 4294901760
    %10038 = vmatmul.f32.gmra.mxu0 %v10037
    %v10039 = vpop.f32.mrf.mxu0
    %v10040 = vadd.f32 %v10014, %v10039
    %10041 = vdwg.mxu0
    %10042 = vmatpush.xpose.msra.mxu0 0.0
    %10043 = vmatpush.xpose.msra.mxu0 0.0
    %10044 = vmatpush.xpose.msra.mxu0 0.0
    %10045 = vmatpush.xpose.msra.mxu0 0.0
    %10046 = vmatpush.xpose.msra.mxu0 0.0
    %10047 = vmatpush.xpose.msra.mxu0 0.0
    %10048 = vmatpush.xpose.msra.mxu0 0.0
    %10049 = vmatpush.xpose.msra.mxu0 0.0
    %10050 = vmatpush.xpose.msra.mxu0 0.0
    %10051 = vmatpush.xpose.msra.mxu0 0.0
    %10052 = vmatpush.xpose.msra.mxu0 0.0
    %10053 = vmatpush.xpose.msra.mxu0 0.0
    %10054 = vmatpush.xpose.msra.mxu0 0.0
    %10055 = vmatpush.xpose.msra.mxu0 0.0
    %10056 = vmatpush.xpose.msra.mxu0 0.0
    %v10057 = vand.u32 %v492, 4294901760
    %v10058 = vsub.f32 %v492, %v10057
    %v10059 = vand.u32 %v10058, 4294901760
    %v10060 = vsub.f32 %v10058, %v10059
    %v10061 = vand.u32 %v10060, 4294901760
    %10062 = vmatpush.xpose.msra.mxu0 %v10061
    %v10063 = vand.u32 %v362, 4294901760
    %10064 = vmatmul.f32.gmra.mxu0 %v10063
    %v10065 = vpop.f32.mrf.mxu0
    %v10066 = vadd.f32 %v10040, %v10065
    %10067 = vdwg.mxu0
    %10068 = vmatpush.xpose.msra.mxu0 0.0
    %10069 = vmatpush.xpose.msra.mxu0 0.0
    %10070 = vmatpush.xpose.msra.mxu0 0.0
    %10071 = vmatpush.xpose.msra.mxu0 0.0
    %10072 = vmatpush.xpose.msra.mxu0 0.0
    %10073 = vmatpush.xpose.msra.mxu0 0.0
    %10074 = vmatpush.xpose.msra.mxu0 0.0
    %10075 = vmatpush.xpose.msra.mxu0 0.0
    %10076 = vmatpush.xpose.msra.mxu0 0.0
    %10077 = vmatpush.xpose.msra.mxu0 0.0
    %10078 = vmatpush.xpose.msra.mxu0 0.0
    %10079 = vmatpush.xpose.msra.mxu0 0.0
    %10080 = vmatpush.xpose.msra.mxu0 0.0
    %10081 = vmatpush.xpose.msra.mxu0 0.0
    %10082 = vmatpush.xpose.msra.mxu0 0.0
    %v10083 = vand.u32 %v492, 4294901760
    %v10084 = vsub.f32 %v492, %v10083
    %10085 = vmatpush.xpose.msra.mxu0 %v10084
    %v10086 = vand.u32 %v362, 4294901760
    %v10087 = vsub.f32 %v362, %v10086
    %10088 = vmatmul.f32.gmra.mxu0 %v10087
    %v10089 = vpop.f32.mrf.mxu0
    %v10090 = vadd.f32 %v10066, %v10089
    %10091 = vdwg.mxu0
    %10092 = vmatpush.xpose.msra.mxu0 0.0
    %10093 = vmatpush.xpose.msra.mxu0 0.0
    %10094 = vmatpush.xpose.msra.mxu0 0.0
    %10095 = vmatpush.xpose.msra.mxu0 0.0
    %10096 = vmatpush.xpose.msra.mxu0 0.0
    %10097 = vmatpush.xpose.msra.mxu0 0.0
    %10098 = vmatpush.xpose.msra.mxu0 0.0
    %10099 = vmatpush.xpose.msra.mxu0 0.0
    %10100 = vmatpush.xpose.msra.mxu0 0.0
    %10101 = vmatpush.xpose.msra.mxu0 0.0
    %10102 = vmatpush.xpose.msra.mxu0 0.0
    %10103 = vmatpush.xpose.msra.mxu0 0.0
    %10104 = vmatpush.xpose.msra.mxu0 0.0
    %10105 = vmatpush.xpose.msra.mxu0 0.0
    %10106 = vmatpush.xpose.msra.mxu0 0.0
    %v10107 = vand.u32 %v492, 4294901760
    %10108 = vmatpush.xpose.msra.mxu0 %v10107
    %v10109 = vand.u32 %v362, 4294901760
    %v10110 = vsub.f32 %v362, %v10109
    %v10111 = vand.u32 %v10110, 4294901760
    %10112 = vmatmul.f32.gmra.mxu0 %v10111
    %v10113 = vpop.f32.mrf.mxu0
    %v10114 = vadd.f32 %v10090, %v10113
    %10115 = vdwg.mxu0
    %10116 = vmatpush.xpose.msra.mxu0 0.0
    %10117 = vmatpush.xpose.msra.mxu0 0.0
    %10118 = vmatpush.xpose.msra.mxu0 0.0
    %10119 = vmatpush.xpose.msra.mxu0 0.0
    %10120 = vmatpush.xpose.msra.mxu0 0.0
    %10121 = vmatpush.xpose.msra.mxu0 0.0
    %10122 = vmatpush.xpose.msra.mxu0 0.0
    %10123 = vmatpush.xpose.msra.mxu0 0.0
    %10124 = vmatpush.xpose.msra.mxu0 0.0
    %10125 = vmatpush.xpose.msra.mxu0 0.0
    %10126 = vmatpush.xpose.msra.mxu0 0.0
    %10127 = vmatpush.xpose.msra.mxu0 0.0
    %10128 = vmatpush.xpose.msra.mxu0 0.0
    %10129 = vmatpush.xpose.msra.mxu0 0.0
    %10130 = vmatpush.xpose.msra.mxu0 0.0
    %v10131 = vand.u32 %v492, 4294901760
    %v10132 = vsub.f32 %v492, %v10131
    %v10133 = vand.u32 %v10132, 4294901760
    %10134 = vmatpush.xpose.msra.mxu0 %v10133
    %v10135 = vand.u32 %v362, 4294901760
    %10136 = vmatmul.f32.gmra.mxu0 %v10135
    %v10137 = vpop.f32.mrf.mxu0
    %v10138 = vadd.f32 %v10114, %v10137
    %10139 = vdwg.mxu0
    %10140 = vmatpush.xpose.msra.mxu0 0.0
    %10141 = vmatpush.xpose.msra.mxu0 0.0
    %10142 = vmatpush.xpose.msra.mxu0 0.0
    %10143 = vmatpush.xpose.msra.mxu0 0.0
    %10144 = vmatpush.xpose.msra.mxu0 0.0
    %10145 = vmatpush.xpose.msra.mxu0 0.0
    %10146 = vmatpush.xpose.msra.mxu0 0.0
    %10147 = vmatpush.xpose.msra.mxu0 0.0
    %10148 = vmatpush.xpose.msra.mxu0 0.0
    %10149 = vmatpush.xpose.msra.mxu0 0.0
    %10150 = vmatpush.xpose.msra.mxu0 0.0
    %10151 = vmatpush.xpose.msra.mxu0 0.0
    %10152 = vmatpush.xpose.msra.mxu0 0.0
    %10153 = vmatpush.xpose.msra.mxu0 0.0
    %10154 = vmatpush.xpose.msra.mxu0 0.0
    %v10155 = vand.u32 %v492, 4294901760
    %10156 = vmatpush.xpose.msra.mxu0 %v10155
    %v10157 = vand.u32 %v362, 4294901760
    %10158 = vmatmul.f32.gmra.mxu0 %v10157
    %v10159 = vpop.f32.mrf.mxu0
    %v10160 = vadd.f32 %v10138, %v10159
    %10161 = vdwg.mxu0
    %10162 = vmatpush.xpose.msra.mxu0 0.0
    %10163 = vmatpush.xpose.msra.mxu0 0.0
    %10164 = vmatpush.xpose.msra.mxu0 0.0
    %10165 = vmatpush.xpose.msra.mxu0 0.0
    %10166 = vmatpush.xpose.msra.mxu0 0.0
    %10167 = vmatpush.xpose.msra.mxu0 0.0
    %10168 = vmatpush.xpose.msra.mxu0 0.0
    %10169 = vmatpush.xpose.msra.mxu0 0.0
    %10170 = vmatpush.xpose.msra.mxu0 0.0
    %10171 = vmatpush.xpose.msra.mxu0 0.0
    %10172 = vmatpush.xpose.msra.mxu0 0.0
    %10173 = vmatpush.xpose.msra.mxu0 0.0
    %10174 = vmatpush.xpose.msra.mxu0 0.0
    %10175 = vmatpush.xpose.msra.mxu0 0.0
    %10176 = vmatpush.xpose.msra.mxu0 0.0
    %v10177 = vand.u32 %v493, 4294901760
    %10178 = vmatpush.xpose.msra.mxu0 %v10177
    %v10179 = vand.u32 %v363, 4294901760
    %v10180 = vsub.f32 %v363, %v10179
    %v10181 = vand.u32 %v10180, 4294901760
    %v10182 = vsub.f32 %v10180, %v10181
    %v10183 = vand.u32 %v10182, 4294901760
    %10184 = vmatmul.f32.gmra.mxu0 %v10183
    %v10185 = vpop.f32.mrf.mxu0
    %v10186 = vadd.f32 %v10160, %v10185
    %10187 = vdwg.mxu0
    %10188 = vmatpush.xpose.msra.mxu0 0.0
    %10189 = vmatpush.xpose.msra.mxu0 0.0
    %10190 = vmatpush.xpose.msra.mxu0 0.0
    %10191 = vmatpush.xpose.msra.mxu0 0.0
    %10192 = vmatpush.xpose.msra.mxu0 0.0
    %10193 = vmatpush.xpose.msra.mxu0 0.0
    %10194 = vmatpush.xpose.msra.mxu0 0.0
    %10195 = vmatpush.xpose.msra.mxu0 0.0
    %10196 = vmatpush.xpose.msra.mxu0 0.0
    %10197 = vmatpush.xpose.msra.mxu0 0.0
    %10198 = vmatpush.xpose.msra.mxu0 0.0
    %10199 = vmatpush.xpose.msra.mxu0 0.0
    %10200 = vmatpush.xpose.msra.mxu0 0.0
    %10201 = vmatpush.xpose.msra.mxu0 0.0
    %10202 = vmatpush.xpose.msra.mxu0 0.0
    %v10203 = vand.u32 %v493, 4294901760
    %v10204 = vsub.f32 %v493, %v10203
    %v10205 = vand.u32 %v10204, 4294901760
    %v10206 = vsub.f32 %v10204, %v10205
    %v10207 = vand.u32 %v10206, 4294901760
    %10208 = vmatpush.xpose.msra.mxu0 %v10207
    %v10209 = vand.u32 %v363, 4294901760
    %10210 = vmatmul.f32.gmra.mxu0 %v10209
    %v10211 = vpop.f32.mrf.mxu0
    %v10212 = vadd.f32 %v10186, %v10211
    %10213 = vdwg.mxu0
    %10214 = vmatpush.xpose.msra.mxu0 0.0
    %10215 = vmatpush.xpose.msra.mxu0 0.0
    %10216 = vmatpush.xpose.msra.mxu0 0.0
    %10217 = vmatpush.xpose.msra.mxu0 0.0
    %10218 = vmatpush.xpose.msra.mxu0 0.0
    %10219 = vmatpush.xpose.msra.mxu0 0.0
    %10220 = vmatpush.xpose.msra.mxu0 0.0
    %10221 = vmatpush.xpose.msra.mxu0 0.0
    %10222 = vmatpush.xpose.msra.mxu0 0.0
    %10223 = vmatpush.xpose.msra.mxu0 0.0
    %10224 = vmatpush.xpose.msra.mxu0 0.0
    %10225 = vmatpush.xpose.msra.mxu0 0.0
    %10226 = vmatpush.xpose.msra.mxu0 0.0
    %10227 = vmatpush.xpose.msra.mxu0 0.0
    %10228 = vmatpush.xpose.msra.mxu0 0.0
    %v10229 = vand.u32 %v493, 4294901760
    %v10230 = vsub.f32 %v493, %v10229
    %10231 = vmatpush.xpose.msra.mxu0 %v10230
    %v10232 = vand.u32 %v363, 4294901760
    %v10233 = vsub.f32 %v363, %v10232
    %10234 = vmatmul.f32.gmra.mxu0 %v10233
    %v10235 = vpop.f32.mrf.mxu0
    %v10236 = vadd.f32 %v10212, %v10235
    %10237 = vdwg.mxu0
    %10238 = vmatpush.xpose.msra.mxu0 0.0
    %10239 = vmatpush.xpose.msra.mxu0 0.0
    %10240 = vmatpush.xpose.msra.mxu0 0.0
    %10241 = vmatpush.xpose.msra.mxu0 0.0
    %10242 = vmatpush.xpose.msra.mxu0 0.0
    %10243 = vmatpush.xpose.msra.mxu0 0.0
    %10244 = vmatpush.xpose.msra.mxu0 0.0
    %10245 = vmatpush.xpose.msra.mxu0 0.0
    %10246 = vmatpush.xpose.msra.mxu0 0.0
    %10247 = vmatpush.xpose.msra.mxu0 0.0
    %10248 = vmatpush.xpose.msra.mxu0 0.0
    %10249 = vmatpush.xpose.msra.mxu0 0.0
    %10250 = vmatpush.xpose.msra.mxu0 0.0
    %10251 = vmatpush.xpose.msra.mxu0 0.0
    %10252 = vmatpush.xpose.msra.mxu0 0.0
    %v10253 = vand.u32 %v493, 4294901760
    %10254 = vmatpush.xpose.msra.mxu0 %v10253
    %v10255 = vand.u32 %v363, 4294901760
    %v10256 = vsub.f32 %v363, %v10255
    %v10257 = vand.u32 %v10256, 4294901760
    %10258 = vmatmul.f32.gmra.mxu0 %v10257
    %v10259 = vpop.f32.mrf.mxu0
    %v10260 = vadd.f32 %v10236, %v10259
    %10261 = vdwg.mxu0
    %10262 = vmatpush.xpose.msra.mxu0 0.0
    %10263 = vmatpush.xpose.msra.mxu0 0.0
    %10264 = vmatpush.xpose.msra.mxu0 0.0
    %10265 = vmatpush.xpose.msra.mxu0 0.0
    %10266 = vmatpush.xpose.msra.mxu0 0.0
    %10267 = vmatpush.xpose.msra.mxu0 0.0
    %10268 = vmatpush.xpose.msra.mxu0 0.0
    %10269 = vmatpush.xpose.msra.mxu0 0.0
    %10270 = vmatpush.xpose.msra.mxu0 0.0
    %10271 = vmatpush.xpose.msra.mxu0 0.0
    %10272 = vmatpush.xpose.msra.mxu0 0.0
    %10273 = vmatpush.xpose.msra.mxu0 0.0
    %10274 = vmatpush.xpose.msra.mxu0 0.0
    %10275 = vmatpush.xpose.msra.mxu0 0.0
    %10276 = vmatpush.xpose.msra.mxu0 0.0
    %v10277 = vand.u32 %v493, 4294901760
    %v10278 = vsub.f32 %v493, %v10277
    %v10279 = vand.u32 %v10278, 4294901760
    %10280 = vmatpush.xpose.msra.mxu0 %v10279
    %v10281 = vand.u32 %v363, 4294901760
    %10282 = vmatmul.f32.gmra.mxu0 %v10281
    %v10283 = vpop.f32.mrf.mxu0
    %v10284 = vadd.f32 %v10260, %v10283
    %10285 = vdwg.mxu0
    %10286 = vmatpush.xpose.msra.mxu0 0.0
    %10287 = vmatpush.xpose.msra.mxu0 0.0
    %10288 = vmatpush.xpose.msra.mxu0 0.0
    %10289 = vmatpush.xpose.msra.mxu0 0.0
    %10290 = vmatpush.xpose.msra.mxu0 0.0
    %10291 = vmatpush.xpose.msra.mxu0 0.0
    %10292 = vmatpush.xpose.msra.mxu0 0.0
    %10293 = vmatpush.xpose.msra.mxu0 0.0
    %10294 = vmatpush.xpose.msra.mxu0 0.0
    %10295 = vmatpush.xpose.msra.mxu0 0.0
    %10296 = vmatpush.xpose.msra.mxu0 0.0
    %10297 = vmatpush.xpose.msra.mxu0 0.0
    %10298 = vmatpush.xpose.msra.mxu0 0.0
    %10299 = vmatpush.xpose.msra.mxu0 0.0
    %10300 = vmatpush.xpose.msra.mxu0 0.0
    %v10301 = vand.u32 %v493, 4294901760
    %10302 = vmatpush.xpose.msra.mxu0 %v10301
    %v10303 = vand.u32 %v363, 4294901760
    %10304 = vmatmul.f32.gmra.mxu0 %v10303
    %v10305 = vpop.f32.mrf.mxu0
    %v10306 = vadd.f32 %v10284, %v10305
    %10307 = vdwg.mxu0
    %10308 = vmatpush.xpose.msra.mxu0 0.0
    %10309 = vmatpush.xpose.msra.mxu0 0.0
    %10310 = vmatpush.xpose.msra.mxu0 0.0
    %10311 = vmatpush.xpose.msra.mxu0 0.0
    %10312 = vmatpush.xpose.msra.mxu0 0.0
    %10313 = vmatpush.xpose.msra.mxu0 0.0
    %10314 = vmatpush.xpose.msra.mxu0 0.0
    %10315 = vmatpush.xpose.msra.mxu0 0.0
    %10316 = vmatpush.xpose.msra.mxu0 0.0
    %10317 = vmatpush.xpose.msra.mxu0 0.0
    %10318 = vmatpush.xpose.msra.mxu0 0.0
    %10319 = vmatpush.xpose.msra.mxu0 0.0
    %10320 = vmatpush.xpose.msra.mxu0 0.0
    %10321 = vmatpush.xpose.msra.mxu0 0.0
    %10322 = vmatpush.xpose.msra.mxu0 0.0
    %v10323 = vand.u32 %v494, 4294901760
    %10324 = vmatpush.xpose.msra.mxu0 %v10323
    %v10325 = vand.u32 %v364, 4294901760
    %v10326 = vsub.f32 %v364, %v10325
    %v10327 = vand.u32 %v10326, 4294901760
    %v10328 = vsub.f32 %v10326, %v10327
    %v10329 = vand.u32 %v10328, 4294901760
    %10330 = vmatmul.f32.gmra.mxu0 %v10329
    %v10331 = vpop.f32.mrf.mxu0
    %v10332 = vadd.f32 %v10306, %v10331
    %10333 = vdwg.mxu0
    %10334 = vmatpush.xpose.msra.mxu0 0.0
    %10335 = vmatpush.xpose.msra.mxu0 0.0
    %10336 = vmatpush.xpose.msra.mxu0 0.0
    %10337 = vmatpush.xpose.msra.mxu0 0.0
    %10338 = vmatpush.xpose.msra.mxu0 0.0
    %10339 = vmatpush.xpose.msra.mxu0 0.0
    %10340 = vmatpush.xpose.msra.mxu0 0.0
    %10341 = vmatpush.xpose.msra.mxu0 0.0
    %10342 = vmatpush.xpose.msra.mxu0 0.0
    %10343 = vmatpush.xpose.msra.mxu0 0.0
    %10344 = vmatpush.xpose.msra.mxu0 0.0
    %10345 = vmatpush.xpose.msra.mxu0 0.0
    %10346 = vmatpush.xpose.msra.mxu0 0.0
    %10347 = vmatpush.xpose.msra.mxu0 0.0
    %10348 = vmatpush.xpose.msra.mxu0 0.0
    %v10349 = vand.u32 %v494, 4294901760
    %v10350 = vsub.f32 %v494, %v10349
    %v10351 = vand.u32 %v10350, 4294901760
    %v10352 = vsub.f32 %v10350, %v10351
    %v10353 = vand.u32 %v10352, 4294901760
    %10354 = vmatpush.xpose.msra.mxu0 %v10353
    %v10355 = vand.u32 %v364, 4294901760
    %10356 = vmatmul.f32.gmra.mxu0 %v10355
    %v10357 = vpop.f32.mrf.mxu0
    %v10358 = vadd.f32 %v10332, %v10357
    %10359 = vdwg.mxu0
    %10360 = vmatpush.xpose.msra.mxu0 0.0
    %10361 = vmatpush.xpose.msra.mxu0 0.0
    %10362 = vmatpush.xpose.msra.mxu0 0.0
    %10363 = vmatpush.xpose.msra.mxu0 0.0
    %10364 = vmatpush.xpose.msra.mxu0 0.0
    %10365 = vmatpush.xpose.msra.mxu0 0.0
    %10366 = vmatpush.xpose.msra.mxu0 0.0
    %10367 = vmatpush.xpose.msra.mxu0 0.0
    %10368 = vmatpush.xpose.msra.mxu0 0.0
    %10369 = vmatpush.xpose.msra.mxu0 0.0
    %10370 = vmatpush.xpose.msra.mxu0 0.0
    %10371 = vmatpush.xpose.msra.mxu0 0.0
    %10372 = vmatpush.xpose.msra.mxu0 0.0
    %10373 = vmatpush.xpose.msra.mxu0 0.0
    %10374 = vmatpush.xpose.msra.mxu0 0.0
    %v10375 = vand.u32 %v494, 4294901760
    %v10376 = vsub.f32 %v494, %v10375
    %10377 = vmatpush.xpose.msra.mxu0 %v10376
    %v10378 = vand.u32 %v364, 4294901760
    %v10379 = vsub.f32 %v364, %v10378
    %10380 = vmatmul.f32.gmra.mxu0 %v10379
    %v10381 = vpop.f32.mrf.mxu0
    %v10382 = vadd.f32 %v10358, %v10381
    %10383 = vdwg.mxu0
    %10384 = vmatpush.xpose.msra.mxu0 0.0
    %10385 = vmatpush.xpose.msra.mxu0 0.0
    %10386 = vmatpush.xpose.msra.mxu0 0.0
    %10387 = vmatpush.xpose.msra.mxu0 0.0
    %10388 = vmatpush.xpose.msra.mxu0 0.0
    %10389 = vmatpush.xpose.msra.mxu0 0.0
    %10390 = vmatpush.xpose.msra.mxu0 0.0
    %10391 = vmatpush.xpose.msra.mxu0 0.0
    %10392 = vmatpush.xpose.msra.mxu0 0.0
    %10393 = vmatpush.xpose.msra.mxu0 0.0
    %10394 = vmatpush.xpose.msra.mxu0 0.0
    %10395 = vmatpush.xpose.msra.mxu0 0.0
    %10396 = vmatpush.xpose.msra.mxu0 0.0
    %10397 = vmatpush.xpose.msra.mxu0 0.0
    %10398 = vmatpush.xpose.msra.mxu0 0.0
    %v10399 = vand.u32 %v494, 4294901760
    %10400 = vmatpush.xpose.msra.mxu0 %v10399
    %v10401 = vand.u32 %v364, 4294901760
    %v10402 = vsub.f32 %v364, %v10401
    %v10403 = vand.u32 %v10402, 4294901760
    %10404 = vmatmul.f32.gmra.mxu0 %v10403
    %v10405 = vpop.f32.mrf.mxu0
    %v10406 = vadd.f32 %v10382, %v10405
    %10407 = vdwg.mxu0
    %10408 = vmatpush.xpose.msra.mxu0 0.0
    %10409 = vmatpush.xpose.msra.mxu0 0.0
    %10410 = vmatpush.xpose.msra.mxu0 0.0
    %10411 = vmatpush.xpose.msra.mxu0 0.0
    %10412 = vmatpush.xpose.msra.mxu0 0.0
    %10413 = vmatpush.xpose.msra.mxu0 0.0
    %10414 = vmatpush.xpose.msra.mxu0 0.0
    %10415 = vmatpush.xpose.msra.mxu0 0.0
    %10416 = vmatpush.xpose.msra.mxu0 0.0
    %10417 = vmatpush.xpose.msra.mxu0 0.0
    %10418 = vmatpush.xpose.msra.mxu0 0.0
    %10419 = vmatpush.xpose.msra.mxu0 0.0
    %10420 = vmatpush.xpose.msra.mxu0 0.0
    %10421 = vmatpush.xpose.msra.mxu0 0.0
    %10422 = vmatpush.xpose.msra.mxu0 0.0
    %v10423 = vand.u32 %v494, 4294901760
    %v10424 = vsub.f32 %v494, %v10423
    %v10425 = vand.u32 %v10424, 4294901760
    %10426 = vmatpush.xpose.msra.mxu0 %v10425
    %v10427 = vand.u32 %v364, 4294901760
    %10428 = vmatmul.f32.gmra.mxu0 %v10427
    %v10429 = vpop.f32.mrf.mxu0
    %v10430 = vadd.f32 %v10406, %v10429
    %10431 = vdwg.mxu0
    %10432 = vmatpush.xpose.msra.mxu0 0.0
    %10433 = vmatpush.xpose.msra.mxu0 0.0
    %10434 = vmatpush.xpose.msra.mxu0 0.0
    %10435 = vmatpush.xpose.msra.mxu0 0.0
    %10436 = vmatpush.xpose.msra.mxu0 0.0
    %10437 = vmatpush.xpose.msra.mxu0 0.0
    %10438 = vmatpush.xpose.msra.mxu0 0.0
    %10439 = vmatpush.xpose.msra.mxu0 0.0
    %10440 = vmatpush.xpose.msra.mxu0 0.0
    %10441 = vmatpush.xpose.msra.mxu0 0.0
    %10442 = vmatpush.xpose.msra.mxu0 0.0
    %10443 = vmatpush.xpose.msra.mxu0 0.0
    %10444 = vmatpush.xpose.msra.mxu0 0.0
    %10445 = vmatpush.xpose.msra.mxu0 0.0
    %10446 = vmatpush.xpose.msra.mxu0 0.0
    %v10447 = vand.u32 %v494, 4294901760
    %10448 = vmatpush.xpose.msra.mxu0 %v10447
    %v10449 = vand.u32 %v364, 4294901760
    %10450 = vmatmul.f32.gmra.mxu0 %v10449
    %v10451 = vpop.f32.mrf.mxu0
    %v10452 = vadd.f32 %v10430, %v10451
    %10453 = vdwg.mxu0
    %v10454 = vadd.f32 %v963, %v10452
    %vm10455 = vcmask 64512
    %10456 = vst.msk [vmem:[#allocation8] sm:$0xff] %vm10455, %v10454
    // Predicated region
    $region30: #{tpu_custom_call.1} parent=1 // pred_check
      _
    $region31: #{tpu_custom_call.1} parent=1 // pred_check_branch
      %10458 = sbr.rel (0) target = $region33
    $region32: #{tpu_custom_call.1} parent=1 // pred_region
      %10460 = vsyncadd [#allocation4], 0
      %s10462 = sshll.u32 [#allocation8], 4
      %s10463 = int_to_ptr.vmem [resolvable:$true] %s10462
      %s10464 = sshll.u32 %s3, 4
      %s10465 = int_to_ptr.hbm [resolvable:$true] %s10464
      %10467 = dma.vmem_to_hbm [thread:$0]  %s10463, 128, %s10465, [#allocation4]
    $region33: #{tpu_custom_call.1} parent=1 // pred_fallthru
      _
    // Predicated region
    $region34: #{tpu_custom_call.1} parent=1 // pred_check
      _
    $region35: #{tpu_custom_call.1} parent=1 // pred_check_branch
      %10469 = sbr.rel (0) target = $region37
    $region36: #{tpu_custom_call.1} parent=1 // pred_region
      _
    $region37: #{tpu_custom_call.1} parent=1 // pred_fallthru
      _
    // Predicated region
    $region38: #{tpu_custom_call.1} parent=1 // pred_check
      _
    $region39: #{tpu_custom_call.1} parent=1 // pred_check_branch
      %10471 = sbr.rel (0) target = $region41
    $region40: #{tpu_custom_call.1} parent=1 // pred_region
      _
    $region41: #{tpu_custom_call.1} parent=1 // pred_fallthru
      _
    // Predicated region
    $region42: #{tpu_custom_call.1} parent=1 // pred_check
      _
    $region43: #{tpu_custom_call.1} parent=1 // pred_check_branch
      %10473 = sbr.rel (0) target = $region45
    $region44: #{tpu_custom_call.1} parent=1 // pred_region
      _
    $region45: #{tpu_custom_call.1} parent=1 // pred_fallthru
      _
    // Predicated region
    $region46: #{tpu_custom_call.1} parent=1 // pred_check
      _
    $region47: #{tpu_custom_call.1} parent=1 // pred_check_branch
      %10475 = sbr.rel (0) target = $region49
    $region48: #{tpu_custom_call.1} parent=1 // pred_region
      %10477 = dma.done [#allocation4], 128
    $region49: #{tpu_custom_call.1} parent=1 // pred_fallthru
      _
    // Predicated region
    $region50: #{tpu_custom_call.1} parent=1 // pred_check
      _
    $region51: #{tpu_custom_call.1} parent=1 // pred_check_branch
      %10479 = sbr.rel (0) target = $region53
    $region52: #{tpu_custom_call.1} parent=1 // pred_region
      _
    $region53: #{tpu_custom_call.1} parent=1 // pred_fallthru
      _
    // Predicated region
    $region54: #{tpu_custom_call.1} parent=1 // pred_check
      _
    $region55: #{tpu_custom_call.1} parent=1 // pred_check_branch
      %10481 = sbr.rel (0) target = $region57
    $region56: #{tpu_custom_call.1} parent=1 // pred_region
      _
    $region57: #{tpu_custom_call.1} parent=1 // pred_fallthru
      _
    // Predicated region
    $region58: #{tpu_custom_call.1} parent=1 // pred_check
      _
    $region59: #{tpu_custom_call.1} parent=1 // pred_check_branch
      %10483 = sbr.rel (0) target = $region61
    $region60: #{tpu_custom_call.1} parent=1 // pred_region
      _
    $region61: #{tpu_custom_call.1} parent=1 // pred_fallthru
      _
    %10484 = vsyncpa [#allocation3], 1
    %10485 = vsyncpa [#allocation6], 1
    %10486 = vsyncpa [#allocation4], 1

</llo_original>
